<compile_context>
chip_gen: v6e
topology: v6e:2x2x1
jax: 0.10.0
libtpu: 0.0.40
codegen_flags: <defaults>
</compile_context>

<pallas_src>
import functools

import numpy as np
import jax
import jax.numpy as jnp
from jax import lax
from jax.experimental import pallas as pl
from jax.experimental.pallas import tpu as pltpu

# ----------------------- config -----------------------
N_VOCAB = 50
EMBED = 32          # unigram_embed_size
HIDDEN = 32         # rnn_hidden_size
N_LABELS = 8
BATCH = 2
MAXLEN = 8
SUBLANE = 8         # batch rows padded to one full sublane tile
LANE = 128          # tags output padded to one full lane tile (lane-dense single store)

VMEM_SPEC = pl.BlockSpec(memory_space=pltpu.MemorySpace.VMEM)


# ----------------------- fused kernel: BiLSTM + MLP + CRF NLL + Viterbi -----------------------
def _tagger_kernel(x_ref, maskc_ref, mask1_ref, oh_ref, ohlast_ref,
                   wcomb_ref, ball_ref, wrec_ref,
                   wmf_ref, wmb_ref, bm_ref, trans_ref, start_ref, end_ref,
                   loss_ref, tags_ref, *, n_real):
    TB = x_ref.shape[0]
    BP = ohlast_ref.shape[0]
    T = TB // BP
    H = wmf_ref.shape[0]
    L = trans_ref.shape[0]
    TW = tags_ref.shape[1]
    BIG = 2 ** 30

    trans = trans_ref[...]                    # (L, L)
    start = start_ref[...]                    # (1, L)
    end = end_ref[...]                        # (1, L)
    oh = oh_ref[...]                          # (T*BP, L) one-hot gold labels (pre-masked)
    mask1 = mask1_ref[...]                    # (T*BP, 1) validity mask at time t
    maskc = maskc_ref[...]                    # (T*BP, 2H) [fwd mask@t | bwd mask@T-1-t]

    # ---- hoisted input projection: one matmul covers both directions and all timesteps ----
    # gate-interleaved columns: [i_f, i_b, f_f, f_b, g_f, g_b, o_f, o_b], each block width H
    gx = (jnp.dot(x_ref[...], wcomb_ref[...], preferred_element_type=jnp.float32)
          + ball_ref[...])                    # (T*BP, 8H), bias broadcast once

    wrec = wrec_ref[...]                      # (2H, 8H) block-diagonal recurrent weights

    # ---- BiLSTM recurrence: ONE block-diagonal matmul per step drives both directions ----
    # state h = [hf | hb], c = [cf | cb]; fwd half is at time s, bwd half at time T-1-s.
    h = jnp.zeros((BP, 2 * H), jnp.float32)
    c = jnp.zeros((BP, 2 * H), jnp.float32)
    h_out = [None] * T                        # h_out[s][:, :H]=fwd@t=s, [:, H:]=bwd@t=T-1-s
    for s in range(T):
        r0, r1 = s * BP, (s + 1) * BP
        gates = gx[r0:r1, :] + jnp.dot(h, wrec, preferred_element_type=jnp.float32)  # (BP, 8H)
        i_all = jax.nn.sigmoid(gates[:, 0 * H:2 * H])   # PyTorch gate order i, f, g, o
        f_all = jax.nn.sigmoid(gates[:, 2 * H:4 * H])
        g_all = jnp.tanh(gates[:, 4 * H:6 * H])
        o_all = jax.nn.sigmoid(gates[:, 6 * H:8 * H])
        c_new = f_all * c + i_all * g_all
        h_new = o_all * jnp.tanh(c_new)
        mb = maskc[r0:r1, :] > 0.5                       # packed-sequence semantics
        h_out[s] = jnp.where(mb, h_new, 0.0)             # zero output at padding
        h = jnp.where(mb, h_new, h)                      # freeze state past sequence end
        c = jnp.where(mb, c_new, c)

    # ---- MLP (Linear 2H -> L, Identity): per-time logits stay in vregs, no scratch ----
    wm_f = wmf_ref[...]                        # (H, L)
    wm_b = wmb_ref[...]                        # (H, L)
    bm = bm_ref[...]                           # (1, L)
    logits = [None] * T
    for t in range(T):
        logits[t] = (jnp.dot(h_out[t][:, 0:H], wm_f, preferred_element_type=jnp.float32)
                     + jnp.dot(h_out[T - 1 - t][:, H:2 * H], wm_b,
                               preferred_element_type=jnp.float32)
                     + bm)                     # (BP, L)

    # ---- gold-path score (oh is pre-masked, so no extra mask multiplies needed) ----
    score_mat = start * oh[0:BP, :] + end * ohlast_ref[...]          # (BP, L)
    for t in range(T):
        score_mat = score_mat + logits[t] * oh[t * BP:(t + 1) * BP, :]
    rows = jnp.dot(oh, trans, preferred_element_type=jnp.float32)    # (T*BP, L)
    tmat = rows[0:(T - 1) * BP, :] * oh[BP:, :]                      # transition terms
    gold = (jnp.sum(jnp.sum(score_mat, axis=-1, keepdims=True), axis=0, keepdims=True)
            + jnp.sum(jnp.sum(tmat, axis=-1, keepdims=True), axis=0, keepdims=True))  # (1,1)

    # ---- fused CRF forward (log-partition) + Viterbi recursion ----
    trans_b = trans[None, :, :]                                      # hoisted broadcast
    io_prev = lax.broadcasted_iota(jnp.int32, (L, L), 0)[None, :, :]
    lane_io = lax.broadcasted_iota(jnp.int32, (BP, L), 1)

    alpha = start + logits[0]                                        # (BP, L) CRF forward
    v = alpha                                                        # (BP, L) Viterbi scores
    bps = [None] * T
    for t in range(1, T):
        logit_t = logits[t]
        keep = mask1[t * BP:(t + 1) * BP, :] > 0.5                   # (BP, 1) bool
        # CRF forward step
        inner_a = alpha[:, :, None] + trans_b + logit_t[:, None, :]  # (BP, L, L)
        ma = jnp.max(inner_a, axis=1, keepdims=True)
        na = (ma + jnp.log(jnp.sum(jnp.exp(inner_a - ma), axis=1, keepdims=True)))[:, 0, :]
        alpha = jnp.where(keep, na, alpha)
        # Viterbi step (argmax tie-break = smallest previous index, like torch argmax-first)
        inner_v = v[:, :, None] + trans_b
        mv = jnp.max(inner_v, axis=1, keepdims=True)
        bp_t = jnp.min(jnp.where(inner_v >= mv, io_prev, BIG), axis=1, keepdims=True)[:, 0, :]
        v = jnp.where(keep, mv[:, 0, :] + logit_t, v)
        bps[t] = jnp.where(keep, bp_t, lane_io)                      # identity bp at padding

    # log-partition with end transitions; padded batch rows masked out of the sum
    stops = alpha + end
    mx = jnp.max(stops, axis=-1, keepdims=True)
    log_z = mx + jnp.log(jnp.sum(jnp.exp(stops - mx), axis=-1, keepdims=True))   # (BP, 1)
    log_z = log_z * mask1[0:BP, :]
    logz_tot = jnp.sum(log_z, axis=0, keepdims=True)                             # (1, 1)

    loss_ref[...] = -(gold - logz_tot) * (1.0 / n_real)              # -log_likelihood / B

    # ---- Viterbi termination + backtrace: build (BP, TW) tag matrix in vregs, store once ----
    vfin = v + end
    fm = jnp.max(vfin, axis=-1, keepdims=True)
    cur = jnp.min(jnp.where(vfin >= fm, lane_io, BIG), axis=-1, keepdims=True)   # (BP, 1)
    col_io = lax.broadcasted_iota(jnp.int32, (BP, TW), 1)
    tags_acc = jnp.where(col_io == (T - 1), cur, 0)
    for t in range(T - 1, 0, -1):
        cur = jnp.sum(jnp.where(lane_io == cur, bps[t], 0), axis=-1, keepdims=True)
        tags_acc = jnp.where(col_io == (t - 1), cur, tags_acc)
    tags_ref[...] = tags_acc                                          # single lane-dense store


def _fused_tagger(x_comb, mask_comb, mask1, oh2d, oh_last, p, n_real, T, BP):
    tw = ((T + LANE - 1) // LANE) * LANE
    kernel = functools.partial(_tagger_kernel, n_real=n_real)
    return pl.pallas_call(
        kernel,
        out_shape=(jax.ShapeDtypeStruct((1, 1), jnp.float32),
                   jax.ShapeDtypeStruct((BP, tw), jnp.int32)),
        in_specs=[VMEM_SPEC] * 14,
        out_specs=(VMEM_SPEC, VMEM_SPEC),
    )(x_comb, mask_comb, mask1, oh2d, oh_last,
      p["w_comb"], p["b_all"], p["w_rec"],
      p["wm_f_T"], p["wm_b_T"], p["b_m"],
      p["crf_trans"], p["crf_start"], p["crf_end"])


# ----------------------- parameters (deterministic synthetic init) -----------------------
def _interleave_blockdiag(wf_T, wb_T, H):
    """wf_T/wb_T: (D, 4H) with gate col blocks [i|f|g|o] -> (2D, 8H) block-diag,
    gate-interleaved columns [i_f, i_b, f_f, f_b, g_f, g_b, o_f, o_b]."""
    Df, Db = wf_T.shape[0], wb_T.shape[0]
    out = jnp.zeros((Df + Db, 8 * H), jnp.float32)
    for k in range(4):
        out = out.at[0:Df, (2 * k) * H:(2 * k + 1) * H].set(wf_T[:, k * H:(k + 1) * H])
        out = out.at[Df:, (2 * k + 1) * H:(2 * k + 2) * H].set(wb_T[:, k * H:(k + 1) * H])
    return out


def _interleave_bias(bf, bb, H):
    out = jnp.zeros((1, 8 * H), jnp.float32)
    for k in range(4):
        out = out.at[0, (2 * k) * H:(2 * k + 1) * H].set(bf[k * H:(k + 1) * H])
        out = out.at[0, (2 * k + 1) * H:(2 * k + 2) * H].set(bb[k * H:(k + 1) * H])
    return out


def init_params(key):
    ks = jax.random.split(key, 12)

    def nrm(k, shape, s=0.1):
        return (s * jax.random.normal(k, shape)).astype(jnp.float32)

    H, E, L = HIDDEN, EMBED, N_LABELS
    p = {}
    p["embed"] = nrm(ks[0], (N_VOCAB, E), 0.5)
    # LSTM (PyTorch layout: W_ih (4H,E), W_hh (4H,H), gate order i,f,g,o)
    wihf, whhf = nrm(ks[1], (4 * H, E)), nrm(ks[2], (4 * H, H))
    bihf, bhhf = nrm(ks[3], (4 * H,)), nrm(ks[4], (4 * H,))
    wihb, whhb = nrm(ks[5], (4 * H, E)), nrm(ks[6], (4 * H, H))
    bihb, bhhb = nrm(ks[7], (4 * H,)), nrm(ks[8], (4 * H,))
    # fused block-diagonal, gate-interleaved projection weights
    p["w_comb"] = _interleave_blockdiag(wihf.T, wihb.T, H)          # (2E, 8H) input proj
    p["w_rec"] = _interleave_blockdiag(whhf.T, whhb.T, H)           # (2H, 8H) recurrent
    p["b_all"] = _interleave_bias(bihf + bhhf, bihb + bhhb, H)      # (1, 8H)
    # MLP: Linear(2H -> L), first H rows act on forward half, last H on backward half
    wm, bm = nrm(ks[9], (L, 2 * H)), nrm(ks[10], (L,))
    p["wm_f_T"] = wm[:, 0:H].T
    p["wm_b_T"] = wm[:, H:2 * H].T
    p["b_m"] = bm.reshape(1, L)
    # CRF
    kt, kst, ke = jax.random.split(ks[11], 3)
    p["crf_trans"] = nrm(kt, (L, L))
    p["crf_start"] = nrm(kst, (L,)).reshape(1, L)
    p["crf_end"] = nrm(ke, (L,)).reshape(1, L)
    return p


# ----------------------- forward (== RNNTagger.forward(us, ls)) -----------------------
@jax.jit
def _forward_device(params, tokens, labels, lengths):
    B, T = tokens.shape
    BP = ((B + SUBLANE - 1) // SUBLANE) * SUBLANE     # pad batch to a full sublane tile
    pad = BP - B
    tokens_p = jnp.pad(tokens, ((0, pad), (0, 0)))
    labels_p = jnp.pad(labels, ((0, pad), (0, 0)))
    lengths_p = jnp.pad(lengths, (0, pad))            # padded rows get length 0 (fully masked)

    # embedding lookup + time-major layout (XLA glue)
    xs = jnp.take(params["embed"], tokens_p, axis=0)                  # (BP, T, E)
    x_tm = jnp.transpose(xs, (1, 0, 2)).astype(jnp.float32)           # (T, BP, E)
    # combined input: [x_t | x_{T-1-t}] so one matmul feeds fwd and bwd gate pre-activations
    x_comb = jnp.concatenate([x_tm, x_tm[::-1, :, :]], axis=-1).reshape(T * BP, 2 * EMBED)

    mask_tm = (jnp.arange(T)[:, None] < lengths_p[None, :]).astype(jnp.float32)   # (T, BP)
    mask1 = mask_tm.reshape(T * BP, 1)
    mask_comb = jnp.concatenate(
        [jnp.broadcast_to(mask_tm[:, :, None], (T, BP, HIDDEN)),
         jnp.broadcast_to(mask_tm[::-1, :, None], (T, BP, HIDDEN))],
        axis=-1).reshape(T * BP, 2 * HIDDEN)

    # gold labels one-hot, pre-masked (invalid positions / padded rows are all-zero)
    oh_tm = jax.nn.one_hot(jnp.transpose(labels_p, (1, 0)), N_LABELS, dtype=jnp.float32)
    oh2d = (oh_tm * mask_tm[:, :, None]).reshape(T * BP, N_LABELS)

    last_idx = jnp.maximum(lengths_p - 1, 0)          # guard length==0 (padded rows)
    last_tags = labels_p[jnp.arange(BP), last_idx]
    batch_valid = (lengths_p > 0).astype(jnp.float32)
    oh_last = jax.nn.one_hot(last_tags, N_LABELS, dtype=jnp.float32) * batch_valid[:, None]

    loss, tags = _fused_tagger(x_comb, mask_comb, mask1, oh2d, oh_last, params, B, T, BP)
    return loss[0, 0], tags[:B, :T]


def rnn_tagger_forward(params, tokens, labels, lengths):
    """tokens/labels: (B, T) int32 padded batch-first; lengths: (B,) int32 (each >= 1).
    Returns (loss, ps) like the PyTorch module (ps = per-sample tag lists)."""
    loss, tags = _forward_device(params, tokens, labels, lengths)
    tags_np = np.asarray(tags)
    lens_np = np.asarray(lengths)
    # TODO(synk): k-best Viterbi (crf_top_k > 1) not implemented; module default path is top-1.
    ps = [tags_np[b, :int(lens_np[b])].tolist() for b in range(tags_np.shape[0])]
    return loss, ps


if __name__ == "__main__":
    key = jax.random.PRNGKey(0)
    kp, ktok, klab = jax.random.split(key, 3)
    params = init_params(kp)

    lengths = jnp.array([MAXLEN, MAXLEN - 2], dtype=jnp.int32)   # variable-length batch
    tokens = jax.random.randint(ktok, (BATCH, MAXLEN), 0, N_VOCAB, dtype=jnp.int32)
    labels = jax.random.randint(klab, (BATCH, MAXLEN), 0, N_LABELS, dtype=jnp.int32)
    pad_mask = (jnp.arange(MAXLEN)[None, :] < lengths[:, None])  # pad_sequence pads with 0
    tokens = jnp.where(pad_mask, tokens, 0)
    labels = jnp.where(pad_mask, labels, 0)

    loss, ps = rnn_tagger_forward(params, tokens, labels, lengths)
    loss = jax.block_until_ready(loss)
    assert np.isfinite(float(loss))
    assert len(ps) == BATCH
    assert len(ps[0]) == int(lengths[0]) and len(ps[1]) == int(lengths[1])
    assert all(0 <= t < N_LABELS for seq in ps for t in seq)
    print("KERNEL_OK")
</pallas_src>

<mosaic_0001>
module attributes {stable_mosaic.version = 11 : i64} {
  func.func @_tagger_kernel(%arg0: memref<64x64xf32, #tpu.memory_space<vmem>>, %arg1: memref<64x64xf32, #tpu.memory_space<vmem>>, %arg2: memref<64x1xf32, #tpu.memory_space<vmem>>, %arg3: memref<64x8xf32, #tpu.memory_space<vmem>>, %arg4: memref<8x8xf32, #tpu.memory_space<vmem>>, %arg5: memref<64x256xf32, #tpu.memory_space<vmem>>, %arg6: memref<1x256xf32, #tpu.memory_space<vmem>>, %arg7: memref<64x256xf32, #tpu.memory_space<vmem>>, %arg8: memref<32x8xf32, #tpu.memory_space<vmem>>, %arg9: memref<32x8xf32, #tpu.memory_space<vmem>>, %arg10: memref<1x8xf32, #tpu.memory_space<vmem>>, %arg11: memref<8x8xf32, #tpu.memory_space<vmem>>, %arg12: memref<1x8xf32, #tpu.memory_space<vmem>>, %arg13: memref<1x8xf32, #tpu.memory_space<vmem>>, %arg14: memref<1x1xf32, #tpu.memory_space<vmem>>, %arg15: memref<8x128xi32, #tpu.memory_space<vmem>>) attributes {dimension_semantics = [], scalar_prefetch = 0 : i64, scratch_operands = 0 : i64, tpu.core_type = #tpu.core_type<tc>} {
    %c0 = arith.constant 0 : index
    %c0_0 = arith.constant 0 : index
    %0 = vector.load %arg11[%c0, %c0_0] : memref<8x8xf32, #tpu.memory_space<vmem>>, vector<8x8xf32>
    %c0_1 = arith.constant 0 : index
    %c0_2 = arith.constant 0 : index
    %1 = vector.load %arg12[%c0_1, %c0_2] : memref<1x8xf32, #tpu.memory_space<vmem>>, vector<1x8xf32>
    %c0_3 = arith.constant 0 : index
    %c0_4 = arith.constant 0 : index
    %2 = vector.load %arg13[%c0_3, %c0_4] : memref<1x8xf32, #tpu.memory_space<vmem>>, vector<1x8xf32>
    %c0_5 = arith.constant 0 : index
    %c0_6 = arith.constant 0 : index
    %3 = vector.load %arg3[%c0_5, %c0_6] : memref<64x8xf32, #tpu.memory_space<vmem>>, vector<64x8xf32>
    %c0_7 = arith.constant 0 : index
    %c0_8 = arith.constant 0 : index
    %4 = vector.load %arg2[%c0_7, %c0_8] : memref<64x1xf32, #tpu.memory_space<vmem>>, vector<64x1xf32>
    %c0_9 = arith.constant 0 : index
    %c0_10 = arith.constant 0 : index
    %5 = vector.load %arg1[%c0_9, %c0_10] : memref<64x64xf32, #tpu.memory_space<vmem>>, vector<64x64xf32>
    %c0_11 = arith.constant 0 : index
    %c0_12 = arith.constant 0 : index
    %6 = vector.load %arg0[%c0_11, %c0_12] : memref<64x64xf32, #tpu.memory_space<vmem>>, vector<64x64xf32>
    %c0_13 = arith.constant 0 : index
    %c0_14 = arith.constant 0 : index
    %7 = vector.load %arg5[%c0_13, %c0_14] : memref<64x256xf32, #tpu.memory_space<vmem>>, vector<64x256xf32>
    %cst = arith.constant dense<0.000000e+00> : vector<64x256xf32>
    %8 = tpu.matmul %6, %7, %cst {dimension_numbers = #tpu.dot_dimension_numbers<[1], [0], [0], [1], [0, 0, 1, 1], [], []>} : vector<64x64xf32>, vector<64x256xf32>, vector<64x256xf32> -> vector<64x256xf32>
    %c0_15 = arith.constant 0 : index
    %c0_16 = arith.constant 0 : index
    %9 = vector.load %arg6[%c0_15, %c0_16] : memref<1x256xf32, #tpu.memory_space<vmem>>, vector<1x256xf32>
    %10 = vector.broadcast %9 : vector<1x256xf32> to vector<64x256xf32>
    %11 = arith.addf %8, %10 : vector<64x256xf32>
    %c0_17 = arith.constant 0 : index
    %c0_18 = arith.constant 0 : index
    %12 = vector.load %arg7[%c0_17, %c0_18] : memref<64x256xf32, #tpu.memory_space<vmem>>, vector<64x256xf32>
    %cst_19 = arith.constant 0.000000e+00 : f32
    %13 = vector.broadcast %cst_19 : f32 to vector<8x64xf32>
    %cst_20 = arith.constant 0.000000e+00 : f32
    %14 = vector.broadcast %cst_20 : f32 to vector<8x64xf32>
    %15 = vector.extract_strided_slice %11 {offsets = [0, 0], sizes = [8, 256], strides = [1, 1]} : vector<64x256xf32> to vector<8x256xf32>
    %cst_21 = arith.constant dense<0.000000e+00> : vector<8x256xf32>
    %16 = tpu.matmul %13, %12, %cst_21 {dimension_numbers = #tpu.dot_dimension_numbers<[1], [0], [0], [1], [0, 0, 1, 1], [], []>} : vector<8x64xf32>, vector<64x256xf32>, vector<8x256xf32> -> vector<8x256xf32>
    %17 = arith.addf %15, %16 : vector<8x256xf32>
    %18 = vector.extract_strided_slice %17 {offsets = [0, 0], sizes = [8, 64], strides = [1, 1]} : vector<8x256xf32> to vector<8x64xf32>
    %19 = arith.negf %18 : vector<8x64xf32>
    %20 = math.exp %19 : vector<8x64xf32>
    %cst_22 = arith.constant 1.000000e+00 : f32
    %21 = vector.broadcast %cst_22 : f32 to vector<8x64xf32>
    %22 = arith.addf %21, %20 : vector<8x64xf32>
    %23 = arith.divf %21, %22 : vector<8x64xf32>
    %24 = vector.extract_strided_slice %17 {offsets = [0, 64], sizes = [8, 64], strides = [1, 1]} : vector<8x256xf32> to vector<8x64xf32>
    %25 = arith.negf %24 : vector<8x64xf32>
    %26 = math.exp %25 : vector<8x64xf32>
    %cst_23 = arith.constant 1.000000e+00 : f32
    %27 = vector.broadcast %cst_23 : f32 to vector<8x64xf32>
    %28 = arith.addf %27, %26 : vector<8x64xf32>
    %29 = arith.divf %27, %28 : vector<8x64xf32>
    %30 = vector.extract_strided_slice %17 {offsets = [0, 128], sizes = [8, 64], strides = [1, 1]} : vector<8x256xf32> to vector<8x64xf32>
    %31 = math.tanh %30 : vector<8x64xf32>
    %32 = vector.extract_strided_slice %17 {offsets = [0, 192], sizes = [8, 64], strides = [1, 1]} : vector<8x256xf32> to vector<8x64xf32>
    %33 = arith.negf %32 : vector<8x64xf32>
    %34 = math.exp %33 : vector<8x64xf32>
    %cst_24 = arith.constant 1.000000e+00 : f32
    %35 = vector.broadcast %cst_24 : f32 to vector<8x64xf32>
    %36 = arith.addf %35, %34 : vector<8x64xf32>
    %37 = arith.divf %35, %36 : vector<8x64xf32>
    %38 = arith.mulf %29, %14 : vector<8x64xf32>
    %39 = arith.mulf %23, %31 : vector<8x64xf32>
    %40 = arith.addf %38, %39 : vector<8x64xf32>
    %41 = math.tanh %40 : vector<8x64xf32>
    %42 = arith.mulf %37, %41 : vector<8x64xf32>
    %43 = vector.extract_strided_slice %5 {offsets = [0, 0], sizes = [8, 64], strides = [1, 1]} : vector<64x64xf32> to vector<8x64xf32>
    %cst_25 = arith.constant 5.000000e-01 : f32
    %44 = vector.broadcast %cst_25 : f32 to vector<8x64xf32>
    %45 = arith.cmpf ogt, %43, %44 : vector<8x64xf32>
    %cst_26 = arith.constant 0.000000e+00 : f32
    %46 = vector.broadcast %cst_26 : f32 to vector<8x64xf32>
    %47 = arith.select %45, %42, %46 : vector<8x64xi1>, vector<8x64xf32>
    %48 = arith.select %45, %42, %13 : vector<8x64xi1>, vector<8x64xf32>
    %49 = arith.select %45, %40, %14 : vector<8x64xi1>, vector<8x64xf32>
    %50 = vector.extract_strided_slice %11 {offsets = [8, 0], sizes = [8, 256], strides = [1, 1]} : vector<64x256xf32> to vector<8x256xf32>
    %cst_27 = arith.constant dense<0.000000e+00> : vector<8x256xf32>
    %51 = tpu.matmul %48, %12, %cst_27 {dimension_numbers = #tpu.dot_dimension_numbers<[1], [0], [0], [1], [0, 0, 1, 1], [], []>} : vector<8x64xf32>, vector<64x256xf32>, vector<8x256xf32> -> vector<8x256xf32>
    %52 = arith.addf %50, %51 : vector<8x256xf32>
    %53 = vector.extract_strided_slice %52 {offsets = [0, 0], sizes = [8, 64], strides = [1, 1]} : vector<8x256xf32> to vector<8x64xf32>
    %54 = arith.negf %53 : vector<8x64xf32>
    %55 = math.exp %54 : vector<8x64xf32>
    %cst_28 = arith.constant 1.000000e+00 : f32
    %56 = vector.broadcast %cst_28 : f32 to vector<8x64xf32>
    %57 = arith.addf %56, %55 : vector<8x64xf32>
    %58 = arith.divf %56, %57 : vector<8x64xf32>
    %59 = vector.extract_strided_slice %52 {offsets = [0, 64], sizes = [8, 64], strides = [1, 1]} : vector<8x256xf32> to vector<8x64xf32>
    %60 = arith.negf %59 : vector<8x64xf32>
    %61 = math.exp %60 : vector<8x64xf32>
    %cst_29 = arith.constant 1.000000e+00 : f32
    %62 = vector.broadcast %cst_29 : f32 to vector<8x64xf32>
    %63 = arith.addf %62, %61 : vector<8x64xf32>
    %64 = arith.divf %62, %63 : vector<8x64xf32>
    %65 = vector.extract_strided_slice %52 {offsets = [0, 128], sizes = [8, 64], strides = [1, 1]} : vector<8x256xf32> to vector<8x64xf32>
    %66 = math.tanh %65 : vector<8x64xf32>
    %67 = vector.extract_strided_slice %52 {offsets = [0, 192], sizes = [8, 64], strides = [1, 1]} : vector<8x256xf32> to vector<8x64xf32>
    %68 = arith.negf %67 : vector<8x64xf32>
    %69 = math.exp %68 : vector<8x64xf32>
    %cst_30 = arith.constant 1.000000e+00 : f32
    %70 = vector.broadcast %cst_30 : f32 to vector<8x64xf32>
    %71 = arith.addf %70, %69 : vector<8x64xf32>
    %72 = arith.divf %70, %71 : vector<8x64xf32>
    %73 = arith.mulf %64, %49 : vector<8x64xf32>
    %74 = arith.mulf %58, %66 : vector<8x64xf32>
    %75 = arith.addf %73, %74 : vector<8x64xf32>
    %76 = math.tanh %75 : vector<8x64xf32>
    %77 = arith.mulf %72, %76 : vector<8x64xf32>
    %78 = vector.extract_strided_slice %5 {offsets = [8, 0], sizes = [8, 64], strides = [1, 1]} : vector<64x64xf32> to vector<8x64xf32>
    %cst_31 = arith.constant 5.000000e-01 : f32
    %79 = vector.broadcast %cst_31 : f32 to vector<8x64xf32>
    %80 = arith.cmpf ogt, %78, %79 : vector<8x64xf32>
    %cst_32 = arith.constant 0.000000e+00 : f32
    %81 = vector.broadcast %cst_32 : f32 to vector<8x64xf32>
    %82 = arith.select %80, %77, %81 : vector<8x64xi1>, vector<8x64xf32>
    %83 = arith.select %80, %77, %48 : vector<8x64xi1>, vector<8x64xf32>
    %84 = arith.select %80, %75, %49 : vector<8x64xi1>, vector<8x64xf32>
    %85 = vector.extract_strided_slice %11 {offsets = [16, 0], sizes = [8, 256], strides = [1, 1]} : vector<64x256xf32> to vector<8x256xf32>
    %cst_33 = arith.constant dense<0.000000e+00> : vector<8x256xf32>
    %86 = tpu.matmul %83, %12, %cst_33 {dimension_numbers = #tpu.dot_dimension_numbers<[1], [0], [0], [1], [0, 0, 1, 1], [], []>} : vector<8x64xf32>, vector<64x256xf32>, vector<8x256xf32> -> vector<8x256xf32>
    %87 = arith.addf %85, %86 : vector<8x256xf32>
    %88 = vector.extract_strided_slice %87 {offsets = [0, 0], sizes = [8, 64], strides = [1, 1]} : vector<8x256xf32> to vector<8x64xf32>
    %89 = arith.negf %88 : vector<8x64xf32>
    %90 = math.exp %89 : vector<8x64xf32>
    %cst_34 = arith.constant 1.000000e+00 : f32
    %91 = vector.broadcast %cst_34 : f32 to vector<8x64xf32>
    %92 = arith.addf %91, %90 : vector<8x64xf32>
    %93 = arith.divf %91, %92 : vector<8x64xf32>
    %94 = vector.extract_strided_slice %87 {offsets = [0, 64], sizes = [8, 64], strides = [1, 1]} : vector<8x256xf32> to vector<8x64xf32>
    %95 = arith.negf %94 : vector<8x64xf32>
    %96 = math.exp %95 : vector<8x64xf32>
    %cst_35 = arith.constant 1.000000e+00 : f32
    %97 = vector.broadcast %cst_35 : f32 to vector<8x64xf32>
    %98 = arith.addf %97, %96 : vector<8x64xf32>
    %99 = arith.divf %97, %98 : vector<8x64xf32>
    %100 = vector.extract_strided_slice %87 {offsets = [0, 128], sizes = [8, 64], strides = [1, 1]} : vector<8x256xf32> to vector<8x64xf32>
    %101 = math.tanh %100 : vector<8x64xf32>
    %102 = vector.extract_strided_slice %87 {offsets = [0, 192], sizes = [8, 64], strides = [1, 1]} : vector<8x256xf32> to vector<8x64xf32>
    %103 = arith.negf %102 : vector<8x64xf32>
    %104 = math.exp %103 : vector<8x64xf32>
    %cst_36 = arith.constant 1.000000e+00 : f32
    %105 = vector.broadcast %cst_36 : f32 to vector<8x64xf32>
    %106 = arith.addf %105, %104 : vector<8x64xf32>
    %107 = arith.divf %105, %106 : vector<8x64xf32>
    %108 = arith.mulf %99, %84 : vector<8x64xf32>
    %109 = arith.mulf %93, %101 : vector<8x64xf32>
    %110 = arith.addf %108, %109 : vector<8x64xf32>
    %111 = math.tanh %110 : vector<8x64xf32>
    %112 = arith.mulf %107, %111 : vector<8x64xf32>
    %113 = vector.extract_strided_slice %5 {offsets = [16, 0], sizes = [8, 64], strides = [1, 1]} : vector<64x64xf32> to vector<8x64xf32>
    %cst_37 = arith.constant 5.000000e-01 : f32
    %114 = vector.broadcast %cst_37 : f32 to vector<8x64xf32>
    %115 = arith.cmpf ogt, %113, %114 : vector<8x64xf32>
    %cst_38 = arith.constant 0.000000e+00 : f32
    %116 = vector.broadcast %cst_38 : f32 to vector<8x64xf32>
    %117 = arith.select %115, %112, %116 : vector<8x64xi1>, vector<8x64xf32>
    %118 = arith.select %115, %112, %83 : vector<8x64xi1>, vector<8x64xf32>
    %119 = arith.select %115, %110, %84 : vector<8x64xi1>, vector<8x64xf32>
    %120 = vector.extract_strided_slice %11 {offsets = [24, 0], sizes = [8, 256], strides = [1, 1]} : vector<64x256xf32> to vector<8x256xf32>
    %cst_39 = arith.constant dense<0.000000e+00> : vector<8x256xf32>
    %121 = tpu.matmul %118, %12, %cst_39 {dimension_numbers = #tpu.dot_dimension_numbers<[1], [0], [0], [1], [0, 0, 1, 1], [], []>} : vector<8x64xf32>, vector<64x256xf32>, vector<8x256xf32> -> vector<8x256xf32>
    %122 = arith.addf %120, %121 : vector<8x256xf32>
    %123 = vector.extract_strided_slice %122 {offsets = [0, 0], sizes = [8, 64], strides = [1, 1]} : vector<8x256xf32> to vector<8x64xf32>
    %124 = arith.negf %123 : vector<8x64xf32>
    %125 = math.exp %124 : vector<8x64xf32>
    %cst_40 = arith.constant 1.000000e+00 : f32
    %126 = vector.broadcast %cst_40 : f32 to vector<8x64xf32>
    %127 = arith.addf %126, %125 : vector<8x64xf32>
    %128 = arith.divf %126, %127 : vector<8x64xf32>
    %129 = vector.extract_strided_slice %122 {offsets = [0, 64], sizes = [8, 64], strides = [1, 1]} : vector<8x256xf32> to vector<8x64xf32>
    %130 = arith.negf %129 : vector<8x64xf32>
    %131 = math.exp %130 : vector<8x64xf32>
    %cst_41 = arith.constant 1.000000e+00 : f32
    %132 = vector.broadcast %cst_41 : f32 to vector<8x64xf32>
    %133 = arith.addf %132, %131 : vector<8x64xf32>
    %134 = arith.divf %132, %133 : vector<8x64xf32>
    %135 = vector.extract_strided_slice %122 {offsets = [0, 128], sizes = [8, 64], strides = [1, 1]} : vector<8x256xf32> to vector<8x64xf32>
    %136 = math.tanh %135 : vector<8x64xf32>
    %137 = vector.extract_strided_slice %122 {offsets = [0, 192], sizes = [8, 64], strides = [1, 1]} : vector<8x256xf32> to vector<8x64xf32>
    %138 = arith.negf %137 : vector<8x64xf32>
    %139 = math.exp %138 : vector<8x64xf32>
    %cst_42 = arith.constant 1.000000e+00 : f32
    %140 = vector.broadcast %cst_42 : f32 to vector<8x64xf32>
    %141 = arith.addf %140, %139 : vector<8x64xf32>
    %142 = arith.divf %140, %141 : vector<8x64xf32>
    %143 = arith.mulf %134, %119 : vector<8x64xf32>
    %144 = arith.mulf %128, %136 : vector<8x64xf32>
    %145 = arith.addf %143, %144 : vector<8x64xf32>
    %146 = math.tanh %145 : vector<8x64xf32>
    %147 = arith.mulf %142, %146 : vector<8x64xf32>
    %148 = vector.extract_strided_slice %5 {offsets = [24, 0], sizes = [8, 64], strides = [1, 1]} : vector<64x64xf32> to vector<8x64xf32>
    %cst_43 = arith.constant 5.000000e-01 : f32
    %149 = vector.broadcast %cst_43 : f32 to vector<8x64xf32>
    %150 = arith.cmpf ogt, %148, %149 : vector<8x64xf32>
    %cst_44 = arith.constant 0.000000e+00 : f32
    %151 = vector.broadcast %cst_44 : f32 to vector<8x64xf32>
    %152 = arith.select %150, %147, %151 : vector<8x64xi1>, vector<8x64xf32>
    %153 = arith.select %150, %147, %118 : vector<8x64xi1>, vector<8x64xf32>
    %154 = arith.select %150, %145, %119 : vector<8x64xi1>, vector<8x64xf32>
    %155 = vector.extract_strided_slice %11 {offsets = [32, 0], sizes = [8, 256], strides = [1, 1]} : vector<64x256xf32> to vector<8x256xf32>
    %cst_45 = arith.constant dense<0.000000e+00> : vector<8x256xf32>
    %156 = tpu.matmul %153, %12, %cst_45 {dimension_numbers = #tpu.dot_dimension_numbers<[1], [0], [0], [1], [0, 0, 1, 1], [], []>} : vector<8x64xf32>, vector<64x256xf32>, vector<8x256xf32> -> vector<8x256xf32>
    %157 = arith.addf %155, %156 : vector<8x256xf32>
    %158 = vector.extract_strided_slice %157 {offsets = [0, 0], sizes = [8, 64], strides = [1, 1]} : vector<8x256xf32> to vector<8x64xf32>
    %159 = arith.negf %158 : vector<8x64xf32>
    %160 = math.exp %159 : vector<8x64xf32>
    %cst_46 = arith.constant 1.000000e+00 : f32
    %161 = vector.broadcast %cst_46 : f32 to vector<8x64xf32>
    %162 = arith.addf %161, %160 : vector<8x64xf32>
    %163 = arith.divf %161, %162 : vector<8x64xf32>
    %164 = vector.extract_strided_slice %157 {offsets = [0, 64], sizes = [8, 64], strides = [1, 1]} : vector<8x256xf32> to vector<8x64xf32>
    %165 = arith.negf %164 : vector<8x64xf32>
    %166 = math.exp %165 : vector<8x64xf32>
    %cst_47 = arith.constant 1.000000e+00 : f32
    %167 = vector.broadcast %cst_47 : f32 to vector<8x64xf32>
    %168 = arith.addf %167, %166 : vector<8x64xf32>
    %169 = arith.divf %167, %168 : vector<8x64xf32>
    %170 = vector.extract_strided_slice %157 {offsets = [0, 128], sizes = [8, 64], strides = [1, 1]} : vector<8x256xf32> to vector<8x64xf32>
    %171 = math.tanh %170 : vector<8x64xf32>
    %172 = vector.extract_strided_slice %157 {offsets = [0, 192], sizes = [8, 64], strides = [1, 1]} : vector<8x256xf32> to vector<8x64xf32>
    %173 = arith.negf %172 : vector<8x64xf32>
    %174 = math.exp %173 : vector<8x64xf32>
    %cst_48 = arith.constant 1.000000e+00 : f32
    %175 = vector.broadcast %cst_48 : f32 to vector<8x64xf32>
    %176 = arith.addf %175, %174 : vector<8x64xf32>
    %177 = arith.divf %175, %176 : vector<8x64xf32>
    %178 = arith.mulf %169, %154 : vector<8x64xf32>
    %179 = arith.mulf %163, %171 : vector<8x64xf32>
    %180 = arith.addf %178, %179 : vector<8x64xf32>
    %181 = math.tanh %180 : vector<8x64xf32>
    %182 = arith.mulf %177, %181 : vector<8x64xf32>
    %183 = vector.extract_strided_slice %5 {offsets = [32, 0], sizes = [8, 64], strides = [1, 1]} : vector<64x64xf32> to vector<8x64xf32>
    %cst_49 = arith.constant 5.000000e-01 : f32
    %184 = vector.broadcast %cst_49 : f32 to vector<8x64xf32>
    %185 = arith.cmpf ogt, %183, %184 : vector<8x64xf32>
    %cst_50 = arith.constant 0.000000e+00 : f32
    %186 = vector.broadcast %cst_50 : f32 to vector<8x64xf32>
    %187 = arith.select %185, %182, %186 : vector<8x64xi1>, vector<8x64xf32>
    %188 = arith.select %185, %182, %153 : vector<8x64xi1>, vector<8x64xf32>
    %189 = arith.select %185, %180, %154 : vector<8x64xi1>, vector<8x64xf32>
    %190 = vector.extract_strided_slice %11 {offsets = [40, 0], sizes = [8, 256], strides = [1, 1]} : vector<64x256xf32> to vector<8x256xf32>
    %cst_51 = arith.constant dense<0.000000e+00> : vector<8x256xf32>
    %191 = tpu.matmul %188, %12, %cst_51 {dimension_numbers = #tpu.dot_dimension_numbers<[1], [0], [0], [1], [0, 0, 1, 1], [], []>} : vector<8x64xf32>, vector<64x256xf32>, vector<8x256xf32> -> vector<8x256xf32>
    %192 = arith.addf %190, %191 : vector<8x256xf32>
    %193 = vector.extract_strided_slice %192 {offsets = [0, 0], sizes = [8, 64], strides = [1, 1]} : vector<8x256xf32> to vector<8x64xf32>
    %194 = arith.negf %193 : vector<8x64xf32>
    %195 = math.exp %194 : vector<8x64xf32>
    %cst_52 = arith.constant 1.000000e+00 : f32
    %196 = vector.broadcast %cst_52 : f32 to vector<8x64xf32>
    %197 = arith.addf %196, %195 : vector<8x64xf32>
    %198 = arith.divf %196, %197 : vector<8x64xf32>
    %199 = vector.extract_strided_slice %192 {offsets = [0, 64], sizes = [8, 64], strides = [1, 1]} : vector<8x256xf32> to vector<8x64xf32>
    %200 = arith.negf %199 : vector<8x64xf32>
    %201 = math.exp %200 : vector<8x64xf32>
    %cst_53 = arith.constant 1.000000e+00 : f32
    %202 = vector.broadcast %cst_53 : f32 to vector<8x64xf32>
    %203 = arith.addf %202, %201 : vector<8x64xf32>
    %204 = arith.divf %202, %203 : vector<8x64xf32>
    %205 = vector.extract_strided_slice %192 {offsets = [0, 128], sizes = [8, 64], strides = [1, 1]} : vector<8x256xf32> to vector<8x64xf32>
    %206 = math.tanh %205 : vector<8x64xf32>
    %207 = vector.extract_strided_slice %192 {offsets = [0, 192], sizes = [8, 64], strides = [1, 1]} : vector<8x256xf32> to vector<8x64xf32>
    %208 = arith.negf %207 : vector<8x64xf32>
    %209 = math.exp %208 : vector<8x64xf32>
    %cst_54 = arith.constant 1.000000e+00 : f32
    %210 = vector.broadcast %cst_54 : f32 to vector<8x64xf32>
    %211 = arith.addf %210, %209 : vector<8x64xf32>
    %212 = arith.divf %210, %211 : vector<8x64xf32>
    %213 = arith.mulf %204, %189 : vector<8x64xf32>
    %214 = arith.mulf %198, %206 : vector<8x64xf32>
    %215 = arith.addf %213, %214 : vector<8x64xf32>
    %216 = math.tanh %215 : vector<8x64xf32>
    %217 = arith.mulf %212, %216 : vector<8x64xf32>
    %218 = vector.extract_strided_slice %5 {offsets = [40, 0], sizes = [8, 64], strides = [1, 1]} : vector<64x64xf32> to vector<8x64xf32>
    %cst_55 = arith.constant 5.000000e-01 : f32
    %219 = vector.broadcast %cst_55 : f32 to vector<8x64xf32>
    %220 = arith.cmpf ogt, %218, %219 : vector<8x64xf32>
    %cst_56 = arith.constant 0.000000e+00 : f32
    %221 = vector.broadcast %cst_56 : f32 to vector<8x64xf32>
    %222 = arith.select %220, %217, %221 : vector<8x64xi1>, vector<8x64xf32>
    %223 = arith.select %220, %217, %188 : vector<8x64xi1>, vector<8x64xf32>
    %224 = arith.select %220, %215, %189 : vector<8x64xi1>, vector<8x64xf32>
    %225 = vector.extract_strided_slice %11 {offsets = [48, 0], sizes = [8, 256], strides = [1, 1]} : vector<64x256xf32> to vector<8x256xf32>
    %cst_57 = arith.constant dense<0.000000e+00> : vector<8x256xf32>
    %226 = tpu.matmul %223, %12, %cst_57 {dimension_numbers = #tpu.dot_dimension_numbers<[1], [0], [0], [1], [0, 0, 1, 1], [], []>} : vector<8x64xf32>, vector<64x256xf32>, vector<8x256xf32> -> vector<8x256xf32>
    %227 = arith.addf %225, %226 : vector<8x256xf32>
    %228 = vector.extract_strided_slice %227 {offsets = [0, 0], sizes = [8, 64], strides = [1, 1]} : vector<8x256xf32> to vector<8x64xf32>
    %229 = arith.negf %228 : vector<8x64xf32>
    %230 = math.exp %229 : vector<8x64xf32>
    %cst_58 = arith.constant 1.000000e+00 : f32
    %231 = vector.broadcast %cst_58 : f32 to vector<8x64xf32>
    %232 = arith.addf %231, %230 : vector<8x64xf32>
    %233 = arith.divf %231, %232 : vector<8x64xf32>
    %234 = vector.extract_strided_slice %227 {offsets = [0, 64], sizes = [8, 64], strides = [1, 1]} : vector<8x256xf32> to vector<8x64xf32>
    %235 = arith.negf %234 : vector<8x64xf32>
    %236 = math.exp %235 : vector<8x64xf32>
    %cst_59 = arith.constant 1.000000e+00 : f32
    %237 = vector.broadcast %cst_59 : f32 to vector<8x64xf32>
    %238 = arith.addf %237, %236 : vector<8x64xf32>
    %239 = arith.divf %237, %238 : vector<8x64xf32>
    %240 = vector.extract_strided_slice %227 {offsets = [0, 128], sizes = [8, 64], strides = [1, 1]} : vector<8x256xf32> to vector<8x64xf32>
    %241 = math.tanh %240 : vector<8x64xf32>
    %242 = vector.extract_strided_slice %227 {offsets = [0, 192], sizes = [8, 64], strides = [1, 1]} : vector<8x256xf32> to vector<8x64xf32>
    %243 = arith.negf %242 : vector<8x64xf32>
    %244 = math.exp %243 : vector<8x64xf32>
    %cst_60 = arith.constant 1.000000e+00 : f32
    %245 = vector.broadcast %cst_60 : f32 to vector<8x64xf32>
    %246 = arith.addf %245, %244 : vector<8x64xf32>
    %247 = arith.divf %245, %246 : vector<8x64xf32>
    %248 = arith.mulf %239, %224 : vector<8x64xf32>
    %249 = arith.mulf %233, %241 : vector<8x64xf32>
    %250 = arith.addf %248, %249 : vector<8x64xf32>
    %251 = math.tanh %250 : vector<8x64xf32>
    %252 = arith.mulf %247, %251 : vector<8x64xf32>
    %253 = vector.extract_strided_slice %5 {offsets = [48, 0], sizes = [8, 64], strides = [1, 1]} : vector<64x64xf32> to vector<8x64xf32>
    %cst_61 = arith.constant 5.000000e-01 : f32
    %254 = vector.broadcast %cst_61 : f32 to vector<8x64xf32>
    %255 = arith.cmpf ogt, %253, %254 : vector<8x64xf32>
    %cst_62 = arith.constant 0.000000e+00 : f32
    %256 = vector.broadcast %cst_62 : f32 to vector<8x64xf32>
    %257 = arith.select %255, %252, %256 : vector<8x64xi1>, vector<8x64xf32>
    %258 = arith.select %255, %252, %223 : vector<8x64xi1>, vector<8x64xf32>
    %259 = arith.select %255, %250, %224 : vector<8x64xi1>, vector<8x64xf32>
    %260 = vector.extract_strided_slice %11 {offsets = [56, 0], sizes = [8, 256], strides = [1, 1]} : vector<64x256xf32> to vector<8x256xf32>
    %cst_63 = arith.constant dense<0.000000e+00> : vector<8x256xf32>
    %261 = tpu.matmul %258, %12, %cst_63 {dimension_numbers = #tpu.dot_dimension_numbers<[1], [0], [0], [1], [0, 0, 1, 1], [], []>} : vector<8x64xf32>, vector<64x256xf32>, vector<8x256xf32> -> vector<8x256xf32>
    %262 = arith.addf %260, %261 : vector<8x256xf32>
    %263 = vector.extract_strided_slice %262 {offsets = [0, 0], sizes = [8, 64], strides = [1, 1]} : vector<8x256xf32> to vector<8x64xf32>
    %264 = arith.negf %263 : vector<8x64xf32>
    %265 = math.exp %264 : vector<8x64xf32>
    %cst_64 = arith.constant 1.000000e+00 : f32
    %266 = vector.broadcast %cst_64 : f32 to vector<8x64xf32>
    %267 = arith.addf %266, %265 : vector<8x64xf32>
    %268 = arith.divf %266, %267 : vector<8x64xf32>
    %269 = vector.extract_strided_slice %262 {offsets = [0, 64], sizes = [8, 64], strides = [1, 1]} : vector<8x256xf32> to vector<8x64xf32>
    %270 = arith.negf %269 : vector<8x64xf32>
    %271 = math.exp %270 : vector<8x64xf32>
    %cst_65 = arith.constant 1.000000e+00 : f32
    %272 = vector.broadcast %cst_65 : f32 to vector<8x64xf32>
    %273 = arith.addf %272, %271 : vector<8x64xf32>
    %274 = arith.divf %272, %273 : vector<8x64xf32>
    %275 = vector.extract_strided_slice %262 {offsets = [0, 128], sizes = [8, 64], strides = [1, 1]} : vector<8x256xf32> to vector<8x64xf32>
    %276 = math.tanh %275 : vector<8x64xf32>
    %277 = vector.extract_strided_slice %262 {offsets = [0, 192], sizes = [8, 64], strides = [1, 1]} : vector<8x256xf32> to vector<8x64xf32>
    %278 = arith.negf %277 : vector<8x64xf32>
    %279 = math.exp %278 : vector<8x64xf32>
    %cst_66 = arith.constant 1.000000e+00 : f32
    %280 = vector.broadcast %cst_66 : f32 to vector<8x64xf32>
    %281 = arith.addf %280, %279 : vector<8x64xf32>
    %282 = arith.divf %280, %281 : vector<8x64xf32>
    %283 = arith.mulf %274, %259 : vector<8x64xf32>
    %284 = arith.mulf %268, %276 : vector<8x64xf32>
    %285 = arith.addf %283, %284 : vector<8x64xf32>
    %286 = math.tanh %285 : vector<8x64xf32>
    %287 = arith.mulf %282, %286 : vector<8x64xf32>
    %288 = vector.extract_strided_slice %5 {offsets = [56, 0], sizes = [8, 64], strides = [1, 1]} : vector<64x64xf32> to vector<8x64xf32>
    %cst_67 = arith.constant 5.000000e-01 : f32
    %289 = vector.broadcast %cst_67 : f32 to vector<8x64xf32>
    %290 = arith.cmpf ogt, %288, %289 : vector<8x64xf32>
    %cst_68 = arith.constant 0.000000e+00 : f32
    %291 = vector.broadcast %cst_68 : f32 to vector<8x64xf32>
    %292 = arith.select %290, %287, %291 : vector<8x64xi1>, vector<8x64xf32>
    %c0_69 = arith.constant 0 : index
    %c0_70 = arith.constant 0 : index
    %293 = vector.load %arg8[%c0_69, %c0_70] : memref<32x8xf32, #tpu.memory_space<vmem>>, vector<32x8xf32>
    %c0_71 = arith.constant 0 : index
    %c0_72 = arith.constant 0 : index
    %294 = vector.load %arg9[%c0_71, %c0_72] : memref<32x8xf32, #tpu.memory_space<vmem>>, vector<32x8xf32>
    %c0_73 = arith.constant 0 : index
    %c0_74 = arith.constant 0 : index
    %295 = vector.load %arg10[%c0_73, %c0_74] : memref<1x8xf32, #tpu.memory_space<vmem>>, vector<1x8xf32>
    %296 = vector.extract_strided_slice %47 {offsets = [0, 0], sizes = [8, 32], strides = [1, 1]} : vector<8x64xf32> to vector<8x32xf32>
    %cst_75 = arith.constant dense<0.000000e+00> : vector<8x8xf32>
    %297 = tpu.matmul %296, %293, %cst_75 {dimension_numbers = #tpu.dot_dimension_numbers<[1], [0], [0], [1], [0, 0, 1, 1], [], []>} : vector<8x32xf32>, vector<32x8xf32>, vector<8x8xf32> -> vector<8x8xf32>
    %298 = vector.extract_strided_slice %292 {offsets = [0, 32], sizes = [8, 32], strides = [1, 1]} : vector<8x64xf32> to vector<8x32xf32>
    %cst_76 = arith.constant dense<0.000000e+00> : vector<8x8xf32>
    %299 = tpu.matmul %298, %294, %cst_76 {dimension_numbers = #tpu.dot_dimension_numbers<[1], [0], [0], [1], [0, 0, 1, 1], [], []>} : vector<8x32xf32>, vector<32x8xf32>, vector<8x8xf32> -> vector<8x8xf32>
    %300 = arith.addf %297, %299 : vector<8x8xf32>
    %301 = vector.broadcast %295 : vector<1x8xf32> to vector<8x8xf32>
    %302 = arith.addf %300, %301 : vector<8x8xf32>
    %303 = vector.extract_strided_slice %82 {offsets = [0, 0], sizes = [8, 32], strides = [1, 1]} : vector<8x64xf32> to vector<8x32xf32>
    %cst_77 = arith.constant dense<0.000000e+00> : vector<8x8xf32>
    %304 = tpu.matmul %303, %293, %cst_77 {dimension_numbers = #tpu.dot_dimension_numbers<[1], [0], [0], [1], [0, 0, 1, 1], [], []>} : vector<8x32xf32>, vector<32x8xf32>, vector<8x8xf32> -> vector<8x8xf32>
    %305 = vector.extract_strided_slice %257 {offsets = [0, 32], sizes = [8, 32], strides = [1, 1]} : vector<8x64xf32> to vector<8x32xf32>
    %cst_78 = arith.constant dense<0.000000e+00> : vector<8x8xf32>
    %306 = tpu.matmul %305, %294, %cst_78 {dimension_numbers = #tpu.dot_dimension_numbers<[1], [0], [0], [1], [0, 0, 1, 1], [], []>} : vector<8x32xf32>, vector<32x8xf32>, vector<8x8xf32> -> vector<8x8xf32>
    %307 = arith.addf %304, %306 : vector<8x8xf32>
    %308 = vector.broadcast %295 : vector<1x8xf32> to vector<8x8xf32>
    %309 = arith.addf %307, %308 : vector<8x8xf32>
    %310 = vector.extract_strided_slice %117 {offsets = [0, 0], sizes = [8, 32], strides = [1, 1]} : vector<8x64xf32> to vector<8x32xf32>
    %cst_79 = arith.constant dense<0.000000e+00> : vector<8x8xf32>
    %311 = tpu.matmul %310, %293, %cst_79 {dimension_numbers = #tpu.dot_dimension_numbers<[1], [0], [0], [1], [0, 0, 1, 1], [], []>} : vector<8x32xf32>, vector<32x8xf32>, vector<8x8xf32> -> vector<8x8xf32>
    %312 = vector.extract_strided_slice %222 {offsets = [0, 32], sizes = [8, 32], strides = [1, 1]} : vector<8x64xf32> to vector<8x32xf32>
    %cst_80 = arith.constant dense<0.000000e+00> : vector<8x8xf32>
    %313 = tpu.matmul %312, %294, %cst_80 {dimension_numbers = #tpu.dot_dimension_numbers<[1], [0], [0], [1], [0, 0, 1, 1], [], []>} : vector<8x32xf32>, vector<32x8xf32>, vector<8x8xf32> -> vector<8x8xf32>
    %314 = arith.addf %311, %313 : vector<8x8xf32>
    %315 = vector.broadcast %295 : vector<1x8xf32> to vector<8x8xf32>
    %316 = arith.addf %314, %315 : vector<8x8xf32>
    %317 = vector.extract_strided_slice %152 {offsets = [0, 0], sizes = [8, 32], strides = [1, 1]} : vector<8x64xf32> to vector<8x32xf32>
    %cst_81 = arith.constant dense<0.000000e+00> : vector<8x8xf32>
    %318 = tpu.matmul %317, %293, %cst_81 {dimension_numbers = #tpu.dot_dimension_numbers<[1], [0], [0], [1], [0, 0, 1, 1], [], []>} : vector<8x32xf32>, vector<32x8xf32>, vector<8x8xf32> -> vector<8x8xf32>
    %319 = vector.extract_strided_slice %187 {offsets = [0, 32], sizes = [8, 32], strides = [1, 1]} : vector<8x64xf32> to vector<8x32xf32>
    %cst_82 = arith.constant dense<0.000000e+00> : vector<8x8xf32>
    %320 = tpu.matmul %319, %294, %cst_82 {dimension_numbers = #tpu.dot_dimension_numbers<[1], [0], [0], [1], [0, 0, 1, 1], [], []>} : vector<8x32xf32>, vector<32x8xf32>, vector<8x8xf32> -> vector<8x8xf32>
    %321 = arith.addf %318, %320 : vector<8x8xf32>
    %322 = vector.broadcast %295 : vector<1x8xf32> to vector<8x8xf32>
    %323 = arith.addf %321, %322 : vector<8x8xf32>
    %324 = vector.extract_strided_slice %187 {offsets = [0, 0], sizes = [8, 32], strides = [1, 1]} : vector<8x64xf32> to vector<8x32xf32>
    %cst_83 = arith.constant dense<0.000000e+00> : vector<8x8xf32>
    %325 = tpu.matmul %324, %293, %cst_83 {dimension_numbers = #tpu.dot_dimension_numbers<[1], [0], [0], [1], [0, 0, 1, 1], [], []>} : vector<8x32xf32>, vector<32x8xf32>, vector<8x8xf32> -> vector<8x8xf32>
    %326 = vector.extract_strided_slice %152 {offsets = [0, 32], sizes = [8, 32], strides = [1, 1]} : vector<8x64xf32> to vector<8x32xf32>
    %cst_84 = arith.constant dense<0.000000e+00> : vector<8x8xf32>
    %327 = tpu.matmul %326, %294, %cst_84 {dimension_numbers = #tpu.dot_dimension_numbers<[1], [0], [0], [1], [0, 0, 1, 1], [], []>} : vector<8x32xf32>, vector<32x8xf32>, vector<8x8xf32> -> vector<8x8xf32>
    %328 = arith.addf %325, %327 : vector<8x8xf32>
    %329 = vector.broadcast %295 : vector<1x8xf32> to vector<8x8xf32>
    %330 = arith.addf %328, %329 : vector<8x8xf32>
    %331 = vector.extract_strided_slice %222 {offsets = [0, 0], sizes = [8, 32], strides = [1, 1]} : vector<8x64xf32> to vector<8x32xf32>
    %cst_85 = arith.constant dense<0.000000e+00> : vector<8x8xf32>
    %332 = tpu.matmul %331, %293, %cst_85 {dimension_numbers = #tpu.dot_dimension_numbers<[1], [0], [0], [1], [0, 0, 1, 1], [], []>} : vector<8x32xf32>, vector<32x8xf32>, vector<8x8xf32> -> vector<8x8xf32>
    %333 = vector.extract_strided_slice %117 {offsets = [0, 32], sizes = [8, 32], strides = [1, 1]} : vector<8x64xf32> to vector<8x32xf32>
    %cst_86 = arith.constant dense<0.000000e+00> : vector<8x8xf32>
    %334 = tpu.matmul %333, %294, %cst_86 {dimension_numbers = #tpu.dot_dimension_numbers<[1], [0], [0], [1], [0, 0, 1, 1], [], []>} : vector<8x32xf32>, vector<32x8xf32>, vector<8x8xf32> -> vector<8x8xf32>
    %335 = arith.addf %332, %334 : vector<8x8xf32>
    %336 = vector.broadcast %295 : vector<1x8xf32> to vector<8x8xf32>
    %337 = arith.addf %335, %336 : vector<8x8xf32>
    %338 = vector.extract_strided_slice %257 {offsets = [0, 0], sizes = [8, 32], strides = [1, 1]} : vector<8x64xf32> to vector<8x32xf32>
    %cst_87 = arith.constant dense<0.000000e+00> : vector<8x8xf32>
    %339 = tpu.matmul %338, %293, %cst_87 {dimension_numbers = #tpu.dot_dimension_numbers<[1], [0], [0], [1], [0, 0, 1, 1], [], []>} : vector<8x32xf32>, vector<32x8xf32>, vector<8x8xf32> -> vector<8x8xf32>
    %340 = vector.extract_strided_slice %82 {offsets = [0, 32], sizes = [8, 32], strides = [1, 1]} : vector<8x64xf32> to vector<8x32xf32>
    %cst_88 = arith.constant dense<0.000000e+00> : vector<8x8xf32>
    %341 = tpu.matmul %340, %294, %cst_88 {dimension_numbers = #tpu.dot_dimension_numbers<[1], [0], [0], [1], [0, 0, 1, 1], [], []>} : vector<8x32xf32>, vector<32x8xf32>, vector<8x8xf32> -> vector<8x8xf32>
    %342 = arith.addf %339, %341 : vector<8x8xf32>
    %343 = vector.broadcast %295 : vector<1x8xf32> to vector<8x8xf32>
    %344 = arith.addf %342, %343 : vector<8x8xf32>
    %345 = vector.extract_strided_slice %292 {offsets = [0, 0], sizes = [8, 32], strides = [1, 1]} : vector<8x64xf32> to vector<8x32xf32>
    %cst_89 = arith.constant dense<0.000000e+00> : vector<8x8xf32>
    %346 = tpu.matmul %345, %293, %cst_89 {dimension_numbers = #tpu.dot_dimension_numbers<[1], [0], [0], [1], [0, 0, 1, 1], [], []>} : vector<8x32xf32>, vector<32x8xf32>, vector<8x8xf32> -> vector<8x8xf32>
    %347 = vector.extract_strided_slice %47 {offsets = [0, 32], sizes = [8, 32], strides = [1, 1]} : vector<8x64xf32> to vector<8x32xf32>
    %cst_90 = arith.constant dense<0.000000e+00> : vector<8x8xf32>
    %348 = tpu.matmul %347, %294, %cst_90 {dimension_numbers = #tpu.dot_dimension_numbers<[1], [0], [0], [1], [0, 0, 1, 1], [], []>} : vector<8x32xf32>, vector<32x8xf32>, vector<8x8xf32> -> vector<8x8xf32>
    %349 = arith.addf %346, %348 : vector<8x8xf32>
    %350 = vector.broadcast %295 : vector<1x8xf32> to vector<8x8xf32>
    %351 = arith.addf %349, %350 : vector<8x8xf32>
    %352 = vector.extract_strided_slice %3 {offsets = [0, 0], sizes = [8, 8], strides = [1, 1]} : vector<64x8xf32> to vector<8x8xf32>
    %353 = vector.broadcast %1 : vector<1x8xf32> to vector<8x8xf32>
    %354 = arith.mulf %353, %352 : vector<8x8xf32>
    %c0_91 = arith.constant 0 : index
    %c0_92 = arith.constant 0 : index
    %355 = vector.load %arg4[%c0_91, %c0_92] : memref<8x8xf32, #tpu.memory_space<vmem>>, vector<8x8xf32>
    %356 = vector.broadcast %2 : vector<1x8xf32> to vector<8x8xf32>
    %357 = arith.mulf %356, %355 : vector<8x8xf32>
    %358 = arith.addf %354, %357 : vector<8x8xf32>
    %359 = vector.extract_strided_slice %3 {offsets = [0, 0], sizes = [8, 8], strides = [1, 1]} : vector<64x8xf32> to vector<8x8xf32>
    %360 = arith.mulf %302, %359 : vector<8x8xf32>
    %361 = arith.addf %358, %360 : vector<8x8xf32>
    %362 = vector.extract_strided_slice %3 {offsets = [8, 0], sizes = [8, 8], strides = [1, 1]} : vector<64x8xf32> to vector<8x8xf32>
    %363 = arith.mulf %309, %362 : vector<8x8xf32>
    %364 = arith.addf %361, %363 : vector<8x8xf32>
    %365 = vector.extract_strided_slice %3 {offsets = [16, 0], sizes = [8, 8], strides = [1, 1]} : vector<64x8xf32> to vector<8x8xf32>
    %366 = arith.mulf %316, %365 : vector<8x8xf32>
    %367 = arith.addf %364, %366 : vector<8x8xf32>
    %368 = vector.extract_strided_slice %3 {offsets = [24, 0], sizes = [8, 8], strides = [1, 1]} : vector<64x8xf32> to vector<8x8xf32>
    %369 = arith.mulf %323, %368 : vector<8x8xf32>
    %370 = arith.addf %367, %369 : vector<8x8xf32>
    %371 = vector.extract_strided_slice %3 {offsets = [32, 0], sizes = [8, 8], strides = [1, 1]} : vector<64x8xf32> to vector<8x8xf32>
    %372 = arith.mulf %330, %371 : vector<8x8xf32>
    %373 = arith.addf %370, %372 : vector<8x8xf32>
    %374 = vector.extract_strided_slice %3 {offsets = [40, 0], sizes = [8, 8], strides = [1, 1]} : vector<64x8xf32> to vector<8x8xf32>
    %375 = arith.mulf %337, %374 : vector<8x8xf32>
    %376 = arith.addf %373, %375 : vector<8x8xf32>
    %377 = vector.extract_strided_slice %3 {offsets = [48, 0], sizes = [8, 8], strides = [1, 1]} : vector<64x8xf32> to vector<8x8xf32>
    %378 = arith.mulf %344, %377 : vector<8x8xf32>
    %379 = arith.addf %376, %378 : vector<8x8xf32>
    %380 = vector.extract_strided_slice %3 {offsets = [56, 0], sizes = [8, 8], strides = [1, 1]} : vector<64x8xf32> to vector<8x8xf32>
    %381 = arith.mulf %351, %380 : vector<8x8xf32>
    %382 = arith.addf %379, %381 : vector<8x8xf32>
    %cst_93 = arith.constant dense<0.000000e+00> : vector<64x8xf32>
    %383 = tpu.matmul %3, %0, %cst_93 {dimension_numbers = #tpu.dot_dimension_numbers<[1], [0], [0], [1], [0, 0, 1, 1], [], []>} : vector<64x8xf32>, vector<8x8xf32>, vector<64x8xf32> -> vector<64x8xf32>
    %384 = vector.extract_strided_slice %383 {offsets = [0, 0], sizes = [56, 8], strides = [1, 1]} : vector<64x8xf32> to vector<56x8xf32>
    %385 = vector.extract_strided_slice %3 {offsets = [8, 0], sizes = [56, 8], strides = [1, 1]} : vector<64x8xf32> to vector<56x8xf32>
    %386 = arith.mulf %384, %385 : vector<56x8xf32>
    %cst_94 = arith.constant dense<0.000000e+00> : vector<8xf32>
    %387 = vector.multi_reduction <add>, %382, %cst_94 [1] : vector<8x8xf32> to vector<8xf32>
    %388 = vector.shape_cast %387 : vector<8xf32> to vector<8x1xf32>
    %cst_95 = arith.constant dense<0.000000e+00> : vector<1xf32>
    %389 = vector.multi_reduction <add>, %388, %cst_95 [0] : vector<8x1xf32> to vector<1xf32>
    %390 = vector.shape_cast %389 : vector<1xf32> to vector<1x1xf32>
    %cst_96 = arith.constant dense<0.000000e+00> : vector<56xf32>
    %391 = vector.multi_reduction <add>, %386, %cst_96 [1] : vector<56x8xf32> to vector<56xf32>
    %392 = vector.shape_cast %391 : vector<56xf32> to vector<56x1xf32>
    %cst_97 = arith.constant dense<0.000000e+00> : vector<1xf32>
    %393 = vector.multi_reduction <add>, %392, %cst_97 [0] : vector<56x1xf32> to vector<1xf32>
    %394 = vector.shape_cast %393 : vector<1xf32> to vector<1x1xf32>
    %395 = arith.addf %390, %394 : vector<1x1xf32>
    %396 = vector.shape_cast %0 : vector<8x8xf32> to vector<1x8x8xf32>
    %397 = tpu.iota {dimensions = array<i32: 0>} : vector<8x8xi32>
    %398 = vector.shape_cast %397 : vector<8x8xi32> to vector<1x8x8xi32>
    %399 = tpu.iota {dimensions = array<i32: 1>} : vector<8x8xi32>
    %400 = vector.broadcast %1 : vector<1x8xf32> to vector<8x8xf32>
    %401 = arith.addf %400, %302 : vector<8x8xf32>
    %402 = vector.extract_strided_slice %4 {offsets = [8, 0], sizes = [8, 1], strides = [1, 1]} : vector<64x1xf32> to vector<8x1xf32>
    %cst_98 = arith.constant 5.000000e-01 : f32
    %403 = vector.broadcast %cst_98 : f32 to vector<8x1xf32>
    %404 = arith.cmpf ogt, %402, %403 : vector<8x1xf32>
    %405 = vector.shape_cast %401 : vector<8x8xf32> to vector<8x8x1xf32>
    %406 = vector.broadcast %405 : vector<8x8x1xf32> to vector<8x8x8xf32>
    %407 = vector.broadcast %396 : vector<1x8x8xf32> to vector<8x8x8xf32>
    %408 = arith.addf %406, %407 : vector<8x8x8xf32>
    %409 = vector.shape_cast %309 : vector<8x8xf32> to vector<8x1x8xf32>
    %410 = vector.broadcast %409 : vector<8x1x8xf32> to vector<8x8x8xf32>
    %411 = arith.addf %408, %410 : vector<8x8x8xf32>
    %cst_99 = arith.constant dense<0xFF800000> : vector<8x8xf32>
    %412 = vector.multi_reduction <maximumf>, %411, %cst_99 [1] : vector<8x8x8xf32> to vector<8x8xf32>
    %413 = vector.shape_cast %412 : vector<8x8xf32> to vector<8x1x8xf32>
    %414 = vector.broadcast %413 : vector<8x1x8xf32> to vector<8x8x8xf32>
    %415 = arith.subf %411, %414 : vector<8x8x8xf32>
    %416 = math.exp %415 : vector<8x8x8xf32>
    %cst_100 = arith.constant dense<0.000000e+00> : vector<8x8xf32>
    %417 = vector.multi_reduction <add>, %416, %cst_100 [1] : vector<8x8x8xf32> to vector<8x8xf32>
    %418 = vector.shape_cast %417 : vector<8x8xf32> to vector<8x1x8xf32>
    %419 = math.log %418 : vector<8x1x8xf32>
    %420 = arith.addf %413, %419 : vector<8x1x8xf32>
    %421 = vector.shape_cast %420 : vector<8x1x8xf32> to vector<8x8xf32>
    %422 = vector.shape_cast %404 : vector<8x1xi1> to vector<8x1xi1>
    %423 = vector.broadcast %422 : vector<8x1xi1> to vector<8x8xi1>
    %424 = arith.select %423, %421, %401 : vector<8x8xi1>, vector<8x8xf32>
    %425 = vector.shape_cast %401 : vector<8x8xf32> to vector<8x8x1xf32>
    %426 = vector.broadcast %425 : vector<8x8x1xf32> to vector<8x8x8xf32>
    %427 = vector.broadcast %396 : vector<1x8x8xf32> to vector<8x8x8xf32>
    %428 = arith.addf %426, %427 : vector<8x8x8xf32>
    %cst_101 = arith.constant dense<0xFF800000> : vector<8x8xf32>
    %429 = vector.multi_reduction <maximumf>, %428, %cst_101 [1] : vector<8x8x8xf32> to vector<8x8xf32>
    %430 = vector.shape_cast %429 : vector<8x8xf32> to vector<8x1x8xf32>
    %431 = vector.broadcast %430 : vector<8x1x8xf32> to vector<8x8x8xf32>
    %432 = arith.cmpf oge, %428, %431 : vector<8x8x8xf32>
    %c1073741824_i32 = arith.constant 1073741824 : i32
    %433 = vector.shape_cast %398 : vector<1x8x8xi32> to vector<1x8x8xi32>
    %434 = vector.broadcast %433 : vector<1x8x8xi32> to vector<8x8x8xi32>
    %435 = vector.broadcast %c1073741824_i32 : i32 to vector<8x8x8xi32>
    %436 = arith.select %432, %434, %435 : vector<8x8x8xi1>, vector<8x8x8xi32>
    %cst_102 = arith.constant dense<2147483647> : vector<8x8xi32>
    %437 = vector.multi_reduction <minsi>, %436, %cst_102 [1] : vector<8x8x8xi32> to vector<8x8xi32>
    %438 = vector.shape_cast %437 : vector<8x8xi32> to vector<8x1x8xi32>
    %439 = vector.shape_cast %438 : vector<8x1x8xi32> to vector<8x8xi32>
    %440 = vector.shape_cast %430 : vector<8x1x8xf32> to vector<8x8xf32>
    %441 = arith.addf %440, %309 : vector<8x8xf32>
    %442 = vector.shape_cast %404 : vector<8x1xi1> to vector<8x1xi1>
    %443 = vector.broadcast %442 : vector<8x1xi1> to vector<8x8xi1>
    %444 = arith.select %443, %441, %401 : vector<8x8xi1>, vector<8x8xf32>
    %445 = vector.shape_cast %404 : vector<8x1xi1> to vector<8x1xi1>
    %446 = vector.broadcast %445 : vector<8x1xi1> to vector<8x8xi1>
    %447 = arith.select %446, %439, %399 : vector<8x8xi1>, vector<8x8xi32>
    %448 = vector.extract_strided_slice %4 {offsets = [16, 0], sizes = [8, 1], strides = [1, 1]} : vector<64x1xf32> to vector<8x1xf32>
    %cst_103 = arith.constant 5.000000e-01 : f32
    %449 = vector.broadcast %cst_103 : f32 to vector<8x1xf32>
    %450 = arith.cmpf ogt, %448, %449 : vector<8x1xf32>
    %451 = vector.shape_cast %424 : vector<8x8xf32> to vector<8x8x1xf32>
    %452 = vector.broadcast %451 : vector<8x8x1xf32> to vector<8x8x8xf32>
    %453 = vector.broadcast %396 : vector<1x8x8xf32> to vector<8x8x8xf32>
    %454 = arith.addf %452, %453 : vector<8x8x8xf32>
    %455 = vector.shape_cast %316 : vector<8x8xf32> to vector<8x1x8xf32>
    %456 = vector.broadcast %455 : vector<8x1x8xf32> to vector<8x8x8xf32>
    %457 = arith.addf %454, %456 : vector<8x8x8xf32>
    %cst_104 = arith.constant dense<0xFF800000> : vector<8x8xf32>
    %458 = vector.multi_reduction <maximumf>, %457, %cst_104 [1] : vector<8x8x8xf32> to vector<8x8xf32>
    %459 = vector.shape_cast %458 : vector<8x8xf32> to vector<8x1x8xf32>
    %460 = vector.broadcast %459 : vector<8x1x8xf32> to vector<8x8x8xf32>
    %461 = arith.subf %457, %460 : vector<8x8x8xf32>
    %462 = math.exp %461 : vector<8x8x8xf32>
    %cst_105 = arith.constant dense<0.000000e+00> : vector<8x8xf32>
    %463 = vector.multi_reduction <add>, %462, %cst_105 [1] : vector<8x8x8xf32> to vector<8x8xf32>
    %464 = vector.shape_cast %463 : vector<8x8xf32> to vector<8x1x8xf32>
    %465 = math.log %464 : vector<8x1x8xf32>
    %466 = arith.addf %459, %465 : vector<8x1x8xf32>
    %467 = vector.shape_cast %466 : vector<8x1x8xf32> to vector<8x8xf32>
    %468 = vector.shape_cast %450 : vector<8x1xi1> to vector<8x1xi1>
    %469 = vector.broadcast %468 : vector<8x1xi1> to vector<8x8xi1>
    %470 = arith.select %469, %467, %424 : vector<8x8xi1>, vector<8x8xf32>
    %471 = vector.shape_cast %444 : vector<8x8xf32> to vector<8x8x1xf32>
    %472 = vector.broadcast %471 : vector<8x8x1xf32> to vector<8x8x8xf32>
    %473 = vector.broadcast %396 : vector<1x8x8xf32> to vector<8x8x8xf32>
    %474 = arith.addf %472, %473 : vector<8x8x8xf32>
    %cst_106 = arith.constant dense<0xFF800000> : vector<8x8xf32>
    %475 = vector.multi_reduction <maximumf>, %474, %cst_106 [1] : vector<8x8x8xf32> to vector<8x8xf32>
    %476 = vector.shape_cast %475 : vector<8x8xf32> to vector<8x1x8xf32>
    %477 = vector.broadcast %476 : vector<8x1x8xf32> to vector<8x8x8xf32>
    %478 = arith.cmpf oge, %474, %477 : vector<8x8x8xf32>
    %c1073741824_i32_107 = arith.constant 1073741824 : i32
    %479 = vector.shape_cast %398 : vector<1x8x8xi32> to vector<1x8x8xi32>
    %480 = vector.broadcast %479 : vector<1x8x8xi32> to vector<8x8x8xi32>
    %481 = vector.broadcast %c1073741824_i32_107 : i32 to vector<8x8x8xi32>
    %482 = arith.select %478, %480, %481 : vector<8x8x8xi1>, vector<8x8x8xi32>
    %cst_108 = arith.constant dense<2147483647> : vector<8x8xi32>
    %483 = vector.multi_reduction <minsi>, %482, %cst_108 [1] : vector<8x8x8xi32> to vector<8x8xi32>
    %484 = vector.shape_cast %483 : vector<8x8xi32> to vector<8x1x8xi32>
    %485 = vector.shape_cast %484 : vector<8x1x8xi32> to vector<8x8xi32>
    %486 = vector.shape_cast %476 : vector<8x1x8xf32> to vector<8x8xf32>
    %487 = arith.addf %486, %316 : vector<8x8xf32>
    %488 = vector.shape_cast %450 : vector<8x1xi1> to vector<8x1xi1>
    %489 = vector.broadcast %488 : vector<8x1xi1> to vector<8x8xi1>
    %490 = arith.select %489, %487, %444 : vector<8x8xi1>, vector<8x8xf32>
    %491 = vector.shape_cast %450 : vector<8x1xi1> to vector<8x1xi1>
    %492 = vector.broadcast %491 : vector<8x1xi1> to vector<8x8xi1>
    %493 = arith.select %492, %485, %399 : vector<8x8xi1>, vector<8x8xi32>
    %494 = vector.extract_strided_slice %4 {offsets = [24, 0], sizes = [8, 1], strides = [1, 1]} : vector<64x1xf32> to vector<8x1xf32>
    %cst_109 = arith.constant 5.000000e-01 : f32
    %495 = vector.broadcast %cst_109 : f32 to vector<8x1xf32>
    %496 = arith.cmpf ogt, %494, %495 : vector<8x1xf32>
    %497 = vector.shape_cast %470 : vector<8x8xf32> to vector<8x8x1xf32>
    %498 = vector.broadcast %497 : vector<8x8x1xf32> to vector<8x8x8xf32>
    %499 = vector.broadcast %396 : vector<1x8x8xf32> to vector<8x8x8xf32>
    %500 = arith.addf %498, %499 : vector<8x8x8xf32>
    %501 = vector.shape_cast %323 : vector<8x8xf32> to vector<8x1x8xf32>
    %502 = vector.broadcast %501 : vector<8x1x8xf32> to vector<8x8x8xf32>
    %503 = arith.addf %500, %502 : vector<8x8x8xf32>
    %cst_110 = arith.constant dense<0xFF800000> : vector<8x8xf32>
    %504 = vector.multi_reduction <maximumf>, %503, %cst_110 [1] : vector<8x8x8xf32> to vector<8x8xf32>
    %505 = vector.shape_cast %504 : vector<8x8xf32> to vector<8x1x8xf32>
    %506 = vector.broadcast %505 : vector<8x1x8xf32> to vector<8x8x8xf32>
    %507 = arith.subf %503, %506 : vector<8x8x8xf32>
    %508 = math.exp %507 : vector<8x8x8xf32>
    %cst_111 = arith.constant dense<0.000000e+00> : vector<8x8xf32>
    %509 = vector.multi_reduction <add>, %508, %cst_111 [1] : vector<8x8x8xf32> to vector<8x8xf32>
    %510 = vector.shape_cast %509 : vector<8x8xf32> to vector<8x1x8xf32>
    %511 = math.log %510 : vector<8x1x8xf32>
    %512 = arith.addf %505, %511 : vector<8x1x8xf32>
    %513 = vector.shape_cast %512 : vector<8x1x8xf32> to vector<8x8xf32>
    %514 = vector.shape_cast %496 : vector<8x1xi1> to vector<8x1xi1>
    %515 = vector.broadcast %514 : vector<8x1xi1> to vector<8x8xi1>
    %516 = arith.select %515, %513, %470 : vector<8x8xi1>, vector<8x8xf32>
    %517 = vector.shape_cast %490 : vector<8x8xf32> to vector<8x8x1xf32>
    %518 = vector.broadcast %517 : vector<8x8x1xf32> to vector<8x8x8xf32>
    %519 = vector.broadcast %396 : vector<1x8x8xf32> to vector<8x8x8xf32>
    %520 = arith.addf %518, %519 : vector<8x8x8xf32>
    %cst_112 = arith.constant dense<0xFF800000> : vector<8x8xf32>
    %521 = vector.multi_reduction <maximumf>, %520, %cst_112 [1] : vector<8x8x8xf32> to vector<8x8xf32>
    %522 = vector.shape_cast %521 : vector<8x8xf32> to vector<8x1x8xf32>
    %523 = vector.broadcast %522 : vector<8x1x8xf32> to vector<8x8x8xf32>
    %524 = arith.cmpf oge, %520, %523 : vector<8x8x8xf32>
    %c1073741824_i32_113 = arith.constant 1073741824 : i32
    %525 = vector.shape_cast %398 : vector<1x8x8xi32> to vector<1x8x8xi32>
    %526 = vector.broadcast %525 : vector<1x8x8xi32> to vector<8x8x8xi32>
    %527 = vector.broadcast %c1073741824_i32_113 : i32 to vector<8x8x8xi32>
    %528 = arith.select %524, %526, %527 : vector<8x8x8xi1>, vector<8x8x8xi32>
    %cst_114 = arith.constant dense<2147483647> : vector<8x8xi32>
    %529 = vector.multi_reduction <minsi>, %528, %cst_114 [1] : vector<8x8x8xi32> to vector<8x8xi32>
    %530 = vector.shape_cast %529 : vector<8x8xi32> to vector<8x1x8xi32>
    %531 = vector.shape_cast %530 : vector<8x1x8xi32> to vector<8x8xi32>
    %532 = vector.shape_cast %522 : vector<8x1x8xf32> to vector<8x8xf32>
    %533 = arith.addf %532, %323 : vector<8x8xf32>
    %534 = vector.shape_cast %496 : vector<8x1xi1> to vector<8x1xi1>
    %535 = vector.broadcast %534 : vector<8x1xi1> to vector<8x8xi1>
    %536 = arith.select %535, %533, %490 : vector<8x8xi1>, vector<8x8xf32>
    %537 = vector.shape_cast %496 : vector<8x1xi1> to vector<8x1xi1>
    %538 = vector.broadcast %537 : vector<8x1xi1> to vector<8x8xi1>
    %539 = arith.select %538, %531, %399 : vector<8x8xi1>, vector<8x8xi32>
    %540 = vector.extract_strided_slice %4 {offsets = [32, 0], sizes = [8, 1], strides = [1, 1]} : vector<64x1xf32> to vector<8x1xf32>
    %cst_115 = arith.constant 5.000000e-01 : f32
    %541 = vector.broadcast %cst_115 : f32 to vector<8x1xf32>
    %542 = arith.cmpf ogt, %540, %541 : vector<8x1xf32>
    %543 = vector.shape_cast %516 : vector<8x8xf32> to vector<8x8x1xf32>
    %544 = vector.broadcast %543 : vector<8x8x1xf32> to vector<8x8x8xf32>
    %545 = vector.broadcast %396 : vector<1x8x8xf32> to vector<8x8x8xf32>
    %546 = arith.addf %544, %545 : vector<8x8x8xf32>
    %547 = vector.shape_cast %330 : vector<8x8xf32> to vector<8x1x8xf32>
    %548 = vector.broadcast %547 : vector<8x1x8xf32> to vector<8x8x8xf32>
    %549 = arith.addf %546, %548 : vector<8x8x8xf32>
    %cst_116 = arith.constant dense<0xFF800000> : vector<8x8xf32>
    %550 = vector.multi_reduction <maximumf>, %549, %cst_116 [1] : vector<8x8x8xf32> to vector<8x8xf32>
    %551 = vector.shape_cast %550 : vector<8x8xf32> to vector<8x1x8xf32>
    %552 = vector.broadcast %551 : vector<8x1x8xf32> to vector<8x8x8xf32>
    %553 = arith.subf %549, %552 : vector<8x8x8xf32>
    %554 = math.exp %553 : vector<8x8x8xf32>
    %cst_117 = arith.constant dense<0.000000e+00> : vector<8x8xf32>
    %555 = vector.multi_reduction <add>, %554, %cst_117 [1] : vector<8x8x8xf32> to vector<8x8xf32>
    %556 = vector.shape_cast %555 : vector<8x8xf32> to vector<8x1x8xf32>
    %557 = math.log %556 : vector<8x1x8xf32>
    %558 = arith.addf %551, %557 : vector<8x1x8xf32>
    %559 = vector.shape_cast %558 : vector<8x1x8xf32> to vector<8x8xf32>
    %560 = vector.shape_cast %542 : vector<8x1xi1> to vector<8x1xi1>
    %561 = vector.broadcast %560 : vector<8x1xi1> to vector<8x8xi1>
    %562 = arith.select %561, %559, %516 : vector<8x8xi1>, vector<8x8xf32>
    %563 = vector.shape_cast %536 : vector<8x8xf32> to vector<8x8x1xf32>
    %564 = vector.broadcast %563 : vector<8x8x1xf32> to vector<8x8x8xf32>
    %565 = vector.broadcast %396 : vector<1x8x8xf32> to vector<8x8x8xf32>
    %566 = arith.addf %564, %565 : vector<8x8x8xf32>
    %cst_118 = arith.constant dense<0xFF800000> : vector<8x8xf32>
    %567 = vector.multi_reduction <maximumf>, %566, %cst_118 [1] : vector<8x8x8xf32> to vector<8x8xf32>
    %568 = vector.shape_cast %567 : vector<8x8xf32> to vector<8x1x8xf32>
    %569 = vector.broadcast %568 : vector<8x1x8xf32> to vector<8x8x8xf32>
    %570 = arith.cmpf oge, %566, %569 : vector<8x8x8xf32>
    %c1073741824_i32_119 = arith.constant 1073741824 : i32
    %571 = vector.shape_cast %398 : vector<1x8x8xi32> to vector<1x8x8xi32>
    %572 = vector.broadcast %571 : vector<1x8x8xi32> to vector<8x8x8xi32>
    %573 = vector.broadcast %c1073741824_i32_119 : i32 to vector<8x8x8xi32>
    %574 = arith.select %570, %572, %573 : vector<8x8x8xi1>, vector<8x8x8xi32>
    %cst_120 = arith.constant dense<2147483647> : vector<8x8xi32>
    %575 = vector.multi_reduction <minsi>, %574, %cst_120 [1] : vector<8x8x8xi32> to vector<8x8xi32>
    %576 = vector.shape_cast %575 : vector<8x8xi32> to vector<8x1x8xi32>
    %577 = vector.shape_cast %576 : vector<8x1x8xi32> to vector<8x8xi32>
    %578 = vector.shape_cast %568 : vector<8x1x8xf32> to vector<8x8xf32>
    %579 = arith.addf %578, %330 : vector<8x8xf32>
    %580 = vector.shape_cast %542 : vector<8x1xi1> to vector<8x1xi1>
    %581 = vector.broadcast %580 : vector<8x1xi1> to vector<8x8xi1>
    %582 = arith.select %581, %579, %536 : vector<8x8xi1>, vector<8x8xf32>
    %583 = vector.shape_cast %542 : vector<8x1xi1> to vector<8x1xi1>
    %584 = vector.broadcast %583 : vector<8x1xi1> to vector<8x8xi1>
    %585 = arith.select %584, %577, %399 : vector<8x8xi1>, vector<8x8xi32>
    %586 = vector.extract_strided_slice %4 {offsets = [40, 0], sizes = [8, 1], strides = [1, 1]} : vector<64x1xf32> to vector<8x1xf32>
    %cst_121 = arith.constant 5.000000e-01 : f32
    %587 = vector.broadcast %cst_121 : f32 to vector<8x1xf32>
    %588 = arith.cmpf ogt, %586, %587 : vector<8x1xf32>
    %589 = vector.shape_cast %562 : vector<8x8xf32> to vector<8x8x1xf32>
    %590 = vector.broadcast %589 : vector<8x8x1xf32> to vector<8x8x8xf32>
    %591 = vector.broadcast %396 : vector<1x8x8xf32> to vector<8x8x8xf32>
    %592 = arith.addf %590, %591 : vector<8x8x8xf32>
    %593 = vector.shape_cast %337 : vector<8x8xf32> to vector<8x1x8xf32>
    %594 = vector.broadcast %593 : vector<8x1x8xf32> to vector<8x8x8xf32>
    %595 = arith.addf %592, %594 : vector<8x8x8xf32>
    %cst_122 = arith.constant dense<0xFF800000> : vector<8x8xf32>
    %596 = vector.multi_reduction <maximumf>, %595, %cst_122 [1] : vector<8x8x8xf32> to vector<8x8xf32>
    %597 = vector.shape_cast %596 : vector<8x8xf32> to vector<8x1x8xf32>
    %598 = vector.broadcast %597 : vector<8x1x8xf32> to vector<8x8x8xf32>
    %599 = arith.subf %595, %598 : vector<8x8x8xf32>
    %600 = math.exp %599 : vector<8x8x8xf32>
    %cst_123 = arith.constant dense<0.000000e+00> : vector<8x8xf32>
    %601 = vector.multi_reduction <add>, %600, %cst_123 [1] : vector<8x8x8xf32> to vector<8x8xf32>
    %602 = vector.shape_cast %601 : vector<8x8xf32> to vector<8x1x8xf32>
    %603 = math.log %602 : vector<8x1x8xf32>
    %604 = arith.addf %597, %603 : vector<8x1x8xf32>
    %605 = vector.shape_cast %604 : vector<8x1x8xf32> to vector<8x8xf32>
    %606 = vector.shape_cast %588 : vector<8x1xi1> to vector<8x1xi1>
    %607 = vector.broadcast %606 : vector<8x1xi1> to vector<8x8xi1>
    %608 = arith.select %607, %605, %562 : vector<8x8xi1>, vector<8x8xf32>
    %609 = vector.shape_cast %582 : vector<8x8xf32> to vector<8x8x1xf32>
    %610 = vector.broadcast %609 : vector<8x8x1xf32> to vector<8x8x8xf32>
    %611 = vector.broadcast %396 : vector<1x8x8xf32> to vector<8x8x8xf32>
    %612 = arith.addf %610, %611 : vector<8x8x8xf32>
    %cst_124 = arith.constant dense<0xFF800000> : vector<8x8xf32>
    %613 = vector.multi_reduction <maximumf>, %612, %cst_124 [1] : vector<8x8x8xf32> to vector<8x8xf32>
    %614 = vector.shape_cast %613 : vector<8x8xf32> to vector<8x1x8xf32>
    %615 = vector.broadcast %614 : vector<8x1x8xf32> to vector<8x8x8xf32>
    %616 = arith.cmpf oge, %612, %615 : vector<8x8x8xf32>
    %c1073741824_i32_125 = arith.constant 1073741824 : i32
    %617 = vector.shape_cast %398 : vector<1x8x8xi32> to vector<1x8x8xi32>
    %618 = vector.broadcast %617 : vector<1x8x8xi32> to vector<8x8x8xi32>
    %619 = vector.broadcast %c1073741824_i32_125 : i32 to vector<8x8x8xi32>
    %620 = arith.select %616, %618, %619 : vector<8x8x8xi1>, vector<8x8x8xi32>
    %cst_126 = arith.constant dense<2147483647> : vector<8x8xi32>
    %621 = vector.multi_reduction <minsi>, %620, %cst_126 [1] : vector<8x8x8xi32> to vector<8x8xi32>
    %622 = vector.shape_cast %621 : vector<8x8xi32> to vector<8x1x8xi32>
    %623 = vector.shape_cast %622 : vector<8x1x8xi32> to vector<8x8xi32>
    %624 = vector.shape_cast %614 : vector<8x1x8xf32> to vector<8x8xf32>
    %625 = arith.addf %624, %337 : vector<8x8xf32>
    %626 = vector.shape_cast %588 : vector<8x1xi1> to vector<8x1xi1>
    %627 = vector.broadcast %626 : vector<8x1xi1> to vector<8x8xi1>
    %628 = arith.select %627, %625, %582 : vector<8x8xi1>, vector<8x8xf32>
    %629 = vector.shape_cast %588 : vector<8x1xi1> to vector<8x1xi1>
    %630 = vector.broadcast %629 : vector<8x1xi1> to vector<8x8xi1>
    %631 = arith.select %630, %623, %399 : vector<8x8xi1>, vector<8x8xi32>
    %632 = vector.extract_strided_slice %4 {offsets = [48, 0], sizes = [8, 1], strides = [1, 1]} : vector<64x1xf32> to vector<8x1xf32>
    %cst_127 = arith.constant 5.000000e-01 : f32
    %633 = vector.broadcast %cst_127 : f32 to vector<8x1xf32>
    %634 = arith.cmpf ogt, %632, %633 : vector<8x1xf32>
    %635 = vector.shape_cast %608 : vector<8x8xf32> to vector<8x8x1xf32>
    %636 = vector.broadcast %635 : vector<8x8x1xf32> to vector<8x8x8xf32>
    %637 = vector.broadcast %396 : vector<1x8x8xf32> to vector<8x8x8xf32>
    %638 = arith.addf %636, %637 : vector<8x8x8xf32>
    %639 = vector.shape_cast %344 : vector<8x8xf32> to vector<8x1x8xf32>
    %640 = vector.broadcast %639 : vector<8x1x8xf32> to vector<8x8x8xf32>
    %641 = arith.addf %638, %640 : vector<8x8x8xf32>
    %cst_128 = arith.constant dense<0xFF800000> : vector<8x8xf32>
    %642 = vector.multi_reduction <maximumf>, %641, %cst_128 [1] : vector<8x8x8xf32> to vector<8x8xf32>
    %643 = vector.shape_cast %642 : vector<8x8xf32> to vector<8x1x8xf32>
    %644 = vector.broadcast %643 : vector<8x1x8xf32> to vector<8x8x8xf32>
    %645 = arith.subf %641, %644 : vector<8x8x8xf32>
    %646 = math.exp %645 : vector<8x8x8xf32>
    %cst_129 = arith.constant dense<0.000000e+00> : vector<8x8xf32>
    %647 = vector.multi_reduction <add>, %646, %cst_129 [1] : vector<8x8x8xf32> to vector<8x8xf32>
    %648 = vector.shape_cast %647 : vector<8x8xf32> to vector<8x1x8xf32>
    %649 = math.log %648 : vector<8x1x8xf32>
    %650 = arith.addf %643, %649 : vector<8x1x8xf32>
    %651 = vector.shape_cast %650 : vector<8x1x8xf32> to vector<8x8xf32>
    %652 = vector.shape_cast %634 : vector<8x1xi1> to vector<8x1xi1>
    %653 = vector.broadcast %652 : vector<8x1xi1> to vector<8x8xi1>
    %654 = arith.select %653, %651, %608 : vector<8x8xi1>, vector<8x8xf32>
    %655 = vector.shape_cast %628 : vector<8x8xf32> to vector<8x8x1xf32>
    %656 = vector.broadcast %655 : vector<8x8x1xf32> to vector<8x8x8xf32>
    %657 = vector.broadcast %396 : vector<1x8x8xf32> to vector<8x8x8xf32>
    %658 = arith.addf %656, %657 : vector<8x8x8xf32>
    %cst_130 = arith.constant dense<0xFF800000> : vector<8x8xf32>
    %659 = vector.multi_reduction <maximumf>, %658, %cst_130 [1] : vector<8x8x8xf32> to vector<8x8xf32>
    %660 = vector.shape_cast %659 : vector<8x8xf32> to vector<8x1x8xf32>
    %661 = vector.broadcast %660 : vector<8x1x8xf32> to vector<8x8x8xf32>
    %662 = arith.cmpf oge, %658, %661 : vector<8x8x8xf32>
    %c1073741824_i32_131 = arith.constant 1073741824 : i32
    %663 = vector.shape_cast %398 : vector<1x8x8xi32> to vector<1x8x8xi32>
    %664 = vector.broadcast %663 : vector<1x8x8xi32> to vector<8x8x8xi32>
    %665 = vector.broadcast %c1073741824_i32_131 : i32 to vector<8x8x8xi32>
    %666 = arith.select %662, %664, %665 : vector<8x8x8xi1>, vector<8x8x8xi32>
    %cst_132 = arith.constant dense<2147483647> : vector<8x8xi32>
    %667 = vector.multi_reduction <minsi>, %666, %cst_132 [1] : vector<8x8x8xi32> to vector<8x8xi32>
    %668 = vector.shape_cast %667 : vector<8x8xi32> to vector<8x1x8xi32>
    %669 = vector.shape_cast %668 : vector<8x1x8xi32> to vector<8x8xi32>
    %670 = vector.shape_cast %660 : vector<8x1x8xf32> to vector<8x8xf32>
    %671 = arith.addf %670, %344 : vector<8x8xf32>
    %672 = vector.shape_cast %634 : vector<8x1xi1> to vector<8x1xi1>
    %673 = vector.broadcast %672 : vector<8x1xi1> to vector<8x8xi1>
    %674 = arith.select %673, %671, %628 : vector<8x8xi1>, vector<8x8xf32>
    %675 = vector.shape_cast %634 : vector<8x1xi1> to vector<8x1xi1>
    %676 = vector.broadcast %675 : vector<8x1xi1> to vector<8x8xi1>
    %677 = arith.select %676, %669, %399 : vector<8x8xi1>, vector<8x8xi32>
    %678 = vector.extract_strided_slice %4 {offsets = [56, 0], sizes = [8, 1], strides = [1, 1]} : vector<64x1xf32> to vector<8x1xf32>
    %cst_133 = arith.constant 5.000000e-01 : f32
    %679 = vector.broadcast %cst_133 : f32 to vector<8x1xf32>
    %680 = arith.cmpf ogt, %678, %679 : vector<8x1xf32>
    %681 = vector.shape_cast %654 : vector<8x8xf32> to vector<8x8x1xf32>
    %682 = vector.broadcast %681 : vector<8x8x1xf32> to vector<8x8x8xf32>
    %683 = vector.broadcast %396 : vector<1x8x8xf32> to vector<8x8x8xf32>
    %684 = arith.addf %682, %683 : vector<8x8x8xf32>
    %685 = vector.shape_cast %351 : vector<8x8xf32> to vector<8x1x8xf32>
    %686 = vector.broadcast %685 : vector<8x1x8xf32> to vector<8x8x8xf32>
    %687 = arith.addf %684, %686 : vector<8x8x8xf32>
    %cst_134 = arith.constant dense<0xFF800000> : vector<8x8xf32>
    %688 = vector.multi_reduction <maximumf>, %687, %cst_134 [1] : vector<8x8x8xf32> to vector<8x8xf32>
    %689 = vector.shape_cast %688 : vector<8x8xf32> to vector<8x1x8xf32>
    %690 = vector.broadcast %689 : vector<8x1x8xf32> to vector<8x8x8xf32>
    %691 = arith.subf %687, %690 : vector<8x8x8xf32>
    %692 = math.exp %691 : vector<8x8x8xf32>
    %cst_135 = arith.constant dense<0.000000e+00> : vector<8x8xf32>
    %693 = vector.multi_reduction <add>, %692, %cst_135 [1] : vector<8x8x8xf32> to vector<8x8xf32>
    %694 = vector.shape_cast %693 : vector<8x8xf32> to vector<8x1x8xf32>
    %695 = math.log %694 : vector<8x1x8xf32>
    %696 = arith.addf %689, %695 : vector<8x1x8xf32>
    %697 = vector.shape_cast %696 : vector<8x1x8xf32> to vector<8x8xf32>
    %698 = vector.shape_cast %680 : vector<8x1xi1> to vector<8x1xi1>
    %699 = vector.broadcast %698 : vector<8x1xi1> to vector<8x8xi1>
    %700 = arith.select %699, %697, %654 : vector<8x8xi1>, vector<8x8xf32>
    %701 = vector.shape_cast %674 : vector<8x8xf32> to vector<8x8x1xf32>
    %702 = vector.broadcast %701 : vector<8x8x1xf32> to vector<8x8x8xf32>
    %703 = vector.broadcast %396 : vector<1x8x8xf32> to vector<8x8x8xf32>
    %704 = arith.addf %702, %703 : vector<8x8x8xf32>
    %cst_136 = arith.constant dense<0xFF800000> : vector<8x8xf32>
    %705 = vector.multi_reduction <maximumf>, %704, %cst_136 [1] : vector<8x8x8xf32> to vector<8x8xf32>
    %706 = vector.shape_cast %705 : vector<8x8xf32> to vector<8x1x8xf32>
    %707 = vector.broadcast %706 : vector<8x1x8xf32> to vector<8x8x8xf32>
    %708 = arith.cmpf oge, %704, %707 : vector<8x8x8xf32>
    %c1073741824_i32_137 = arith.constant 1073741824 : i32
    %709 = vector.shape_cast %398 : vector<1x8x8xi32> to vector<1x8x8xi32>
    %710 = vector.broadcast %709 : vector<1x8x8xi32> to vector<8x8x8xi32>
    %711 = vector.broadcast %c1073741824_i32_137 : i32 to vector<8x8x8xi32>
    %712 = arith.select %708, %710, %711 : vector<8x8x8xi1>, vector<8x8x8xi32>
    %cst_138 = arith.constant dense<2147483647> : vector<8x8xi32>
    %713 = vector.multi_reduction <minsi>, %712, %cst_138 [1] : vector<8x8x8xi32> to vector<8x8xi32>
    %714 = vector.shape_cast %713 : vector<8x8xi32> to vector<8x1x8xi32>
    %715 = vector.shape_cast %714 : vector<8x1x8xi32> to vector<8x8xi32>
    %716 = vector.shape_cast %706 : vector<8x1x8xf32> to vector<8x8xf32>
    %717 = arith.addf %716, %351 : vector<8x8xf32>
    %718 = vector.shape_cast %680 : vector<8x1xi1> to vector<8x1xi1>
    %719 = vector.broadcast %718 : vector<8x1xi1> to vector<8x8xi1>
    %720 = arith.select %719, %717, %674 : vector<8x8xi1>, vector<8x8xf32>
    %721 = vector.shape_cast %680 : vector<8x1xi1> to vector<8x1xi1>
    %722 = vector.broadcast %721 : vector<8x1xi1> to vector<8x8xi1>
    %723 = arith.select %722, %715, %399 : vector<8x8xi1>, vector<8x8xi32>
    %724 = vector.broadcast %2 : vector<1x8xf32> to vector<8x8xf32>
    %725 = arith.addf %700, %724 : vector<8x8xf32>
    %cst_139 = arith.constant dense<0xFF800000> : vector<8xf32>
    %726 = vector.multi_reduction <maximumf>, %725, %cst_139 [1] : vector<8x8xf32> to vector<8xf32>
    %727 = vector.shape_cast %726 : vector<8xf32> to vector<8x1xf32>
    %728 = vector.broadcast %727 : vector<8x1xf32> to vector<8x8xf32>
    %729 = arith.subf %725, %728 : vector<8x8xf32>
    %730 = math.exp %729 : vector<8x8xf32>
    %cst_140 = arith.constant dense<0.000000e+00> : vector<8xf32>
    %731 = vector.multi_reduction <add>, %730, %cst_140 [1] : vector<8x8xf32> to vector<8xf32>
    %732 = vector.shape_cast %731 : vector<8xf32> to vector<8x1xf32>
    %733 = math.log %732 : vector<8x1xf32>
    %734 = arith.addf %727, %733 : vector<8x1xf32>
    %735 = vector.extract_strided_slice %4 {offsets = [0, 0], sizes = [8, 1], strides = [1, 1]} : vector<64x1xf32> to vector<8x1xf32>
    %736 = arith.mulf %734, %735 : vector<8x1xf32>
    %cst_141 = arith.constant dense<0.000000e+00> : vector<1xf32>
    %737 = vector.multi_reduction <add>, %736, %cst_141 [0] : vector<8x1xf32> to vector<1xf32>
    %738 = vector.shape_cast %737 : vector<1xf32> to vector<1x1xf32>
    %739 = arith.subf %395, %738 : vector<1x1xf32>
    %cst_142 = arith.constant 0.000000e+00 : f32
    %740 = vector.broadcast %cst_142 : f32 to vector<1x1xf32>
    %741 = arith.subf %740, %739 : vector<1x1xf32>
    %cst_143 = arith.constant 5.000000e-01 : f32
    %742 = vector.broadcast %cst_143 : f32 to vector<1x1xf32>
    %743 = arith.mulf %741, %742 : vector<1x1xf32>
    %c0_144 = arith.constant 0 : index
    %c0_145 = arith.constant 0 : index
    %744 = vector.load %arg14[%c0_144, %c0_145] : memref<1x1xf32, #tpu.memory_space<vmem>>, vector<1x1xf32>
    tpu.vector_store %arg14[%c0_144, %c0_145], %743 {strides = array<i32>} : memref<1x1xf32, #tpu.memory_space<vmem>>, vector<1x1xf32>,
    %745 = vector.broadcast %2 : vector<1x8xf32> to vector<8x8xf32>
    %746 = arith.addf %720, %745 : vector<8x8xf32>
    %cst_146 = arith.constant dense<0xFF800000> : vector<8xf32>
    %747 = vector.multi_reduction <maximumf>, %746, %cst_146 [1] : vector<8x8xf32> to vector<8xf32>
    %748 = vector.shape_cast %747 : vector<8xf32> to vector<8x1xf32>
    %749 = vector.broadcast %748 : vector<8x1xf32> to vector<8x8xf32>
    %750 = arith.cmpf oge, %746, %749 : vector<8x8xf32>
    %c1073741824_i32_147 = arith.constant 1073741824 : i32
    %751 = vector.broadcast %c1073741824_i32_147 : i32 to vector<8x8xi32>
    %752 = arith.select %750, %399, %751 : vector<8x8xi1>, vector<8x8xi32>
    %cst_148 = arith.constant dense<2147483647> : vector<8xi32>
    %753 = vector.multi_reduction <minsi>, %752, %cst_148 [1] : vector<8x8xi32> to vector<8xi32>
    %754 = vector.shape_cast %753 : vector<8xi32> to vector<8x1xi32>
    %755 = tpu.iota {dimensions = array<i32: 1>} : vector<8x128xi32>
    %c7_i32 = arith.constant 7 : i32
    %756 = vector.broadcast %c7_i32 : i32 to vector<8x128xi32>
    %757 = arith.cmpi eq, %755, %756 : vector<8x128xi32>
    %c0_i32 = arith.constant 0 : i32
    %758 = vector.shape_cast %754 : vector<8x1xi32> to vector<8x1xi32>
    %759 = vector.broadcast %758 : vector<8x1xi32> to vector<8x128xi32>
    %760 = vector.broadcast %c0_i32 : i32 to vector<8x128xi32>
    %761 = arith.select %757, %759, %760 : vector<8x128xi1>, vector<8x128xi32>
    %762 = vector.broadcast %754 : vector<8x1xi32> to vector<8x8xi32>
    %763 = arith.cmpi eq, %399, %762 : vector<8x8xi32>
    %c0_i32_149 = arith.constant 0 : i32
    %764 = vector.broadcast %c0_i32_149 : i32 to vector<8x8xi32>
    %765 = arith.select %763, %723, %764 : vector<8x8xi1>, vector<8x8xi32>
    %cst_150 = arith.constant dense<0> : vector<8xi32>
    %766 = vector.multi_reduction <add>, %765, %cst_150 [1] : vector<8x8xi32> to vector<8xi32>
    %767 = vector.shape_cast %766 : vector<8xi32> to vector<8x1xi32>
    %c6_i32 = arith.constant 6 : i32
    %768 = vector.broadcast %c6_i32 : i32 to vector<8x128xi32>
    %769 = arith.cmpi eq, %755, %768 : vector<8x128xi32>
    %770 = vector.shape_cast %767 : vector<8x1xi32> to vector<8x1xi32>
    %771 = vector.broadcast %770 : vector<8x1xi32> to vector<8x128xi32>
    %772 = arith.select %769, %771, %761 : vector<8x128xi1>, vector<8x128xi32>
    %773 = vector.broadcast %767 : vector<8x1xi32> to vector<8x8xi32>
    %774 = arith.cmpi eq, %399, %773 : vector<8x8xi32>
    %c0_i32_151 = arith.constant 0 : i32
    %775 = vector.broadcast %c0_i32_151 : i32 to vector<8x8xi32>
    %776 = arith.select %774, %677, %775 : vector<8x8xi1>, vector<8x8xi32>
    %cst_152 = arith.constant dense<0> : vector<8xi32>
    %777 = vector.multi_reduction <add>, %776, %cst_152 [1] : vector<8x8xi32> to vector<8xi32>
    %778 = vector.shape_cast %777 : vector<8xi32> to vector<8x1xi32>
    %c5_i32 = arith.constant 5 : i32
    %779 = vector.broadcast %c5_i32 : i32 to vector<8x128xi32>
    %780 = arith.cmpi eq, %755, %779 : vector<8x128xi32>
    %781 = vector.shape_cast %778 : vector<8x1xi32> to vector<8x1xi32>
    %782 = vector.broadcast %781 : vector<8x1xi32> to vector<8x128xi32>
    %783 = arith.select %780, %782, %772 : vector<8x128xi1>, vector<8x128xi32>
    %784 = vector.broadcast %778 : vector<8x1xi32> to vector<8x8xi32>
    %785 = arith.cmpi eq, %399, %784 : vector<8x8xi32>
    %c0_i32_153 = arith.constant 0 : i32
    %786 = vector.broadcast %c0_i32_153 : i32 to vector<8x8xi32>
    %787 = arith.select %785, %631, %786 : vector<8x8xi1>, vector<8x8xi32>
    %cst_154 = arith.constant dense<0> : vector<8xi32>
    %788 = vector.multi_reduction <add>, %787, %cst_154 [1] : vector<8x8xi32> to vector<8xi32>
    %789 = vector.shape_cast %788 : vector<8xi32> to vector<8x1xi32>
    %c4_i32 = arith.constant 4 : i32
    %790 = vector.broadcast %c4_i32 : i32 to vector<8x128xi32>
    %791 = arith.cmpi eq, %755, %790 : vector<8x128xi32>
    %792 = vector.shape_cast %789 : vector<8x1xi32> to vector<8x1xi32>
    %793 = vector.broadcast %792 : vector<8x1xi32> to vector<8x128xi32>
    %794 = arith.select %791, %793, %783 : vector<8x128xi1>, vector<8x128xi32>
    %795 = vector.broadcast %789 : vector<8x1xi32> to vector<8x8xi32>
    %796 = arith.cmpi eq, %399, %795 : vector<8x8xi32>
    %c0_i32_155 = arith.constant 0 : i32
    %797 = vector.broadcast %c0_i32_155 : i32 to vector<8x8xi32>
    %798 = arith.select %796, %585, %797 : vector<8x8xi1>, vector<8x8xi32>
    %cst_156 = arith.constant dense<0> : vector<8xi32>
    %799 = vector.multi_reduction <add>, %798, %cst_156 [1] : vector<8x8xi32> to vector<8xi32>
    %800 = vector.shape_cast %799 : vector<8xi32> to vector<8x1xi32>
    %c3_i32 = arith.constant 3 : i32
    %801 = vector.broadcast %c3_i32 : i32 to vector<8x128xi32>
    %802 = arith.cmpi eq, %755, %801 : vector<8x128xi32>
    %803 = vector.shape_cast %800 : vector<8x1xi32> to vector<8x1xi32>
    %804 = vector.broadcast %803 : vector<8x1xi32> to vector<8x128xi32>
    %805 = arith.select %802, %804, %794 : vector<8x128xi1>, vector<8x128xi32>
    %806 = vector.broadcast %800 : vector<8x1xi32> to vector<8x8xi32>
    %807 = arith.cmpi eq, %399, %806 : vector<8x8xi32>
    %c0_i32_157 = arith.constant 0 : i32
    %808 = vector.broadcast %c0_i32_157 : i32 to vector<8x8xi32>
    %809 = arith.select %807, %539, %808 : vector<8x8xi1>, vector<8x8xi32>
    %cst_158 = arith.constant dense<0> : vector<8xi32>
    %810 = vector.multi_reduction <add>, %809, %cst_158 [1] : vector<8x8xi32> to vector<8xi32>
    %811 = vector.shape_cast %810 : vector<8xi32> to vector<8x1xi32>
    %c2_i32 = arith.constant 2 : i32
    %812 = vector.broadcast %c2_i32 : i32 to vector<8x128xi32>
    %813 = arith.cmpi eq, %755, %812 : vector<8x128xi32>
    %814 = vector.shape_cast %811 : vector<8x1xi32> to vector<8x1xi32>
    %815 = vector.broadcast %814 : vector<8x1xi32> to vector<8x128xi32>
    %816 = arith.select %813, %815, %805 : vector<8x128xi1>, vector<8x128xi32>
    %817 = vector.broadcast %811 : vector<8x1xi32> to vector<8x8xi32>
    %818 = arith.cmpi eq, %399, %817 : vector<8x8xi32>
    %c0_i32_159 = arith.constant 0 : i32
    %819 = vector.broadcast %c0_i32_159 : i32 to vector<8x8xi32>
    %820 = arith.select %818, %493, %819 : vector<8x8xi1>, vector<8x8xi32>
    %cst_160 = arith.constant dense<0> : vector<8xi32>
    %821 = vector.multi_reduction <add>, %820, %cst_160 [1] : vector<8x8xi32> to vector<8xi32>
    %822 = vector.shape_cast %821 : vector<8xi32> to vector<8x1xi32>
    %c1_i32 = arith.constant 1 : i32
    %823 = vector.broadcast %c1_i32 : i32 to vector<8x128xi32>
    %824 = arith.cmpi eq, %755, %823 : vector<8x128xi32>
    %825 = vector.shape_cast %822 : vector<8x1xi32> to vector<8x1xi32>
    %826 = vector.broadcast %825 : vector<8x1xi32> to vector<8x128xi32>
    %827 = arith.select %824, %826, %816 : vector<8x128xi1>, vector<8x128xi32>
    %828 = vector.broadcast %822 : vector<8x1xi32> to vector<8x8xi32>
    %829 = arith.cmpi eq, %399, %828 : vector<8x8xi32>
    %c0_i32_161 = arith.constant 0 : i32
    %830 = vector.broadcast %c0_i32_161 : i32 to vector<8x8xi32>
    %831 = arith.select %829, %447, %830 : vector<8x8xi1>, vector<8x8xi32>
    %cst_162 = arith.constant dense<0> : vector<8xi32>
    %832 = vector.multi_reduction <add>, %831, %cst_162 [1] : vector<8x8xi32> to vector<8xi32>
    %833 = vector.shape_cast %832 : vector<8xi32> to vector<8x1xi32>
    %c0_i32_163 = arith.constant 0 : i32
    %834 = vector.broadcast %c0_i32_163 : i32 to vector<8x128xi32>
    %835 = arith.cmpi eq, %755, %834 : vector<8x128xi32>
    %836 = vector.shape_cast %833 : vector<8x1xi32> to vector<8x1xi32>
    %837 = vector.broadcast %836 : vector<8x1xi32> to vector<8x128xi32>
    %838 = arith.select %835, %837, %827 : vector<8x128xi1>, vector<8x128xi32>
    %c0_164 = arith.constant 0 : index
    %c0_165 = arith.constant 0 : index
    %839 = vector.load %arg15[%c0_164, %c0_165] : memref<8x128xi32, #tpu.memory_space<vmem>>, vector<8x128xi32>
    tpu.vector_store %arg15[%c0_164, %c0_165], %838 {strides = array<i32>} : memref<8x128xi32, #tpu.memory_space<vmem>>, vector<8x128xi32>,
    return
  }
}

</mosaic_0001>

<llo_original>
// kernel: _forward_device.1
$region0: #{_forward_device.1}
  #allocation0 [shape = 'u32[]', space=smem, size = 0x4, offset = 0x4, fixed_abs, tag = 'smem constant byte address 0x4 - core index']
  #allocation1 [shape = 'u32[144,128]{1,0:T(1,128)}', space=vmem, size = 0x12000, scoped, tag = 'internal scratch']
  %s0 = inlined_call_operand.vmem [shape: f32[64,64], index: 0, kind: input, shape index: {}]
  %s1 = inlined_call_operand.vmem [shape: f32[64,64], index: 1, kind: input, shape index: {}]
  %s2 = inlined_call_operand.vmem [shape: f32[64,1], index: 2, kind: input, shape index: {}]
  %s3 = inlined_call_operand.vmem [shape: f32[64,8], index: 3, kind: input, shape index: {}]
  %s4 = inlined_call_operand.vmem [shape: f32[8,8], index: 4, kind: input, shape index: {}]
  %s5 = inlined_call_operand.vmem [shape: f32[64,256], index: 5, kind: input, shape index: {}]
  %s6 = inlined_call_operand.vmem [shape: f32[1,256], index: 6, kind: input, shape index: {}]
  %s7 = inlined_call_operand.vmem [shape: f32[64,256], index: 7, kind: input, shape index: {}]
  %s8 = inlined_call_operand.vmem [shape: f32[32,8], index: 8, kind: input, shape index: {}]
  %s9 = inlined_call_operand.vmem [shape: f32[32,8], index: 9, kind: input, shape index: {}]
  %s10 = inlined_call_operand.vmem [shape: f32[1,8], index: 10, kind: input, shape index: {}]
  %s11 = inlined_call_operand.vmem [shape: f32[8,8], index: 11, kind: input, shape index: {}]
  %s12 = inlined_call_operand.vmem [shape: f32[1,8], index: 12, kind: input, shape index: {}]
  %s13 = inlined_call_operand.vmem [shape: f32[1,8], index: 13, kind: input, shape index: {}]
  %s14 = inlined_call_operand.hbm [shape: f32[1,1], index: 14, kind: output, shape index: {0}]
  %s15 = inlined_call_operand.vmem [shape: s32[8,128], index: 15, kind: output, shape index: {1}]
  %16 = xla_tuple %s14, %s15
  %s17 = sld [smem:[#allocation0]]
  $region74: #{_forward_device.1} parent=0
    _
  %s19 = ssub.s32 1, %s17
  %s20 = scalar_select 0, %s19, %s17
  $region1: #{_forward_device.1} parent=0
    #allocation2 [shape = 'u8[512]{0}', space=vmem, size = 0x400, scoped, tag = 'output window, operand 0, single buffered']
    #allocation3 [shape = 's32[1]{0}', space=sflag, size = 0x4, scoped, tag = 'scoped memory for _forward_device.1']
    %21 = vsyncpa [#allocation3], 0
    // Predicated region
    $region2: #{_forward_device.1} parent=1 // pred_check
      _
    $region3: #{_forward_device.1} parent=1 // pred_check_branch
      %23 = sbr.rel (0) target = $region5
    $region4: #{_forward_device.1} parent=1 // pred_region
      _
    $region5: #{_forward_device.1} parent=1 // pred_fallthru
      _
    // Predicated region
    $region6: #{_forward_device.1} parent=1 // pred_check
      _
    $region7: #{_forward_device.1} parent=1 // pred_check_branch
      %25 = sbr.rel (0) target = $region9
    $region8: #{_forward_device.1} parent=1 // pred_region
      _
    $region9: #{_forward_device.1} parent=1 // pred_fallthru
      _
    // Predicated region
    $region10: #{_forward_device.1} parent=1 // pred_check
      _
    $region11: #{_forward_device.1} parent=1 // pred_check_branch
      %27 = sbr.rel (0) target = $region13
    $region12: #{_forward_device.1} parent=1 // pred_region
      _
    $region13: #{_forward_device.1} parent=1 // pred_fallthru
      _
    // Predicated region
    $region14: #{_forward_device.1} parent=1 // pred_check
      _
    $region15: #{_forward_device.1} parent=1 // pred_check_branch
      %29 = sbr.rel (0) target = $region17
    $region16: #{_forward_device.1} parent=1 // pred_region
      _
    $region17: #{_forward_device.1} parent=1 // pred_fallthru
      _
    // Predicated region
    $region18: #{_forward_device.1} parent=1 // pred_check
      _
    $region19: #{_forward_device.1} parent=1 // pred_check_branch
      %31 = sbr.rel (0) target = $region21
    $region20: #{_forward_device.1} parent=1 // pred_region
      _
    $region21: #{_forward_device.1} parent=1 // pred_fallthru
      _
    // Predicated region
    $region22: #{_forward_device.1} parent=1 // pred_check
      _
    $region23: #{_forward_device.1} parent=1 // pred_check_branch
      %33 = sbr.rel (0) target = $region25
    $region24: #{_forward_device.1} parent=1 // pred_region
      _
    $region25: #{_forward_device.1} parent=1 // pred_fallthru
      _
    // Predicated region
    $region26: #{_forward_device.1} parent=1 // pred_check
      _
    $region27: #{_forward_device.1} parent=1 // pred_check_branch
      %35 = sbr.rel (0) target = $region29
    $region28: #{_forward_device.1} parent=1 // pred_region
      _
    $region29: #{_forward_device.1} parent=1 // pred_fallthru
      _
    // Predicated region
    $region30: #{_forward_device.1} parent=1 // pred_check
      _
    $region31: #{_forward_device.1} parent=1 // pred_check_branch
      %37 = sbr.rel (0) target = $region33
    $region32: #{_forward_device.1} parent=1 // pred_region
      _
    $region33: #{_forward_device.1} parent=1 // pred_fallthru
      _
    // Predicated region
    $region34: #{_forward_device.1} parent=1 // pred_check
      _
    $region35: #{_forward_device.1} parent=1 // pred_check_branch
      %39 = sbr.rel (0) target = $region37
    $region36: #{_forward_device.1} parent=1 // pred_region
      _
    $region37: #{_forward_device.1} parent=1 // pred_fallthru
      _
    // Predicated region
    $region38: #{_forward_device.1} parent=1 // pred_check
      _
    $region39: #{_forward_device.1} parent=1 // pred_check_branch
      %41 = sbr.rel (0) target = $region41
    $region40: #{_forward_device.1} parent=1 // pred_region
      _
    $region41: #{_forward_device.1} parent=1 // pred_fallthru
      _
    // Predicated region
    $region42: #{_forward_device.1} parent=1 // pred_check
      _
    $region43: #{_forward_device.1} parent=1 // pred_check_branch
      %43 = sbr.rel (0) target = $region45
    $region44: #{_forward_device.1} parent=1 // pred_region
      _
    $region45: #{_forward_device.1} parent=1 // pred_fallthru
      _
    // Predicated region
    $region46: #{_forward_device.1} parent=1 // pred_check
      _
    $region47: #{_forward_device.1} parent=1 // pred_check_branch
      %45 = sbr.rel (0) target = $region49
    $region48: #{_forward_device.1} parent=1 // pred_region
      _
    $region49: #{_forward_device.1} parent=1 // pred_fallthru
      _
    // Predicated region
    $region50: #{_forward_device.1} parent=1 // pred_check
      _
    $region51: #{_forward_device.1} parent=1 // pred_check_branch
      %47 = sbr.rel (0) target = $region53
    $region52: #{_forward_device.1} parent=1 // pred_region
      _
    $region53: #{_forward_device.1} parent=1 // pred_fallthru
      _
    // Predicated region
    $region54: #{_forward_device.1} parent=1 // pred_check
      _
    $region55: #{_forward_device.1} parent=1 // pred_check_branch
      %49 = sbr.rel (0) target = $region57
    $region56: #{_forward_device.1} parent=1 // pred_region
      _
    $region57: #{_forward_device.1} parent=1 // pred_fallthru
      _
    %v50 = vld [vmem:[%s11] sm:$0xff]
    %v51 = vld [vmem:[%s12] sm:$0x1]
    %v52 = vld [vmem:[%s13] sm:$0x1]
    %v53 = vld [vmem:[%s3] sm:$0xff]
    %v54 = vld [vmem:[%s3 + $0x8] sm:$0xff]
    %v55 = vld [vmem:[%s3 + $0x10] sm:$0xff]
    %v56 = vld [vmem:[%s3 + $0x18] sm:$0xff]
    %v57 = vld [vmem:[%s3 + $0x20] sm:$0xff]
    %v58 = vld [vmem:[%s3 + $0x28] sm:$0xff]
    %v59 = vld [vmem:[%s3 + $0x30] sm:$0xff]
    %v60 = vld [vmem:[%s3 + $0x38] sm:$0xff]
    %v61 = vld [vmem:[%s2] sm:$0xff]
    %v62 = vld [vmem:[%s2 + $0x8] sm:$0xff]
    %v63 = vld [vmem:[%s2 + $0x10] sm:$0xff]
    %v64 = vld [vmem:[%s2 + $0x18] sm:$0xff]
    %v65 = vld [vmem:[%s2 + $0x20] sm:$0xff]
    %v66 = vld [vmem:[%s2 + $0x28] sm:$0xff]
    %v67 = vld [vmem:[%s2 + $0x30] sm:$0xff]
    %v68 = vld [vmem:[%s2 + $0x38] sm:$0xff]
    %v69 = vld [vmem:[%s1] sm:$0xff]
    %v70 = vld [vmem:[%s1 + $0x8] sm:$0xff]
    %v71 = vld [vmem:[%s1 + $0x10] sm:$0xff]
    %v72 = vld [vmem:[%s1 + $0x18] sm:$0xff]
    %v73 = vld [vmem:[%s1 + $0x20] sm:$0xff]
    %v74 = vld [vmem:[%s1 + $0x28] sm:$0xff]
    %v75 = vld [vmem:[%s1 + $0x30] sm:$0xff]
    %v76 = vld [vmem:[%s1 + $0x38] sm:$0xff]
    %v77 = vld [vmem:[%s0] sm:$0xff]
    %v78 = vld [vmem:[%s0 + $0x8] sm:$0xff]
    %v79 = vld [vmem:[%s0 + $0x10] sm:$0xff]
    %v80 = vld [vmem:[%s0 + $0x18] sm:$0xff]
    %v81 = vld [vmem:[%s0 + $0x20] sm:$0xff]
    %v82 = vld [vmem:[%s0 + $0x28] sm:$0xff]
    %v83 = vld [vmem:[%s0 + $0x30] sm:$0xff]
    %v84 = vld [vmem:[%s0 + $0x38] sm:$0xff]
    %v85 = vld [vmem:[%s5] sm:$0xff]
    %v86 = vld [vmem:[%s5 + $0x8] sm:$0xff]
    %v87 = vld [vmem:[%s5 + $0x10] sm:$0xff]
    %v88 = vld [vmem:[%s5 + $0x18] sm:$0xff]
    %v89 = vld [vmem:[%s5 + $0x20] sm:$0xff]
    %v90 = vld [vmem:[%s5 + $0x28] sm:$0xff]
    %v91 = vld [vmem:[%s5 + $0x30] sm:$0xff]
    %v92 = vld [vmem:[%s5 + $0x38] sm:$0xff]
    %v93 = vld [vmem:[%s5 + $0x40] sm:$0xff]
    %v94 = vld [vmem:[%s5 + $0x48] sm:$0xff]
    %v95 = vld [vmem:[%s5 + $0x50] sm:$0xff]
    %v96 = vld [vmem:[%s5 + $0x58] sm:$0xff]
    %v97 = vld [vmem:[%s5 + $0x60] sm:$0xff]
    %v98 = vld [vmem:[%s5 + $0x68] sm:$0xff]
    %v99 = vld [vmem:[%s5 + $0x70] sm:$0xff]
    %v100 = vld [vmem:[%s5 + $0x78] sm:$0xff]
    %v101 = vld [vmem:[%s6] sm:$0x3]
    %v103 = vlaneseq
    %v104 = vshrl.u32 %v103, 7
    %v105 = vsub.s32 0, %v104
    %v106 = vrot.slane %v101, %v105
    %v107 = vlaneseq
    %v108 = vshrl.u32 %v107, 7
    %v109 = vsub.s32 1, %v108
    %v110 = vrot.slane %v101, %v109
    %vm113 = vcmask 523264
    %v115 = vsel %vm113, %v77, 0
    %v118 = vsel %vm113, %v78, 0
    %v121 = vsel %vm113, %v79, 0
    %v124 = vsel %vm113, %v80, 0
    %v127 = vsel %vm113, %v81, 0
    %v130 = vsel %vm113, %v82, 0
    %v133 = vsel %vm113, %v83, 0
    %v136 = vsel %vm113, %v84, 0
    %138 = vmatprep.subr.mxu0 0.0
    %139 = vmatpush1.msra.mxu0 0.0
    %140 = vmatprep.subr.mxu0 0.0
    %141 = vmatpush1.msra.mxu0 0.0
    %142 = vmatprep.subr.mxu0 0.0
    %143 = vmatpush1.msra.mxu0 0.0
    %144 = vmatprep.subr.mxu0 0.0
    %145 = vmatpush1.msra.mxu0 0.0
    %146 = vmatprep.subr.mxu0 0.0
    %147 = vmatpush1.msra.mxu0 0.0
    %148 = vmatprep.subr.mxu0 0.0
    %149 = vmatpush1.msra.mxu0 0.0
    %150 = vmatprep.subr.mxu0 0.0
    %151 = vmatpush1.msra.mxu0 0.0
    %152 = vmatprep.subr.mxu0 0.0
    %153 = vmatpush1.msra.mxu0 0.0
    %154 = vmatprep.subr.mxu0 %v100
    %155 = vmatpush1.msra.mxu0 %v99
    %156 = vmatprep.subr.mxu0 %v98
    %157 = vmatpush1.msra.mxu0 %v97
    %158 = vmatprep.subr.mxu0 %v96
    %159 = vmatpush1.msra.mxu0 %v95
    %160 = vmatprep.subr.mxu0 %v94
    %161 = vmatpush1.msra.mxu0 %v93
    %162 = vmatprep.subr.mxu0 %v92
    %163 = vmatpush1.msra.mxu0 %v91
    %164 = vmatprep.subr.mxu0 %v90
    %165 = vmatpush1.msra.mxu0 %v89
    %166 = vmatprep.subr.mxu0 %v88
    %167 = vmatpush1.msra.mxu0 %v87
    %168 = vmatprep.subr.mxu0 %v86
    %169 = vmatpush1.msra.mxu0 %v85
    %170 = vmatprep.subr.mxu0 0.0
    %171 = vmatpush2.msra.mxu0 0.0
    %172 = vmatprep.subr.mxu0 0.0
    %173 = vmatpush2.msra.mxu0 0.0
    %174 = vmatprep.subr.mxu0 0.0
    %175 = vmatpush2.msra.mxu0 0.0
    %176 = vmatprep.subr.mxu0 0.0
    %177 = vmatpush2.msra.mxu0 0.0
    %178 = vmatprep.subr.mxu0 0.0
    %179 = vmatpush2.msra.mxu0 0.0
    %180 = vmatprep.subr.mxu0 0.0
    %181 = vmatpush2.msra.mxu0 0.0
    %182 = vmatprep.subr.mxu0 0.0
    %183 = vmatpush2.msra.mxu0 0.0
    %184 = vmatprep.subr.mxu0 0.0
    %185 = vmatpush2.msra.mxu0 0.0
    %186 = vmatprep.subr.mxu0 0.0
    %187 = vmatpush2.msra.mxu0 0.0
    %188 = vmatprep.subr.mxu0 0.0
    %189 = vmatpush2.msra.mxu0 0.0
    %190 = vmatprep.subr.mxu0 0.0
    %191 = vmatpush2.msra.mxu0 0.0
    %192 = vmatprep.subr.mxu0 0.0
    %193 = vmatpush2.msra.mxu0 0.0
    %194 = vmatprep.subr.mxu0 0.0
    %195 = vmatpush2.msra.mxu0 0.0
    %196 = vmatprep.subr.mxu0 0.0
    %197 = vmatpush2.msra.mxu0 0.0
    %198 = vmatprep.subr.mxu0 0.0
    %199 = vmatpush2.msra.mxu0 0.0
    %200 = vmatprep.subr.mxu0 0.0
    %201 = vmatpush2.msra.mxu0 0.0
    %202 = vmatprep.mubr.f32.mxu0 0.0
    %203 = vmatmul.mubr.f32.gmra.mxu0 %v115
    %v204 = vpop.f32.mrf.mxu0
    %v205 = vadd.f32 %v106, %v204
    %v206 = vpop.f32.mrf.mxu0
    %v207 = vadd.f32 %v110, %v206
    %208 = vmatprep.mubr.f32.mxu0 0.0
    %209 = vmatmul.mubr.f32.gmra.mxu0 %v118
    %v210 = vpop.f32.mrf.mxu0
    %v211 = vadd.f32 %v106, %v210
    %v212 = vpop.f32.mrf.mxu0
    %v213 = vadd.f32 %v110, %v212
    %214 = vmatprep.mubr.f32.mxu0 0.0
    %215 = vmatmul.mubr.f32.gmra.mxu0 %v121
    %v216 = vpop.f32.mrf.mxu0
    %v217 = vadd.f32 %v106, %v216
    %v218 = vpop.f32.mrf.mxu0
    %v219 = vadd.f32 %v110, %v218
    %220 = vmatprep.mubr.f32.mxu0 0.0
    %221 = vmatmul.mubr.f32.gmra.mxu0 %v124
    %v222 = vpop.f32.mrf.mxu0
    %v223 = vadd.f32 %v106, %v222
    %v224 = vpop.f32.mrf.mxu0
    %v225 = vadd.f32 %v110, %v224
    %226 = vmatprep.mubr.f32.mxu0 0.0
    %227 = vmatmul.mubr.f32.gmra.mxu0 %v127
    %v228 = vpop.f32.mrf.mxu0
    %v229 = vadd.f32 %v106, %v228
    %v230 = vpop.f32.mrf.mxu0
    %v231 = vadd.f32 %v110, %v230
    %232 = vmatprep.mubr.f32.mxu0 0.0
    %233 = vmatmul.mubr.f32.gmra.mxu0 %v130
    %v234 = vpop.f32.mrf.mxu0
    %v235 = vadd.f32 %v106, %v234
    %v236 = vpop.f32.mrf.mxu0
    %v237 = vadd.f32 %v110, %v236
    %238 = vmatprep.mubr.f32.mxu0 0.0
    %239 = vmatmul.mubr.f32.gmra.mxu0 %v133
    %v240 = vpop.f32.mrf.mxu0
    %v241 = vadd.f32 %v106, %v240
    %v242 = vpop.f32.mrf.mxu0
    %v243 = vadd.f32 %v110, %v242
    %244 = vmatprep.mubr.f32.mxu0 0.0
    %245 = vmatmul.mubr.f32.gmra.mxu0 %v136
    %v246 = vpop.f32.mrf.mxu0
    %v247 = vadd.f32 %v106, %v246
    %v248 = vpop.f32.mrf.mxu0
    %v249 = vadd.f32 %v110, %v248
    %250 = vdwg.mxu0
    %v251 = vld [vmem:[%s7] sm:$0xff]
    %v252 = vld [vmem:[%s7 + $0x8] sm:$0xff]
    %v253 = vld [vmem:[%s7 + $0x10] sm:$0xff]
    %v254 = vld [vmem:[%s7 + $0x18] sm:$0xff]
    %v255 = vld [vmem:[%s7 + $0x20] sm:$0xff]
    %v256 = vld [vmem:[%s7 + $0x28] sm:$0xff]
    %v257 = vld [vmem:[%s7 + $0x30] sm:$0xff]
    %v258 = vld [vmem:[%s7 + $0x38] sm:$0xff]
    %v259 = vld [vmem:[%s7 + $0x40] sm:$0xff]
    %v260 = vld [vmem:[%s7 + $0x48] sm:$0xff]
    %v261 = vld [vmem:[%s7 + $0x50] sm:$0xff]
    %v262 = vld [vmem:[%s7 + $0x58] sm:$0xff]
    %v263 = vld [vmem:[%s7 + $0x60] sm:$0xff]
    %v264 = vld [vmem:[%s7 + $0x68] sm:$0xff]
    %v265 = vld [vmem:[%s7 + $0x70] sm:$0xff]
    %v266 = vld [vmem:[%s7 + $0x78] sm:$0xff]
    %v268 = vsel %vm113, 0.0, 0
    %270 = vmatprep.subr.mxu0 0.0
    %271 = vmatpush1.msra.mxu0 0.0
    %272 = vmatprep.subr.mxu0 0.0
    %273 = vmatpush1.msra.mxu0 0.0
    %274 = vmatprep.subr.mxu0 0.0
    %275 = vmatpush1.msra.mxu0 0.0
    %276 = vmatprep.subr.mxu0 0.0
    %277 = vmatpush1.msra.mxu0 0.0
    %278 = vmatprep.subr.mxu0 0.0
    %279 = vmatpush1.msra.mxu0 0.0
    %280 = vmatprep.subr.mxu0 0.0
    %281 = vmatpush1.msra.mxu0 0.0
    %282 = vmatprep.subr.mxu0 0.0
    %283 = vmatpush1.msra.mxu0 0.0
    %284 = vmatprep.subr.mxu0 0.0
    %285 = vmatpush1.msra.mxu0 0.0
    %286 = vmatprep.subr.mxu0 %v266
    %287 = vmatpush1.msra.mxu0 %v265
    %288 = vmatprep.subr.mxu0 %v264
    %289 = vmatpush1.msra.mxu0 %v263
    %290 = vmatprep.subr.mxu0 %v262
    %291 = vmatpush1.msra.mxu0 %v261
    %292 = vmatprep.subr.mxu0 %v260
    %293 = vmatpush1.msra.mxu0 %v259
    %294 = vmatprep.subr.mxu0 %v258
    %295 = vmatpush1.msra.mxu0 %v257
    %296 = vmatprep.subr.mxu0 %v256
    %297 = vmatpush1.msra.mxu0 %v255
    %298 = vmatprep.subr.mxu0 %v254
    %299 = vmatpush1.msra.mxu0 %v253
    %300 = vmatprep.subr.mxu0 %v252
    %301 = vmatpush1.msra.mxu0 %v251
    %302 = vmatprep.subr.mxu0 0.0
    %303 = vmatpush2.msra.mxu0 0.0
    %304 = vmatprep.subr.mxu0 0.0
    %305 = vmatpush2.msra.mxu0 0.0
    %306 = vmatprep.subr.mxu0 0.0
    %307 = vmatpush2.msra.mxu0 0.0
    %308 = vmatprep.subr.mxu0 0.0
    %309 = vmatpush2.msra.mxu0 0.0
    %310 = vmatprep.subr.mxu0 0.0
    %311 = vmatpush2.msra.mxu0 0.0
    %312 = vmatprep.subr.mxu0 0.0
    %313 = vmatpush2.msra.mxu0 0.0
    %314 = vmatprep.subr.mxu0 0.0
    %315 = vmatpush2.msra.mxu0 0.0
    %316 = vmatprep.subr.mxu0 0.0
    %317 = vmatpush2.msra.mxu0 0.0
    %318 = vmatprep.subr.mxu0 0.0
    %319 = vmatpush2.msra.mxu0 0.0
    %320 = vmatprep.subr.mxu0 0.0
    %321 = vmatpush2.msra.mxu0 0.0
    %322 = vmatprep.subr.mxu0 0.0
    %323 = vmatpush2.msra.mxu0 0.0
    %324 = vmatprep.subr.mxu0 0.0
    %325 = vmatpush2.msra.mxu0 0.0
    %326 = vmatprep.subr.mxu0 0.0
    %327 = vmatpush2.msra.mxu0 0.0
    %328 = vmatprep.subr.mxu0 0.0
    %329 = vmatpush2.msra.mxu0 0.0
    %330 = vmatprep.subr.mxu0 0.0
    %331 = vmatpush2.msra.mxu0 0.0
    %332 = vmatprep.subr.mxu0 0.0
    %333 = vmatpush2.msra.mxu0 0.0
    %334 = vmatprep.mubr.f32.mxu0 0.0
    %335 = vmatmul.mubr.f32.gmra.mxu0 %v268
    %v336 = vpop.f32.mrf.mxu0
    %v337 = vadd.f32 0.0, %v336
    %v338 = vpop.f32.mrf.mxu0
    %v339 = vadd.f32 0.0, %v338
    %340 = vdwg.mxu0
    %v341 = vadd.f32 %v205, %v337
    %v342 = vadd.f32 %v207, %v339
    %v343 = vxor.u32 %v341, 2147483648
    %v344 = vmul.f32 %v343, 1.442695
    %v345 = vpow.pop %v344
    %v346 = vadd.f32 %v345, 1.0
    %v347 = vrcp.pop %v346
    %v348 = vmul.f32 1.0, %v347
    %v349 = vtanh.pop %v342
    %v350 = vxor.u32 %v342, 2147483648
    %v351 = vmul.f32 %v350, 1.442695
    %v352 = vpow.pop %v351
    %v353 = vadd.f32 %v352, 1.0
    %v354 = vrcp.pop %v353
    %v355 = vmul.f32 1.0, %v354
    %v356 = vmul.f32 %v348, 0.0
    %v357 = vmul.f32 %v348, %v349
    %359 = vrot.lane.b32.xlu0 %v357, 64
    %v360 = vpop.permute.xlu0 %359
    %v362 = vadd.f32 %v356, %v360
    %v363 = vtanh.pop %v362
    %v364 = vmul.f32 %v355, %v363
    %vm365 = vcmp.gt.f32.partialorder %v69, 0.5
    %367 = vrot.lane.b32.xlu0 %v364, 64
    %v368 = vpop.permute.xlu0 %367
    %v370 = vsel %vm365, %v368, 0.0
    %372 = vrot.lane.b32.xlu0 %v362, 64
    %v373 = vpop.permute.xlu0 %372
    %v375 = vsel %vm365, %v373, 0.0
    %v377 = vsel %vm113, %v370, 0
    %379 = vmatprep.subr.mxu0 0.0
    %380 = vmatpush1.msra.mxu0 0.0
    %381 = vmatprep.subr.mxu0 0.0
    %382 = vmatpush1.msra.mxu0 0.0
    %383 = vmatprep.subr.mxu0 0.0
    %384 = vmatpush1.msra.mxu0 0.0
    %385 = vmatprep.subr.mxu0 0.0
    %386 = vmatpush1.msra.mxu0 0.0
    %387 = vmatprep.subr.mxu0 0.0
    %388 = vmatpush1.msra.mxu0 0.0
    %389 = vmatprep.subr.mxu0 0.0
    %390 = vmatpush1.msra.mxu0 0.0
    %391 = vmatprep.subr.mxu0 0.0
    %392 = vmatpush1.msra.mxu0 0.0
    %393 = vmatprep.subr.mxu0 0.0
    %394 = vmatpush1.msra.mxu0 0.0
    %395 = vmatprep.subr.mxu0 %v266
    %396 = vmatpush1.msra.mxu0 %v265
    %397 = vmatprep.subr.mxu0 %v264
    %398 = vmatpush1.msra.mxu0 %v263
    %399 = vmatprep.subr.mxu0 %v262
    %400 = vmatpush1.msra.mxu0 %v261
    %401 = vmatprep.subr.mxu0 %v260
    %402 = vmatpush1.msra.mxu0 %v259
    %403 = vmatprep.subr.mxu0 %v258
    %404 = vmatpush1.msra.mxu0 %v257
    %405 = vmatprep.subr.mxu0 %v256
    %406 = vmatpush1.msra.mxu0 %v255
    %407 = vmatprep.subr.mxu0 %v254
    %408 = vmatpush1.msra.mxu0 %v253
    %409 = vmatprep.subr.mxu0 %v252
    %410 = vmatpush1.msra.mxu0 %v251
    %411 = vmatprep.subr.mxu0 0.0
    %412 = vmatpush2.msra.mxu0 0.0
    %413 = vmatprep.subr.mxu0 0.0
    %414 = vmatpush2.msra.mxu0 0.0
    %415 = vmatprep.subr.mxu0 0.0
    %416 = vmatpush2.msra.mxu0 0.0
    %417 = vmatprep.subr.mxu0 0.0
    %418 = vmatpush2.msra.mxu0 0.0
    %419 = vmatprep.subr.mxu0 0.0
    %420 = vmatpush2.msra.mxu0 0.0
    %421 = vmatprep.subr.mxu0 0.0
    %422 = vmatpush2.msra.mxu0 0.0
    %423 = vmatprep.subr.mxu0 0.0
    %424 = vmatpush2.msra.mxu0 0.0
    %425 = vmatprep.subr.mxu0 0.0
    %426 = vmatpush2.msra.mxu0 0.0
    %427 = vmatprep.subr.mxu0 0.0
    %428 = vmatpush2.msra.mxu0 0.0
    %429 = vmatprep.subr.mxu0 0.0
    %430 = vmatpush2.msra.mxu0 0.0
    %431 = vmatprep.subr.mxu0 0.0
    %432 = vmatpush2.msra.mxu0 0.0
    %433 = vmatprep.subr.mxu0 0.0
    %434 = vmatpush2.msra.mxu0 0.0
    %435 = vmatprep.subr.mxu0 0.0
    %436 = vmatpush2.msra.mxu0 0.0
    %437 = vmatprep.subr.mxu0 0.0
    %438 = vmatpush2.msra.mxu0 0.0
    %439 = vmatprep.subr.mxu0 0.0
    %440 = vmatpush2.msra.mxu0 0.0
    %441 = vmatprep.subr.mxu0 0.0
    %442 = vmatpush2.msra.mxu0 0.0
    %443 = vmatprep.mubr.f32.mxu0 0.0
    %444 = vmatmul.mubr.f32.gmra.mxu0 %v377
    %v445 = vpop.f32.mrf.mxu0
    %v446 = vadd.f32 0.0, %v445
    %v447 = vpop.f32.mrf.mxu0
    %v448 = vadd.f32 0.0, %v447
    %449 = vdwg.mxu0
    %v450 = vadd.f32 %v211, %v446
    %v451 = vadd.f32 %v213, %v448
    %v452 = vxor.u32 %v450, 2147483648
    %v453 = vmul.f32 %v452, 1.442695
    %v454 = vpow.pop %v453
    %v455 = vadd.f32 %v454, 1.0
    %v456 = vrcp.pop %v455
    %v457 = vmul.f32 1.0, %v456
    %v458 = vtanh.pop %v451
    %v459 = vxor.u32 %v451, 2147483648
    %v460 = vmul.f32 %v459, 1.442695
    %v461 = vpow.pop %v460
    %v462 = vadd.f32 %v461, 1.0
    %v463 = vrcp.pop %v462
    %v464 = vmul.f32 1.0, %v463
    %466 = vrot.lane.b32.xlu0 %v375, 64
    %v467 = vpop.permute.xlu0 %466
    %v469 = vmul.f32 %v457, %v467
    %v470 = vmul.f32 %v457, %v458
    %472 = vrot.lane.b32.xlu0 %v470, 64
    %v473 = vpop.permute.xlu0 %472
    %v475 = vadd.f32 %v469, %v473
    %v476 = vtanh.pop %v475
    %v477 = vmul.f32 %v464, %v476
    %vm478 = vcmp.gt.f32.partialorder %v70, 0.5
    %480 = vrot.lane.b32.xlu0 %v477, 64
    %v481 = vpop.permute.xlu0 %480
    %v483 = vsel %vm478, %v481, 0.0
    %v484 = vsel %vm478, %v481, %v370
    %486 = vrot.lane.b32.xlu0 %v475, 64
    %v487 = vpop.permute.xlu0 %486
    %v489 = vsel %vm478, %v487, %v375
    %v491 = vsel %vm113, %v484, 0
    %493 = vmatprep.subr.mxu0 0.0
    %494 = vmatpush1.msra.mxu0 0.0
    %495 = vmatprep.subr.mxu0 0.0
    %496 = vmatpush1.msra.mxu0 0.0
    %497 = vmatprep.subr.mxu0 0.0
    %498 = vmatpush1.msra.mxu0 0.0
    %499 = vmatprep.subr.mxu0 0.0
    %500 = vmatpush1.msra.mxu0 0.0
    %501 = vmatprep.subr.mxu0 0.0
    %502 = vmatpush1.msra.mxu0 0.0
    %503 = vmatprep.subr.mxu0 0.0
    %504 = vmatpush1.msra.mxu0 0.0
    %505 = vmatprep.subr.mxu0 0.0
    %506 = vmatpush1.msra.mxu0 0.0
    %507 = vmatprep.subr.mxu0 0.0
    %508 = vmatpush1.msra.mxu0 0.0
    %509 = vmatprep.subr.mxu0 %v266
    %510 = vmatpush1.msra.mxu0 %v265
    %511 = vmatprep.subr.mxu0 %v264
    %512 = vmatpush1.msra.mxu0 %v263
    %513 = vmatprep.subr.mxu0 %v262
    %514 = vmatpush1.msra.mxu0 %v261
    %515 = vmatprep.subr.mxu0 %v260
    %516 = vmatpush1.msra.mxu0 %v259
    %517 = vmatprep.subr.mxu0 %v258
    %518 = vmatpush1.msra.mxu0 %v257
    %519 = vmatprep.subr.mxu0 %v256
    %520 = vmatpush1.msra.mxu0 %v255
    %521 = vmatprep.subr.mxu0 %v254
    %522 = vmatpush1.msra.mxu0 %v253
    %523 = vmatprep.subr.mxu0 %v252
    %524 = vmatpush1.msra.mxu0 %v251
    %525 = vmatprep.subr.mxu0 0.0
    %526 = vmatpush2.msra.mxu0 0.0
    %527 = vmatprep.subr.mxu0 0.0
    %528 = vmatpush2.msra.mxu0 0.0
    %529 = vmatprep.subr.mxu0 0.0
    %530 = vmatpush2.msra.mxu0 0.0
    %531 = vmatprep.subr.mxu0 0.0
    %532 = vmatpush2.msra.mxu0 0.0
    %533 = vmatprep.subr.mxu0 0.0
    %534 = vmatpush2.msra.mxu0 0.0
    %535 = vmatprep.subr.mxu0 0.0
    %536 = vmatpush2.msra.mxu0 0.0
    %537 = vmatprep.subr.mxu0 0.0
    %538 = vmatpush2.msra.mxu0 0.0
    %539 = vmatprep.subr.mxu0 0.0
    %540 = vmatpush2.msra.mxu0 0.0
    %541 = vmatprep.subr.mxu0 0.0
    %542 = vmatpush2.msra.mxu0 0.0
    %543 = vmatprep.subr.mxu0 0.0
    %544 = vmatpush2.msra.mxu0 0.0
    %545 = vmatprep.subr.mxu0 0.0
    %546 = vmatpush2.msra.mxu0 0.0
    %547 = vmatprep.subr.mxu0 0.0
    %548 = vmatpush2.msra.mxu0 0.0
    %549 = vmatprep.subr.mxu0 0.0
    %550 = vmatpush2.msra.mxu0 0.0
    %551 = vmatprep.subr.mxu0 0.0
    %552 = vmatpush2.msra.mxu0 0.0
    %553 = vmatprep.subr.mxu0 0.0
    %554 = vmatpush2.msra.mxu0 0.0
    %555 = vmatprep.subr.mxu0 0.0
    %556 = vmatpush2.msra.mxu0 0.0
    %557 = vmatprep.mubr.f32.mxu0 0.0
    %558 = vmatmul.mubr.f32.gmra.mxu0 %v491
    %v559 = vpop.f32.mrf.mxu0
    %v560 = vadd.f32 0.0, %v559
    %v561 = vpop.f32.mrf.mxu0
    %v562 = vadd.f32 0.0, %v561
    %563 = vdwg.mxu0
    %v564 = vadd.f32 %v217, %v560
    %v565 = vadd.f32 %v219, %v562
    %v566 = vxor.u32 %v564, 2147483648
    %v567 = vmul.f32 %v566, 1.442695
    %v568 = vpow.pop %v567
    %v569 = vadd.f32 %v568, 1.0
    %v570 = vrcp.pop %v569
    %v571 = vmul.f32 1.0, %v570
    %v572 = vtanh.pop %v565
    %v573 = vxor.u32 %v565, 2147483648
    %v574 = vmul.f32 %v573, 1.442695
    %v575 = vpow.pop %v574
    %v576 = vadd.f32 %v575, 1.0
    %v577 = vrcp.pop %v576
    %v578 = vmul.f32 1.0, %v577
    %580 = vrot.lane.b32.xlu0 %v489, 64
    %v581 = vpop.permute.xlu0 %580
    %v583 = vmul.f32 %v571, %v581
    %v584 = vmul.f32 %v571, %v572
    %586 = vrot.lane.b32.xlu0 %v584, 64
    %v587 = vpop.permute.xlu0 %586
    %v589 = vadd.f32 %v583, %v587
    %v590 = vtanh.pop %v589
    %v591 = vmul.f32 %v578, %v590
    %vm592 = vcmp.gt.f32.partialorder %v71, 0.5
    %594 = vrot.lane.b32.xlu0 %v591, 64
    %v595 = vpop.permute.xlu0 %594
    %v597 = vsel %vm592, %v595, 0.0
    %v598 = vsel %vm592, %v595, %v484
    %600 = vrot.lane.b32.xlu0 %v589, 64
    %v601 = vpop.permute.xlu0 %600
    %v603 = vsel %vm592, %v601, %v489
    %v605 = vsel %vm113, %v598, 0
    %607 = vmatprep.subr.mxu0 0.0
    %608 = vmatpush1.msra.mxu0 0.0
    %609 = vmatprep.subr.mxu0 0.0
    %610 = vmatpush1.msra.mxu0 0.0
    %611 = vmatprep.subr.mxu0 0.0
    %612 = vmatpush1.msra.mxu0 0.0
    %613 = vmatprep.subr.mxu0 0.0
    %614 = vmatpush1.msra.mxu0 0.0
    %615 = vmatprep.subr.mxu0 0.0
    %616 = vmatpush1.msra.mxu0 0.0
    %617 = vmatprep.subr.mxu0 0.0
    %618 = vmatpush1.msra.mxu0 0.0
    %619 = vmatprep.subr.mxu0 0.0
    %620 = vmatpush1.msra.mxu0 0.0
    %621 = vmatprep.subr.mxu0 0.0
    %622 = vmatpush1.msra.mxu0 0.0
    %623 = vmatprep.subr.mxu0 %v266
    %624 = vmatpush1.msra.mxu0 %v265
    %625 = vmatprep.subr.mxu0 %v264
    %626 = vmatpush1.msra.mxu0 %v263
    %627 = vmatprep.subr.mxu0 %v262
    %628 = vmatpush1.msra.mxu0 %v261
    %629 = vmatprep.subr.mxu0 %v260
    %630 = vmatpush1.msra.mxu0 %v259
    %631 = vmatprep.subr.mxu0 %v258
    %632 = vmatpush1.msra.mxu0 %v257
    %633 = vmatprep.subr.mxu0 %v256
    %634 = vmatpush1.msra.mxu0 %v255
    %635 = vmatprep.subr.mxu0 %v254
    %636 = vmatpush1.msra.mxu0 %v253
    %637 = vmatprep.subr.mxu0 %v252
    %638 = vmatpush1.msra.mxu0 %v251
    %639 = vmatprep.subr.mxu0 0.0
    %640 = vmatpush2.msra.mxu0 0.0
    %641 = vmatprep.subr.mxu0 0.0
    %642 = vmatpush2.msra.mxu0 0.0
    %643 = vmatprep.subr.mxu0 0.0
    %644 = vmatpush2.msra.mxu0 0.0
    %645 = vmatprep.subr.mxu0 0.0
    %646 = vmatpush2.msra.mxu0 0.0
    %647 = vmatprep.subr.mxu0 0.0
    %648 = vmatpush2.msra.mxu0 0.0
    %649 = vmatprep.subr.mxu0 0.0
    %650 = vmatpush2.msra.mxu0 0.0
    %651 = vmatprep.subr.mxu0 0.0
    %652 = vmatpush2.msra.mxu0 0.0
    %653 = vmatprep.subr.mxu0 0.0
    %654 = vmatpush2.msra.mxu0 0.0
    %655 = vmatprep.subr.mxu0 0.0
    %656 = vmatpush2.msra.mxu0 0.0
    %657 = vmatprep.subr.mxu0 0.0
    %658 = vmatpush2.msra.mxu0 0.0
    %659 = vmatprep.subr.mxu0 0.0
    %660 = vmatpush2.msra.mxu0 0.0
    %661 = vmatprep.subr.mxu0 0.0
    %662 = vmatpush2.msra.mxu0 0.0
    %663 = vmatprep.subr.mxu0 0.0
    %664 = vmatpush2.msra.mxu0 0.0
    %665 = vmatprep.subr.mxu0 0.0
    %666 = vmatpush2.msra.mxu0 0.0
    %667 = vmatprep.subr.mxu0 0.0
    %668 = vmatpush2.msra.mxu0 0.0
    %669 = vmatprep.subr.mxu0 0.0
    %670 = vmatpush2.msra.mxu0 0.0
    %671 = vmatprep.mubr.f32.mxu0 0.0
    %672 = vmatmul.mubr.f32.gmra.mxu0 %v605
    %v673 = vpop.f32.mrf.mxu0
    %v674 = vadd.f32 0.0, %v673
    %v675 = vpop.f32.mrf.mxu0
    %v676 = vadd.f32 0.0, %v675
    %677 = vdwg.mxu0
    %v678 = vadd.f32 %v223, %v674
    %v679 = vadd.f32 %v225, %v676
    %v680 = vxor.u32 %v678, 2147483648
    %v681 = vmul.f32 %v680, 1.442695
    %v682 = vpow.pop %v681
    %v683 = vadd.f32 %v682, 1.0
    %v684 = vrcp.pop %v683
    %v685 = vmul.f32 1.0, %v684
    %v686 = vtanh.pop %v679
    %v687 = vxor.u32 %v679, 2147483648
    %v688 = vmul.f32 %v687, 1.442695
    %v689 = vpow.pop %v688
    %v690 = vadd.f32 %v689, 1.0
    %v691 = vrcp.pop %v690
    %v692 = vmul.f32 1.0, %v691
    %694 = vrot.lane.b32.xlu0 %v603, 64
    %v695 = vpop.permute.xlu0 %694
    %v697 = vmul.f32 %v685, %v695
    %v698 = vmul.f32 %v685, %v686
    %700 = vrot.lane.b32.xlu0 %v698, 64
    %v701 = vpop.permute.xlu0 %700
    %v703 = vadd.f32 %v697, %v701
    %v704 = vtanh.pop %v703
    %v705 = vmul.f32 %v692, %v704
    %vm706 = vcmp.gt.f32.partialorder %v72, 0.5
    %708 = vrot.lane.b32.xlu0 %v705, 64
    %v709 = vpop.permute.xlu0 %708
    %v711 = vsel %vm706, %v709, 0.0
    %v712 = vsel %vm706, %v709, %v598
    %714 = vrot.lane.b32.xlu0 %v703, 64
    %v715 = vpop.permute.xlu0 %714
    %v717 = vsel %vm706, %v715, %v603
    %v719 = vsel %vm113, %v712, 0
    %721 = vmatprep.subr.mxu0 0.0
    %722 = vmatpush1.msra.mxu0 0.0
    %723 = vmatprep.subr.mxu0 0.0
    %724 = vmatpush1.msra.mxu0 0.0
    %725 = vmatprep.subr.mxu0 0.0
    %726 = vmatpush1.msra.mxu0 0.0
    %727 = vmatprep.subr.mxu0 0.0
    %728 = vmatpush1.msra.mxu0 0.0
    %729 = vmatprep.subr.mxu0 0.0
    %730 = vmatpush1.msra.mxu0 0.0
    %731 = vmatprep.subr.mxu0 0.0
    %732 = vmatpush1.msra.mxu0 0.0
    %733 = vmatprep.subr.mxu0 0.0
    %734 = vmatpush1.msra.mxu0 0.0
    %735 = vmatprep.subr.mxu0 0.0
    %736 = vmatpush1.msra.mxu0 0.0
    %737 = vmatprep.subr.mxu0 %v266
    %738 = vmatpush1.msra.mxu0 %v265
    %739 = vmatprep.subr.mxu0 %v264
    %740 = vmatpush1.msra.mxu0 %v263
    %741 = vmatprep.subr.mxu0 %v262
    %742 = vmatpush1.msra.mxu0 %v261
    %743 = vmatprep.subr.mxu0 %v260
    %744 = vmatpush1.msra.mxu0 %v259
    %745 = vmatprep.subr.mxu0 %v258
    %746 = vmatpush1.msra.mxu0 %v257
    %747 = vmatprep.subr.mxu0 %v256
    %748 = vmatpush1.msra.mxu0 %v255
    %749 = vmatprep.subr.mxu0 %v254
    %750 = vmatpush1.msra.mxu0 %v253
    %751 = vmatprep.subr.mxu0 %v252
    %752 = vmatpush1.msra.mxu0 %v251
    %753 = vmatprep.subr.mxu0 0.0
    %754 = vmatpush2.msra.mxu0 0.0
    %755 = vmatprep.subr.mxu0 0.0
    %756 = vmatpush2.msra.mxu0 0.0
    %757 = vmatprep.subr.mxu0 0.0
    %758 = vmatpush2.msra.mxu0 0.0
    %759 = vmatprep.subr.mxu0 0.0
    %760 = vmatpush2.msra.mxu0 0.0
    %761 = vmatprep.subr.mxu0 0.0
    %762 = vmatpush2.msra.mxu0 0.0
    %763 = vmatprep.subr.mxu0 0.0
    %764 = vmatpush2.msra.mxu0 0.0
    %765 = vmatprep.subr.mxu0 0.0
    %766 = vmatpush2.msra.mxu0 0.0
    %767 = vmatprep.subr.mxu0 0.0
    %768 = vmatpush2.msra.mxu0 0.0
    %769 = vmatprep.subr.mxu0 0.0
    %770 = vmatpush2.msra.mxu0 0.0
    %771 = vmatprep.subr.mxu0 0.0
    %772 = vmatpush2.msra.mxu0 0.0
    %773 = vmatprep.subr.mxu0 0.0
    %774 = vmatpush2.msra.mxu0 0.0
    %775 = vmatprep.subr.mxu0 0.0
    %776 = vmatpush2.msra.mxu0 0.0
    %777 = vmatprep.subr.mxu0 0.0
    %778 = vmatpush2.msra.mxu0 0.0
    %779 = vmatprep.subr.mxu0 0.0
    %780 = vmatpush2.msra.mxu0 0.0
    %781 = vmatprep.subr.mxu0 0.0
    %782 = vmatpush2.msra.mxu0 0.0
    %783 = vmatprep.subr.mxu0 0.0
    %784 = vmatpush2.msra.mxu0 0.0
    %785 = vmatprep.mubr.f32.mxu0 0.0
    %786 = vmatmul.mubr.f32.gmra.mxu0 %v719
    %v787 = vpop.f32.mrf.mxu0
    %v788 = vadd.f32 0.0, %v787
    %v789 = vpop.f32.mrf.mxu0
    %v790 = vadd.f32 0.0, %v789
    %791 = vdwg.mxu0
    %v792 = vadd.f32 %v229, %v788
    %v793 = vadd.f32 %v231, %v790
    %v794 = vxor.u32 %v792, 2147483648
    %v795 = vmul.f32 %v794, 1.442695
    %v796 = vpow.pop %v795
    %v797 = vadd.f32 %v796, 1.0
    %v798 = vrcp.pop %v797
    %v799 = vmul.f32 1.0, %v798
    %v800 = vtanh.pop %v793
    %v801 = vxor.u32 %v793, 2147483648
    %v802 = vmul.f32 %v801, 1.442695
    %v803 = vpow.pop %v802
    %v804 = vadd.f32 %v803, 1.0
    %v805 = vrcp.pop %v804
    %v806 = vmul.f32 1.0, %v805
    %808 = vrot.lane.b32.xlu0 %v717, 64
    %v809 = vpop.permute.xlu0 %808
    %v811 = vmul.f32 %v799, %v809
    %v812 = vmul.f32 %v799, %v800
    %814 = vrot.lane.b32.xlu0 %v812, 64
    %v815 = vpop.permute.xlu0 %814
    %v817 = vadd.f32 %v811, %v815
    %v818 = vtanh.pop %v817
    %v819 = vmul.f32 %v806, %v818
    %vm820 = vcmp.gt.f32.partialorder %v73, 0.5
    %822 = vrot.lane.b32.xlu0 %v819, 64
    %v823 = vpop.permute.xlu0 %822
    %v825 = vsel %vm820, %v823, 0.0
    %v826 = vsel %vm820, %v823, %v712
    %828 = vrot.lane.b32.xlu0 %v817, 64
    %v829 = vpop.permute.xlu0 %828
    %v831 = vsel %vm820, %v829, %v717
    %v833 = vsel %vm113, %v826, 0
    %835 = vmatprep.subr.mxu0 0.0
    %836 = vmatpush1.msra.mxu0 0.0
    %837 = vmatprep.subr.mxu0 0.0
    %838 = vmatpush1.msra.mxu0 0.0
    %839 = vmatprep.subr.mxu0 0.0
    %840 = vmatpush1.msra.mxu0 0.0
    %841 = vmatprep.subr.mxu0 0.0
    %842 = vmatpush1.msra.mxu0 0.0
    %843 = vmatprep.subr.mxu0 0.0
    %844 = vmatpush1.msra.mxu0 0.0
    %845 = vmatprep.subr.mxu0 0.0
    %846 = vmatpush1.msra.mxu0 0.0
    %847 = vmatprep.subr.mxu0 0.0
    %848 = vmatpush1.msra.mxu0 0.0
    %849 = vmatprep.subr.mxu0 0.0
    %850 = vmatpush1.msra.mxu0 0.0
    %851 = vmatprep.subr.mxu0 %v266
    %852 = vmatpush1.msra.mxu0 %v265
    %853 = vmatprep.subr.mxu0 %v264
    %854 = vmatpush1.msra.mxu0 %v263
    %855 = vmatprep.subr.mxu0 %v262
    %856 = vmatpush1.msra.mxu0 %v261
    %857 = vmatprep.subr.mxu0 %v260
    %858 = vmatpush1.msra.mxu0 %v259
    %859 = vmatprep.subr.mxu0 %v258
    %860 = vmatpush1.msra.mxu0 %v257
    %861 = vmatprep.subr.mxu0 %v256
    %862 = vmatpush1.msra.mxu0 %v255
    %863 = vmatprep.subr.mxu0 %v254
    %864 = vmatpush1.msra.mxu0 %v253
    %865 = vmatprep.subr.mxu0 %v252
    %866 = vmatpush1.msra.mxu0 %v251
    %867 = vmatprep.subr.mxu0 0.0
    %868 = vmatpush2.msra.mxu0 0.0
    %869 = vmatprep.subr.mxu0 0.0
    %870 = vmatpush2.msra.mxu0 0.0
    %871 = vmatprep.subr.mxu0 0.0
    %872 = vmatpush2.msra.mxu0 0.0
    %873 = vmatprep.subr.mxu0 0.0
    %874 = vmatpush2.msra.mxu0 0.0
    %875 = vmatprep.subr.mxu0 0.0
    %876 = vmatpush2.msra.mxu0 0.0
    %877 = vmatprep.subr.mxu0 0.0
    %878 = vmatpush2.msra.mxu0 0.0
    %879 = vmatprep.subr.mxu0 0.0
    %880 = vmatpush2.msra.mxu0 0.0
    %881 = vmatprep.subr.mxu0 0.0
    %882 = vmatpush2.msra.mxu0 0.0
    %883 = vmatprep.subr.mxu0 0.0
    %884 = vmatpush2.msra.mxu0 0.0
    %885 = vmatprep.subr.mxu0 0.0
    %886 = vmatpush2.msra.mxu0 0.0
    %887 = vmatprep.subr.mxu0 0.0
    %888 = vmatpush2.msra.mxu0 0.0
    %889 = vmatprep.subr.mxu0 0.0
    %890 = vmatpush2.msra.mxu0 0.0
    %891 = vmatprep.subr.mxu0 0.0
    %892 = vmatpush2.msra.mxu0 0.0
    %893 = vmatprep.subr.mxu0 0.0
    %894 = vmatpush2.msra.mxu0 0.0
    %895 = vmatprep.subr.mxu0 0.0
    %896 = vmatpush2.msra.mxu0 0.0
    %897 = vmatprep.subr.mxu0 0.0
    %898 = vmatpush2.msra.mxu0 0.0
    %899 = vmatprep.mubr.f32.mxu0 0.0
    %900 = vmatmul.mubr.f32.gmra.mxu0 %v833
    %v901 = vpop.f32.mrf.mxu0
    %v902 = vadd.f32 0.0, %v901
    %v903 = vpop.f32.mrf.mxu0
    %v904 = vadd.f32 0.0, %v903
    %905 = vdwg.mxu0
    %v906 = vadd.f32 %v235, %v902
    %v907 = vadd.f32 %v237, %v904
    %v908 = vxor.u32 %v906, 2147483648
    %v909 = vmul.f32 %v908, 1.442695
    %v910 = vpow.pop %v909
    %v911 = vadd.f32 %v910, 1.0
    %v912 = vrcp.pop %v911
    %v913 = vmul.f32 1.0, %v912
    %v914 = vtanh.pop %v907
    %v915 = vxor.u32 %v907, 2147483648
    %v916 = vmul.f32 %v915, 1.442695
    %v917 = vpow.pop %v916
    %v918 = vadd.f32 %v917, 1.0
    %v919 = vrcp.pop %v918
    %v920 = vmul.f32 1.0, %v919
    %922 = vrot.lane.b32.xlu0 %v831, 64
    %v923 = vpop.permute.xlu0 %922
    %v925 = vmul.f32 %v913, %v923
    %v926 = vmul.f32 %v913, %v914
    %928 = vrot.lane.b32.xlu0 %v926, 64
    %v929 = vpop.permute.xlu0 %928
    %v931 = vadd.f32 %v925, %v929
    %v932 = vtanh.pop %v931
    %v933 = vmul.f32 %v920, %v932
    %vm934 = vcmp.gt.f32.partialorder %v74, 0.5
    %936 = vrot.lane.b32.xlu0 %v933, 64
    %v937 = vpop.permute.xlu0 %936
    %v939 = vsel %vm934, %v937, 0.0
    %v940 = vsel %vm934, %v937, %v826
    %942 = vrot.lane.b32.xlu0 %v931, 64
    %v943 = vpop.permute.xlu0 %942
    %v945 = vsel %vm934, %v943, %v831
    %v947 = vsel %vm113, %v940, 0
    %949 = vmatprep.subr.mxu0 0.0
    %950 = vmatpush1.msra.mxu0 0.0
    %951 = vmatprep.subr.mxu0 0.0
    %952 = vmatpush1.msra.mxu0 0.0
    %953 = vmatprep.subr.mxu0 0.0
    %954 = vmatpush1.msra.mxu0 0.0
    %955 = vmatprep.subr.mxu0 0.0
    %956 = vmatpush1.msra.mxu0 0.0
    %957 = vmatprep.subr.mxu0 0.0
    %958 = vmatpush1.msra.mxu0 0.0
    %959 = vmatprep.subr.mxu0 0.0
    %960 = vmatpush1.msra.mxu0 0.0
    %961 = vmatprep.subr.mxu0 0.0
    %962 = vmatpush1.msra.mxu0 0.0
    %963 = vmatprep.subr.mxu0 0.0
    %964 = vmatpush1.msra.mxu0 0.0
    %965 = vmatprep.subr.mxu0 %v266
    %966 = vmatpush1.msra.mxu0 %v265
    %967 = vmatprep.subr.mxu0 %v264
    %968 = vmatpush1.msra.mxu0 %v263
    %969 = vmatprep.subr.mxu0 %v262
    %970 = vmatpush1.msra.mxu0 %v261
    %971 = vmatprep.subr.mxu0 %v260
    %972 = vmatpush1.msra.mxu0 %v259
    %973 = vmatprep.subr.mxu0 %v258
    %974 = vmatpush1.msra.mxu0 %v257
    %975 = vmatprep.subr.mxu0 %v256
    %976 = vmatpush1.msra.mxu0 %v255
    %977 = vmatprep.subr.mxu0 %v254
    %978 = vmatpush1.msra.mxu0 %v253
    %979 = vmatprep.subr.mxu0 %v252
    %980 = vmatpush1.msra.mxu0 %v251
    %981 = vmatprep.subr.mxu0 0.0
    %982 = vmatpush2.msra.mxu0 0.0
    %983 = vmatprep.subr.mxu0 0.0
    %984 = vmatpush2.msra.mxu0 0.0
    %985 = vmatprep.subr.mxu0 0.0
    %986 = vmatpush2.msra.mxu0 0.0
    %987 = vmatprep.subr.mxu0 0.0
    %988 = vmatpush2.msra.mxu0 0.0
    %989 = vmatprep.subr.mxu0 0.0
    %990 = vmatpush2.msra.mxu0 0.0
    %991 = vmatprep.subr.mxu0 0.0
    %992 = vmatpush2.msra.mxu0 0.0
    %993 = vmatprep.subr.mxu0 0.0
    %994 = vmatpush2.msra.mxu0 0.0
    %995 = vmatprep.subr.mxu0 0.0
    %996 = vmatpush2.msra.mxu0 0.0
    %997 = vmatprep.subr.mxu0 0.0
    %998 = vmatpush2.msra.mxu0 0.0
    %999 = vmatprep.subr.mxu0 0.0
    %1000 = vmatpush2.msra.mxu0 0.0
    %1001 = vmatprep.subr.mxu0 0.0
    %1002 = vmatpush2.msra.mxu0 0.0
    %1003 = vmatprep.subr.mxu0 0.0
    %1004 = vmatpush2.msra.mxu0 0.0
    %1005 = vmatprep.subr.mxu0 0.0
    %1006 = vmatpush2.msra.mxu0 0.0
    %1007 = vmatprep.subr.mxu0 0.0
    %1008 = vmatpush2.msra.mxu0 0.0
    %1009 = vmatprep.subr.mxu0 0.0
    %1010 = vmatpush2.msra.mxu0 0.0
    %1011 = vmatprep.subr.mxu0 0.0
    %1012 = vmatpush2.msra.mxu0 0.0
    %1013 = vmatprep.mubr.f32.mxu0 0.0
    %1014 = vmatmul.mubr.f32.gmra.mxu0 %v947
    %v1015 = vpop.f32.mrf.mxu0
    %v1016 = vadd.f32 0.0, %v1015
    %v1017 = vpop.f32.mrf.mxu0
    %v1018 = vadd.f32 0.0, %v1017
    %1019 = vdwg.mxu0
    %v1020 = vadd.f32 %v241, %v1016
    %v1021 = vadd.f32 %v243, %v1018
    %v1022 = vxor.u32 %v1020, 2147483648
    %v1023 = vmul.f32 %v1022, 1.442695
    %v1024 = vpow.pop %v1023
    %v1025 = vadd.f32 %v1024, 1.0
    %v1026 = vrcp.pop %v1025
    %v1027 = vmul.f32 1.0, %v1026
    %v1028 = vtanh.pop %v1021
    %v1029 = vxor.u32 %v1021, 2147483648
    %v1030 = vmul.f32 %v1029, 1.442695
    %v1031 = vpow.pop %v1030
    %v1032 = vadd.f32 %v1031, 1.0
    %v1033 = vrcp.pop %v1032
    %v1034 = vmul.f32 1.0, %v1033
    %1036 = vrot.lane.b32.xlu0 %v945, 64
    %v1037 = vpop.permute.xlu0 %1036
    %v1039 = vmul.f32 %v1027, %v1037
    %v1040 = vmul.f32 %v1027, %v1028
    %1042 = vrot.lane.b32.xlu0 %v1040, 64
    %v1043 = vpop.permute.xlu0 %1042
    %v1045 = vadd.f32 %v1039, %v1043
    %v1046 = vtanh.pop %v1045
    %v1047 = vmul.f32 %v1034, %v1046
    %vm1048 = vcmp.gt.f32.partialorder %v75, 0.5
    %1050 = vrot.lane.b32.xlu0 %v1047, 64
    %v1051 = vpop.permute.xlu0 %1050
    %v1053 = vsel %vm1048, %v1051, 0.0
    %v1054 = vsel %vm1048, %v1051, %v940
    %1056 = vrot.lane.b32.xlu0 %v1045, 64
    %v1057 = vpop.permute.xlu0 %1056
    %v1059 = vsel %vm1048, %v1057, %v945
    %v1061 = vsel %vm113, %v1054, 0
    %1063 = vmatprep.subr.mxu0 0.0
    %1064 = vmatpush1.msra.mxu0 0.0
    %1065 = vmatprep.subr.mxu0 0.0
    %1066 = vmatpush1.msra.mxu0 0.0
    %1067 = vmatprep.subr.mxu0 0.0
    %1068 = vmatpush1.msra.mxu0 0.0
    %1069 = vmatprep.subr.mxu0 0.0
    %1070 = vmatpush1.msra.mxu0 0.0
    %1071 = vmatprep.subr.mxu0 0.0
    %1072 = vmatpush1.msra.mxu0 0.0
    %1073 = vmatprep.subr.mxu0 0.0
    %1074 = vmatpush1.msra.mxu0 0.0
    %1075 = vmatprep.subr.mxu0 0.0
    %1076 = vmatpush1.msra.mxu0 0.0
    %1077 = vmatprep.subr.mxu0 0.0
    %1078 = vmatpush1.msra.mxu0 0.0
    %1079 = vmatprep.subr.mxu0 %v266
    %1080 = vmatpush1.msra.mxu0 %v265
    %1081 = vmatprep.subr.mxu0 %v264
    %1082 = vmatpush1.msra.mxu0 %v263
    %1083 = vmatprep.subr.mxu0 %v262
    %1084 = vmatpush1.msra.mxu0 %v261
    %1085 = vmatprep.subr.mxu0 %v260
    %1086 = vmatpush1.msra.mxu0 %v259
    %1087 = vmatprep.subr.mxu0 %v258
    %1088 = vmatpush1.msra.mxu0 %v257
    %1089 = vmatprep.subr.mxu0 %v256
    %1090 = vmatpush1.msra.mxu0 %v255
    %1091 = vmatprep.subr.mxu0 %v254
    %1092 = vmatpush1.msra.mxu0 %v253
    %1093 = vmatprep.subr.mxu0 %v252
    %1094 = vmatpush1.msra.mxu0 %v251
    %1095 = vmatprep.subr.mxu0 0.0
    %1096 = vmatpush2.msra.mxu0 0.0
    %1097 = vmatprep.subr.mxu0 0.0
    %1098 = vmatpush2.msra.mxu0 0.0
    %1099 = vmatprep.subr.mxu0 0.0
    %1100 = vmatpush2.msra.mxu0 0.0
    %1101 = vmatprep.subr.mxu0 0.0
    %1102 = vmatpush2.msra.mxu0 0.0
    %1103 = vmatprep.subr.mxu0 0.0
    %1104 = vmatpush2.msra.mxu0 0.0
    %1105 = vmatprep.subr.mxu0 0.0
    %1106 = vmatpush2.msra.mxu0 0.0
    %1107 = vmatprep.subr.mxu0 0.0
    %1108 = vmatpush2.msra.mxu0 0.0
    %1109 = vmatprep.subr.mxu0 0.0
    %1110 = vmatpush2.msra.mxu0 0.0
    %1111 = vmatprep.subr.mxu0 0.0
    %1112 = vmatpush2.msra.mxu0 0.0
    %1113 = vmatprep.subr.mxu0 0.0
    %1114 = vmatpush2.msra.mxu0 0.0
    %1115 = vmatprep.subr.mxu0 0.0
    %1116 = vmatpush2.msra.mxu0 0.0
    %1117 = vmatprep.subr.mxu0 0.0
    %1118 = vmatpush2.msra.mxu0 0.0
    %1119 = vmatprep.subr.mxu0 0.0
    %1120 = vmatpush2.msra.mxu0 0.0
    %1121 = vmatprep.subr.mxu0 0.0
    %1122 = vmatpush2.msra.mxu0 0.0
    %1123 = vmatprep.subr.mxu0 0.0
    %1124 = vmatpush2.msra.mxu0 0.0
    %1125 = vmatprep.subr.mxu0 0.0
    %1126 = vmatpush2.msra.mxu0 0.0
    %1127 = vmatprep.mubr.f32.mxu0 0.0
    %1128 = vmatmul.mubr.f32.gmra.mxu0 %v1061
    %v1129 = vpop.f32.mrf.mxu0
    %v1130 = vadd.f32 0.0, %v1129
    %v1131 = vpop.f32.mrf.mxu0
    %v1132 = vadd.f32 0.0, %v1131
    %1133 = vdwg.mxu0
    %v1134 = vadd.f32 %v247, %v1130
    %v1135 = vadd.f32 %v249, %v1132
    %v1136 = vxor.u32 %v1134, 2147483648
    %v1137 = vmul.f32 %v1136, 1.442695
    %v1138 = vpow.pop %v1137
    %v1139 = vadd.f32 %v1138, 1.0
    %v1140 = vrcp.pop %v1139
    %v1141 = vmul.f32 1.0, %v1140
    %v1142 = vtanh.pop %v1135
    %v1143 = vxor.u32 %v1135, 2147483648
    %v1144 = vmul.f32 %v1143, 1.442695
    %v1145 = vpow.pop %v1144
    %v1146 = vadd.f32 %v1145, 1.0
    %v1147 = vrcp.pop %v1146
    %v1148 = vmul.f32 1.0, %v1147
    %1150 = vrot.lane.b32.xlu0 %v1059, 64
    %v1151 = vpop.permute.xlu0 %1150
    %v1153 = vmul.f32 %v1141, %v1151
    %v1154 = vmul.f32 %v1141, %v1142
    %1156 = vrot.lane.b32.xlu0 %v1154, 64
    %v1157 = vpop.permute.xlu0 %1156
    %v1159 = vadd.f32 %v1153, %v1157
    %v1160 = vtanh.pop %v1159
    %v1161 = vmul.f32 %v1148, %v1160
    %vm1162 = vcmp.gt.f32.partialorder %v76, 0.5
    %1164 = vrot.lane.b32.xlu0 %v1161, 64
    %v1165 = vpop.permute.xlu0 %1164
    %v1167 = vsel %vm1162, %v1165, 0.0
    %v1168 = vld [vmem:[%s8] sm:$0xff]
    %v1169 = vld [vmem:[%s8 + $0x8] sm:$0xff]
    %v1170 = vld [vmem:[%s8 + $0x10] sm:$0xff]
    %v1171 = vld [vmem:[%s8 + $0x18] sm:$0xff]
    %v1172 = vld [vmem:[%s9] sm:$0xff]
    %v1173 = vld [vmem:[%s9 + $0x8] sm:$0xff]
    %v1174 = vld [vmem:[%s9 + $0x10] sm:$0xff]
    %v1175 = vld [vmem:[%s9 + $0x18] sm:$0xff]
    %v1176 = vld [vmem:[%s10] sm:$0x1]
    %1178 = vrot.lane.b32.xlu0 %v1167, 96
    %v1179 = vpop.permute.xlu0 %1178
    %vm1180 = vcmask 261120
    %v1181 = vsel %vm1180, %v1179, 0
    %1183 = vmatprep.subr.mxu0 0.0
    %1184 = vmatpush1.msra.mxu0 0.0
    %1185 = vmatprep.subr.mxu0 0.0
    %1186 = vmatpush1.msra.mxu0 0.0
    %1187 = vmatprep.subr.mxu0 0.0
    %1188 = vmatpush1.msra.mxu0 0.0
    %1189 = vmatprep.subr.mxu0 0.0
    %1190 = vmatpush1.msra.mxu0 0.0
    %1191 = vmatprep.subr.mxu0 0.0
    %1192 = vmatpush1.msra.mxu0 0.0
    %1193 = vmatprep.subr.mxu0 0.0
    %1194 = vmatpush1.msra.mxu0 0.0
    %1195 = vmatprep.subr.mxu0 0.0
    %1196 = vmatpush1.msra.mxu0 0.0
    %1197 = vmatprep.subr.mxu0 0.0
    %1198 = vmatpush1.msra.mxu0 0.0
    %1199 = vmatprep.subr.mxu0 0.0
    %1200 = vmatpush1.msra.mxu0 0.0
    %1201 = vmatprep.subr.mxu0 0.0
    %1202 = vmatpush1.msra.mxu0 0.0
    %1203 = vmatprep.subr.mxu0 0.0
    %1204 = vmatpush1.msra.mxu0 0.0
    %1205 = vmatprep.subr.mxu0 0.0
    %1206 = vmatpush1.msra.mxu0 0.0
    %1207 = vmatprep.subr.mxu0 0.0
    %1208 = vmatpush1.msra.mxu0 %v1175
    %1209 = vmatprep.subr.mxu0 0.0
    %1210 = vmatpush1.msra.mxu0 %v1174
    %1211 = vmatprep.subr.mxu0 0.0
    %1212 = vmatpush1.msra.mxu0 %v1173
    %1213 = vmatprep.subr.mxu0 0.0
    %1214 = vmatpush1.msra.mxu0 %v1172
    %1215 = vmatprep.subr.mxu0 0.0
    %1216 = vmatpush2.msra.mxu0 0.0
    %1217 = vmatprep.subr.mxu0 0.0
    %1218 = vmatpush2.msra.mxu0 0.0
    %1219 = vmatprep.subr.mxu0 0.0
    %1220 = vmatpush2.msra.mxu0 0.0
    %1221 = vmatprep.subr.mxu0 0.0
    %1222 = vmatpush2.msra.mxu0 0.0
    %1223 = vmatprep.subr.mxu0 0.0
    %1224 = vmatpush2.msra.mxu0 0.0
    %1225 = vmatprep.subr.mxu0 0.0
    %1226 = vmatpush2.msra.mxu0 0.0
    %1227 = vmatprep.subr.mxu0 0.0
    %1228 = vmatpush2.msra.mxu0 0.0
    %1229 = vmatprep.subr.mxu0 0.0
    %1230 = vmatpush2.msra.mxu0 0.0
    %1231 = vmatprep.subr.mxu0 0.0
    %1232 = vmatpush2.msra.mxu0 0.0
    %1233 = vmatprep.subr.mxu0 0.0
    %1234 = vmatpush2.msra.mxu0 0.0
    %1235 = vmatprep.subr.mxu0 0.0
    %1236 = vmatpush2.msra.mxu0 0.0
    %1237 = vmatprep.subr.mxu0 0.0
    %1238 = vmatpush2.msra.mxu0 0.0
    %1239 = vmatprep.subr.mxu0 0.0
    %1240 = vmatpush2.msra.mxu0 0.0
    %1241 = vmatprep.subr.mxu0 0.0
    %1242 = vmatpush2.msra.mxu0 0.0
    %1243 = vmatprep.subr.mxu0 0.0
    %1244 = vmatpush2.msra.mxu0 0.0
    %1245 = vmatprep.subr.mxu0 0.0
    %1246 = vmatpush2.msra.mxu0 0.0
    %1247 = vmatprep.mubr.f32.mxu0 0.0
    %1248 = vmatmul.mubr.f32.gmra.mxu0 %v1181
    %v1249 = vpop.f32.mrf.mxu0
    %v1250 = vadd.f32 0.0, %v1249
    %v1251 = vpop.f32.mrf.mxu0
    %1252 = vdwg.mxu0
    %v1253 = vsel %vm1180, %v370, 0
    %1255 = vmatprep.subr.mxu0 0.0
    %1256 = vmatpush1.msra.mxu0 0.0
    %1257 = vmatprep.subr.mxu0 0.0
    %1258 = vmatpush1.msra.mxu0 0.0
    %1259 = vmatprep.subr.mxu0 0.0
    %1260 = vmatpush1.msra.mxu0 0.0
    %1261 = vmatprep.subr.mxu0 0.0
    %1262 = vmatpush1.msra.mxu0 0.0
    %1263 = vmatprep.subr.mxu0 0.0
    %1264 = vmatpush1.msra.mxu0 0.0
    %1265 = vmatprep.subr.mxu0 0.0
    %1266 = vmatpush1.msra.mxu0 0.0
    %1267 = vmatprep.subr.mxu0 0.0
    %1268 = vmatpush1.msra.mxu0 0.0
    %1269 = vmatprep.subr.mxu0 0.0
    %1270 = vmatpush1.msra.mxu0 0.0
    %1271 = vmatprep.subr.mxu0 0.0
    %1272 = vmatpush1.msra.mxu0 0.0
    %1273 = vmatprep.subr.mxu0 0.0
    %1274 = vmatpush1.msra.mxu0 0.0
    %1275 = vmatprep.subr.mxu0 0.0
    %1276 = vmatpush1.msra.mxu0 0.0
    %1277 = vmatprep.subr.mxu0 0.0
    %1278 = vmatpush1.msra.mxu0 0.0
    %1279 = vmatprep.subr.mxu0 0.0
    %1280 = vmatpush1.msra.mxu0 %v1171
    %1281 = vmatprep.subr.mxu0 0.0
    %1282 = vmatpush1.msra.mxu0 %v1170
    %1283 = vmatprep.subr.mxu0 0.0
    %1284 = vmatpush1.msra.mxu0 %v1169
    %1285 = vmatprep.subr.mxu0 0.0
    %1286 = vmatpush1.msra.mxu0 %v1168
    %1287 = vmatprep.subr.mxu0 0.0
    %1288 = vmatpush2.msra.mxu0 0.0
    %1289 = vmatprep.subr.mxu0 0.0
    %1290 = vmatpush2.msra.mxu0 0.0
    %1291 = vmatprep.subr.mxu0 0.0
    %1292 = vmatpush2.msra.mxu0 0.0
    %1293 = vmatprep.subr.mxu0 0.0
    %1294 = vmatpush2.msra.mxu0 0.0
    %1295 = vmatprep.subr.mxu0 0.0
    %1296 = vmatpush2.msra.mxu0 0.0
    %1297 = vmatprep.subr.mxu0 0.0
    %1298 = vmatpush2.msra.mxu0 0.0
    %1299 = vmatprep.subr.mxu0 0.0
    %1300 = vmatpush2.msra.mxu0 0.0
    %1301 = vmatprep.subr.mxu0 0.0
    %1302 = vmatpush2.msra.mxu0 0.0
    %1303 = vmatprep.subr.mxu0 0.0
    %1304 = vmatpush2.msra.mxu0 0.0
    %1305 = vmatprep.subr.mxu0 0.0
    %1306 = vmatpush2.msra.mxu0 0.0
    %1307 = vmatprep.subr.mxu0 0.0
    %1308 = vmatpush2.msra.mxu0 0.0
    %1309 = vmatprep.subr.mxu0 0.0
    %1310 = vmatpush2.msra.mxu0 0.0
    %1311 = vmatprep.subr.mxu0 0.0
    %1312 = vmatpush2.msra.mxu0 0.0
    %1313 = vmatprep.subr.mxu0 0.0
    %1314 = vmatpush2.msra.mxu0 0.0
    %1315 = vmatprep.subr.mxu0 0.0
    %1316 = vmatpush2.msra.mxu0 0.0
    %1317 = vmatprep.subr.mxu0 0.0
    %1318 = vmatpush2.msra.mxu0 0.0
    %1319 = vmatprep.mubr.f32.mxu0 0.0
    %1320 = vmatmul.mubr.f32.gmra.mxu0 %v1253
    %v1321 = vpop.f32.mrf.mxu0
    %v1322 = vadd.f32 %v1250, %v1321
    %v1323 = vpop.f32.mrf.mxu0
    %1324 = vdwg.mxu0
    %v1326 = vlaneseq
    %v1327 = vshrl.u32 %v1326, 7
    %v1328 = vsub.s32 0, %v1327
    %v1329 = vrot.slane %v1176, %v1328
    %v1331 = vadd.f32 %v1322, %v1329
    %1333 = vrot.lane.b32.xlu0 %v1053, 96
    %v1334 = vpop.permute.xlu0 %1333
    %v1335 = vsel %vm1180, %v1334, 0
    %1337 = vmatprep.subr.mxu0 0.0
    %1338 = vmatpush1.msra.mxu0 0.0
    %1339 = vmatprep.subr.mxu0 0.0
    %1340 = vmatpush1.msra.mxu0 0.0
    %1341 = vmatprep.subr.mxu0 0.0
    %1342 = vmatpush1.msra.mxu0 0.0
    %1343 = vmatprep.subr.mxu0 0.0
    %1344 = vmatpush1.msra.mxu0 0.0
    %1345 = vmatprep.subr.mxu0 0.0
    %1346 = vmatpush1.msra.mxu0 0.0
    %1347 = vmatprep.subr.mxu0 0.0
    %1348 = vmatpush1.msra.mxu0 0.0
    %1349 = vmatprep.subr.mxu0 0.0
    %1350 = vmatpush1.msra.mxu0 0.0
    %1351 = vmatprep.subr.mxu0 0.0
    %1352 = vmatpush1.msra.mxu0 0.0
    %1353 = vmatprep.subr.mxu0 0.0
    %1354 = vmatpush1.msra.mxu0 0.0
    %1355 = vmatprep.subr.mxu0 0.0
    %1356 = vmatpush1.msra.mxu0 0.0
    %1357 = vmatprep.subr.mxu0 0.0
    %1358 = vmatpush1.msra.mxu0 0.0
    %1359 = vmatprep.subr.mxu0 0.0
    %1360 = vmatpush1.msra.mxu0 0.0
    %1361 = vmatprep.subr.mxu0 0.0
    %1362 = vmatpush1.msra.mxu0 %v1175
    %1363 = vmatprep.subr.mxu0 0.0
    %1364 = vmatpush1.msra.mxu0 %v1174
    %1365 = vmatprep.subr.mxu0 0.0
    %1366 = vmatpush1.msra.mxu0 %v1173
    %1367 = vmatprep.subr.mxu0 0.0
    %1368 = vmatpush1.msra.mxu0 %v1172
    %1369 = vmatprep.subr.mxu0 0.0
    %1370 = vmatpush2.msra.mxu0 0.0
    %1371 = vmatprep.subr.mxu0 0.0
    %1372 = vmatpush2.msra.mxu0 0.0
    %1373 = vmatprep.subr.mxu0 0.0
    %1374 = vmatpush2.msra.mxu0 0.0
    %1375 = vmatprep.subr.mxu0 0.0
    %1376 = vmatpush2.msra.mxu0 0.0
    %1377 = vmatprep.subr.mxu0 0.0
    %1378 = vmatpush2.msra.mxu0 0.0
    %1379 = vmatprep.subr.mxu0 0.0
    %1380 = vmatpush2.msra.mxu0 0.0
    %1381 = vmatprep.subr.mxu0 0.0
    %1382 = vmatpush2.msra.mxu0 0.0
    %1383 = vmatprep.subr.mxu0 0.0
    %1384 = vmatpush2.msra.mxu0 0.0
    %1385 = vmatprep.subr.mxu0 0.0
    %1386 = vmatpush2.msra.mxu0 0.0
    %1387 = vmatprep.subr.mxu0 0.0
    %1388 = vmatpush2.msra.mxu0 0.0
    %1389 = vmatprep.subr.mxu0 0.0
    %1390 = vmatpush2.msra.mxu0 0.0
    %1391 = vmatprep.subr.mxu0 0.0
    %1392 = vmatpush2.msra.mxu0 0.0
    %1393 = vmatprep.subr.mxu0 0.0
    %1394 = vmatpush2.msra.mxu0 0.0
    %1395 = vmatprep.subr.mxu0 0.0
    %1396 = vmatpush2.msra.mxu0 0.0
    %1397 = vmatprep.subr.mxu0 0.0
    %1398 = vmatpush2.msra.mxu0 0.0
    %1399 = vmatprep.subr.mxu0 0.0
    %1400 = vmatpush2.msra.mxu0 0.0
    %1401 = vmatprep.mubr.f32.mxu0 0.0
    %1402 = vmatmul.mubr.f32.gmra.mxu0 %v1335
    %v1403 = vpop.f32.mrf.mxu0
    %v1404 = vadd.f32 0.0, %v1403
    %v1405 = vpop.f32.mrf.mxu0
    %1406 = vdwg.mxu0
    %v1408 = vsel %vm1180, %v483, 0
    %1410 = vmatprep.subr.mxu0 0.0
    %1411 = vmatpush1.msra.mxu0 0.0
    %1412 = vmatprep.subr.mxu0 0.0
    %1413 = vmatpush1.msra.mxu0 0.0
    %1414 = vmatprep.subr.mxu0 0.0
    %1415 = vmatpush1.msra.mxu0 0.0
    %1416 = vmatprep.subr.mxu0 0.0
    %1417 = vmatpush1.msra.mxu0 0.0
    %1418 = vmatprep.subr.mxu0 0.0
    %1419 = vmatpush1.msra.mxu0 0.0
    %1420 = vmatprep.subr.mxu0 0.0
    %1421 = vmatpush1.msra.mxu0 0.0
    %1422 = vmatprep.subr.mxu0 0.0
    %1423 = vmatpush1.msra.mxu0 0.0
    %1424 = vmatprep.subr.mxu0 0.0
    %1425 = vmatpush1.msra.mxu0 0.0
    %1426 = vmatprep.subr.mxu0 0.0
    %1427 = vmatpush1.msra.mxu0 0.0
    %1428 = vmatprep.subr.mxu0 0.0
    %1429 = vmatpush1.msra.mxu0 0.0
    %1430 = vmatprep.subr.mxu0 0.0
    %1431 = vmatpush1.msra.mxu0 0.0
    %1432 = vmatprep.subr.mxu0 0.0
    %1433 = vmatpush1.msra.mxu0 0.0
    %1434 = vmatprep.subr.mxu0 0.0
    %1435 = vmatpush1.msra.mxu0 %v1171
    %1436 = vmatprep.subr.mxu0 0.0
    %1437 = vmatpush1.msra.mxu0 %v1170
    %1438 = vmatprep.subr.mxu0 0.0
    %1439 = vmatpush1.msra.mxu0 %v1169
    %1440 = vmatprep.subr.mxu0 0.0
    %1441 = vmatpush1.msra.mxu0 %v1168
    %1442 = vmatprep.subr.mxu0 0.0
    %1443 = vmatpush2.msra.mxu0 0.0
    %1444 = vmatprep.subr.mxu0 0.0
    %1445 = vmatpush2.msra.mxu0 0.0
    %1446 = vmatprep.subr.mxu0 0.0
    %1447 = vmatpush2.msra.mxu0 0.0
    %1448 = vmatprep.subr.mxu0 0.0
    %1449 = vmatpush2.msra.mxu0 0.0
    %1450 = vmatprep.subr.mxu0 0.0
    %1451 = vmatpush2.msra.mxu0 0.0
    %1452 = vmatprep.subr.mxu0 0.0
    %1453 = vmatpush2.msra.mxu0 0.0
    %1454 = vmatprep.subr.mxu0 0.0
    %1455 = vmatpush2.msra.mxu0 0.0
    %1456 = vmatprep.subr.mxu0 0.0
    %1457 = vmatpush2.msra.mxu0 0.0
    %1458 = vmatprep.subr.mxu0 0.0
    %1459 = vmatpush2.msra.mxu0 0.0
    %1460 = vmatprep.subr.mxu0 0.0
    %1461 = vmatpush2.msra.mxu0 0.0
    %1462 = vmatprep.subr.mxu0 0.0
    %1463 = vmatpush2.msra.mxu0 0.0
    %1464 = vmatprep.subr.mxu0 0.0
    %1465 = vmatpush2.msra.mxu0 0.0
    %1466 = vmatprep.subr.mxu0 0.0
    %1467 = vmatpush2.msra.mxu0 0.0
    %1468 = vmatprep.subr.mxu0 0.0
    %1469 = vmatpush2.msra.mxu0 0.0
    %1470 = vmatprep.subr.mxu0 0.0
    %1471 = vmatpush2.msra.mxu0 0.0
    %1472 = vmatprep.subr.mxu0 0.0
    %1473 = vmatpush2.msra.mxu0 0.0
    %1474 = vmatprep.mubr.f32.mxu0 0.0
    %1475 = vmatmul.mubr.f32.gmra.mxu0 %v1408
    %v1476 = vpop.f32.mrf.mxu0
    %v1477 = vadd.f32 %v1404, %v1476
    %v1478 = vpop.f32.mrf.mxu0
    %1479 = vdwg.mxu0
    %v1480 = vadd.f32 %v1477, %v1329
    %1482 = vrot.lane.b32.xlu0 %v939, 96
    %v1483 = vpop.permute.xlu0 %1482
    %v1484 = vsel %vm1180, %v1483, 0
    %1486 = vmatprep.subr.mxu0 0.0
    %1487 = vmatpush1.msra.mxu0 0.0
    %1488 = vmatprep.subr.mxu0 0.0
    %1489 = vmatpush1.msra.mxu0 0.0
    %1490 = vmatprep.subr.mxu0 0.0
    %1491 = vmatpush1.msra.mxu0 0.0
    %1492 = vmatprep.subr.mxu0 0.0
    %1493 = vmatpush1.msra.mxu0 0.0
    %1494 = vmatprep.subr.mxu0 0.0
    %1495 = vmatpush1.msra.mxu0 0.0
    %1496 = vmatprep.subr.mxu0 0.0
    %1497 = vmatpush1.msra.mxu0 0.0
    %1498 = vmatprep.subr.mxu0 0.0
    %1499 = vmatpush1.msra.mxu0 0.0
    %1500 = vmatprep.subr.mxu0 0.0
    %1501 = vmatpush1.msra.mxu0 0.0
    %1502 = vmatprep.subr.mxu0 0.0
    %1503 = vmatpush1.msra.mxu0 0.0
    %1504 = vmatprep.subr.mxu0 0.0
    %1505 = vmatpush1.msra.mxu0 0.0
    %1506 = vmatprep.subr.mxu0 0.0
    %1507 = vmatpush1.msra.mxu0 0.0
    %1508 = vmatprep.subr.mxu0 0.0
    %1509 = vmatpush1.msra.mxu0 0.0
    %1510 = vmatprep.subr.mxu0 0.0
    %1511 = vmatpush1.msra.mxu0 %v1175
    %1512 = vmatprep.subr.mxu0 0.0
    %1513 = vmatpush1.msra.mxu0 %v1174
    %1514 = vmatprep.subr.mxu0 0.0
    %1515 = vmatpush1.msra.mxu0 %v1173
    %1516 = vmatprep.subr.mxu0 0.0
    %1517 = vmatpush1.msra.mxu0 %v1172
    %1518 = vmatprep.subr.mxu0 0.0
    %1519 = vmatpush2.msra.mxu0 0.0
    %1520 = vmatprep.subr.mxu0 0.0
    %1521 = vmatpush2.msra.mxu0 0.0
    %1522 = vmatprep.subr.mxu0 0.0
    %1523 = vmatpush2.msra.mxu0 0.0
    %1524 = vmatprep.subr.mxu0 0.0
    %1525 = vmatpush2.msra.mxu0 0.0
    %1526 = vmatprep.subr.mxu0 0.0
    %1527 = vmatpush2.msra.mxu0 0.0
    %1528 = vmatprep.subr.mxu0 0.0
    %1529 = vmatpush2.msra.mxu0 0.0
    %1530 = vmatprep.subr.mxu0 0.0
    %1531 = vmatpush2.msra.mxu0 0.0
    %1532 = vmatprep.subr.mxu0 0.0
    %1533 = vmatpush2.msra.mxu0 0.0
    %1534 = vmatprep.subr.mxu0 0.0
    %1535 = vmatpush2.msra.mxu0 0.0
    %1536 = vmatprep.subr.mxu0 0.0
    %1537 = vmatpush2.msra.mxu0 0.0
    %1538 = vmatprep.subr.mxu0 0.0
    %1539 = vmatpush2.msra.mxu0 0.0
    %1540 = vmatprep.subr.mxu0 0.0
    %1541 = vmatpush2.msra.mxu0 0.0
    %1542 = vmatprep.subr.mxu0 0.0
    %1543 = vmatpush2.msra.mxu0 0.0
    %1544 = vmatprep.subr.mxu0 0.0
    %1545 = vmatpush2.msra.mxu0 0.0
    %1546 = vmatprep.subr.mxu0 0.0
    %1547 = vmatpush2.msra.mxu0 0.0
    %1548 = vmatprep.subr.mxu0 0.0
    %1549 = vmatpush2.msra.mxu0 0.0
    %1550 = vmatprep.mubr.f32.mxu0 0.0
    %1551 = vmatmul.mubr.f32.gmra.mxu0 %v1484
    %v1552 = vpop.f32.mrf.mxu0
    %v1553 = vadd.f32 0.0, %v1552
    %v1554 = vpop.f32.mrf.mxu0
    %1555 = vdwg.mxu0
    %v1557 = vsel %vm1180, %v597, 0
    %1559 = vmatprep.subr.mxu0 0.0
    %1560 = vmatpush1.msra.mxu0 0.0
    %1561 = vmatprep.subr.mxu0 0.0
    %1562 = vmatpush1.msra.mxu0 0.0
    %1563 = vmatprep.subr.mxu0 0.0
    %1564 = vmatpush1.msra.mxu0 0.0
    %1565 = vmatprep.subr.mxu0 0.0
    %1566 = vmatpush1.msra.mxu0 0.0
    %1567 = vmatprep.subr.mxu0 0.0
    %1568 = vmatpush1.msra.mxu0 0.0
    %1569 = vmatprep.subr.mxu0 0.0
    %1570 = vmatpush1.msra.mxu0 0.0
    %1571 = vmatprep.subr.mxu0 0.0
    %1572 = vmatpush1.msra.mxu0 0.0
    %1573 = vmatprep.subr.mxu0 0.0
    %1574 = vmatpush1.msra.mxu0 0.0
    %1575 = vmatprep.subr.mxu0 0.0
    %1576 = vmatpush1.msra.mxu0 0.0
    %1577 = vmatprep.subr.mxu0 0.0
    %1578 = vmatpush1.msra.mxu0 0.0
    %1579 = vmatprep.subr.mxu0 0.0
    %1580 = vmatpush1.msra.mxu0 0.0
    %1581 = vmatprep.subr.mxu0 0.0
    %1582 = vmatpush1.msra.mxu0 0.0
    %1583 = vmatprep.subr.mxu0 0.0
    %1584 = vmatpush1.msra.mxu0 %v1171
    %1585 = vmatprep.subr.mxu0 0.0
    %1586 = vmatpush1.msra.mxu0 %v1170
    %1587 = vmatprep.subr.mxu0 0.0
    %1588 = vmatpush1.msra.mxu0 %v1169
    %1589 = vmatprep.subr.mxu0 0.0
    %1590 = vmatpush1.msra.mxu0 %v1168
    %1591 = vmatprep.subr.mxu0 0.0
    %1592 = vmatpush2.msra.mxu0 0.0
    %1593 = vmatprep.subr.mxu0 0.0
    %1594 = vmatpush2.msra.mxu0 0.0
    %1595 = vmatprep.subr.mxu0 0.0
    %1596 = vmatpush2.msra.mxu0 0.0
    %1597 = vmatprep.subr.mxu0 0.0
    %1598 = vmatpush2.msra.mxu0 0.0
    %1599 = vmatprep.subr.mxu0 0.0
    %1600 = vmatpush2.msra.mxu0 0.0
    %1601 = vmatprep.subr.mxu0 0.0
    %1602 = vmatpush2.msra.mxu0 0.0
    %1603 = vmatprep.subr.mxu0 0.0
    %1604 = vmatpush2.msra.mxu0 0.0
    %1605 = vmatprep.subr.mxu0 0.0
    %1606 = vmatpush2.msra.mxu0 0.0
    %1607 = vmatprep.subr.mxu0 0.0
    %1608 = vmatpush2.msra.mxu0 0.0
    %1609 = vmatprep.subr.mxu0 0.0
    %1610 = vmatpush2.msra.mxu0 0.0
    %1611 = vmatprep.subr.mxu0 0.0
    %1612 = vmatpush2.msra.mxu0 0.0
    %1613 = vmatprep.subr.mxu0 0.0
    %1614 = vmatpush2.msra.mxu0 0.0
    %1615 = vmatprep.subr.mxu0 0.0
    %1616 = vmatpush2.msra.mxu0 0.0
    %1617 = vmatprep.subr.mxu0 0.0
    %1618 = vmatpush2.msra.mxu0 0.0
    %1619 = vmatprep.subr.mxu0 0.0
    %1620 = vmatpush2.msra.mxu0 0.0
    %1621 = vmatprep.subr.mxu0 0.0
    %1622 = vmatpush2.msra.mxu0 0.0
    %1623 = vmatprep.mubr.f32.mxu0 0.0
    %1624 = vmatmul.mubr.f32.gmra.mxu0 %v1557
    %v1625 = vpop.f32.mrf.mxu0
    %v1626 = vadd.f32 %v1553, %v1625
    %v1627 = vpop.f32.mrf.mxu0
    %1628 = vdwg.mxu0
    %v1629 = vadd.f32 %v1626, %v1329
    %1631 = vrot.lane.b32.xlu0 %v825, 96
    %v1632 = vpop.permute.xlu0 %1631
    %v1633 = vsel %vm1180, %v1632, 0
    %1635 = vmatprep.subr.mxu0 0.0
    %1636 = vmatpush1.msra.mxu0 0.0
    %1637 = vmatprep.subr.mxu0 0.0
    %1638 = vmatpush1.msra.mxu0 0.0
    %1639 = vmatprep.subr.mxu0 0.0
    %1640 = vmatpush1.msra.mxu0 0.0
    %1641 = vmatprep.subr.mxu0 0.0
    %1642 = vmatpush1.msra.mxu0 0.0
    %1643 = vmatprep.subr.mxu0 0.0
    %1644 = vmatpush1.msra.mxu0 0.0
    %1645 = vmatprep.subr.mxu0 0.0
    %1646 = vmatpush1.msra.mxu0 0.0
    %1647 = vmatprep.subr.mxu0 0.0
    %1648 = vmatpush1.msra.mxu0 0.0
    %1649 = vmatprep.subr.mxu0 0.0
    %1650 = vmatpush1.msra.mxu0 0.0
    %1651 = vmatprep.subr.mxu0 0.0
    %1652 = vmatpush1.msra.mxu0 0.0
    %1653 = vmatprep.subr.mxu0 0.0
    %1654 = vmatpush1.msra.mxu0 0.0
    %1655 = vmatprep.subr.mxu0 0.0
    %1656 = vmatpush1.msra.mxu0 0.0
    %1657 = vmatprep.subr.mxu0 0.0
    %1658 = vmatpush1.msra.mxu0 0.0
    %1659 = vmatprep.subr.mxu0 0.0
    %1660 = vmatpush1.msra.mxu0 %v1175
    %1661 = vmatprep.subr.mxu0 0.0
    %1662 = vmatpush1.msra.mxu0 %v1174
    %1663 = vmatprep.subr.mxu0 0.0
    %1664 = vmatpush1.msra.mxu0 %v1173
    %1665 = vmatprep.subr.mxu0 0.0
    %1666 = vmatpush1.msra.mxu0 %v1172
    %1667 = vmatprep.subr.mxu0 0.0
    %1668 = vmatpush2.msra.mxu0 0.0
    %1669 = vmatprep.subr.mxu0 0.0
    %1670 = vmatpush2.msra.mxu0 0.0
    %1671 = vmatprep.subr.mxu0 0.0
    %1672 = vmatpush2.msra.mxu0 0.0
    %1673 = vmatprep.subr.mxu0 0.0
    %1674 = vmatpush2.msra.mxu0 0.0
    %1675 = vmatprep.subr.mxu0 0.0
    %1676 = vmatpush2.msra.mxu0 0.0
    %1677 = vmatprep.subr.mxu0 0.0
    %1678 = vmatpush2.msra.mxu0 0.0
    %1679 = vmatprep.subr.mxu0 0.0
    %1680 = vmatpush2.msra.mxu0 0.0
    %1681 = vmatprep.subr.mxu0 0.0
    %1682 = vmatpush2.msra.mxu0 0.0
    %1683 = vmatprep.subr.mxu0 0.0
    %1684 = vmatpush2.msra.mxu0 0.0
    %1685 = vmatprep.subr.mxu0 0.0
    %1686 = vmatpush2.msra.mxu0 0.0
    %1687 = vmatprep.subr.mxu0 0.0
    %1688 = vmatpush2.msra.mxu0 0.0
    %1689 = vmatprep.subr.mxu0 0.0
    %1690 = vmatpush2.msra.mxu0 0.0
    %1691 = vmatprep.subr.mxu0 0.0
    %1692 = vmatpush2.msra.mxu0 0.0
    %1693 = vmatprep.subr.mxu0 0.0
    %1694 = vmatpush2.msra.mxu0 0.0
    %1695 = vmatprep.subr.mxu0 0.0
    %1696 = vmatpush2.msra.mxu0 0.0
    %1697 = vmatprep.subr.mxu0 0.0
    %1698 = vmatpush2.msra.mxu0 0.0
    %1699 = vmatprep.mubr.f32.mxu0 0.0
    %1700 = vmatmul.mubr.f32.gmra.mxu0 %v1633
    %v1701 = vpop.f32.mrf.mxu0
    %v1702 = vadd.f32 0.0, %v1701
    %v1703 = vpop.f32.mrf.mxu0
    %1704 = vdwg.mxu0
    %v1706 = vsel %vm1180, %v711, 0
    %1708 = vmatprep.subr.mxu0 0.0
    %1709 = vmatpush1.msra.mxu0 0.0
    %1710 = vmatprep.subr.mxu0 0.0
    %1711 = vmatpush1.msra.mxu0 0.0
    %1712 = vmatprep.subr.mxu0 0.0
    %1713 = vmatpush1.msra.mxu0 0.0
    %1714 = vmatprep.subr.mxu0 0.0
    %1715 = vmatpush1.msra.mxu0 0.0
    %1716 = vmatprep.subr.mxu0 0.0
    %1717 = vmatpush1.msra.mxu0 0.0
    %1718 = vmatprep.subr.mxu0 0.0
    %1719 = vmatpush1.msra.mxu0 0.0
    %1720 = vmatprep.subr.mxu0 0.0
    %1721 = vmatpush1.msra.mxu0 0.0
    %1722 = vmatprep.subr.mxu0 0.0
    %1723 = vmatpush1.msra.mxu0 0.0
    %1724 = vmatprep.subr.mxu0 0.0
    %1725 = vmatpush1.msra.mxu0 0.0
    %1726 = vmatprep.subr.mxu0 0.0
    %1727 = vmatpush1.msra.mxu0 0.0
    %1728 = vmatprep.subr.mxu0 0.0
    %1729 = vmatpush1.msra.mxu0 0.0
    %1730 = vmatprep.subr.mxu0 0.0
    %1731 = vmatpush1.msra.mxu0 0.0
    %1732 = vmatprep.subr.mxu0 0.0
    %1733 = vmatpush1.msra.mxu0 %v1171
    %1734 = vmatprep.subr.mxu0 0.0
    %1735 = vmatpush1.msra.mxu0 %v1170
    %1736 = vmatprep.subr.mxu0 0.0
    %1737 = vmatpush1.msra.mxu0 %v1169
    %1738 = vmatprep.subr.mxu0 0.0
    %1739 = vmatpush1.msra.mxu0 %v1168
    %1740 = vmatprep.subr.mxu0 0.0
    %1741 = vmatpush2.msra.mxu0 0.0
    %1742 = vmatprep.subr.mxu0 0.0
    %1743 = vmatpush2.msra.mxu0 0.0
    %1744 = vmatprep.subr.mxu0 0.0
    %1745 = vmatpush2.msra.mxu0 0.0
    %1746 = vmatprep.subr.mxu0 0.0
    %1747 = vmatpush2.msra.mxu0 0.0
    %1748 = vmatprep.subr.mxu0 0.0
    %1749 = vmatpush2.msra.mxu0 0.0
    %1750 = vmatprep.subr.mxu0 0.0
    %1751 = vmatpush2.msra.mxu0 0.0
    %1752 = vmatprep.subr.mxu0 0.0
    %1753 = vmatpush2.msra.mxu0 0.0
    %1754 = vmatprep.subr.mxu0 0.0
    %1755 = vmatpush2.msra.mxu0 0.0
    %1756 = vmatprep.subr.mxu0 0.0
    %1757 = vmatpush2.msra.mxu0 0.0
    %1758 = vmatprep.subr.mxu0 0.0
    %1759 = vmatpush2.msra.mxu0 0.0
    %1760 = vmatprep.subr.mxu0 0.0
    %1761 = vmatpush2.msra.mxu0 0.0
    %1762 = vmatprep.subr.mxu0 0.0
    %1763 = vmatpush2.msra.mxu0 0.0
    %1764 = vmatprep.subr.mxu0 0.0
    %1765 = vmatpush2.msra.mxu0 0.0
    %1766 = vmatprep.subr.mxu0 0.0
    %1767 = vmatpush2.msra.mxu0 0.0
    %1768 = vmatprep.subr.mxu0 0.0
    %1769 = vmatpush2.msra.mxu0 0.0
    %1770 = vmatprep.subr.mxu0 0.0
    %1771 = vmatpush2.msra.mxu0 0.0
    %1772 = vmatprep.mubr.f32.mxu0 0.0
    %1773 = vmatmul.mubr.f32.gmra.mxu0 %v1706
    %v1774 = vpop.f32.mrf.mxu0
    %v1775 = vadd.f32 %v1702, %v1774
    %v1776 = vpop.f32.mrf.mxu0
    %1777 = vdwg.mxu0
    %v1778 = vadd.f32 %v1775, %v1329
    %1779 = vrot.lane.b32.xlu0 %v711, 96
    %v1780 = vpop.permute.xlu0 %1779
    %v1781 = vsel %vm1180, %v1780, 0
    %1783 = vmatprep.subr.mxu0 0.0
    %1784 = vmatpush1.msra.mxu0 0.0
    %1785 = vmatprep.subr.mxu0 0.0
    %1786 = vmatpush1.msra.mxu0 0.0
    %1787 = vmatprep.subr.mxu0 0.0
    %1788 = vmatpush1.msra.mxu0 0.0
    %1789 = vmatprep.subr.mxu0 0.0
    %1790 = vmatpush1.msra.mxu0 0.0
    %1791 = vmatprep.subr.mxu0 0.0
    %1792 = vmatpush1.msra.mxu0 0.0
    %1793 = vmatprep.subr.mxu0 0.0
    %1794 = vmatpush1.msra.mxu0 0.0
    %1795 = vmatprep.subr.mxu0 0.0
    %1796 = vmatpush1.msra.mxu0 0.0
    %1797 = vmatprep.subr.mxu0 0.0
    %1798 = vmatpush1.msra.mxu0 0.0
    %1799 = vmatprep.subr.mxu0 0.0
    %1800 = vmatpush1.msra.mxu0 0.0
    %1801 = vmatprep.subr.mxu0 0.0
    %1802 = vmatpush1.msra.mxu0 0.0
    %1803 = vmatprep.subr.mxu0 0.0
    %1804 = vmatpush1.msra.mxu0 0.0
    %1805 = vmatprep.subr.mxu0 0.0
    %1806 = vmatpush1.msra.mxu0 0.0
    %1807 = vmatprep.subr.mxu0 0.0
    %1808 = vmatpush1.msra.mxu0 %v1175
    %1809 = vmatprep.subr.mxu0 0.0
    %1810 = vmatpush1.msra.mxu0 %v1174
    %1811 = vmatprep.subr.mxu0 0.0
    %1812 = vmatpush1.msra.mxu0 %v1173
    %1813 = vmatprep.subr.mxu0 0.0
    %1814 = vmatpush1.msra.mxu0 %v1172
    %1815 = vmatprep.subr.mxu0 0.0
    %1816 = vmatpush2.msra.mxu0 0.0
    %1817 = vmatprep.subr.mxu0 0.0
    %1818 = vmatpush2.msra.mxu0 0.0
    %1819 = vmatprep.subr.mxu0 0.0
    %1820 = vmatpush2.msra.mxu0 0.0
    %1821 = vmatprep.subr.mxu0 0.0
    %1822 = vmatpush2.msra.mxu0 0.0
    %1823 = vmatprep.subr.mxu0 0.0
    %1824 = vmatpush2.msra.mxu0 0.0
    %1825 = vmatprep.subr.mxu0 0.0
    %1826 = vmatpush2.msra.mxu0 0.0
    %1827 = vmatprep.subr.mxu0 0.0
    %1828 = vmatpush2.msra.mxu0 0.0
    %1829 = vmatprep.subr.mxu0 0.0
    %1830 = vmatpush2.msra.mxu0 0.0
    %1831 = vmatprep.subr.mxu0 0.0
    %1832 = vmatpush2.msra.mxu0 0.0
    %1833 = vmatprep.subr.mxu0 0.0
    %1834 = vmatpush2.msra.mxu0 0.0
    %1835 = vmatprep.subr.mxu0 0.0
    %1836 = vmatpush2.msra.mxu0 0.0
    %1837 = vmatprep.subr.mxu0 0.0
    %1838 = vmatpush2.msra.mxu0 0.0
    %1839 = vmatprep.subr.mxu0 0.0
    %1840 = vmatpush2.msra.mxu0 0.0
    %1841 = vmatprep.subr.mxu0 0.0
    %1842 = vmatpush2.msra.mxu0 0.0
    %1843 = vmatprep.subr.mxu0 0.0
    %1844 = vmatpush2.msra.mxu0 0.0
    %1845 = vmatprep.subr.mxu0 0.0
    %1846 = vmatpush2.msra.mxu0 0.0
    %1847 = vmatprep.mubr.f32.mxu0 0.0
    %1848 = vmatmul.mubr.f32.gmra.mxu0 %v1781
    %v1849 = vpop.f32.mrf.mxu0
    %v1850 = vadd.f32 0.0, %v1849
    %v1851 = vpop.f32.mrf.mxu0
    %1852 = vdwg.mxu0
    %v1853 = vsel %vm1180, %v825, 0
    %1855 = vmatprep.subr.mxu0 0.0
    %1856 = vmatpush1.msra.mxu0 0.0
    %1857 = vmatprep.subr.mxu0 0.0
    %1858 = vmatpush1.msra.mxu0 0.0
    %1859 = vmatprep.subr.mxu0 0.0
    %1860 = vmatpush1.msra.mxu0 0.0
    %1861 = vmatprep.subr.mxu0 0.0
    %1862 = vmatpush1.msra.mxu0 0.0
    %1863 = vmatprep.subr.mxu0 0.0
    %1864 = vmatpush1.msra.mxu0 0.0
    %1865 = vmatprep.subr.mxu0 0.0
    %1866 = vmatpush1.msra.mxu0 0.0
    %1867 = vmatprep.subr.mxu0 0.0
    %1868 = vmatpush1.msra.mxu0 0.0
    %1869 = vmatprep.subr.mxu0 0.0
    %1870 = vmatpush1.msra.mxu0 0.0
    %1871 = vmatprep.subr.mxu0 0.0
    %1872 = vmatpush1.msra.mxu0 0.0
    %1873 = vmatprep.subr.mxu0 0.0
    %1874 = vmatpush1.msra.mxu0 0.0
    %1875 = vmatprep.subr.mxu0 0.0
    %1876 = vmatpush1.msra.mxu0 0.0
    %1877 = vmatprep.subr.mxu0 0.0
    %1878 = vmatpush1.msra.mxu0 0.0
    %1879 = vmatprep.subr.mxu0 0.0
    %1880 = vmatpush1.msra.mxu0 %v1171
    %1881 = vmatprep.subr.mxu0 0.0
    %1882 = vmatpush1.msra.mxu0 %v1170
    %1883 = vmatprep.subr.mxu0 0.0
    %1884 = vmatpush1.msra.mxu0 %v1169
    %1885 = vmatprep.subr.mxu0 0.0
    %1886 = vmatpush1.msra.mxu0 %v1168
    %1887 = vmatprep.subr.mxu0 0.0
    %1888 = vmatpush2.msra.mxu0 0.0
    %1889 = vmatprep.subr.mxu0 0.0
    %1890 = vmatpush2.msra.mxu0 0.0
    %1891 = vmatprep.subr.mxu0 0.0
    %1892 = vmatpush2.msra.mxu0 0.0
    %1893 = vmatprep.subr.mxu0 0.0
    %1894 = vmatpush2.msra.mxu0 0.0
    %1895 = vmatprep.subr.mxu0 0.0
    %1896 = vmatpush2.msra.mxu0 0.0
    %1897 = vmatprep.subr.mxu0 0.0
    %1898 = vmatpush2.msra.mxu0 0.0
    %1899 = vmatprep.subr.mxu0 0.0
    %1900 = vmatpush2.msra.mxu0 0.0
    %1901 = vmatprep.subr.mxu0 0.0
    %1902 = vmatpush2.msra.mxu0 0.0
    %1903 = vmatprep.subr.mxu0 0.0
    %1904 = vmatpush2.msra.mxu0 0.0
    %1905 = vmatprep.subr.mxu0 0.0
    %1906 = vmatpush2.msra.mxu0 0.0
    %1907 = vmatprep.subr.mxu0 0.0
    %1908 = vmatpush2.msra.mxu0 0.0
    %1909 = vmatprep.subr.mxu0 0.0
    %1910 = vmatpush2.msra.mxu0 0.0
    %1911 = vmatprep.subr.mxu0 0.0
    %1912 = vmatpush2.msra.mxu0 0.0
    %1913 = vmatprep.subr.mxu0 0.0
    %1914 = vmatpush2.msra.mxu0 0.0
    %1915 = vmatprep.subr.mxu0 0.0
    %1916 = vmatpush2.msra.mxu0 0.0
    %1917 = vmatprep.subr.mxu0 0.0
    %1918 = vmatpush2.msra.mxu0 0.0
    %1919 = vmatprep.mubr.f32.mxu0 0.0
    %1920 = vmatmul.mubr.f32.gmra.mxu0 %v1853
    %v1921 = vpop.f32.mrf.mxu0
    %v1922 = vadd.f32 %v1850, %v1921
    %v1923 = vpop.f32.mrf.mxu0
    %1924 = vdwg.mxu0
    %v1925 = vadd.f32 %v1922, %v1329
    %1926 = vrot.lane.b32.xlu0 %v597, 96
    %v1927 = vpop.permute.xlu0 %1926
    %v1928 = vsel %vm1180, %v1927, 0
    %1930 = vmatprep.subr.mxu0 0.0
    %1931 = vmatpush1.msra.mxu0 0.0
    %1932 = vmatprep.subr.mxu0 0.0
    %1933 = vmatpush1.msra.mxu0 0.0
    %1934 = vmatprep.subr.mxu0 0.0
    %1935 = vmatpush1.msra.mxu0 0.0
    %1936 = vmatprep.subr.mxu0 0.0
    %1937 = vmatpush1.msra.mxu0 0.0
    %1938 = vmatprep.subr.mxu0 0.0
    %1939 = vmatpush1.msra.mxu0 0.0
    %1940 = vmatprep.subr.mxu0 0.0
    %1941 = vmatpush1.msra.mxu0 0.0
    %1942 = vmatprep.subr.mxu0 0.0
    %1943 = vmatpush1.msra.mxu0 0.0
    %1944 = vmatprep.subr.mxu0 0.0
    %1945 = vmatpush1.msra.mxu0 0.0
    %1946 = vmatprep.subr.mxu0 0.0
    %1947 = vmatpush1.msra.mxu0 0.0
    %1948 = vmatprep.subr.mxu0 0.0
    %1949 = vmatpush1.msra.mxu0 0.0
    %1950 = vmatprep.subr.mxu0 0.0
    %1951 = vmatpush1.msra.mxu0 0.0
    %1952 = vmatprep.subr.mxu0 0.0
    %1953 = vmatpush1.msra.mxu0 0.0
    %1954 = vmatprep.subr.mxu0 0.0
    %1955 = vmatpush1.msra.mxu0 %v1175
    %1956 = vmatprep.subr.mxu0 0.0
    %1957 = vmatpush1.msra.mxu0 %v1174
    %1958 = vmatprep.subr.mxu0 0.0
    %1959 = vmatpush1.msra.mxu0 %v1173
    %1960 = vmatprep.subr.mxu0 0.0
    %1961 = vmatpush1.msra.mxu0 %v1172
    %1962 = vmatprep.subr.mxu0 0.0
    %1963 = vmatpush2.msra.mxu0 0.0
    %1964 = vmatprep.subr.mxu0 0.0
    %1965 = vmatpush2.msra.mxu0 0.0
    %1966 = vmatprep.subr.mxu0 0.0
    %1967 = vmatpush2.msra.mxu0 0.0
    %1968 = vmatprep.subr.mxu0 0.0
    %1969 = vmatpush2.msra.mxu0 0.0
    %1970 = vmatprep.subr.mxu0 0.0
    %1971 = vmatpush2.msra.mxu0 0.0
    %1972 = vmatprep.subr.mxu0 0.0
    %1973 = vmatpush2.msra.mxu0 0.0
    %1974 = vmatprep.subr.mxu0 0.0
    %1975 = vmatpush2.msra.mxu0 0.0
    %1976 = vmatprep.subr.mxu0 0.0
    %1977 = vmatpush2.msra.mxu0 0.0
    %1978 = vmatprep.subr.mxu0 0.0
    %1979 = vmatpush2.msra.mxu0 0.0
    %1980 = vmatprep.subr.mxu0 0.0
    %1981 = vmatpush2.msra.mxu0 0.0
    %1982 = vmatprep.subr.mxu0 0.0
    %1983 = vmatpush2.msra.mxu0 0.0
    %1984 = vmatprep.subr.mxu0 0.0
    %1985 = vmatpush2.msra.mxu0 0.0
    %1986 = vmatprep.subr.mxu0 0.0
    %1987 = vmatpush2.msra.mxu0 0.0
    %1988 = vmatprep.subr.mxu0 0.0
    %1989 = vmatpush2.msra.mxu0 0.0
    %1990 = vmatprep.subr.mxu0 0.0
    %1991 = vmatpush2.msra.mxu0 0.0
    %1992 = vmatprep.subr.mxu0 0.0
    %1993 = vmatpush2.msra.mxu0 0.0
    %1994 = vmatprep.mubr.f32.mxu0 0.0
    %1995 = vmatmul.mubr.f32.gmra.mxu0 %v1928
    %v1996 = vpop.f32.mrf.mxu0
    %v1997 = vadd.f32 0.0, %v1996
    %v1998 = vpop.f32.mrf.mxu0
    %1999 = vdwg.mxu0
    %v2000 = vsel %vm1180, %v939, 0
    %2002 = vmatprep.subr.mxu0 0.0
    %2003 = vmatpush1.msra.mxu0 0.0
    %2004 = vmatprep.subr.mxu0 0.0
    %2005 = vmatpush1.msra.mxu0 0.0
    %2006 = vmatprep.subr.mxu0 0.0
    %2007 = vmatpush1.msra.mxu0 0.0
    %2008 = vmatprep.subr.mxu0 0.0
    %2009 = vmatpush1.msra.mxu0 0.0
    %2010 = vmatprep.subr.mxu0 0.0
    %2011 = vmatpush1.msra.mxu0 0.0
    %2012 = vmatprep.subr.mxu0 0.0
    %2013 = vmatpush1.msra.mxu0 0.0
    %2014 = vmatprep.subr.mxu0 0.0
    %2015 = vmatpush1.msra.mxu0 0.0
    %2016 = vmatprep.subr.mxu0 0.0
    %2017 = vmatpush1.msra.mxu0 0.0
    %2018 = vmatprep.subr.mxu0 0.0
    %2019 = vmatpush1.msra.mxu0 0.0
    %2020 = vmatprep.subr.mxu0 0.0
    %2021 = vmatpush1.msra.mxu0 0.0
    %2022 = vmatprep.subr.mxu0 0.0
    %2023 = vmatpush1.msra.mxu0 0.0
    %2024 = vmatprep.subr.mxu0 0.0
    %2025 = vmatpush1.msra.mxu0 0.0
    %2026 = vmatprep.subr.mxu0 0.0
    %2027 = vmatpush1.msra.mxu0 %v1171
    %2028 = vmatprep.subr.mxu0 0.0
    %2029 = vmatpush1.msra.mxu0 %v1170
    %2030 = vmatprep.subr.mxu0 0.0
    %2031 = vmatpush1.msra.mxu0 %v1169
    %2032 = vmatprep.subr.mxu0 0.0
    %2033 = vmatpush1.msra.mxu0 %v1168
    %2034 = vmatprep.subr.mxu0 0.0
    %2035 = vmatpush2.msra.mxu0 0.0
    %2036 = vmatprep.subr.mxu0 0.0
    %2037 = vmatpush2.msra.mxu0 0.0
    %2038 = vmatprep.subr.mxu0 0.0
    %2039 = vmatpush2.msra.mxu0 0.0
    %2040 = vmatprep.subr.mxu0 0.0
    %2041 = vmatpush2.msra.mxu0 0.0
    %2042 = vmatprep.subr.mxu0 0.0
    %2043 = vmatpush2.msra.mxu0 0.0
    %2044 = vmatprep.subr.mxu0 0.0
    %2045 = vmatpush2.msra.mxu0 0.0
    %2046 = vmatprep.subr.mxu0 0.0
    %2047 = vmatpush2.msra.mxu0 0.0
    %2048 = vmatprep.subr.mxu0 0.0
    %2049 = vmatpush2.msra.mxu0 0.0
    %2050 = vmatprep.subr.mxu0 0.0
    %2051 = vmatpush2.msra.mxu0 0.0
    %2052 = vmatprep.subr.mxu0 0.0
    %2053 = vmatpush2.msra.mxu0 0.0
    %2054 = vmatprep.subr.mxu0 0.0
    %2055 = vmatpush2.msra.mxu0 0.0
    %2056 = vmatprep.subr.mxu0 0.0
    %2057 = vmatpush2.msra.mxu0 0.0
    %2058 = vmatprep.subr.mxu0 0.0
    %2059 = vmatpush2.msra.mxu0 0.0
    %2060 = vmatprep.subr.mxu0 0.0
    %2061 = vmatpush2.msra.mxu0 0.0
    %2062 = vmatprep.subr.mxu0 0.0
    %2063 = vmatpush2.msra.mxu0 0.0
    %2064 = vmatprep.subr.mxu0 0.0
    %2065 = vmatpush2.msra.mxu0 0.0
    %2066 = vmatprep.mubr.f32.mxu0 0.0
    %2067 = vmatmul.mubr.f32.gmra.mxu0 %v2000
    %v2068 = vpop.f32.mrf.mxu0
    %v2069 = vadd.f32 %v1997, %v2068
    %v2070 = vpop.f32.mrf.mxu0
    %2071 = vdwg.mxu0
    %v2072 = vadd.f32 %v2069, %v1329
    %2073 = vrot.lane.b32.xlu0 %v483, 96
    %v2074 = vpop.permute.xlu0 %2073
    %v2075 = vsel %vm1180, %v2074, 0
    %2077 = vmatprep.subr.mxu0 0.0
    %2078 = vmatpush1.msra.mxu0 0.0
    %2079 = vmatprep.subr.mxu0 0.0
    %2080 = vmatpush1.msra.mxu0 0.0
    %2081 = vmatprep.subr.mxu0 0.0
    %2082 = vmatpush1.msra.mxu0 0.0
    %2083 = vmatprep.subr.mxu0 0.0
    %2084 = vmatpush1.msra.mxu0 0.0
    %2085 = vmatprep.subr.mxu0 0.0
    %2086 = vmatpush1.msra.mxu0 0.0
    %2087 = vmatprep.subr.mxu0 0.0
    %2088 = vmatpush1.msra.mxu0 0.0
    %2089 = vmatprep.subr.mxu0 0.0
    %2090 = vmatpush1.msra.mxu0 0.0
    %2091 = vmatprep.subr.mxu0 0.0
    %2092 = vmatpush1.msra.mxu0 0.0
    %2093 = vmatprep.subr.mxu0 0.0
    %2094 = vmatpush1.msra.mxu0 0.0
    %2095 = vmatprep.subr.mxu0 0.0
    %2096 = vmatpush1.msra.mxu0 0.0
    %2097 = vmatprep.subr.mxu0 0.0
    %2098 = vmatpush1.msra.mxu0 0.0
    %2099 = vmatprep.subr.mxu0 0.0
    %2100 = vmatpush1.msra.mxu0 0.0
    %2101 = vmatprep.subr.mxu0 0.0
    %2102 = vmatpush1.msra.mxu0 %v1175
    %2103 = vmatprep.subr.mxu0 0.0
    %2104 = vmatpush1.msra.mxu0 %v1174
    %2105 = vmatprep.subr.mxu0 0.0
    %2106 = vmatpush1.msra.mxu0 %v1173
    %2107 = vmatprep.subr.mxu0 0.0
    %2108 = vmatpush1.msra.mxu0 %v1172
    %2109 = vmatprep.subr.mxu0 0.0
    %2110 = vmatpush2.msra.mxu0 0.0
    %2111 = vmatprep.subr.mxu0 0.0
    %2112 = vmatpush2.msra.mxu0 0.0
    %2113 = vmatprep.subr.mxu0 0.0
    %2114 = vmatpush2.msra.mxu0 0.0
    %2115 = vmatprep.subr.mxu0 0.0
    %2116 = vmatpush2.msra.mxu0 0.0
    %2117 = vmatprep.subr.mxu0 0.0
    %2118 = vmatpush2.msra.mxu0 0.0
    %2119 = vmatprep.subr.mxu0 0.0
    %2120 = vmatpush2.msra.mxu0 0.0
    %2121 = vmatprep.subr.mxu0 0.0
    %2122 = vmatpush2.msra.mxu0 0.0
    %2123 = vmatprep.subr.mxu0 0.0
    %2124 = vmatpush2.msra.mxu0 0.0
    %2125 = vmatprep.subr.mxu0 0.0
    %2126 = vmatpush2.msra.mxu0 0.0
    %2127 = vmatprep.subr.mxu0 0.0
    %2128 = vmatpush2.msra.mxu0 0.0
    %2129 = vmatprep.subr.mxu0 0.0
    %2130 = vmatpush2.msra.mxu0 0.0
    %2131 = vmatprep.subr.mxu0 0.0
    %2132 = vmatpush2.msra.mxu0 0.0
    %2133 = vmatprep.subr.mxu0 0.0
    %2134 = vmatpush2.msra.mxu0 0.0
    %2135 = vmatprep.subr.mxu0 0.0
    %2136 = vmatpush2.msra.mxu0 0.0
    %2137 = vmatprep.subr.mxu0 0.0
    %2138 = vmatpush2.msra.mxu0 0.0
    %2139 = vmatprep.subr.mxu0 0.0
    %2140 = vmatpush2.msra.mxu0 0.0
    %2141 = vmatprep.mubr.f32.mxu0 0.0
    %2142 = vmatmul.mubr.f32.gmra.mxu0 %v2075
    %v2143 = vpop.f32.mrf.mxu0
    %v2144 = vadd.f32 0.0, %v2143
    %v2145 = vpop.f32.mrf.mxu0
    %2146 = vdwg.mxu0
    %v2147 = vsel %vm1180, %v1053, 0
    %2149 = vmatprep.subr.mxu0 0.0
    %2150 = vmatpush1.msra.mxu0 0.0
    %2151 = vmatprep.subr.mxu0 0.0
    %2152 = vmatpush1.msra.mxu0 0.0
    %2153 = vmatprep.subr.mxu0 0.0
    %2154 = vmatpush1.msra.mxu0 0.0
    %2155 = vmatprep.subr.mxu0 0.0
    %2156 = vmatpush1.msra.mxu0 0.0
    %2157 = vmatprep.subr.mxu0 0.0
    %2158 = vmatpush1.msra.mxu0 0.0
    %2159 = vmatprep.subr.mxu0 0.0
    %2160 = vmatpush1.msra.mxu0 0.0
    %2161 = vmatprep.subr.mxu0 0.0
    %2162 = vmatpush1.msra.mxu0 0.0
    %2163 = vmatprep.subr.mxu0 0.0
    %2164 = vmatpush1.msra.mxu0 0.0
    %2165 = vmatprep.subr.mxu0 0.0
    %2166 = vmatpush1.msra.mxu0 0.0
    %2167 = vmatprep.subr.mxu0 0.0
    %2168 = vmatpush1.msra.mxu0 0.0
    %2169 = vmatprep.subr.mxu0 0.0
    %2170 = vmatpush1.msra.mxu0 0.0
    %2171 = vmatprep.subr.mxu0 0.0
    %2172 = vmatpush1.msra.mxu0 0.0
    %2173 = vmatprep.subr.mxu0 0.0
    %2174 = vmatpush1.msra.mxu0 %v1171
    %2175 = vmatprep.subr.mxu0 0.0
    %2176 = vmatpush1.msra.mxu0 %v1170
    %2177 = vmatprep.subr.mxu0 0.0
    %2178 = vmatpush1.msra.mxu0 %v1169
    %2179 = vmatprep.subr.mxu0 0.0
    %2180 = vmatpush1.msra.mxu0 %v1168
    %2181 = vmatprep.subr.mxu0 0.0
    %2182 = vmatpush2.msra.mxu0 0.0
    %2183 = vmatprep.subr.mxu0 0.0
    %2184 = vmatpush2.msra.mxu0 0.0
    %2185 = vmatprep.subr.mxu0 0.0
    %2186 = vmatpush2.msra.mxu0 0.0
    %2187 = vmatprep.subr.mxu0 0.0
    %2188 = vmatpush2.msra.mxu0 0.0
    %2189 = vmatprep.subr.mxu0 0.0
    %2190 = vmatpush2.msra.mxu0 0.0
    %2191 = vmatprep.subr.mxu0 0.0
    %2192 = vmatpush2.msra.mxu0 0.0
    %2193 = vmatprep.subr.mxu0 0.0
    %2194 = vmatpush2.msra.mxu0 0.0
    %2195 = vmatprep.subr.mxu0 0.0
    %2196 = vmatpush2.msra.mxu0 0.0
    %2197 = vmatprep.subr.mxu0 0.0
    %2198 = vmatpush2.msra.mxu0 0.0
    %2199 = vmatprep.subr.mxu0 0.0
    %2200 = vmatpush2.msra.mxu0 0.0
    %2201 = vmatprep.subr.mxu0 0.0
    %2202 = vmatpush2.msra.mxu0 0.0
    %2203 = vmatprep.subr.mxu0 0.0
    %2204 = vmatpush2.msra.mxu0 0.0
    %2205 = vmatprep.subr.mxu0 0.0
    %2206 = vmatpush2.msra.mxu0 0.0
    %2207 = vmatprep.subr.mxu0 0.0
    %2208 = vmatpush2.msra.mxu0 0.0
    %2209 = vmatprep.subr.mxu0 0.0
    %2210 = vmatpush2.msra.mxu0 0.0
    %2211 = vmatprep.subr.mxu0 0.0
    %2212 = vmatpush2.msra.mxu0 0.0
    %2213 = vmatprep.mubr.f32.mxu0 0.0
    %2214 = vmatmul.mubr.f32.gmra.mxu0 %v2147
    %v2215 = vpop.f32.mrf.mxu0
    %v2216 = vadd.f32 %v2144, %v2215
    %v2217 = vpop.f32.mrf.mxu0
    %2218 = vdwg.mxu0
    %v2219 = vadd.f32 %v2216, %v1329
    %2220 = vrot.lane.b32.xlu0 %v370, 96
    %v2221 = vpop.permute.xlu0 %2220
    %v2222 = vsel %vm1180, %v2221, 0
    %2224 = vmatprep.subr.mxu0 0.0
    %2225 = vmatpush1.msra.mxu0 0.0
    %2226 = vmatprep.subr.mxu0 0.0
    %2227 = vmatpush1.msra.mxu0 0.0
    %2228 = vmatprep.subr.mxu0 0.0
    %2229 = vmatpush1.msra.mxu0 0.0
    %2230 = vmatprep.subr.mxu0 0.0
    %2231 = vmatpush1.msra.mxu0 0.0
    %2232 = vmatprep.subr.mxu0 0.0
    %2233 = vmatpush1.msra.mxu0 0.0
    %2234 = vmatprep.subr.mxu0 0.0
    %2235 = vmatpush1.msra.mxu0 0.0
    %2236 = vmatprep.subr.mxu0 0.0
    %2237 = vmatpush1.msra.mxu0 0.0
    %2238 = vmatprep.subr.mxu0 0.0
    %2239 = vmatpush1.msra.mxu0 0.0
    %2240 = vmatprep.subr.mxu0 0.0
    %2241 = vmatpush1.msra.mxu0 0.0
    %2242 = vmatprep.subr.mxu0 0.0
    %2243 = vmatpush1.msra.mxu0 0.0
    %2244 = vmatprep.subr.mxu0 0.0
    %2245 = vmatpush1.msra.mxu0 0.0
    %2246 = vmatprep.subr.mxu0 0.0
    %2247 = vmatpush1.msra.mxu0 0.0
    %2248 = vmatprep.subr.mxu0 0.0
    %2249 = vmatpush1.msra.mxu0 %v1175
    %2250 = vmatprep.subr.mxu0 0.0
    %2251 = vmatpush1.msra.mxu0 %v1174
    %2252 = vmatprep.subr.mxu0 0.0
    %2253 = vmatpush1.msra.mxu0 %v1173
    %2254 = vmatprep.subr.mxu0 0.0
    %2255 = vmatpush1.msra.mxu0 %v1172
    %2256 = vmatprep.subr.mxu0 0.0
    %2257 = vmatpush2.msra.mxu0 0.0
    %2258 = vmatprep.subr.mxu0 0.0
    %2259 = vmatpush2.msra.mxu0 0.0
    %2260 = vmatprep.subr.mxu0 0.0
    %2261 = vmatpush2.msra.mxu0 0.0
    %2262 = vmatprep.subr.mxu0 0.0
    %2263 = vmatpush2.msra.mxu0 0.0
    %2264 = vmatprep.subr.mxu0 0.0
    %2265 = vmatpush2.msra.mxu0 0.0
    %2266 = vmatprep.subr.mxu0 0.0
    %2267 = vmatpush2.msra.mxu0 0.0
    %2268 = vmatprep.subr.mxu0 0.0
    %2269 = vmatpush2.msra.mxu0 0.0
    %2270 = vmatprep.subr.mxu0 0.0
    %2271 = vmatpush2.msra.mxu0 0.0
    %2272 = vmatprep.subr.mxu0 0.0
    %2273 = vmatpush2.msra.mxu0 0.0
    %2274 = vmatprep.subr.mxu0 0.0
    %2275 = vmatpush2.msra.mxu0 0.0
    %2276 = vmatprep.subr.mxu0 0.0
    %2277 = vmatpush2.msra.mxu0 0.0
    %2278 = vmatprep.subr.mxu0 0.0
    %2279 = vmatpush2.msra.mxu0 0.0
    %2280 = vmatprep.subr.mxu0 0.0
    %2281 = vmatpush2.msra.mxu0 0.0
    %2282 = vmatprep.subr.mxu0 0.0
    %2283 = vmatpush2.msra.mxu0 0.0
    %2284 = vmatprep.subr.mxu0 0.0
    %2285 = vmatpush2.msra.mxu0 0.0
    %2286 = vmatprep.subr.mxu0 0.0
    %2287 = vmatpush2.msra.mxu0 0.0
    %2288 = vmatprep.mubr.f32.mxu0 0.0
    %2289 = vmatmul.mubr.f32.gmra.mxu0 %v2222
    %v2290 = vpop.f32.mrf.mxu0
    %v2291 = vadd.f32 0.0, %v2290
    %v2292 = vpop.f32.mrf.mxu0
    %2293 = vdwg.mxu0
    %v2294 = vsel %vm1180, %v1167, 0
    %2296 = vmatprep.subr.mxu0 0.0
    %2297 = vmatpush1.msra.mxu0 0.0
    %2298 = vmatprep.subr.mxu0 0.0
    %2299 = vmatpush1.msra.mxu0 0.0
    %2300 = vmatprep.subr.mxu0 0.0
    %2301 = vmatpush1.msra.mxu0 0.0
    %2302 = vmatprep.subr.mxu0 0.0
    %2303 = vmatpush1.msra.mxu0 0.0
    %2304 = vmatprep.subr.mxu0 0.0
    %2305 = vmatpush1.msra.mxu0 0.0
    %2306 = vmatprep.subr.mxu0 0.0
    %2307 = vmatpush1.msra.mxu0 0.0
    %2308 = vmatprep.subr.mxu0 0.0
    %2309 = vmatpush1.msra.mxu0 0.0
    %2310 = vmatprep.subr.mxu0 0.0
    %2311 = vmatpush1.msra.mxu0 0.0
    %2312 = vmatprep.subr.mxu0 0.0
    %2313 = vmatpush1.msra.mxu0 0.0
    %2314 = vmatprep.subr.mxu0 0.0
    %2315 = vmatpush1.msra.mxu0 0.0
    %2316 = vmatprep.subr.mxu0 0.0
    %2317 = vmatpush1.msra.mxu0 0.0
    %2318 = vmatprep.subr.mxu0 0.0
    %2319 = vmatpush1.msra.mxu0 0.0
    %2320 = vmatprep.subr.mxu0 0.0
    %2321 = vmatpush1.msra.mxu0 %v1171
    %2322 = vmatprep.subr.mxu0 0.0
    %2323 = vmatpush1.msra.mxu0 %v1170
    %2324 = vmatprep.subr.mxu0 0.0
    %2325 = vmatpush1.msra.mxu0 %v1169
    %2326 = vmatprep.subr.mxu0 0.0
    %2327 = vmatpush1.msra.mxu0 %v1168
    %2328 = vmatprep.subr.mxu0 0.0
    %2329 = vmatpush2.msra.mxu0 0.0
    %2330 = vmatprep.subr.mxu0 0.0
    %2331 = vmatpush2.msra.mxu0 0.0
    %2332 = vmatprep.subr.mxu0 0.0
    %2333 = vmatpush2.msra.mxu0 0.0
    %2334 = vmatprep.subr.mxu0 0.0
    %2335 = vmatpush2.msra.mxu0 0.0
    %2336 = vmatprep.subr.mxu0 0.0
    %2337 = vmatpush2.msra.mxu0 0.0
    %2338 = vmatprep.subr.mxu0 0.0
    %2339 = vmatpush2.msra.mxu0 0.0
    %2340 = vmatprep.subr.mxu0 0.0
    %2341 = vmatpush2.msra.mxu0 0.0
    %2342 = vmatprep.subr.mxu0 0.0
    %2343 = vmatpush2.msra.mxu0 0.0
    %2344 = vmatprep.subr.mxu0 0.0
    %2345 = vmatpush2.msra.mxu0 0.0
    %2346 = vmatprep.subr.mxu0 0.0
    %2347 = vmatpush2.msra.mxu0 0.0
    %2348 = vmatprep.subr.mxu0 0.0
    %2349 = vmatpush2.msra.mxu0 0.0
    %2350 = vmatprep.subr.mxu0 0.0
    %2351 = vmatpush2.msra.mxu0 0.0
    %2352 = vmatprep.subr.mxu0 0.0
    %2353 = vmatpush2.msra.mxu0 0.0
    %2354 = vmatprep.subr.mxu0 0.0
    %2355 = vmatpush2.msra.mxu0 0.0
    %2356 = vmatprep.subr.mxu0 0.0
    %2357 = vmatpush2.msra.mxu0 0.0
    %2358 = vmatprep.subr.mxu0 0.0
    %2359 = vmatpush2.msra.mxu0 0.0
    %2360 = vmatprep.mubr.f32.mxu0 0.0
    %2361 = vmatmul.mubr.f32.gmra.mxu0 %v2294
    %v2362 = vpop.f32.mrf.mxu0
    %v2363 = vadd.f32 %v2291, %v2362
    %v2364 = vpop.f32.mrf.mxu0
    %2365 = vdwg.mxu0
    %v2366 = vadd.f32 %v2363, %v1329
    %v2368 = vlaneseq
    %v2369 = vshrl.u32 %v2368, 7
    %v2370 = vsub.s32 0, %v2369
    %v2371 = vrot.slane %v51, %v2370
    %v2373 = vmul.f32 %v2371, %v53
    %v2374 = vld [vmem:[%s4] sm:$0xff]
    %v2376 = vlaneseq
    %v2377 = vshrl.u32 %v2376, 7
    %v2378 = vsub.s32 0, %v2377
    %v2379 = vrot.slane %v52, %v2378
    %v2381 = vmul.f32 %v2379, %v2374
    %v2382 = vadd.f32 %v2373, %v2381
    %v2383 = vmul.f32 %v1331, %v53
    %v2384 = vadd.f32 %v2382, %v2383
    %v2385 = vmul.f32 %v1480, %v54
    %v2386 = vadd.f32 %v2384, %v2385
    %v2387 = vmul.f32 %v1629, %v55
    %v2388 = vadd.f32 %v2386, %v2387
    %v2389 = vmul.f32 %v1778, %v56
    %v2390 = vadd.f32 %v2388, %v2389
    %v2391 = vmul.f32 %v1925, %v57
    %v2392 = vadd.f32 %v2390, %v2391
    %v2393 = vmul.f32 %v2072, %v58
    %v2394 = vadd.f32 %v2392, %v2393
    %v2395 = vmul.f32 %v2219, %v59
    %v2396 = vadd.f32 %v2394, %v2395
    %v2397 = vmul.f32 %v2366, %v60
    %v2398 = vadd.f32 %v2396, %v2397
    %vm2399 = vcmask 64512
    %v2401 = vsel %vm2399, %v53, 0
    %v2404 = vsel %vm2399, %v54, 0
    %v2407 = vsel %vm2399, %v55, 0
    %v2410 = vsel %vm2399, %v56, 0
    %v2413 = vsel %vm2399, %v57, 0
    %v2416 = vsel %vm2399, %v58, 0
    %v2419 = vsel %vm2399, %v59, 0
    %v2422 = vsel %vm2399, %v60, 0
    %2424 = vmatprep.subr.mxu0 0.0
    %2425 = vmatpush1.msra.mxu0 0.0
    %2426 = vmatprep.subr.mxu0 0.0
    %2427 = vmatpush1.msra.mxu0 0.0
    %2428 = vmatprep.subr.mxu0 0.0
    %2429 = vmatpush1.msra.mxu0 0.0
    %2430 = vmatprep.subr.mxu0 0.0
    %2431 = vmatpush1.msra.mxu0 0.0
    %2432 = vmatprep.subr.mxu0 0.0
    %2433 = vmatpush1.msra.mxu0 0.0
    %2434 = vmatprep.subr.mxu0 0.0
    %2435 = vmatpush1.msra.mxu0 0.0
    %2436 = vmatprep.subr.mxu0 0.0
    %2437 = vmatpush1.msra.mxu0 0.0
    %2438 = vmatprep.subr.mxu0 0.0
    %2439 = vmatpush1.msra.mxu0 0.0
    %2440 = vmatprep.subr.mxu0 0.0
    %2441 = vmatpush1.msra.mxu0 0.0
    %2442 = vmatprep.subr.mxu0 0.0
    %2443 = vmatpush1.msra.mxu0 0.0
    %2444 = vmatprep.subr.mxu0 0.0
    %2445 = vmatpush1.msra.mxu0 0.0
    %2446 = vmatprep.subr.mxu0 0.0
    %2447 = vmatpush1.msra.mxu0 0.0
    %2448 = vmatprep.subr.mxu0 0.0
    %2449 = vmatpush1.msra.mxu0 0.0
    %2450 = vmatprep.subr.mxu0 0.0
    %2451 = vmatpush1.msra.mxu0 0.0
    %2452 = vmatprep.subr.mxu0 0.0
    %2453 = vmatpush1.msra.mxu0 0.0
    %2454 = vmatprep.subr.mxu0 0.0
    %2455 = vmatpush1.msra.mxu0 %v50
    %2456 = vmatprep.subr.mxu0 0.0
    %2457 = vmatpush2.msra.mxu0 0.0
    %2458 = vmatprep.subr.mxu0 0.0
    %2459 = vmatpush2.msra.mxu0 0.0
    %2460 = vmatprep.subr.mxu0 0.0
    %2461 = vmatpush2.msra.mxu0 0.0
    %2462 = vmatprep.subr.mxu0 0.0
    %2463 = vmatpush2.msra.mxu0 0.0
    %2464 = vmatprep.subr.mxu0 0.0
    %2465 = vmatpush2.msra.mxu0 0.0
    %2466 = vmatprep.subr.mxu0 0.0
    %2467 = vmatpush2.msra.mxu0 0.0
    %2468 = vmatprep.subr.mxu0 0.0
    %2469 = vmatpush2.msra.mxu0 0.0
    %2470 = vmatprep.subr.mxu0 0.0
    %2471 = vmatpush2.msra.mxu0 0.0
    %2472 = vmatprep.subr.mxu0 0.0
    %2473 = vmatpush2.msra.mxu0 0.0
    %2474 = vmatprep.subr.mxu0 0.0
    %2475 = vmatpush2.msra.mxu0 0.0
    %2476 = vmatprep.subr.mxu0 0.0
    %2477 = vmatpush2.msra.mxu0 0.0
    %2478 = vmatprep.subr.mxu0 0.0
    %2479 = vmatpush2.msra.mxu0 0.0
    %2480 = vmatprep.subr.mxu0 0.0
    %2481 = vmatpush2.msra.mxu0 0.0
    %2482 = vmatprep.subr.mxu0 0.0
    %2483 = vmatpush2.msra.mxu0 0.0
    %2484 = vmatprep.subr.mxu0 0.0
    %2485 = vmatpush2.msra.mxu0 0.0
    %2486 = vmatprep.subr.mxu0 0.0
    %2487 = vmatpush2.msra.mxu0 0.0
    %2488 = vmatprep.mubr.f32.mxu0 0.0
    %2489 = vmatmul.mubr.f32.gmra.mxu0 %v2401
    %v2490 = vpop.f32.mrf.mxu0
    %v2491 = vadd.f32 0.0, %v2490
    %v2492 = vpop.f32.mrf.mxu0
    %2493 = vmatprep.mubr.f32.mxu0 0.0
    %2494 = vmatmul.mubr.f32.gmra.mxu0 %v2404
    %v2495 = vpop.f32.mrf.mxu0
    %v2496 = vadd.f32 0.0, %v2495
    %v2497 = vpop.f32.mrf.mxu0
    %2498 = vmatprep.mubr.f32.mxu0 0.0
    %2499 = vmatmul.mubr.f32.gmra.mxu0 %v2407
    %v2500 = vpop.f32.mrf.mxu0
    %v2501 = vadd.f32 0.0, %v2500
    %v2502 = vpop.f32.mrf.mxu0
    %2503 = vmatprep.mubr.f32.mxu0 0.0
    %2504 = vmatmul.mubr.f32.gmra.mxu0 %v2410
    %v2505 = vpop.f32.mrf.mxu0
    %v2506 = vadd.f32 0.0, %v2505
    %v2507 = vpop.f32.mrf.mxu0
    %2508 = vmatprep.mubr.f32.mxu0 0.0
    %2509 = vmatmul.mubr.f32.gmra.mxu0 %v2413
    %v2510 = vpop.f32.mrf.mxu0
    %v2511 = vadd.f32 0.0, %v2510
    %v2512 = vpop.f32.mrf.mxu0
    %2513 = vmatprep.mubr.f32.mxu0 0.0
    %2514 = vmatmul.mubr.f32.gmra.mxu0 %v2416
    %v2515 = vpop.f32.mrf.mxu0
    %v2516 = vadd.f32 0.0, %v2515
    %v2517 = vpop.f32.mrf.mxu0
    %2518 = vmatprep.mubr.f32.mxu0 0.0
    %2519 = vmatmul.mubr.f32.gmra.mxu0 %v2419
    %v2520 = vpop.f32.mrf.mxu0
    %v2521 = vadd.f32 0.0, %v2520
    %v2522 = vpop.f32.mrf.mxu0
    %2523 = vmatprep.mubr.f32.mxu0 0.0
    %2524 = vmatmul.mubr.f32.gmra.mxu0 %v2422
    %v2525 = vpop.f32.mrf.mxu0
    %v2526 = vpop.f32.mrf.mxu0
    %2527 = vdwg.mxu0
    %v2528 = vmul.f32 %v2491, %v54
    %v2529 = vmul.f32 %v2496, %v55
    %v2530 = vmul.f32 %v2501, %v56
    %v2531 = vmul.f32 %v2506, %v57
    %v2532 = vmul.f32 %v2511, %v58
    %v2533 = vmul.f32 %v2516, %v59
    %v2534 = vmul.f32 %v2521, %v60
    %v2535 = vsel %vm2399, %v2398, 0.0
    %2536 = vadd.xlane.f32.xlu0 %v2535
    %v2537 = vpop.xlane.xlu0 %2536
    %v2538 = vrot.slane %v2537, 4
    %v2539 = vadd.f32 %v2537, %v2538
    %v2540 = vrot.slane %v2539, 2
    %v2541 = vadd.f32 %v2539, %v2540
    %v2542 = vrot.slane %v2541, 1
    %v2543 = vadd.f32 %v2541, %v2542
    %v2544 = vsel %vm2399, %v2528, 0.0
    %2545 = vadd.xlane.f32.xlu0 %v2544
    %v2546 = vpop.xlane.xlu0 %2545
    %v2547 = vsel %vm2399, %v2529, 0.0
    %2548 = vadd.xlane.f32.xlu0 %v2547
    %v2549 = vpop.xlane.xlu0 %2548
    %v2550 = vsel %vm2399, %v2530, 0.0
    %2551 = vadd.xlane.f32.xlu0 %v2550
    %v2552 = vpop.xlane.xlu0 %2551
    %v2553 = vsel %vm2399, %v2531, 0.0
    %2554 = vadd.xlane.f32.xlu0 %v2553
    %v2555 = vpop.xlane.xlu0 %2554
    %v2556 = vsel %vm2399, %v2532, 0.0
    %2557 = vadd.xlane.f32.xlu0 %v2556
    %v2558 = vpop.xlane.xlu0 %2557
    %v2559 = vsel %vm2399, %v2533, 0.0
    %2560 = vadd.xlane.f32.xlu0 %v2559
    %v2561 = vpop.xlane.xlu0 %2560
    %v2562 = vsel %vm2399, %v2534, 0.0
    %2563 = vadd.xlane.f32.xlu0 %v2562
    %v2564 = vpop.xlane.xlu0 %2563
    %v2565 = vadd.f32 %v2546, %v2549
    %v2566 = vadd.f32 %v2565, %v2552
    %v2567 = vadd.f32 %v2566, %v2555
    %v2568 = vadd.f32 %v2567, %v2558
    %v2569 = vadd.f32 %v2568, %v2561
    %v2570 = vadd.f32 %v2569, %v2564
    %v2571 = vrot.slane %v2570, 4
    %v2572 = vadd.f32 %v2570, %v2571
    %v2573 = vrot.slane %v2572, 2
    %v2574 = vadd.f32 %v2572, %v2573
    %v2575 = vrot.slane %v2574, 1
    %v2576 = vadd.f32 %v2574, %v2575
    %v2577 = vadd.f32 %v2543, %v2576
    %v2578 = vlaneseq
    %v2579 = vshrl.u32 %v2578, 7
    %v2580 = vlaneseq
    %v2581 = vand.u32 %v2580, 127
    %v2582 = vadd.f32 %v2371, %v1331
    %vm2583 = vcmp.gt.f32.partialorder %v62, 0.5
    %v2584 = vlaneseq
    %v2585 = vshrl.u32 %v2584, 7
    %v2586 = vsub.s32 0, %v2585
    %v2587 = vrot.slane %v2582, %v2586
    %2589 = vbcast.lane.b32.xlu0 %v2587, 256
    %v2590 = vpop.permute.xlu0 %2589
    %v2591 = vlaneseq
    %v2592 = vshrl.u32 %v2591, 7
    %v2593 = vsub.s32 1, %v2592
    %v2594 = vrot.slane %v2582, %v2593
    %2596 = vbcast.lane.b32.xlu0 %v2594, 256
    %v2597 = vpop.permute.xlu0 %2596
    %v2598 = vlaneseq
    %v2599 = vshrl.u32 %v2598, 7
    %v2600 = vsub.s32 2, %v2599
    %v2601 = vrot.slane %v2582, %v2600
    %2603 = vbcast.lane.b32.xlu0 %v2601, 256
    %v2604 = vpop.permute.xlu0 %2603
    %v2605 = vlaneseq
    %v2606 = vshrl.u32 %v2605, 7
    %v2607 = vsub.s32 3, %v2606
    %v2608 = vrot.slane %v2582, %v2607
    %2610 = vbcast.lane.b32.xlu0 %v2608, 256
    %v2611 = vpop.permute.xlu0 %2610
    %v2612 = vlaneseq
    %v2613 = vshrl.u32 %v2612, 7
    %v2614 = vsub.s32 4, %v2613
    %v2615 = vrot.slane %v2582, %v2614
    %2617 = vbcast.lane.b32.xlu0 %v2615, 256
    %v2618 = vpop.permute.xlu0 %2617
    %v2619 = vlaneseq
    %v2620 = vshrl.u32 %v2619, 7
    %v2621 = vsub.s32 5, %v2620
    %v2622 = vrot.slane %v2582, %v2621
    %2624 = vbcast.lane.b32.xlu0 %v2622, 256
    %v2625 = vpop.permute.xlu0 %2624
    %v2626 = vlaneseq
    %v2627 = vshrl.u32 %v2626, 7
    %v2628 = vsub.s32 6, %v2627
    %v2629 = vrot.slane %v2582, %v2628
    %2631 = vbcast.lane.b32.xlu0 %v2629, 256
    %v2632 = vpop.permute.xlu0 %2631
    %v2633 = vlaneseq
    %v2634 = vshrl.u32 %v2633, 7
    %v2635 = vsub.s32 7, %v2634
    %v2636 = vrot.slane %v2582, %v2635
    %2638 = vbcast.lane.b32.xlu0 %v2636, 256
    %v2639 = vpop.permute.xlu0 %2638
    %v2640 = vadd.f32 %v2590, %v50
    %v2641 = vadd.f32 %v2597, %v50
    %v2642 = vadd.f32 %v2604, %v50
    %v2643 = vadd.f32 %v2611, %v50
    %v2644 = vadd.f32 %v2618, %v50
    %v2645 = vadd.f32 %v2625, %v50
    %v2646 = vadd.f32 %v2632, %v50
    %v2647 = vadd.f32 %v2639, %v50
    %v2649 = vcombine.high %v1480, %v1480
    %v2651 = vunpack.c.l.s4 1966171168
    %v2652 = vunpack.c.0.s8 %v2651
    %v2653 = vlaneseq
    %v2654 = vshrl.u32 %v2653, 7
    %v2655 = vsub.s32 %v2652, %v2654
    %v2656 = vrot.slane %v1480, %v2655
    %v2658 = vunpack.c.l.s4 1966171168
    %v2659 = vunpack.c.0.s8 %v2658
    %v2660 = vlaneseq
    %v2661 = vshrl.u32 %v2660, 7
    %v2662 = vsub.s32 %v2659, %v2661
    %v2663 = vrot.slane %v2649, %v2662
    %v2664 = vcombine.high %v2656, %v2656
    %v2665 = vcombine.high %v2663, %v2663
    %v2667 = vunpack.c.l.s4 1966171168
    %v2668 = vunpack.c.0.s8 %v2667
    %v2669 = vlaneseq
    %v2670 = vshrl.u32 %v2669, 7
    %v2671 = vsub.s32 %v2668, %v2670
    %v2672 = vrot.slane %v2656, %v2671
    %v2674 = vunpack.c.l.s4 1966171168
    %v2675 = vunpack.c.0.s8 %v2674
    %v2676 = vlaneseq
    %v2677 = vshrl.u32 %v2676, 7
    %v2678 = vsub.s32 %v2675, %v2677
    %v2679 = vrot.slane %v2663, %v2678
    %v2681 = vunpack.c.l.s4 1966171168
    %v2682 = vunpack.c.0.s8 %v2681
    %v2683 = vlaneseq
    %v2684 = vshrl.u32 %v2683, 7
    %v2685 = vsub.s32 %v2682, %v2684
    %v2686 = vrot.slane %v2664, %v2685
    %v2688 = vunpack.c.l.s4 1966171168
    %v2689 = vunpack.c.0.s8 %v2688
    %v2690 = vlaneseq
    %v2691 = vshrl.u32 %v2690, 7
    %v2692 = vsub.s32 %v2689, %v2691
    %v2693 = vrot.slane %v2665, %v2692
    %v2694 = vcombine.high %v2672, %v2672
    %v2695 = vcombine.high %v2679, %v2679
    %v2696 = vcombine.high %v2686, %v2686
    %v2697 = vcombine.high %v2693, %v2693
    %v2698 = vlaneseq
    %v2699 = vshrl.u32 %v2698, 7
    %v2700 = vsub.s32 0, %v2699
    %v2701 = vrot.slane %v2672, %v2700
    %v2702 = vlaneseq
    %v2703 = vshrl.u32 %v2702, 7
    %v2704 = vsub.s32 0, %v2703
    %v2705 = vrot.slane %v2686, %v2704
    %v2706 = vlaneseq
    %v2707 = vshrl.u32 %v2706, 7
    %v2708 = vsub.s32 0, %v2707
    %v2709 = vrot.slane %v2694, %v2708
    %v2710 = vlaneseq
    %v2711 = vshrl.u32 %v2710, 7
    %v2712 = vsub.s32 0, %v2711
    %v2713 = vrot.slane %v2696, %v2712
    %v2714 = vlaneseq
    %v2715 = vshrl.u32 %v2714, 7
    %v2716 = vsub.s32 0, %v2715
    %v2717 = vrot.slane %v2679, %v2716
    %v2718 = vlaneseq
    %v2719 = vshrl.u32 %v2718, 7
    %v2720 = vsub.s32 0, %v2719
    %v2721 = vrot.slane %v2693, %v2720
    %v2722 = vlaneseq
    %v2723 = vshrl.u32 %v2722, 7
    %v2724 = vsub.s32 0, %v2723
    %v2725 = vrot.slane %v2695, %v2724
    %v2726 = vlaneseq
    %v2727 = vshrl.u32 %v2726, 7
    %v2728 = vsub.s32 0, %v2727
    %v2729 = vrot.slane %v2697, %v2728
    %v2738 = vadd.f32 %v2640, %v2701
    %v2739 = vadd.f32 %v2641, %v2705
    %v2740 = vadd.f32 %v2642, %v2709
    %v2741 = vadd.f32 %v2643, %v2713
    %v2742 = vadd.f32 %v2644, %v2717
    %v2743 = vadd.f32 %v2645, %v2721
    %v2744 = vadd.f32 %v2646, %v2725
    %v2745 = vadd.f32 %v2647, %v2729
    %v2746 = vsel %vm2399, %v2738, -inf
    %v2747 = vrot.slane %v2746, 4
    %v2748 = vmax.f32 %v2746, %v2747
    %v2749 = vrot.slane %v2748, 2
    %v2750 = vmax.f32 %v2748, %v2749
    %v2751 = vrot.slane %v2750, 1
    %v2752 = vmax.f32 %v2750, %v2751
    %v2753 = vsel %vm2399, %v2739, -inf
    %v2754 = vrot.slane %v2753, 4
    %v2755 = vmax.f32 %v2753, %v2754
    %v2756 = vrot.slane %v2755, 2
    %v2757 = vmax.f32 %v2755, %v2756
    %v2758 = vrot.slane %v2757, 1
    %v2759 = vmax.f32 %v2757, %v2758
    %v2760 = vsel %vm2399, %v2740, -inf
    %v2761 = vrot.slane %v2760, 4
    %v2762 = vmax.f32 %v2760, %v2761
    %v2763 = vrot.slane %v2762, 2
    %v2764 = vmax.f32 %v2762, %v2763
    %v2765 = vrot.slane %v2764, 1
    %v2766 = vmax.f32 %v2764, %v2765
    %v2767 = vsel %vm2399, %v2741, -inf
    %v2768 = vrot.slane %v2767, 4
    %v2769 = vmax.f32 %v2767, %v2768
    %v2770 = vrot.slane %v2769, 2
    %v2771 = vmax.f32 %v2769, %v2770
    %v2772 = vrot.slane %v2771, 1
    %v2773 = vmax.f32 %v2771, %v2772
    %v2774 = vsel %vm2399, %v2742, -inf
    %v2775 = vrot.slane %v2774, 4
    %v2776 = vmax.f32 %v2774, %v2775
    %v2777 = vrot.slane %v2776, 2
    %v2778 = vmax.f32 %v2776, %v2777
    %v2779 = vrot.slane %v2778, 1
    %v2780 = vmax.f32 %v2778, %v2779
    %v2781 = vsel %vm2399, %v2743, -inf
    %v2782 = vrot.slane %v2781, 4
    %v2783 = vmax.f32 %v2781, %v2782
    %v2784 = vrot.slane %v2783, 2
    %v2785 = vmax.f32 %v2783, %v2784
    %v2786 = vrot.slane %v2785, 1
    %v2787 = vmax.f32 %v2785, %v2786
    %v2788 = vsel %vm2399, %v2744, -inf
    %v2789 = vrot.slane %v2788, 4
    %v2790 = vmax.f32 %v2788, %v2789
    %v2791 = vrot.slane %v2790, 2
    %v2792 = vmax.f32 %v2790, %v2791
    %v2793 = vrot.slane %v2792, 1
    %v2794 = vmax.f32 %v2792, %v2793
    %v2795 = vsel %vm2399, %v2745, -inf
    %v2796 = vrot.slane %v2795, 4
    %v2797 = vmax.f32 %v2795, %v2796
    %v2798 = vrot.slane %v2797, 2
    %v2799 = vmax.f32 %v2797, %v2798
    %v2800 = vrot.slane %v2799, 1
    %v2801 = vmax.f32 %v2799, %v2800
    %v2802 = vsub.f32 %v2738, %v2752
    %v2803 = vsub.f32 %v2739, %v2759
    %v2804 = vsub.f32 %v2740, %v2766
    %v2805 = vsub.f32 %v2741, %v2773
    %v2806 = vsub.f32 %v2742, %v2780
    %v2807 = vsub.f32 %v2743, %v2787
    %v2808 = vsub.f32 %v2744, %v2794
    %v2809 = vsub.f32 %v2745, %v2801
    %v2810 = vmul.f32 %v2802, 1.442695
    %v2811 = vpow.pop %v2810
    %v2812 = vmul.f32 %v2803, 1.442695
    %v2813 = vpow.pop %v2812
    %v2814 = vmul.f32 %v2804, 1.442695
    %v2815 = vpow.pop %v2814
    %v2816 = vmul.f32 %v2805, 1.442695
    %v2817 = vpow.pop %v2816
    %v2818 = vmul.f32 %v2806, 1.442695
    %v2819 = vpow.pop %v2818
    %v2820 = vmul.f32 %v2807, 1.442695
    %v2821 = vpow.pop %v2820
    %v2822 = vmul.f32 %v2808, 1.442695
    %v2823 = vpow.pop %v2822
    %v2824 = vmul.f32 %v2809, 1.442695
    %v2825 = vpow.pop %v2824
    %v2826 = vsel %vm2399, %v2811, 0.0
    %v2827 = vrot.slane %v2826, 4
    %v2828 = vadd.f32 %v2826, %v2827
    %v2829 = vrot.slane %v2828, 2
    %v2830 = vadd.f32 %v2828, %v2829
    %v2831 = vrot.slane %v2830, 1
    %v2832 = vadd.f32 %v2830, %v2831
    %v2833 = vsel %vm2399, %v2813, 0.0
    %v2834 = vrot.slane %v2833, 4
    %v2835 = vadd.f32 %v2833, %v2834
    %v2836 = vrot.slane %v2835, 2
    %v2837 = vadd.f32 %v2835, %v2836
    %v2838 = vrot.slane %v2837, 1
    %v2839 = vadd.f32 %v2837, %v2838
    %v2840 = vsel %vm2399, %v2815, 0.0
    %v2841 = vrot.slane %v2840, 4
    %v2842 = vadd.f32 %v2840, %v2841
    %v2843 = vrot.slane %v2842, 2
    %v2844 = vadd.f32 %v2842, %v2843
    %v2845 = vrot.slane %v2844, 1
    %v2846 = vadd.f32 %v2844, %v2845
    %v2847 = vsel %vm2399, %v2817, 0.0
    %v2848 = vrot.slane %v2847, 4
    %v2849 = vadd.f32 %v2847, %v2848
    %v2850 = vrot.slane %v2849, 2
    %v2851 = vadd.f32 %v2849, %v2850
    %v2852 = vrot.slane %v2851, 1
    %v2853 = vadd.f32 %v2851, %v2852
    %v2854 = vsel %vm2399, %v2819, 0.0
    %v2855 = vrot.slane %v2854, 4
    %v2856 = vadd.f32 %v2854, %v2855
    %v2857 = vrot.slane %v2856, 2
    %v2858 = vadd.f32 %v2856, %v2857
    %v2859 = vrot.slane %v2858, 1
    %v2860 = vadd.f32 %v2858, %v2859
    %v2861 = vsel %vm2399, %v2821, 0.0
    %v2862 = vrot.slane %v2861, 4
    %v2863 = vadd.f32 %v2861, %v2862
    %v2864 = vrot.slane %v2863, 2
    %v2865 = vadd.f32 %v2863, %v2864
    %v2866 = vrot.slane %v2865, 1
    %v2867 = vadd.f32 %v2865, %v2866
    %v2868 = vsel %vm2399, %v2823, 0.0
    %v2869 = vrot.slane %v2868, 4
    %v2870 = vadd.f32 %v2868, %v2869
    %v2871 = vrot.slane %v2870, 2
    %v2872 = vadd.f32 %v2870, %v2871
    %v2873 = vrot.slane %v2872, 1
    %v2874 = vadd.f32 %v2872, %v2873
    %v2875 = vsel %vm2399, %v2825, 0.0
    %v2876 = vrot.slane %v2875, 4
    %v2877 = vadd.f32 %v2875, %v2876
    %v2878 = vrot.slane %v2877, 2
    %v2879 = vadd.f32 %v2877, %v2878
    %v2880 = vrot.slane %v2879, 1
    %v2881 = vadd.f32 %v2879, %v2880
    %v2882 = vlog2.pop %v2832
    %v2883 = vmul.f32 %v2882, 0.6931472
    %v2884 = vlog2.pop %v2839
    %v2885 = vmul.f32 %v2884, 0.6931472
    %v2886 = vlog2.pop %v2846
    %v2887 = vmul.f32 %v2886, 0.6931472
    %v2888 = vlog2.pop %v2853
    %v2889 = vmul.f32 %v2888, 0.6931472
    %v2890 = vlog2.pop %v2860
    %v2891 = vmul.f32 %v2890, 0.6931472
    %v2892 = vlog2.pop %v2867
    %v2893 = vmul.f32 %v2892, 0.6931472
    %v2894 = vlog2.pop %v2874
    %v2895 = vmul.f32 %v2894, 0.6931472
    %v2896 = vlog2.pop %v2881
    %v2897 = vmul.f32 %v2896, 0.6931472
    %v2898 = vadd.f32 %v2752, %v2883
    %v2899 = vadd.f32 %v2759, %v2885
    %v2900 = vadd.f32 %v2766, %v2887
    %v2901 = vadd.f32 %v2773, %v2889
    %v2902 = vadd.f32 %v2780, %v2891
    %v2903 = vadd.f32 %v2787, %v2893
    %v2904 = vadd.f32 %v2794, %v2895
    %v2905 = vadd.f32 %v2801, %v2897
    %v2906 = vsel %vm2583, 1, 0
    %2907 = vset.pattern.permute.xlu0 0
    %2908 = vperm.xlu0 %2907, %v2906
    %v2909 = vpop.permute.xlu0 %2908
    %vm2910 = vcmp.eq.s32.totalorder %v2909, 1
    %vm2919 = vcmask 1041409
    %v2920 = vsel %vm2919, %v2899, %v2898
    %vm2921 = vcmask 1042434
    %v2922 = vsel %vm2921, %v2900, %v2920
    %vm2923 = vcmask 1043459
    %v2924 = vsel %vm2923, %v2901, %v2922
    %vm2925 = vcmask 1044484
    %v2926 = vsel %vm2925, %v2902, %v2924
    %vm2927 = vcmask 1045509
    %v2928 = vsel %vm2927, %v2903, %v2926
    %vm2929 = vcmask 1046534
    %v2930 = vsel %vm2929, %v2904, %v2928
    %vm2931 = vcmask 1047559
    %v2932 = vsel %vm2931, %v2905, %v2930
    %v2934 = vsel %vm2910, %v2932, %v2582
    %v2935 = vsel %vm2399, %v2640, -inf
    %v2936 = vrot.slane %v2935, 4
    %v2937 = vmax.f32 %v2935, %v2936
    %v2938 = vrot.slane %v2937, 2
    %v2939 = vmax.f32 %v2937, %v2938
    %v2940 = vrot.slane %v2939, 1
    %v2941 = vmax.f32 %v2939, %v2940
    %v2942 = vsel %vm2399, %v2641, -inf
    %v2943 = vrot.slane %v2942, 4
    %v2944 = vmax.f32 %v2942, %v2943
    %v2945 = vrot.slane %v2944, 2
    %v2946 = vmax.f32 %v2944, %v2945
    %v2947 = vrot.slane %v2946, 1
    %v2948 = vmax.f32 %v2946, %v2947
    %v2949 = vsel %vm2399, %v2642, -inf
    %v2950 = vrot.slane %v2949, 4
    %v2951 = vmax.f32 %v2949, %v2950
    %v2952 = vrot.slane %v2951, 2
    %v2953 = vmax.f32 %v2951, %v2952
    %v2954 = vrot.slane %v2953, 1
    %v2955 = vmax.f32 %v2953, %v2954
    %v2956 = vsel %vm2399, %v2643, -inf
    %v2957 = vrot.slane %v2956, 4
    %v2958 = vmax.f32 %v2956, %v2957
    %v2959 = vrot.slane %v2958, 2
    %v2960 = vmax.f32 %v2958, %v2959
    %v2961 = vrot.slane %v2960, 1
    %v2962 = vmax.f32 %v2960, %v2961
    %v2963 = vsel %vm2399, %v2644, -inf
    %v2964 = vrot.slane %v2963, 4
    %v2965 = vmax.f32 %v2963, %v2964
    %v2966 = vrot.slane %v2965, 2
    %v2967 = vmax.f32 %v2965, %v2966
    %v2968 = vrot.slane %v2967, 1
    %v2969 = vmax.f32 %v2967, %v2968
    %v2970 = vsel %vm2399, %v2645, -inf
    %v2971 = vrot.slane %v2970, 4
    %v2972 = vmax.f32 %v2970, %v2971
    %v2973 = vrot.slane %v2972, 2
    %v2974 = vmax.f32 %v2972, %v2973
    %v2975 = vrot.slane %v2974, 1
    %v2976 = vmax.f32 %v2974, %v2975
    %v2977 = vsel %vm2399, %v2646, -inf
    %v2978 = vrot.slane %v2977, 4
    %v2979 = vmax.f32 %v2977, %v2978
    %v2980 = vrot.slane %v2979, 2
    %v2981 = vmax.f32 %v2979, %v2980
    %v2982 = vrot.slane %v2981, 1
    %v2983 = vmax.f32 %v2981, %v2982
    %v2984 = vsel %vm2399, %v2647, -inf
    %v2985 = vrot.slane %v2984, 4
    %v2986 = vmax.f32 %v2984, %v2985
    %v2987 = vrot.slane %v2986, 2
    %v2988 = vmax.f32 %v2986, %v2987
    %v2989 = vrot.slane %v2988, 1
    %v2990 = vmax.f32 %v2988, %v2989
    %vm2991 = vcmp.ge.f32.partialorder %v2640, %v2941
    %vm2992 = vcmp.ge.f32.partialorder %v2641, %v2948
    %vm2993 = vcmp.ge.f32.partialorder %v2642, %v2955
    %vm2994 = vcmp.ge.f32.partialorder %v2643, %v2962
    %vm2995 = vcmp.ge.f32.partialorder %v2644, %v2969
    %vm2996 = vcmp.ge.f32.partialorder %v2645, %v2976
    %vm2997 = vcmp.ge.f32.partialorder %v2646, %v2983
    %vm2998 = vcmp.ge.f32.partialorder %v2647, %v2990
    %v2999 = vsel %vm2991, %v2579, 1073741824
    %v3000 = vsel %vm2992, %v2579, 1073741824
    %v3001 = vsel %vm2993, %v2579, 1073741824
    %v3002 = vsel %vm2994, %v2579, 1073741824
    %v3003 = vsel %vm2995, %v2579, 1073741824
    %v3004 = vsel %vm2996, %v2579, 1073741824
    %v3005 = vsel %vm2997, %v2579, 1073741824
    %v3006 = vsel %vm2998, %v2579, 1073741824
    %v3007 = vsel %vm2399, %v2999, 2147483647
    %v3008 = vrot.slane %v3007, 4
    %vm3009 = vcmp.lt.s32.totalorder %v3007, %v3008
    %v3010 = vsel %vm3009, %v3007, %v3008
    %v3011 = vrot.slane %v3010, 2
    %vm3012 = vcmp.lt.s32.totalorder %v3010, %v3011
    %v3013 = vsel %vm3012, %v3010, %v3011
    %v3014 = vrot.slane %v3013, 1
    %vm3015 = vcmp.lt.s32.totalorder %v3013, %v3014
    %v3016 = vsel %vm3015, %v3013, %v3014
    %v3017 = vsel %vm2399, %v3000, 2147483647
    %v3018 = vrot.slane %v3017, 4
    %vm3019 = vcmp.lt.s32.totalorder %v3017, %v3018
    %v3020 = vsel %vm3019, %v3017, %v3018
    %v3021 = vrot.slane %v3020, 2
    %vm3022 = vcmp.lt.s32.totalorder %v3020, %v3021
    %v3023 = vsel %vm3022, %v3020, %v3021
    %v3024 = vrot.slane %v3023, 1
    %vm3025 = vcmp.lt.s32.totalorder %v3023, %v3024
    %v3026 = vsel %vm3025, %v3023, %v3024
    %v3027 = vsel %vm2399, %v3001, 2147483647
    %v3028 = vrot.slane %v3027, 4
    %vm3029 = vcmp.lt.s32.totalorder %v3027, %v3028
    %v3030 = vsel %vm3029, %v3027, %v3028
    %v3031 = vrot.slane %v3030, 2
    %vm3032 = vcmp.lt.s32.totalorder %v3030, %v3031
    %v3033 = vsel %vm3032, %v3030, %v3031
    %v3034 = vrot.slane %v3033, 1
    %vm3035 = vcmp.lt.s32.totalorder %v3033, %v3034
    %v3036 = vsel %vm3035, %v3033, %v3034
    %v3037 = vsel %vm2399, %v3002, 2147483647
    %v3038 = vrot.slane %v3037, 4
    %vm3039 = vcmp.lt.s32.totalorder %v3037, %v3038
    %v3040 = vsel %vm3039, %v3037, %v3038
    %v3041 = vrot.slane %v3040, 2
    %vm3042 = vcmp.lt.s32.totalorder %v3040, %v3041
    %v3043 = vsel %vm3042, %v3040, %v3041
    %v3044 = vrot.slane %v3043, 1
    %vm3045 = vcmp.lt.s32.totalorder %v3043, %v3044
    %v3046 = vsel %vm3045, %v3043, %v3044
    %v3047 = vsel %vm2399, %v3003, 2147483647
    %v3048 = vrot.slane %v3047, 4
    %vm3049 = vcmp.lt.s32.totalorder %v3047, %v3048
    %v3050 = vsel %vm3049, %v3047, %v3048
    %v3051 = vrot.slane %v3050, 2
    %vm3052 = vcmp.lt.s32.totalorder %v3050, %v3051
    %v3053 = vsel %vm3052, %v3050, %v3051
    %v3054 = vrot.slane %v3053, 1
    %vm3055 = vcmp.lt.s32.totalorder %v3053, %v3054
    %v3056 = vsel %vm3055, %v3053, %v3054
    %v3057 = vsel %vm2399, %v3004, 2147483647
    %v3058 = vrot.slane %v3057, 4
    %vm3059 = vcmp.lt.s32.totalorder %v3057, %v3058
    %v3060 = vsel %vm3059, %v3057, %v3058
    %v3061 = vrot.slane %v3060, 2
    %vm3062 = vcmp.lt.s32.totalorder %v3060, %v3061
    %v3063 = vsel %vm3062, %v3060, %v3061
    %v3064 = vrot.slane %v3063, 1
    %vm3065 = vcmp.lt.s32.totalorder %v3063, %v3064
    %v3066 = vsel %vm3065, %v3063, %v3064
    %v3067 = vsel %vm2399, %v3005, 2147483647
    %v3068 = vrot.slane %v3067, 4
    %vm3069 = vcmp.lt.s32.totalorder %v3067, %v3068
    %v3070 = vsel %vm3069, %v3067, %v3068
    %v3071 = vrot.slane %v3070, 2
    %vm3072 = vcmp.lt.s32.totalorder %v3070, %v3071
    %v3073 = vsel %vm3072, %v3070, %v3071
    %v3074 = vrot.slane %v3073, 1
    %vm3075 = vcmp.lt.s32.totalorder %v3073, %v3074
    %v3076 = vsel %vm3075, %v3073, %v3074
    %v3077 = vsel %vm2399, %v3006, 2147483647
    %v3078 = vrot.slane %v3077, 4
    %vm3079 = vcmp.lt.s32.totalorder %v3077, %v3078
    %v3080 = vsel %vm3079, %v3077, %v3078
    %v3081 = vrot.slane %v3080, 2
    %vm3082 = vcmp.lt.s32.totalorder %v3080, %v3081
    %v3083 = vsel %vm3082, %v3080, %v3081
    %v3084 = vrot.slane %v3083, 1
    %vm3085 = vcmp.lt.s32.totalorder %v3083, %v3084
    %v3086 = vsel %vm3085, %v3083, %v3084
    %v3087 = vrot.slane %v1480, 1
    %v3088 = vrot.slane %v1480, 2
    %v3089 = vrot.slane %v1480, 3
    %v3090 = vrot.slane %v1480, 4
    %v3091 = vrot.slane %v1480, 5
    %v3092 = vrot.slane %v1480, 6
    %v3093 = vrot.slane %v1480, 7
    %v3102 = vadd.f32 %v2941, %v1480
    %v3103 = vadd.f32 %v2948, %v3087
    %v3104 = vadd.f32 %v2955, %v3088
    %v3105 = vadd.f32 %v2962, %v3089
    %v3106 = vadd.f32 %v2969, %v3090
    %v3107 = vadd.f32 %v2976, %v3091
    %v3108 = vadd.f32 %v2983, %v3092
    %v3109 = vadd.f32 %v2990, %v3093
    %v3118 = vrot.slane %v3103, 7
    %v3119 = vsel %vm2919, %v3118, %v3102
    %v3120 = vrot.slane %v3104, 6
    %v3121 = vsel %vm2921, %v3120, %v3119
    %v3122 = vrot.slane %v3105, 5
    %v3123 = vsel %vm2923, %v3122, %v3121
    %v3124 = vrot.slane %v3106, 4
    %v3125 = vsel %vm2925, %v3124, %v3123
    %v3126 = vrot.slane %v3107, 3
    %v3127 = vsel %vm2927, %v3126, %v3125
    %v3128 = vrot.slane %v3108, 2
    %v3129 = vsel %vm2929, %v3128, %v3127
    %v3130 = vrot.slane %v3109, 1
    %v3131 = vsel %vm2931, %v3130, %v3129
    %v3133 = vsel %vm2910, %v3131, %v2582
    %v3134 = vsel %vm2919, %v3026, %v3016
    %v3135 = vsel %vm2921, %v3036, %v3134
    %v3136 = vsel %vm2923, %v3046, %v3135
    %v3137 = vsel %vm2925, %v3056, %v3136
    %v3138 = vsel %vm2927, %v3066, %v3137
    %v3139 = vsel %vm2929, %v3076, %v3138
    %v3140 = vsel %vm2931, %v3086, %v3139
    %v3141 = vsel %vm2910, %v3140, %v2581
    %vm3142 = vcmp.gt.f32.partialorder %v63, 0.5
    %v3143 = vlaneseq
    %v3144 = vshrl.u32 %v3143, 7
    %v3145 = vsub.s32 0, %v3144
    %v3146 = vrot.slane %v2934, %v3145
    %3148 = vbcast.lane.b32.xlu0 %v3146, 256
    %v3149 = vpop.permute.xlu0 %3148
    %v3150 = vlaneseq
    %v3151 = vshrl.u32 %v3150, 7
    %v3152 = vsub.s32 1, %v3151
    %v3153 = vrot.slane %v2934, %v3152
    %3155 = vbcast.lane.b32.xlu0 %v3153, 256
    %v3156 = vpop.permute.xlu0 %3155
    %v3157 = vlaneseq
    %v3158 = vshrl.u32 %v3157, 7
    %v3159 = vsub.s32 2, %v3158
    %v3160 = vrot.slane %v2934, %v3159
    %3162 = vbcast.lane.b32.xlu0 %v3160, 256
    %v3163 = vpop.permute.xlu0 %3162
    %v3164 = vlaneseq
    %v3165 = vshrl.u32 %v3164, 7
    %v3166 = vsub.s32 3, %v3165
    %v3167 = vrot.slane %v2934, %v3166
    %3169 = vbcast.lane.b32.xlu0 %v3167, 256
    %v3170 = vpop.permute.xlu0 %3169
    %v3171 = vlaneseq
    %v3172 = vshrl.u32 %v3171, 7
    %v3173 = vsub.s32 4, %v3172
    %v3174 = vrot.slane %v2934, %v3173
    %3176 = vbcast.lane.b32.xlu0 %v3174, 256
    %v3177 = vpop.permute.xlu0 %3176
    %v3178 = vlaneseq
    %v3179 = vshrl.u32 %v3178, 7
    %v3180 = vsub.s32 5, %v3179
    %v3181 = vrot.slane %v2934, %v3180
    %3183 = vbcast.lane.b32.xlu0 %v3181, 256
    %v3184 = vpop.permute.xlu0 %3183
    %v3185 = vlaneseq
    %v3186 = vshrl.u32 %v3185, 7
    %v3187 = vsub.s32 6, %v3186
    %v3188 = vrot.slane %v2934, %v3187
    %3190 = vbcast.lane.b32.xlu0 %v3188, 256
    %v3191 = vpop.permute.xlu0 %3190
    %v3192 = vlaneseq
    %v3193 = vshrl.u32 %v3192, 7
    %v3194 = vsub.s32 7, %v3193
    %v3195 = vrot.slane %v2934, %v3194
    %3197 = vbcast.lane.b32.xlu0 %v3195, 256
    %v3198 = vpop.permute.xlu0 %3197
    %v3199 = vadd.f32 %v3149, %v50
    %v3200 = vadd.f32 %v3156, %v50
    %v3201 = vadd.f32 %v3163, %v50
    %v3202 = vadd.f32 %v3170, %v50
    %v3203 = vadd.f32 %v3177, %v50
    %v3204 = vadd.f32 %v3184, %v50
    %v3205 = vadd.f32 %v3191, %v50
    %v3206 = vadd.f32 %v3198, %v50
    %v3208 = vcombine.high %v1629, %v1629
    %v3210 = vunpack.c.l.s4 1966171168
    %v3211 = vunpack.c.0.s8 %v3210
    %v3212 = vlaneseq
    %v3213 = vshrl.u32 %v3212, 7
    %v3214 = vsub.s32 %v3211, %v3213
    %v3215 = vrot.slane %v1629, %v3214
    %v3217 = vunpack.c.l.s4 1966171168
    %v3218 = vunpack.c.0.s8 %v3217
    %v3219 = vlaneseq
    %v3220 = vshrl.u32 %v3219, 7
    %v3221 = vsub.s32 %v3218, %v3220
    %v3222 = vrot.slane %v3208, %v3221
    %v3223 = vcombine.high %v3215, %v3215
    %v3224 = vcombine.high %v3222, %v3222
    %v3226 = vunpack.c.l.s4 1966171168
    %v3227 = vunpack.c.0.s8 %v3226
    %v3228 = vlaneseq
    %v3229 = vshrl.u32 %v3228, 7
    %v3230 = vsub.s32 %v3227, %v3229
    %v3231 = vrot.slane %v3215, %v3230
    %v3233 = vunpack.c.l.s4 1966171168
    %v3234 = vunpack.c.0.s8 %v3233
    %v3235 = vlaneseq
    %v3236 = vshrl.u32 %v3235, 7
    %v3237 = vsub.s32 %v3234, %v3236
    %v3238 = vrot.slane %v3222, %v3237
    %v3240 = vunpack.c.l.s4 1966171168
    %v3241 = vunpack.c.0.s8 %v3240
    %v3242 = vlaneseq
    %v3243 = vshrl.u32 %v3242, 7
    %v3244 = vsub.s32 %v3241, %v3243
    %v3245 = vrot.slane %v3223, %v3244
    %v3247 = vunpack.c.l.s4 1966171168
    %v3248 = vunpack.c.0.s8 %v3247
    %v3249 = vlaneseq
    %v3250 = vshrl.u32 %v3249, 7
    %v3251 = vsub.s32 %v3248, %v3250
    %v3252 = vrot.slane %v3224, %v3251
    %v3253 = vcombine.high %v3231, %v3231
    %v3254 = vcombine.high %v3238, %v3238
    %v3255 = vcombine.high %v3245, %v3245
    %v3256 = vcombine.high %v3252, %v3252
    %v3257 = vlaneseq
    %v3258 = vshrl.u32 %v3257, 7
    %v3259 = vsub.s32 0, %v3258
    %v3260 = vrot.slane %v3231, %v3259
    %v3261 = vlaneseq
    %v3262 = vshrl.u32 %v3261, 7
    %v3263 = vsub.s32 0, %v3262
    %v3264 = vrot.slane %v3245, %v3263
    %v3265 = vlaneseq
    %v3266 = vshrl.u32 %v3265, 7
    %v3267 = vsub.s32 0, %v3266
    %v3268 = vrot.slane %v3253, %v3267
    %v3269 = vlaneseq
    %v3270 = vshrl.u32 %v3269, 7
    %v3271 = vsub.s32 0, %v3270
    %v3272 = vrot.slane %v3255, %v3271
    %v3273 = vlaneseq
    %v3274 = vshrl.u32 %v3273, 7
    %v3275 = vsub.s32 0, %v3274
    %v3276 = vrot.slane %v3238, %v3275
    %v3277 = vlaneseq
    %v3278 = vshrl.u32 %v3277, 7
    %v3279 = vsub.s32 0, %v3278
    %v3280 = vrot.slane %v3252, %v3279
    %v3281 = vlaneseq
    %v3282 = vshrl.u32 %v3281, 7
    %v3283 = vsub.s32 0, %v3282
    %v3284 = vrot.slane %v3254, %v3283
    %v3285 = vlaneseq
    %v3286 = vshrl.u32 %v3285, 7
    %v3287 = vsub.s32 0, %v3286
    %v3288 = vrot.slane %v3256, %v3287
    %v3297 = vadd.f32 %v3199, %v3260
    %v3298 = vadd.f32 %v3200, %v3264
    %v3299 = vadd.f32 %v3201, %v3268
    %v3300 = vadd.f32 %v3202, %v3272
    %v3301 = vadd.f32 %v3203, %v3276
    %v3302 = vadd.f32 %v3204, %v3280
    %v3303 = vadd.f32 %v3205, %v3284
    %v3304 = vadd.f32 %v3206, %v3288
    %v3305 = vsel %vm2399, %v3297, -inf
    %v3306 = vrot.slane %v3305, 4
    %v3307 = vmax.f32 %v3305, %v3306
    %v3308 = vrot.slane %v3307, 2
    %v3309 = vmax.f32 %v3307, %v3308
    %v3310 = vrot.slane %v3309, 1
    %v3311 = vmax.f32 %v3309, %v3310
    %v3312 = vsel %vm2399, %v3298, -inf
    %v3313 = vrot.slane %v3312, 4
    %v3314 = vmax.f32 %v3312, %v3313
    %v3315 = vrot.slane %v3314, 2
    %v3316 = vmax.f32 %v3314, %v3315
    %v3317 = vrot.slane %v3316, 1
    %v3318 = vmax.f32 %v3316, %v3317
    %v3319 = vsel %vm2399, %v3299, -inf
    %v3320 = vrot.slane %v3319, 4
    %v3321 = vmax.f32 %v3319, %v3320
    %v3322 = vrot.slane %v3321, 2
    %v3323 = vmax.f32 %v3321, %v3322
    %v3324 = vrot.slane %v3323, 1
    %v3325 = vmax.f32 %v3323, %v3324
    %v3326 = vsel %vm2399, %v3300, -inf
    %v3327 = vrot.slane %v3326, 4
    %v3328 = vmax.f32 %v3326, %v3327
    %v3329 = vrot.slane %v3328, 2
    %v3330 = vmax.f32 %v3328, %v3329
    %v3331 = vrot.slane %v3330, 1
    %v3332 = vmax.f32 %v3330, %v3331
    %v3333 = vsel %vm2399, %v3301, -inf
    %v3334 = vrot.slane %v3333, 4
    %v3335 = vmax.f32 %v3333, %v3334
    %v3336 = vrot.slane %v3335, 2
    %v3337 = vmax.f32 %v3335, %v3336
    %v3338 = vrot.slane %v3337, 1
    %v3339 = vmax.f32 %v3337, %v3338
    %v3340 = vsel %vm2399, %v3302, -inf
    %v3341 = vrot.slane %v3340, 4
    %v3342 = vmax.f32 %v3340, %v3341
    %v3343 = vrot.slane %v3342, 2
    %v3344 = vmax.f32 %v3342, %v3343
    %v3345 = vrot.slane %v3344, 1
    %v3346 = vmax.f32 %v3344, %v3345
    %v3347 = vsel %vm2399, %v3303, -inf
    %v3348 = vrot.slane %v3347, 4
    %v3349 = vmax.f32 %v3347, %v3348
    %v3350 = vrot.slane %v3349, 2
    %v3351 = vmax.f32 %v3349, %v3350
    %v3352 = vrot.slane %v3351, 1
    %v3353 = vmax.f32 %v3351, %v3352
    %v3354 = vsel %vm2399, %v3304, -inf
    %v3355 = vrot.slane %v3354, 4
    %v3356 = vmax.f32 %v3354, %v3355
    %v3357 = vrot.slane %v3356, 2
    %v3358 = vmax.f32 %v3356, %v3357
    %v3359 = vrot.slane %v3358, 1
    %v3360 = vmax.f32 %v3358, %v3359
    %v3361 = vsub.f32 %v3297, %v3311
    %v3362 = vsub.f32 %v3298, %v3318
    %v3363 = vsub.f32 %v3299, %v3325
    %v3364 = vsub.f32 %v3300, %v3332
    %v3365 = vsub.f32 %v3301, %v3339
    %v3366 = vsub.f32 %v3302, %v3346
    %v3367 = vsub.f32 %v3303, %v3353
    %v3368 = vsub.f32 %v3304, %v3360
    %v3369 = vmul.f32 %v3361, 1.442695
    %v3370 = vpow.pop %v3369
    %v3371 = vmul.f32 %v3362, 1.442695
    %v3372 = vpow.pop %v3371
    %v3373 = vmul.f32 %v3363, 1.442695
    %v3374 = vpow.pop %v3373
    %v3375 = vmul.f32 %v3364, 1.442695
    %v3376 = vpow.pop %v3375
    %v3377 = vmul.f32 %v3365, 1.442695
    %v3378 = vpow.pop %v3377
    %v3379 = vmul.f32 %v3366, 1.442695
    %v3380 = vpow.pop %v3379
    %v3381 = vmul.f32 %v3367, 1.442695
    %v3382 = vpow.pop %v3381
    %v3383 = vmul.f32 %v3368, 1.442695
    %v3384 = vpow.pop %v3383
    %v3385 = vsel %vm2399, %v3370, 0.0
    %v3386 = vrot.slane %v3385, 4
    %v3387 = vadd.f32 %v3385, %v3386
    %v3388 = vrot.slane %v3387, 2
    %v3389 = vadd.f32 %v3387, %v3388
    %v3390 = vrot.slane %v3389, 1
    %v3391 = vadd.f32 %v3389, %v3390
    %v3392 = vsel %vm2399, %v3372, 0.0
    %v3393 = vrot.slane %v3392, 4
    %v3394 = vadd.f32 %v3392, %v3393
    %v3395 = vrot.slane %v3394, 2
    %v3396 = vadd.f32 %v3394, %v3395
    %v3397 = vrot.slane %v3396, 1
    %v3398 = vadd.f32 %v3396, %v3397
    %v3399 = vsel %vm2399, %v3374, 0.0
    %v3400 = vrot.slane %v3399, 4
    %v3401 = vadd.f32 %v3399, %v3400
    %v3402 = vrot.slane %v3401, 2
    %v3403 = vadd.f32 %v3401, %v3402
    %v3404 = vrot.slane %v3403, 1
    %v3405 = vadd.f32 %v3403, %v3404
    %v3406 = vsel %vm2399, %v3376, 0.0
    %v3407 = vrot.slane %v3406, 4
    %v3408 = vadd.f32 %v3406, %v3407
    %v3409 = vrot.slane %v3408, 2
    %v3410 = vadd.f32 %v3408, %v3409
    %v3411 = vrot.slane %v3410, 1
    %v3412 = vadd.f32 %v3410, %v3411
    %v3413 = vsel %vm2399, %v3378, 0.0
    %v3414 = vrot.slane %v3413, 4
    %v3415 = vadd.f32 %v3413, %v3414
    %v3416 = vrot.slane %v3415, 2
    %v3417 = vadd.f32 %v3415, %v3416
    %v3418 = vrot.slane %v3417, 1
    %v3419 = vadd.f32 %v3417, %v3418
    %v3420 = vsel %vm2399, %v3380, 0.0
    %v3421 = vrot.slane %v3420, 4
    %v3422 = vadd.f32 %v3420, %v3421
    %v3423 = vrot.slane %v3422, 2
    %v3424 = vadd.f32 %v3422, %v3423
    %v3425 = vrot.slane %v3424, 1
    %v3426 = vadd.f32 %v3424, %v3425
    %v3427 = vsel %vm2399, %v3382, 0.0
    %v3428 = vrot.slane %v3427, 4
    %v3429 = vadd.f32 %v3427, %v3428
    %v3430 = vrot.slane %v3429, 2
    %v3431 = vadd.f32 %v3429, %v3430
    %v3432 = vrot.slane %v3431, 1
    %v3433 = vadd.f32 %v3431, %v3432
    %v3434 = vsel %vm2399, %v3384, 0.0
    %v3435 = vrot.slane %v3434, 4
    %v3436 = vadd.f32 %v3434, %v3435
    %v3437 = vrot.slane %v3436, 2
    %v3438 = vadd.f32 %v3436, %v3437
    %v3439 = vrot.slane %v3438, 1
    %v3440 = vadd.f32 %v3438, %v3439
    %v3441 = vlog2.pop %v3391
    %v3442 = vmul.f32 %v3441, 0.6931472
    %v3443 = vlog2.pop %v3398
    %v3444 = vmul.f32 %v3443, 0.6931472
    %v3445 = vlog2.pop %v3405
    %v3446 = vmul.f32 %v3445, 0.6931472
    %v3447 = vlog2.pop %v3412
    %v3448 = vmul.f32 %v3447, 0.6931472
    %v3449 = vlog2.pop %v3419
    %v3450 = vmul.f32 %v3449, 0.6931472
    %v3451 = vlog2.pop %v3426
    %v3452 = vmul.f32 %v3451, 0.6931472
    %v3453 = vlog2.pop %v3433
    %v3454 = vmul.f32 %v3453, 0.6931472
    %v3455 = vlog2.pop %v3440
    %v3456 = vmul.f32 %v3455, 0.6931472
    %v3457 = vadd.f32 %v3311, %v3442
    %v3458 = vadd.f32 %v3318, %v3444
    %v3459 = vadd.f32 %v3325, %v3446
    %v3460 = vadd.f32 %v3332, %v3448
    %v3461 = vadd.f32 %v3339, %v3450
    %v3462 = vadd.f32 %v3346, %v3452
    %v3463 = vadd.f32 %v3353, %v3454
    %v3464 = vadd.f32 %v3360, %v3456
    %v3465 = vsel %vm3142, 1, 0
    %3466 = vset.pattern.permute.xlu0 0
    %3467 = vperm.xlu0 %3466, %v3465
    %v3468 = vpop.permute.xlu0 %3467
    %vm3469 = vcmp.eq.s32.totalorder %v3468, 1
    %v3478 = vsel %vm2919, %v3458, %v3457
    %v3479 = vsel %vm2921, %v3459, %v3478
    %v3480 = vsel %vm2923, %v3460, %v3479
    %v3481 = vsel %vm2925, %v3461, %v3480
    %v3482 = vsel %vm2927, %v3462, %v3481
    %v3483 = vsel %vm2929, %v3463, %v3482
    %v3484 = vsel %vm2931, %v3464, %v3483
    %v3486 = vsel %vm3469, %v3484, %v2934
    %v3487 = vlaneseq
    %v3488 = vshrl.u32 %v3487, 7
    %v3489 = vsub.s32 0, %v3488
    %v3490 = vrot.slane %v3133, %v3489
    %3492 = vbcast.lane.b32.xlu0 %v3490, 256
    %v3493 = vpop.permute.xlu0 %3492
    %v3494 = vlaneseq
    %v3495 = vshrl.u32 %v3494, 7
    %v3496 = vsub.s32 1, %v3495
    %v3497 = vrot.slane %v3133, %v3496
    %3499 = vbcast.lane.b32.xlu0 %v3497, 256
    %v3500 = vpop.permute.xlu0 %3499
    %v3501 = vlaneseq
    %v3502 = vshrl.u32 %v3501, 7
    %v3503 = vsub.s32 2, %v3502
    %v3504 = vrot.slane %v3133, %v3503
    %3506 = vbcast.lane.b32.xlu0 %v3504, 256
    %v3507 = vpop.permute.xlu0 %3506
    %v3508 = vlaneseq
    %v3509 = vshrl.u32 %v3508, 7
    %v3510 = vsub.s32 3, %v3509
    %v3511 = vrot.slane %v3133, %v3510
    %3513 = vbcast.lane.b32.xlu0 %v3511, 256
    %v3514 = vpop.permute.xlu0 %3513
    %v3515 = vlaneseq
    %v3516 = vshrl.u32 %v3515, 7
    %v3517 = vsub.s32 4, %v3516
    %v3518 = vrot.slane %v3133, %v3517
    %3520 = vbcast.lane.b32.xlu0 %v3518, 256
    %v3521 = vpop.permute.xlu0 %3520
    %v3522 = vlaneseq
    %v3523 = vshrl.u32 %v3522, 7
    %v3524 = vsub.s32 5, %v3523
    %v3525 = vrot.slane %v3133, %v3524
    %3527 = vbcast.lane.b32.xlu0 %v3525, 256
    %v3528 = vpop.permute.xlu0 %3527
    %v3529 = vlaneseq
    %v3530 = vshrl.u32 %v3529, 7
    %v3531 = vsub.s32 6, %v3530
    %v3532 = vrot.slane %v3133, %v3531
    %3534 = vbcast.lane.b32.xlu0 %v3532, 256
    %v3535 = vpop.permute.xlu0 %3534
    %v3536 = vlaneseq
    %v3537 = vshrl.u32 %v3536, 7
    %v3538 = vsub.s32 7, %v3537
    %v3539 = vrot.slane %v3133, %v3538
    %3541 = vbcast.lane.b32.xlu0 %v3539, 256
    %v3542 = vpop.permute.xlu0 %3541
    %v3543 = vadd.f32 %v3493, %v50
    %v3544 = vadd.f32 %v3500, %v50
    %v3545 = vadd.f32 %v3507, %v50
    %v3546 = vadd.f32 %v3514, %v50
    %v3547 = vadd.f32 %v3521, %v50
    %v3548 = vadd.f32 %v3528, %v50
    %v3549 = vadd.f32 %v3535, %v50
    %v3550 = vadd.f32 %v3542, %v50
    %v3551 = vsel %vm2399, %v3543, -inf
    %v3552 = vrot.slane %v3551, 4
    %v3553 = vmax.f32 %v3551, %v3552
    %v3554 = vrot.slane %v3553, 2
    %v3555 = vmax.f32 %v3553, %v3554
    %v3556 = vrot.slane %v3555, 1
    %v3557 = vmax.f32 %v3555, %v3556
    %v3558 = vsel %vm2399, %v3544, -inf
    %v3559 = vrot.slane %v3558, 4
    %v3560 = vmax.f32 %v3558, %v3559
    %v3561 = vrot.slane %v3560, 2
    %v3562 = vmax.f32 %v3560, %v3561
    %v3563 = vrot.slane %v3562, 1
    %v3564 = vmax.f32 %v3562, %v3563
    %v3565 = vsel %vm2399, %v3545, -inf
    %v3566 = vrot.slane %v3565, 4
    %v3567 = vmax.f32 %v3565, %v3566
    %v3568 = vrot.slane %v3567, 2
    %v3569 = vmax.f32 %v3567, %v3568
    %v3570 = vrot.slane %v3569, 1
    %v3571 = vmax.f32 %v3569, %v3570
    %v3572 = vsel %vm2399, %v3546, -inf
    %v3573 = vrot.slane %v3572, 4
    %v3574 = vmax.f32 %v3572, %v3573
    %v3575 = vrot.slane %v3574, 2
    %v3576 = vmax.f32 %v3574, %v3575
    %v3577 = vrot.slane %v3576, 1
    %v3578 = vmax.f32 %v3576, %v3577
    %v3579 = vsel %vm2399, %v3547, -inf
    %v3580 = vrot.slane %v3579, 4
    %v3581 = vmax.f32 %v3579, %v3580
    %v3582 = vrot.slane %v3581, 2
    %v3583 = vmax.f32 %v3581, %v3582
    %v3584 = vrot.slane %v3583, 1
    %v3585 = vmax.f32 %v3583, %v3584
    %v3586 = vsel %vm2399, %v3548, -inf
    %v3587 = vrot.slane %v3586, 4
    %v3588 = vmax.f32 %v3586, %v3587
    %v3589 = vrot.slane %v3588, 2
    %v3590 = vmax.f32 %v3588, %v3589
    %v3591 = vrot.slane %v3590, 1
    %v3592 = vmax.f32 %v3590, %v3591
    %v3593 = vsel %vm2399, %v3549, -inf
    %v3594 = vrot.slane %v3593, 4
    %v3595 = vmax.f32 %v3593, %v3594
    %v3596 = vrot.slane %v3595, 2
    %v3597 = vmax.f32 %v3595, %v3596
    %v3598 = vrot.slane %v3597, 1
    %v3599 = vmax.f32 %v3597, %v3598
    %v3600 = vsel %vm2399, %v3550, -inf
    %v3601 = vrot.slane %v3600, 4
    %v3602 = vmax.f32 %v3600, %v3601
    %v3603 = vrot.slane %v3602, 2
    %v3604 = vmax.f32 %v3602, %v3603
    %v3605 = vrot.slane %v3604, 1
    %v3606 = vmax.f32 %v3604, %v3605
    %vm3607 = vcmp.ge.f32.partialorder %v3543, %v3557
    %vm3608 = vcmp.ge.f32.partialorder %v3544, %v3564
    %vm3609 = vcmp.ge.f32.partialorder %v3545, %v3571
    %vm3610 = vcmp.ge.f32.partialorder %v3546, %v3578
    %vm3611 = vcmp.ge.f32.partialorder %v3547, %v3585
    %vm3612 = vcmp.ge.f32.partialorder %v3548, %v3592
    %vm3613 = vcmp.ge.f32.partialorder %v3549, %v3599
    %vm3614 = vcmp.ge.f32.partialorder %v3550, %v3606
    %v3615 = vsel %vm3607, %v2579, 1073741824
    %v3616 = vsel %vm3608, %v2579, 1073741824
    %v3617 = vsel %vm3609, %v2579, 1073741824
    %v3618 = vsel %vm3610, %v2579, 1073741824
    %v3619 = vsel %vm3611, %v2579, 1073741824
    %v3620 = vsel %vm3612, %v2579, 1073741824
    %v3621 = vsel %vm3613, %v2579, 1073741824
    %v3622 = vsel %vm3614, %v2579, 1073741824
    %v3623 = vsel %vm2399, %v3615, 2147483647
    %v3624 = vrot.slane %v3623, 4
    %vm3625 = vcmp.lt.s32.totalorder %v3623, %v3624
    %v3626 = vsel %vm3625, %v3623, %v3624
    %v3627 = vrot.slane %v3626, 2
    %vm3628 = vcmp.lt.s32.totalorder %v3626, %v3627
    %v3629 = vsel %vm3628, %v3626, %v3627
    %v3630 = vrot.slane %v3629, 1
    %vm3631 = vcmp.lt.s32.totalorder %v3629, %v3630
    %v3632 = vsel %vm3631, %v3629, %v3630
    %v3633 = vsel %vm2399, %v3616, 2147483647
    %v3634 = vrot.slane %v3633, 4
    %vm3635 = vcmp.lt.s32.totalorder %v3633, %v3634
    %v3636 = vsel %vm3635, %v3633, %v3634
    %v3637 = vrot.slane %v3636, 2
    %vm3638 = vcmp.lt.s32.totalorder %v3636, %v3637
    %v3639 = vsel %vm3638, %v3636, %v3637
    %v3640 = vrot.slane %v3639, 1
    %vm3641 = vcmp.lt.s32.totalorder %v3639, %v3640
    %v3642 = vsel %vm3641, %v3639, %v3640
    %v3643 = vsel %vm2399, %v3617, 2147483647
    %v3644 = vrot.slane %v3643, 4
    %vm3645 = vcmp.lt.s32.totalorder %v3643, %v3644
    %v3646 = vsel %vm3645, %v3643, %v3644
    %v3647 = vrot.slane %v3646, 2
    %vm3648 = vcmp.lt.s32.totalorder %v3646, %v3647
    %v3649 = vsel %vm3648, %v3646, %v3647
    %v3650 = vrot.slane %v3649, 1
    %vm3651 = vcmp.lt.s32.totalorder %v3649, %v3650
    %v3652 = vsel %vm3651, %v3649, %v3650
    %v3653 = vsel %vm2399, %v3618, 2147483647
    %v3654 = vrot.slane %v3653, 4
    %vm3655 = vcmp.lt.s32.totalorder %v3653, %v3654
    %v3656 = vsel %vm3655, %v3653, %v3654
    %v3657 = vrot.slane %v3656, 2
    %vm3658 = vcmp.lt.s32.totalorder %v3656, %v3657
    %v3659 = vsel %vm3658, %v3656, %v3657
    %v3660 = vrot.slane %v3659, 1
    %vm3661 = vcmp.lt.s32.totalorder %v3659, %v3660
    %v3662 = vsel %vm3661, %v3659, %v3660
    %v3663 = vsel %vm2399, %v3619, 2147483647
    %v3664 = vrot.slane %v3663, 4
    %vm3665 = vcmp.lt.s32.totalorder %v3663, %v3664
    %v3666 = vsel %vm3665, %v3663, %v3664
    %v3667 = vrot.slane %v3666, 2
    %vm3668 = vcmp.lt.s32.totalorder %v3666, %v3667
    %v3669 = vsel %vm3668, %v3666, %v3667
    %v3670 = vrot.slane %v3669, 1
    %vm3671 = vcmp.lt.s32.totalorder %v3669, %v3670
    %v3672 = vsel %vm3671, %v3669, %v3670
    %v3673 = vsel %vm2399, %v3620, 2147483647
    %v3674 = vrot.slane %v3673, 4
    %vm3675 = vcmp.lt.s32.totalorder %v3673, %v3674
    %v3676 = vsel %vm3675, %v3673, %v3674
    %v3677 = vrot.slane %v3676, 2
    %vm3678 = vcmp.lt.s32.totalorder %v3676, %v3677
    %v3679 = vsel %vm3678, %v3676, %v3677
    %v3680 = vrot.slane %v3679, 1
    %vm3681 = vcmp.lt.s32.totalorder %v3679, %v3680
    %v3682 = vsel %vm3681, %v3679, %v3680
    %v3683 = vsel %vm2399, %v3621, 2147483647
    %v3684 = vrot.slane %v3683, 4
    %vm3685 = vcmp.lt.s32.totalorder %v3683, %v3684
    %v3686 = vsel %vm3685, %v3683, %v3684
    %v3687 = vrot.slane %v3686, 2
    %vm3688 = vcmp.lt.s32.totalorder %v3686, %v3687
    %v3689 = vsel %vm3688, %v3686, %v3687
    %v3690 = vrot.slane %v3689, 1
    %vm3691 = vcmp.lt.s32.totalorder %v3689, %v3690
    %v3692 = vsel %vm3691, %v3689, %v3690
    %v3693 = vsel %vm2399, %v3622, 2147483647
    %v3694 = vrot.slane %v3693, 4
    %vm3695 = vcmp.lt.s32.totalorder %v3693, %v3694
    %v3696 = vsel %vm3695, %v3693, %v3694
    %v3697 = vrot.slane %v3696, 2
    %vm3698 = vcmp.lt.s32.totalorder %v3696, %v3697
    %v3699 = vsel %vm3698, %v3696, %v3697
    %v3700 = vrot.slane %v3699, 1
    %vm3701 = vcmp.lt.s32.totalorder %v3699, %v3700
    %v3702 = vsel %vm3701, %v3699, %v3700
    %v3703 = vrot.slane %v1629, 1
    %v3704 = vrot.slane %v1629, 2
    %v3705 = vrot.slane %v1629, 3
    %v3706 = vrot.slane %v1629, 4
    %v3707 = vrot.slane %v1629, 5
    %v3708 = vrot.slane %v1629, 6
    %v3709 = vrot.slane %v1629, 7
    %v3718 = vadd.f32 %v3557, %v1629
    %v3719 = vadd.f32 %v3564, %v3703
    %v3720 = vadd.f32 %v3571, %v3704
    %v3721 = vadd.f32 %v3578, %v3705
    %v3722 = vadd.f32 %v3585, %v3706
    %v3723 = vadd.f32 %v3592, %v3707
    %v3724 = vadd.f32 %v3599, %v3708
    %v3725 = vadd.f32 %v3606, %v3709
    %v3734 = vrot.slane %v3719, 7
    %v3735 = vsel %vm2919, %v3734, %v3718
    %v3736 = vrot.slane %v3720, 6
    %v3737 = vsel %vm2921, %v3736, %v3735
    %v3738 = vrot.slane %v3721, 5
    %v3739 = vsel %vm2923, %v3738, %v3737
    %v3740 = vrot.slane %v3722, 4
    %v3741 = vsel %vm2925, %v3740, %v3739
    %v3742 = vrot.slane %v3723, 3
    %v3743 = vsel %vm2927, %v3742, %v3741
    %v3744 = vrot.slane %v3724, 2
    %v3745 = vsel %vm2929, %v3744, %v3743
    %v3746 = vrot.slane %v3725, 1
    %v3747 = vsel %vm2931, %v3746, %v3745
    %v3749 = vsel %vm3469, %v3747, %v3133
    %v3750 = vsel %vm2919, %v3642, %v3632
    %v3751 = vsel %vm2921, %v3652, %v3750
    %v3752 = vsel %vm2923, %v3662, %v3751
    %v3753 = vsel %vm2925, %v3672, %v3752
    %v3754 = vsel %vm2927, %v3682, %v3753
    %v3755 = vsel %vm2929, %v3692, %v3754
    %v3756 = vsel %vm2931, %v3702, %v3755
    %v3757 = vsel %vm3469, %v3756, %v2581
    %vm3758 = vcmp.gt.f32.partialorder %v64, 0.5
    %v3759 = vlaneseq
    %v3760 = vshrl.u32 %v3759, 7
    %v3761 = vsub.s32 0, %v3760
    %v3762 = vrot.slane %v3486, %v3761
    %3764 = vbcast.lane.b32.xlu0 %v3762, 256
    %v3765 = vpop.permute.xlu0 %3764
    %v3766 = vlaneseq
    %v3767 = vshrl.u32 %v3766, 7
    %v3768 = vsub.s32 1, %v3767
    %v3769 = vrot.slane %v3486, %v3768
    %3771 = vbcast.lane.b32.xlu0 %v3769, 256
    %v3772 = vpop.permute.xlu0 %3771
    %v3773 = vlaneseq
    %v3774 = vshrl.u32 %v3773, 7
    %v3775 = vsub.s32 2, %v3774
    %v3776 = vrot.slane %v3486, %v3775
    %3778 = vbcast.lane.b32.xlu0 %v3776, 256
    %v3779 = vpop.permute.xlu0 %3778
    %v3780 = vlaneseq
    %v3781 = vshrl.u32 %v3780, 7
    %v3782 = vsub.s32 3, %v3781
    %v3783 = vrot.slane %v3486, %v3782
    %3785 = vbcast.lane.b32.xlu0 %v3783, 256
    %v3786 = vpop.permute.xlu0 %3785
    %v3787 = vlaneseq
    %v3788 = vshrl.u32 %v3787, 7
    %v3789 = vsub.s32 4, %v3788
    %v3790 = vrot.slane %v3486, %v3789
    %3792 = vbcast.lane.b32.xlu0 %v3790, 256
    %v3793 = vpop.permute.xlu0 %3792
    %v3794 = vlaneseq
    %v3795 = vshrl.u32 %v3794, 7
    %v3796 = vsub.s32 5, %v3795
    %v3797 = vrot.slane %v3486, %v3796
    %3799 = vbcast.lane.b32.xlu0 %v3797, 256
    %v3800 = vpop.permute.xlu0 %3799
    %v3801 = vlaneseq
    %v3802 = vshrl.u32 %v3801, 7
    %v3803 = vsub.s32 6, %v3802
    %v3804 = vrot.slane %v3486, %v3803
    %3806 = vbcast.lane.b32.xlu0 %v3804, 256
    %v3807 = vpop.permute.xlu0 %3806
    %v3808 = vlaneseq
    %v3809 = vshrl.u32 %v3808, 7
    %v3810 = vsub.s32 7, %v3809
    %v3811 = vrot.slane %v3486, %v3810
    %3813 = vbcast.lane.b32.xlu0 %v3811, 256
    %v3814 = vpop.permute.xlu0 %3813
    %v3815 = vadd.f32 %v3765, %v50
    %v3816 = vadd.f32 %v3772, %v50
    %v3817 = vadd.f32 %v3779, %v50
    %v3818 = vadd.f32 %v3786, %v50
    %v3819 = vadd.f32 %v3793, %v50
    %v3820 = vadd.f32 %v3800, %v50
    %v3821 = vadd.f32 %v3807, %v50
    %v3822 = vadd.f32 %v3814, %v50
    %v3824 = vcombine.high %v1778, %v1778
    %v3826 = vunpack.c.l.s4 1966171168
    %v3827 = vunpack.c.0.s8 %v3826
    %v3828 = vlaneseq
    %v3829 = vshrl.u32 %v3828, 7
    %v3830 = vsub.s32 %v3827, %v3829
    %v3831 = vrot.slane %v1778, %v3830
    %v3833 = vunpack.c.l.s4 1966171168
    %v3834 = vunpack.c.0.s8 %v3833
    %v3835 = vlaneseq
    %v3836 = vshrl.u32 %v3835, 7
    %v3837 = vsub.s32 %v3834, %v3836
    %v3838 = vrot.slane %v3824, %v3837
    %v3839 = vcombine.high %v3831, %v3831
    %v3840 = vcombine.high %v3838, %v3838
    %v3842 = vunpack.c.l.s4 1966171168
    %v3843 = vunpack.c.0.s8 %v3842
    %v3844 = vlaneseq
    %v3845 = vshrl.u32 %v3844, 7
    %v3846 = vsub.s32 %v3843, %v3845
    %v3847 = vrot.slane %v3831, %v3846
    %v3849 = vunpack.c.l.s4 1966171168
    %v3850 = vunpack.c.0.s8 %v3849
    %v3851 = vlaneseq
    %v3852 = vshrl.u32 %v3851, 7
    %v3853 = vsub.s32 %v3850, %v3852
    %v3854 = vrot.slane %v3838, %v3853
    %v3856 = vunpack.c.l.s4 1966171168
    %v3857 = vunpack.c.0.s8 %v3856
    %v3858 = vlaneseq
    %v3859 = vshrl.u32 %v3858, 7
    %v3860 = vsub.s32 %v3857, %v3859
    %v3861 = vrot.slane %v3839, %v3860
    %v3863 = vunpack.c.l.s4 1966171168
    %v3864 = vunpack.c.0.s8 %v3863
    %v3865 = vlaneseq
    %v3866 = vshrl.u32 %v3865, 7
    %v3867 = vsub.s32 %v3864, %v3866
    %v3868 = vrot.slane %v3840, %v3867
    %v3869 = vcombine.high %v3847, %v3847
    %v3870 = vcombine.high %v3854, %v3854
    %v3871 = vcombine.high %v3861, %v3861
    %v3872 = vcombine.high %v3868, %v3868
    %v3873 = vlaneseq
    %v3874 = vshrl.u32 %v3873, 7
    %v3875 = vsub.s32 0, %v3874
    %v3876 = vrot.slane %v3847, %v3875
    %v3877 = vlaneseq
    %v3878 = vshrl.u32 %v3877, 7
    %v3879 = vsub.s32 0, %v3878
    %v3880 = vrot.slane %v3861, %v3879
    %v3881 = vlaneseq
    %v3882 = vshrl.u32 %v3881, 7
    %v3883 = vsub.s32 0, %v3882
    %v3884 = vrot.slane %v3869, %v3883
    %v3885 = vlaneseq
    %v3886 = vshrl.u32 %v3885, 7
    %v3887 = vsub.s32 0, %v3886
    %v3888 = vrot.slane %v3871, %v3887
    %v3889 = vlaneseq
    %v3890 = vshrl.u32 %v3889, 7
    %v3891 = vsub.s32 0, %v3890
    %v3892 = vrot.slane %v3854, %v3891
    %v3893 = vlaneseq
    %v3894 = vshrl.u32 %v3893, 7
    %v3895 = vsub.s32 0, %v3894
    %v3896 = vrot.slane %v3868, %v3895
    %v3897 = vlaneseq
    %v3898 = vshrl.u32 %v3897, 7
    %v3899 = vsub.s32 0, %v3898
    %v3900 = vrot.slane %v3870, %v3899
    %v3901 = vlaneseq
    %v3902 = vshrl.u32 %v3901, 7
    %v3903 = vsub.s32 0, %v3902
    %v3904 = vrot.slane %v3872, %v3903
    %v3913 = vadd.f32 %v3815, %v3876
    %v3914 = vadd.f32 %v3816, %v3880
    %v3915 = vadd.f32 %v3817, %v3884
    %v3916 = vadd.f32 %v3818, %v3888
    %v3917 = vadd.f32 %v3819, %v3892
    %v3918 = vadd.f32 %v3820, %v3896
    %v3919 = vadd.f32 %v3821, %v3900
    %v3920 = vadd.f32 %v3822, %v3904
    %v3921 = vsel %vm2399, %v3913, -inf
    %v3922 = vrot.slane %v3921, 4
    %v3923 = vmax.f32 %v3921, %v3922
    %v3924 = vrot.slane %v3923, 2
    %v3925 = vmax.f32 %v3923, %v3924
    %v3926 = vrot.slane %v3925, 1
    %v3927 = vmax.f32 %v3925, %v3926
    %v3928 = vsel %vm2399, %v3914, -inf
    %v3929 = vrot.slane %v3928, 4
    %v3930 = vmax.f32 %v3928, %v3929
    %v3931 = vrot.slane %v3930, 2
    %v3932 = vmax.f32 %v3930, %v3931
    %v3933 = vrot.slane %v3932, 1
    %v3934 = vmax.f32 %v3932, %v3933
    %v3935 = vsel %vm2399, %v3915, -inf
    %v3936 = vrot.slane %v3935, 4
    %v3937 = vmax.f32 %v3935, %v3936
    %v3938 = vrot.slane %v3937, 2
    %v3939 = vmax.f32 %v3937, %v3938
    %v3940 = vrot.slane %v3939, 1
    %v3941 = vmax.f32 %v3939, %v3940
    %v3942 = vsel %vm2399, %v3916, -inf
    %v3943 = vrot.slane %v3942, 4
    %v3944 = vmax.f32 %v3942, %v3943
    %v3945 = vrot.slane %v3944, 2
    %v3946 = vmax.f32 %v3944, %v3945
    %v3947 = vrot.slane %v3946, 1
    %v3948 = vmax.f32 %v3946, %v3947
    %v3949 = vsel %vm2399, %v3917, -inf
    %v3950 = vrot.slane %v3949, 4
    %v3951 = vmax.f32 %v3949, %v3950
    %v3952 = vrot.slane %v3951, 2
    %v3953 = vmax.f32 %v3951, %v3952
    %v3954 = vrot.slane %v3953, 1
    %v3955 = vmax.f32 %v3953, %v3954
    %v3956 = vsel %vm2399, %v3918, -inf
    %v3957 = vrot.slane %v3956, 4
    %v3958 = vmax.f32 %v3956, %v3957
    %v3959 = vrot.slane %v3958, 2
    %v3960 = vmax.f32 %v3958, %v3959
    %v3961 = vrot.slane %v3960, 1
    %v3962 = vmax.f32 %v3960, %v3961
    %v3963 = vsel %vm2399, %v3919, -inf
    %v3964 = vrot.slane %v3963, 4
    %v3965 = vmax.f32 %v3963, %v3964
    %v3966 = vrot.slane %v3965, 2
    %v3967 = vmax.f32 %v3965, %v3966
    %v3968 = vrot.slane %v3967, 1
    %v3969 = vmax.f32 %v3967, %v3968
    %v3970 = vsel %vm2399, %v3920, -inf
    %v3971 = vrot.slane %v3970, 4
    %v3972 = vmax.f32 %v3970, %v3971
    %v3973 = vrot.slane %v3972, 2
    %v3974 = vmax.f32 %v3972, %v3973
    %v3975 = vrot.slane %v3974, 1
    %v3976 = vmax.f32 %v3974, %v3975
    %v3977 = vsub.f32 %v3913, %v3927
    %v3978 = vsub.f32 %v3914, %v3934
    %v3979 = vsub.f32 %v3915, %v3941
    %v3980 = vsub.f32 %v3916, %v3948
    %v3981 = vsub.f32 %v3917, %v3955
    %v3982 = vsub.f32 %v3918, %v3962
    %v3983 = vsub.f32 %v3919, %v3969
    %v3984 = vsub.f32 %v3920, %v3976
    %v3985 = vmul.f32 %v3977, 1.442695
    %v3986 = vpow.pop %v3985
    %v3987 = vmul.f32 %v3978, 1.442695
    %v3988 = vpow.pop %v3987
    %v3989 = vmul.f32 %v3979, 1.442695
    %v3990 = vpow.pop %v3989
    %v3991 = vmul.f32 %v3980, 1.442695
    %v3992 = vpow.pop %v3991
    %v3993 = vmul.f32 %v3981, 1.442695
    %v3994 = vpow.pop %v3993
    %v3995 = vmul.f32 %v3982, 1.442695
    %v3996 = vpow.pop %v3995
    %v3997 = vmul.f32 %v3983, 1.442695
    %v3998 = vpow.pop %v3997
    %v3999 = vmul.f32 %v3984, 1.442695
    %v4000 = vpow.pop %v3999
    %v4001 = vsel %vm2399, %v3986, 0.0
    %v4002 = vrot.slane %v4001, 4
    %v4003 = vadd.f32 %v4001, %v4002
    %v4004 = vrot.slane %v4003, 2
    %v4005 = vadd.f32 %v4003, %v4004
    %v4006 = vrot.slane %v4005, 1
    %v4007 = vadd.f32 %v4005, %v4006
    %v4008 = vsel %vm2399, %v3988, 0.0
    %v4009 = vrot.slane %v4008, 4
    %v4010 = vadd.f32 %v4008, %v4009
    %v4011 = vrot.slane %v4010, 2
    %v4012 = vadd.f32 %v4010, %v4011
    %v4013 = vrot.slane %v4012, 1
    %v4014 = vadd.f32 %v4012, %v4013
    %v4015 = vsel %vm2399, %v3990, 0.0
    %v4016 = vrot.slane %v4015, 4
    %v4017 = vadd.f32 %v4015, %v4016
    %v4018 = vrot.slane %v4017, 2
    %v4019 = vadd.f32 %v4017, %v4018
    %v4020 = vrot.slane %v4019, 1
    %v4021 = vadd.f32 %v4019, %v4020
    %v4022 = vsel %vm2399, %v3992, 0.0
    %v4023 = vrot.slane %v4022, 4
    %v4024 = vadd.f32 %v4022, %v4023
    %v4025 = vrot.slane %v4024, 2
    %v4026 = vadd.f32 %v4024, %v4025
    %v4027 = vrot.slane %v4026, 1
    %v4028 = vadd.f32 %v4026, %v4027
    %v4029 = vsel %vm2399, %v3994, 0.0
    %v4030 = vrot.slane %v4029, 4
    %v4031 = vadd.f32 %v4029, %v4030
    %v4032 = vrot.slane %v4031, 2
    %v4033 = vadd.f32 %v4031, %v4032
    %v4034 = vrot.slane %v4033, 1
    %v4035 = vadd.f32 %v4033, %v4034
    %v4036 = vsel %vm2399, %v3996, 0.0
    %v4037 = vrot.slane %v4036, 4
    %v4038 = vadd.f32 %v4036, %v4037
    %v4039 = vrot.slane %v4038, 2
    %v4040 = vadd.f32 %v4038, %v4039
    %v4041 = vrot.slane %v4040, 1
    %v4042 = vadd.f32 %v4040, %v4041
    %v4043 = vsel %vm2399, %v3998, 0.0
    %v4044 = vrot.slane %v4043, 4
    %v4045 = vadd.f32 %v4043, %v4044
    %v4046 = vrot.slane %v4045, 2
    %v4047 = vadd.f32 %v4045, %v4046
    %v4048 = vrot.slane %v4047, 1
    %v4049 = vadd.f32 %v4047, %v4048
    %v4050 = vsel %vm2399, %v4000, 0.0
    %v4051 = vrot.slane %v4050, 4
    %v4052 = vadd.f32 %v4050, %v4051
    %v4053 = vrot.slane %v4052, 2
    %v4054 = vadd.f32 %v4052, %v4053
    %v4055 = vrot.slane %v4054, 1
    %v4056 = vadd.f32 %v4054, %v4055
    %v4057 = vlog2.pop %v4007
    %v4058 = vmul.f32 %v4057, 0.6931472
    %v4059 = vlog2.pop %v4014
    %v4060 = vmul.f32 %v4059, 0.6931472
    %v4061 = vlog2.pop %v4021
    %v4062 = vmul.f32 %v4061, 0.6931472
    %v4063 = vlog2.pop %v4028
    %v4064 = vmul.f32 %v4063, 0.6931472
    %v4065 = vlog2.pop %v4035
    %v4066 = vmul.f32 %v4065, 0.6931472
    %v4067 = vlog2.pop %v4042
    %v4068 = vmul.f32 %v4067, 0.6931472
    %v4069 = vlog2.pop %v4049
    %v4070 = vmul.f32 %v4069, 0.6931472
    %v4071 = vlog2.pop %v4056
    %v4072 = vmul.f32 %v4071, 0.6931472
    %v4073 = vadd.f32 %v3927, %v4058
    %v4074 = vadd.f32 %v3934, %v4060
    %v4075 = vadd.f32 %v3941, %v4062
    %v4076 = vadd.f32 %v3948, %v4064
    %v4077 = vadd.f32 %v3955, %v4066
    %v4078 = vadd.f32 %v3962, %v4068
    %v4079 = vadd.f32 %v3969, %v4070
    %v4080 = vadd.f32 %v3976, %v4072
    %v4081 = vsel %vm3758, 1, 0
    %4082 = vset.pattern.permute.xlu0 0
    %4083 = vperm.xlu0 %4082, %v4081
    %v4084 = vpop.permute.xlu0 %4083
    %vm4085 = vcmp.eq.s32.totalorder %v4084, 1
    %v4094 = vsel %vm2919, %v4074, %v4073
    %v4095 = vsel %vm2921, %v4075, %v4094
    %v4096 = vsel %vm2923, %v4076, %v4095
    %v4097 = vsel %vm2925, %v4077, %v4096
    %v4098 = vsel %vm2927, %v4078, %v4097
    %v4099 = vsel %vm2929, %v4079, %v4098
    %v4100 = vsel %vm2931, %v4080, %v4099
    %v4102 = vsel %vm4085, %v4100, %v3486
    %v4103 = vlaneseq
    %v4104 = vshrl.u32 %v4103, 7
    %v4105 = vsub.s32 0, %v4104
    %v4106 = vrot.slane %v3749, %v4105
    %4108 = vbcast.lane.b32.xlu0 %v4106, 256
    %v4109 = vpop.permute.xlu0 %4108
    %v4110 = vlaneseq
    %v4111 = vshrl.u32 %v4110, 7
    %v4112 = vsub.s32 1, %v4111
    %v4113 = vrot.slane %v3749, %v4112
    %4115 = vbcast.lane.b32.xlu0 %v4113, 256
    %v4116 = vpop.permute.xlu0 %4115
    %v4117 = vlaneseq
    %v4118 = vshrl.u32 %v4117, 7
    %v4119 = vsub.s32 2, %v4118
    %v4120 = vrot.slane %v3749, %v4119
    %4122 = vbcast.lane.b32.xlu0 %v4120, 256
    %v4123 = vpop.permute.xlu0 %4122
    %v4124 = vlaneseq
    %v4125 = vshrl.u32 %v4124, 7
    %v4126 = vsub.s32 3, %v4125
    %v4127 = vrot.slane %v3749, %v4126
    %4129 = vbcast.lane.b32.xlu0 %v4127, 256
    %v4130 = vpop.permute.xlu0 %4129
    %v4131 = vlaneseq
    %v4132 = vshrl.u32 %v4131, 7
    %v4133 = vsub.s32 4, %v4132
    %v4134 = vrot.slane %v3749, %v4133
    %4136 = vbcast.lane.b32.xlu0 %v4134, 256
    %v4137 = vpop.permute.xlu0 %4136
    %v4138 = vlaneseq
    %v4139 = vshrl.u32 %v4138, 7
    %v4140 = vsub.s32 5, %v4139
    %v4141 = vrot.slane %v3749, %v4140
    %4143 = vbcast.lane.b32.xlu0 %v4141, 256
    %v4144 = vpop.permute.xlu0 %4143
    %v4145 = vlaneseq
    %v4146 = vshrl.u32 %v4145, 7
    %v4147 = vsub.s32 6, %v4146
    %v4148 = vrot.slane %v3749, %v4147
    %4150 = vbcast.lane.b32.xlu0 %v4148, 256
    %v4151 = vpop.permute.xlu0 %4150
    %v4152 = vlaneseq
    %v4153 = vshrl.u32 %v4152, 7
    %v4154 = vsub.s32 7, %v4153
    %v4155 = vrot.slane %v3749, %v4154
    %4157 = vbcast.lane.b32.xlu0 %v4155, 256
    %v4158 = vpop.permute.xlu0 %4157
    %v4159 = vadd.f32 %v4109, %v50
    %v4160 = vadd.f32 %v4116, %v50
    %v4161 = vadd.f32 %v4123, %v50
    %v4162 = vadd.f32 %v4130, %v50
    %v4163 = vadd.f32 %v4137, %v50
    %v4164 = vadd.f32 %v4144, %v50
    %v4165 = vadd.f32 %v4151, %v50
    %v4166 = vadd.f32 %v4158, %v50
    %v4167 = vsel %vm2399, %v4159, -inf
    %v4168 = vrot.slane %v4167, 4
    %v4169 = vmax.f32 %v4167, %v4168
    %v4170 = vrot.slane %v4169, 2
    %v4171 = vmax.f32 %v4169, %v4170
    %v4172 = vrot.slane %v4171, 1
    %v4173 = vmax.f32 %v4171, %v4172
    %v4174 = vsel %vm2399, %v4160, -inf
    %v4175 = vrot.slane %v4174, 4
    %v4176 = vmax.f32 %v4174, %v4175
    %v4177 = vrot.slane %v4176, 2
    %v4178 = vmax.f32 %v4176, %v4177
    %v4179 = vrot.slane %v4178, 1
    %v4180 = vmax.f32 %v4178, %v4179
    %v4181 = vsel %vm2399, %v4161, -inf
    %v4182 = vrot.slane %v4181, 4
    %v4183 = vmax.f32 %v4181, %v4182
    %v4184 = vrot.slane %v4183, 2
    %v4185 = vmax.f32 %v4183, %v4184
    %v4186 = vrot.slane %v4185, 1
    %v4187 = vmax.f32 %v4185, %v4186
    %v4188 = vsel %vm2399, %v4162, -inf
    %v4189 = vrot.slane %v4188, 4
    %v4190 = vmax.f32 %v4188, %v4189
    %v4191 = vrot.slane %v4190, 2
    %v4192 = vmax.f32 %v4190, %v4191
    %v4193 = vrot.slane %v4192, 1
    %v4194 = vmax.f32 %v4192, %v4193
    %v4195 = vsel %vm2399, %v4163, -inf
    %v4196 = vrot.slane %v4195, 4
    %v4197 = vmax.f32 %v4195, %v4196
    %v4198 = vrot.slane %v4197, 2
    %v4199 = vmax.f32 %v4197, %v4198
    %v4200 = vrot.slane %v4199, 1
    %v4201 = vmax.f32 %v4199, %v4200
    %v4202 = vsel %vm2399, %v4164, -inf
    %v4203 = vrot.slane %v4202, 4
    %v4204 = vmax.f32 %v4202, %v4203
    %v4205 = vrot.slane %v4204, 2
    %v4206 = vmax.f32 %v4204, %v4205
    %v4207 = vrot.slane %v4206, 1
    %v4208 = vmax.f32 %v4206, %v4207
    %v4209 = vsel %vm2399, %v4165, -inf
    %v4210 = vrot.slane %v4209, 4
    %v4211 = vmax.f32 %v4209, %v4210
    %v4212 = vrot.slane %v4211, 2
    %v4213 = vmax.f32 %v4211, %v4212
    %v4214 = vrot.slane %v4213, 1
    %v4215 = vmax.f32 %v4213, %v4214
    %v4216 = vsel %vm2399, %v4166, -inf
    %v4217 = vrot.slane %v4216, 4
    %v4218 = vmax.f32 %v4216, %v4217
    %v4219 = vrot.slane %v4218, 2
    %v4220 = vmax.f32 %v4218, %v4219
    %v4221 = vrot.slane %v4220, 1
    %v4222 = vmax.f32 %v4220, %v4221
    %vm4223 = vcmp.ge.f32.partialorder %v4159, %v4173
    %vm4224 = vcmp.ge.f32.partialorder %v4160, %v4180
    %vm4225 = vcmp.ge.f32.partialorder %v4161, %v4187
    %vm4226 = vcmp.ge.f32.partialorder %v4162, %v4194
    %vm4227 = vcmp.ge.f32.partialorder %v4163, %v4201
    %vm4228 = vcmp.ge.f32.partialorder %v4164, %v4208
    %vm4229 = vcmp.ge.f32.partialorder %v4165, %v4215
    %vm4230 = vcmp.ge.f32.partialorder %v4166, %v4222
    %v4231 = vsel %vm4223, %v2579, 1073741824
    %v4232 = vsel %vm4224, %v2579, 1073741824
    %v4233 = vsel %vm4225, %v2579, 1073741824
    %v4234 = vsel %vm4226, %v2579, 1073741824
    %v4235 = vsel %vm4227, %v2579, 1073741824
    %v4236 = vsel %vm4228, %v2579, 1073741824
    %v4237 = vsel %vm4229, %v2579, 1073741824
    %v4238 = vsel %vm4230, %v2579, 1073741824
    %v4239 = vsel %vm2399, %v4231, 2147483647
    %v4240 = vrot.slane %v4239, 4
    %vm4241 = vcmp.lt.s32.totalorder %v4239, %v4240
    %v4242 = vsel %vm4241, %v4239, %v4240
    %v4243 = vrot.slane %v4242, 2
    %vm4244 = vcmp.lt.s32.totalorder %v4242, %v4243
    %v4245 = vsel %vm4244, %v4242, %v4243
    %v4246 = vrot.slane %v4245, 1
    %vm4247 = vcmp.lt.s32.totalorder %v4245, %v4246
    %v4248 = vsel %vm4247, %v4245, %v4246
    %v4249 = vsel %vm2399, %v4232, 2147483647
    %v4250 = vrot.slane %v4249, 4
    %vm4251 = vcmp.lt.s32.totalorder %v4249, %v4250
    %v4252 = vsel %vm4251, %v4249, %v4250
    %v4253 = vrot.slane %v4252, 2
    %vm4254 = vcmp.lt.s32.totalorder %v4252, %v4253
    %v4255 = vsel %vm4254, %v4252, %v4253
    %v4256 = vrot.slane %v4255, 1
    %vm4257 = vcmp.lt.s32.totalorder %v4255, %v4256
    %v4258 = vsel %vm4257, %v4255, %v4256
    %v4259 = vsel %vm2399, %v4233, 2147483647
    %v4260 = vrot.slane %v4259, 4
    %vm4261 = vcmp.lt.s32.totalorder %v4259, %v4260
    %v4262 = vsel %vm4261, %v4259, %v4260
    %v4263 = vrot.slane %v4262, 2
    %vm4264 = vcmp.lt.s32.totalorder %v4262, %v4263
    %v4265 = vsel %vm4264, %v4262, %v4263
    %v4266 = vrot.slane %v4265, 1
    %vm4267 = vcmp.lt.s32.totalorder %v4265, %v4266
    %v4268 = vsel %vm4267, %v4265, %v4266
    %v4269 = vsel %vm2399, %v4234, 2147483647
    %v4270 = vrot.slane %v4269, 4
    %vm4271 = vcmp.lt.s32.totalorder %v4269, %v4270
    %v4272 = vsel %vm4271, %v4269, %v4270
    %v4273 = vrot.slane %v4272, 2
    %vm4274 = vcmp.lt.s32.totalorder %v4272, %v4273
    %v4275 = vsel %vm4274, %v4272, %v4273
    %v4276 = vrot.slane %v4275, 1
    %vm4277 = vcmp.lt.s32.totalorder %v4275, %v4276
    %v4278 = vsel %vm4277, %v4275, %v4276
    %v4279 = vsel %vm2399, %v4235, 2147483647
    %v4280 = vrot.slane %v4279, 4
    %vm4281 = vcmp.lt.s32.totalorder %v4279, %v4280
    %v4282 = vsel %vm4281, %v4279, %v4280
    %v4283 = vrot.slane %v4282, 2
    %vm4284 = vcmp.lt.s32.totalorder %v4282, %v4283
    %v4285 = vsel %vm4284, %v4282, %v4283
    %v4286 = vrot.slane %v4285, 1
    %vm4287 = vcmp.lt.s32.totalorder %v4285, %v4286
    %v4288 = vsel %vm4287, %v4285, %v4286
    %v4289 = vsel %vm2399, %v4236, 2147483647
    %v4290 = vrot.slane %v4289, 4
    %vm4291 = vcmp.lt.s32.totalorder %v4289, %v4290
    %v4292 = vsel %vm4291, %v4289, %v4290
    %v4293 = vrot.slane %v4292, 2
    %vm4294 = vcmp.lt.s32.totalorder %v4292, %v4293
    %v4295 = vsel %vm4294, %v4292, %v4293
    %v4296 = vrot.slane %v4295, 1
    %vm4297 = vcmp.lt.s32.totalorder %v4295, %v4296
    %v4298 = vsel %vm4297, %v4295, %v4296
    %v4299 = vsel %vm2399, %v4237, 2147483647
    %v4300 = vrot.slane %v4299, 4
    %vm4301 = vcmp.lt.s32.totalorder %v4299, %v4300
    %v4302 = vsel %vm4301, %v4299, %v4300
    %v4303 = vrot.slane %v4302, 2
    %vm4304 = vcmp.lt.s32.totalorder %v4302, %v4303
    %v4305 = vsel %vm4304, %v4302, %v4303
    %v4306 = vrot.slane %v4305, 1
    %vm4307 = vcmp.lt.s32.totalorder %v4305, %v4306
    %v4308 = vsel %vm4307, %v4305, %v4306
    %v4309 = vsel %vm2399, %v4238, 2147483647
    %v4310 = vrot.slane %v4309, 4
    %vm4311 = vcmp.lt.s32.totalorder %v4309, %v4310
    %v4312 = vsel %vm4311, %v4309, %v4310
    %v4313 = vrot.slane %v4312, 2
    %vm4314 = vcmp.lt.s32.totalorder %v4312, %v4313
    %v4315 = vsel %vm4314, %v4312, %v4313
    %v4316 = vrot.slane %v4315, 1
    %vm4317 = vcmp.lt.s32.totalorder %v4315, %v4316
    %v4318 = vsel %vm4317, %v4315, %v4316
    %v4319 = vrot.slane %v1778, 1
    %v4320 = vrot.slane %v1778, 2
    %v4321 = vrot.slane %v1778, 3
    %v4322 = vrot.slane %v1778, 4
    %v4323 = vrot.slane %v1778, 5
    %v4324 = vrot.slane %v1778, 6
    %v4325 = vrot.slane %v1778, 7
    %v4334 = vadd.f32 %v4173, %v1778
    %v4335 = vadd.f32 %v4180, %v4319
    %v4336 = vadd.f32 %v4187, %v4320
    %v4337 = vadd.f32 %v4194, %v4321
    %v4338 = vadd.f32 %v4201, %v4322
    %v4339 = vadd.f32 %v4208, %v4323
    %v4340 = vadd.f32 %v4215, %v4324
    %v4341 = vadd.f32 %v4222, %v4325
    %v4350 = vrot.slane %v4335, 7
    %v4351 = vsel %vm2919, %v4350, %v4334
    %v4352 = vrot.slane %v4336, 6
    %v4353 = vsel %vm2921, %v4352, %v4351
    %v4354 = vrot.slane %v4337, 5
    %v4355 = vsel %vm2923, %v4354, %v4353
    %v4356 = vrot.slane %v4338, 4
    %v4357 = vsel %vm2925, %v4356, %v4355
    %v4358 = vrot.slane %v4339, 3
    %v4359 = vsel %vm2927, %v4358, %v4357
    %v4360 = vrot.slane %v4340, 2
    %v4361 = vsel %vm2929, %v4360, %v4359
    %v4362 = vrot.slane %v4341, 1
    %v4363 = vsel %vm2931, %v4362, %v4361
    %v4365 = vsel %vm4085, %v4363, %v3749
    %v4366 = vsel %vm2919, %v4258, %v4248
    %v4367 = vsel %vm2921, %v4268, %v4366
    %v4368 = vsel %vm2923, %v4278, %v4367
    %v4369 = vsel %vm2925, %v4288, %v4368
    %v4370 = vsel %vm2927, %v4298, %v4369
    %v4371 = vsel %vm2929, %v4308, %v4370
    %v4372 = vsel %vm2931, %v4318, %v4371
    %v4373 = vsel %vm4085, %v4372, %v2581
    %vm4374 = vcmp.gt.f32.partialorder %v65, 0.5
    %v4375 = vlaneseq
    %v4376 = vshrl.u32 %v4375, 7
    %v4377 = vsub.s32 0, %v4376
    %v4378 = vrot.slane %v4102, %v4377
    %4380 = vbcast.lane.b32.xlu0 %v4378, 256
    %v4381 = vpop.permute.xlu0 %4380
    %v4382 = vlaneseq
    %v4383 = vshrl.u32 %v4382, 7
    %v4384 = vsub.s32 1, %v4383
    %v4385 = vrot.slane %v4102, %v4384
    %4387 = vbcast.lane.b32.xlu0 %v4385, 256
    %v4388 = vpop.permute.xlu0 %4387
    %v4389 = vlaneseq
    %v4390 = vshrl.u32 %v4389, 7
    %v4391 = vsub.s32 2, %v4390
    %v4392 = vrot.slane %v4102, %v4391
    %4394 = vbcast.lane.b32.xlu0 %v4392, 256
    %v4395 = vpop.permute.xlu0 %4394
    %v4396 = vlaneseq
    %v4397 = vshrl.u32 %v4396, 7
    %v4398 = vsub.s32 3, %v4397
    %v4399 = vrot.slane %v4102, %v4398
    %4401 = vbcast.lane.b32.xlu0 %v4399, 256
    %v4402 = vpop.permute.xlu0 %4401
    %v4403 = vlaneseq
    %v4404 = vshrl.u32 %v4403, 7
    %v4405 = vsub.s32 4, %v4404
    %v4406 = vrot.slane %v4102, %v4405
    %4408 = vbcast.lane.b32.xlu0 %v4406, 256
    %v4409 = vpop.permute.xlu0 %4408
    %v4410 = vlaneseq
    %v4411 = vshrl.u32 %v4410, 7
    %v4412 = vsub.s32 5, %v4411
    %v4413 = vrot.slane %v4102, %v4412
    %4415 = vbcast.lane.b32.xlu0 %v4413, 256
    %v4416 = vpop.permute.xlu0 %4415
    %v4417 = vlaneseq
    %v4418 = vshrl.u32 %v4417, 7
    %v4419 = vsub.s32 6, %v4418
    %v4420 = vrot.slane %v4102, %v4419
    %4422 = vbcast.lane.b32.xlu0 %v4420, 256
    %v4423 = vpop.permute.xlu0 %4422
    %v4424 = vlaneseq
    %v4425 = vshrl.u32 %v4424, 7
    %v4426 = vsub.s32 7, %v4425
    %v4427 = vrot.slane %v4102, %v4426
    %4429 = vbcast.lane.b32.xlu0 %v4427, 256
    %v4430 = vpop.permute.xlu0 %4429
    %v4431 = vadd.f32 %v4381, %v50
    %v4432 = vadd.f32 %v4388, %v50
    %v4433 = vadd.f32 %v4395, %v50
    %v4434 = vadd.f32 %v4402, %v50
    %v4435 = vadd.f32 %v4409, %v50
    %v4436 = vadd.f32 %v4416, %v50
    %v4437 = vadd.f32 %v4423, %v50
    %v4438 = vadd.f32 %v4430, %v50
    %v4440 = vcombine.high %v1925, %v1925
    %v4442 = vunpack.c.l.s4 1966171168
    %v4443 = vunpack.c.0.s8 %v4442
    %v4444 = vlaneseq
    %v4445 = vshrl.u32 %v4444, 7
    %v4446 = vsub.s32 %v4443, %v4445
    %v4447 = vrot.slane %v1925, %v4446
    %v4449 = vunpack.c.l.s4 1966171168
    %v4450 = vunpack.c.0.s8 %v4449
    %v4451 = vlaneseq
    %v4452 = vshrl.u32 %v4451, 7
    %v4453 = vsub.s32 %v4450, %v4452
    %v4454 = vrot.slane %v4440, %v4453
    %v4455 = vcombine.high %v4447, %v4447
    %v4456 = vcombine.high %v4454, %v4454
    %v4458 = vunpack.c.l.s4 1966171168
    %v4459 = vunpack.c.0.s8 %v4458
    %v4460 = vlaneseq
    %v4461 = vshrl.u32 %v4460, 7
    %v4462 = vsub.s32 %v4459, %v4461
    %v4463 = vrot.slane %v4447, %v4462
    %v4465 = vunpack.c.l.s4 1966171168
    %v4466 = vunpack.c.0.s8 %v4465
    %v4467 = vlaneseq
    %v4468 = vshrl.u32 %v4467, 7
    %v4469 = vsub.s32 %v4466, %v4468
    %v4470 = vrot.slane %v4454, %v4469
    %v4472 = vunpack.c.l.s4 1966171168
    %v4473 = vunpack.c.0.s8 %v4472
    %v4474 = vlaneseq
    %v4475 = vshrl.u32 %v4474, 7
    %v4476 = vsub.s32 %v4473, %v4475
    %v4477 = vrot.slane %v4455, %v4476
    %v4479 = vunpack.c.l.s4 1966171168
    %v4480 = vunpack.c.0.s8 %v4479
    %v4481 = vlaneseq
    %v4482 = vshrl.u32 %v4481, 7
    %v4483 = vsub.s32 %v4480, %v4482
    %v4484 = vrot.slane %v4456, %v4483
    %v4485 = vcombine.high %v4463, %v4463
    %v4486 = vcombine.high %v4470, %v4470
    %v4487 = vcombine.high %v4477, %v4477
    %v4488 = vcombine.high %v4484, %v4484
    %v4489 = vlaneseq
    %v4490 = vshrl.u32 %v4489, 7
    %v4491 = vsub.s32 0, %v4490
    %v4492 = vrot.slane %v4463, %v4491
    %v4493 = vlaneseq
    %v4494 = vshrl.u32 %v4493, 7
    %v4495 = vsub.s32 0, %v4494
    %v4496 = vrot.slane %v4477, %v4495
    %v4497 = vlaneseq
    %v4498 = vshrl.u32 %v4497, 7
    %v4499 = vsub.s32 0, %v4498
    %v4500 = vrot.slane %v4485, %v4499
    %v4501 = vlaneseq
    %v4502 = vshrl.u32 %v4501, 7
    %v4503 = vsub.s32 0, %v4502
    %v4504 = vrot.slane %v4487, %v4503
    %v4505 = vlaneseq
    %v4506 = vshrl.u32 %v4505, 7
    %v4507 = vsub.s32 0, %v4506
    %v4508 = vrot.slane %v4470, %v4507
    %v4509 = vlaneseq
    %v4510 = vshrl.u32 %v4509, 7
    %v4511 = vsub.s32 0, %v4510
    %v4512 = vrot.slane %v4484, %v4511
    %v4513 = vlaneseq
    %v4514 = vshrl.u32 %v4513, 7
    %v4515 = vsub.s32 0, %v4514
    %v4516 = vrot.slane %v4486, %v4515
    %v4517 = vlaneseq
    %v4518 = vshrl.u32 %v4517, 7
    %v4519 = vsub.s32 0, %v4518
    %v4520 = vrot.slane %v4488, %v4519
    %v4529 = vadd.f32 %v4431, %v4492
    %v4530 = vadd.f32 %v4432, %v4496
    %v4531 = vadd.f32 %v4433, %v4500
    %v4532 = vadd.f32 %v4434, %v4504
    %v4533 = vadd.f32 %v4435, %v4508
    %v4534 = vadd.f32 %v4436, %v4512
    %v4535 = vadd.f32 %v4437, %v4516
    %v4536 = vadd.f32 %v4438, %v4520
    %v4537 = vsel %vm2399, %v4529, -inf
    %v4538 = vrot.slane %v4537, 4
    %v4539 = vmax.f32 %v4537, %v4538
    %v4540 = vrot.slane %v4539, 2
    %v4541 = vmax.f32 %v4539, %v4540
    %v4542 = vrot.slane %v4541, 1
    %v4543 = vmax.f32 %v4541, %v4542
    %v4544 = vsel %vm2399, %v4530, -inf
    %v4545 = vrot.slane %v4544, 4
    %v4546 = vmax.f32 %v4544, %v4545
    %v4547 = vrot.slane %v4546, 2
    %v4548 = vmax.f32 %v4546, %v4547
    %v4549 = vrot.slane %v4548, 1
    %v4550 = vmax.f32 %v4548, %v4549
    %v4551 = vsel %vm2399, %v4531, -inf
    %v4552 = vrot.slane %v4551, 4
    %v4553 = vmax.f32 %v4551, %v4552
    %v4554 = vrot.slane %v4553, 2
    %v4555 = vmax.f32 %v4553, %v4554
    %v4556 = vrot.slane %v4555, 1
    %v4557 = vmax.f32 %v4555, %v4556
    %v4558 = vsel %vm2399, %v4532, -inf
    %v4559 = vrot.slane %v4558, 4
    %v4560 = vmax.f32 %v4558, %v4559
    %v4561 = vrot.slane %v4560, 2
    %v4562 = vmax.f32 %v4560, %v4561
    %v4563 = vrot.slane %v4562, 1
    %v4564 = vmax.f32 %v4562, %v4563
    %v4565 = vsel %vm2399, %v4533, -inf
    %v4566 = vrot.slane %v4565, 4
    %v4567 = vmax.f32 %v4565, %v4566
    %v4568 = vrot.slane %v4567, 2
    %v4569 = vmax.f32 %v4567, %v4568
    %v4570 = vrot.slane %v4569, 1
    %v4571 = vmax.f32 %v4569, %v4570
    %v4572 = vsel %vm2399, %v4534, -inf
    %v4573 = vrot.slane %v4572, 4
    %v4574 = vmax.f32 %v4572, %v4573
    %v4575 = vrot.slane %v4574, 2
    %v4576 = vmax.f32 %v4574, %v4575
    %v4577 = vrot.slane %v4576, 1
    %v4578 = vmax.f32 %v4576, %v4577
    %v4579 = vsel %vm2399, %v4535, -inf
    %v4580 = vrot.slane %v4579, 4
    %v4581 = vmax.f32 %v4579, %v4580
    %v4582 = vrot.slane %v4581, 2
    %v4583 = vmax.f32 %v4581, %v4582
    %v4584 = vrot.slane %v4583, 1
    %v4585 = vmax.f32 %v4583, %v4584
    %v4586 = vsel %vm2399, %v4536, -inf
    %v4587 = vrot.slane %v4586, 4
    %v4588 = vmax.f32 %v4586, %v4587
    %v4589 = vrot.slane %v4588, 2
    %v4590 = vmax.f32 %v4588, %v4589
    %v4591 = vrot.slane %v4590, 1
    %v4592 = vmax.f32 %v4590, %v4591
    %v4593 = vsub.f32 %v4529, %v4543
    %v4594 = vsub.f32 %v4530, %v4550
    %v4595 = vsub.f32 %v4531, %v4557
    %v4596 = vsub.f32 %v4532, %v4564
    %v4597 = vsub.f32 %v4533, %v4571
    %v4598 = vsub.f32 %v4534, %v4578
    %v4599 = vsub.f32 %v4535, %v4585
    %v4600 = vsub.f32 %v4536, %v4592
    %v4601 = vmul.f32 %v4593, 1.442695
    %v4602 = vpow.pop %v4601
    %v4603 = vmul.f32 %v4594, 1.442695
    %v4604 = vpow.pop %v4603
    %v4605 = vmul.f32 %v4595, 1.442695
    %v4606 = vpow.pop %v4605
    %v4607 = vmul.f32 %v4596, 1.442695
    %v4608 = vpow.pop %v4607
    %v4609 = vmul.f32 %v4597, 1.442695
    %v4610 = vpow.pop %v4609
    %v4611 = vmul.f32 %v4598, 1.442695
    %v4612 = vpow.pop %v4611
    %v4613 = vmul.f32 %v4599, 1.442695
    %v4614 = vpow.pop %v4613
    %v4615 = vmul.f32 %v4600, 1.442695
    %v4616 = vpow.pop %v4615
    %v4617 = vsel %vm2399, %v4602, 0.0
    %v4618 = vrot.slane %v4617, 4
    %v4619 = vadd.f32 %v4617, %v4618
    %v4620 = vrot.slane %v4619, 2
    %v4621 = vadd.f32 %v4619, %v4620
    %v4622 = vrot.slane %v4621, 1
    %v4623 = vadd.f32 %v4621, %v4622
    %v4624 = vsel %vm2399, %v4604, 0.0
    %v4625 = vrot.slane %v4624, 4
    %v4626 = vadd.f32 %v4624, %v4625
    %v4627 = vrot.slane %v4626, 2
    %v4628 = vadd.f32 %v4626, %v4627
    %v4629 = vrot.slane %v4628, 1
    %v4630 = vadd.f32 %v4628, %v4629
    %v4631 = vsel %vm2399, %v4606, 0.0
    %v4632 = vrot.slane %v4631, 4
    %v4633 = vadd.f32 %v4631, %v4632
    %v4634 = vrot.slane %v4633, 2
    %v4635 = vadd.f32 %v4633, %v4634
    %v4636 = vrot.slane %v4635, 1
    %v4637 = vadd.f32 %v4635, %v4636
    %v4638 = vsel %vm2399, %v4608, 0.0
    %v4639 = vrot.slane %v4638, 4
    %v4640 = vadd.f32 %v4638, %v4639
    %v4641 = vrot.slane %v4640, 2
    %v4642 = vadd.f32 %v4640, %v4641
    %v4643 = vrot.slane %v4642, 1
    %v4644 = vadd.f32 %v4642, %v4643
    %v4645 = vsel %vm2399, %v4610, 0.0
    %v4646 = vrot.slane %v4645, 4
    %v4647 = vadd.f32 %v4645, %v4646
    %v4648 = vrot.slane %v4647, 2
    %v4649 = vadd.f32 %v4647, %v4648
    %v4650 = vrot.slane %v4649, 1
    %v4651 = vadd.f32 %v4649, %v4650
    %v4652 = vsel %vm2399, %v4612, 0.0
    %v4653 = vrot.slane %v4652, 4
    %v4654 = vadd.f32 %v4652, %v4653
    %v4655 = vrot.slane %v4654, 2
    %v4656 = vadd.f32 %v4654, %v4655
    %v4657 = vrot.slane %v4656, 1
    %v4658 = vadd.f32 %v4656, %v4657
    %v4659 = vsel %vm2399, %v4614, 0.0
    %v4660 = vrot.slane %v4659, 4
    %v4661 = vadd.f32 %v4659, %v4660
    %v4662 = vrot.slane %v4661, 2
    %v4663 = vadd.f32 %v4661, %v4662
    %v4664 = vrot.slane %v4663, 1
    %v4665 = vadd.f32 %v4663, %v4664
    %v4666 = vsel %vm2399, %v4616, 0.0
    %v4667 = vrot.slane %v4666, 4
    %v4668 = vadd.f32 %v4666, %v4667
    %v4669 = vrot.slane %v4668, 2
    %v4670 = vadd.f32 %v4668, %v4669
    %v4671 = vrot.slane %v4670, 1
    %v4672 = vadd.f32 %v4670, %v4671
    %v4673 = vlog2.pop %v4623
    %v4674 = vmul.f32 %v4673, 0.6931472
    %v4675 = vlog2.pop %v4630
    %v4676 = vmul.f32 %v4675, 0.6931472
    %v4677 = vlog2.pop %v4637
    %v4678 = vmul.f32 %v4677, 0.6931472
    %v4679 = vlog2.pop %v4644
    %v4680 = vmul.f32 %v4679, 0.6931472
    %v4681 = vlog2.pop %v4651
    %v4682 = vmul.f32 %v4681, 0.6931472
    %v4683 = vlog2.pop %v4658
    %v4684 = vmul.f32 %v4683, 0.6931472
    %v4685 = vlog2.pop %v4665
    %v4686 = vmul.f32 %v4685, 0.6931472
    %v4687 = vlog2.pop %v4672
    %v4688 = vmul.f32 %v4687, 0.6931472
    %v4689 = vadd.f32 %v4543, %v4674
    %v4690 = vadd.f32 %v4550, %v4676
    %v4691 = vadd.f32 %v4557, %v4678
    %v4692 = vadd.f32 %v4564, %v4680
    %v4693 = vadd.f32 %v4571, %v4682
    %v4694 = vadd.f32 %v4578, %v4684
    %v4695 = vadd.f32 %v4585, %v4686
    %v4696 = vadd.f32 %v4592, %v4688
    %v4697 = vsel %vm4374, 1, 0
    %4698 = vset.pattern.permute.xlu0 0
    %4699 = vperm.xlu0 %4698, %v4697
    %v4700 = vpop.permute.xlu0 %4699
    %vm4701 = vcmp.eq.s32.totalorder %v4700, 1
    %v4710 = vsel %vm2919, %v4690, %v4689
    %v4711 = vsel %vm2921, %v4691, %v4710
    %v4712 = vsel %vm2923, %v4692, %v4711
    %v4713 = vsel %vm2925, %v4693, %v4712
    %v4714 = vsel %vm2927, %v4694, %v4713
    %v4715 = vsel %vm2929, %v4695, %v4714
    %v4716 = vsel %vm2931, %v4696, %v4715
    %v4718 = vsel %vm4701, %v4716, %v4102
    %v4719 = vlaneseq
    %v4720 = vshrl.u32 %v4719, 7
    %v4721 = vsub.s32 0, %v4720
    %v4722 = vrot.slane %v4365, %v4721
    %4724 = vbcast.lane.b32.xlu0 %v4722, 256
    %v4725 = vpop.permute.xlu0 %4724
    %v4726 = vlaneseq
    %v4727 = vshrl.u32 %v4726, 7
    %v4728 = vsub.s32 1, %v4727
    %v4729 = vrot.slane %v4365, %v4728
    %4731 = vbcast.lane.b32.xlu0 %v4729, 256
    %v4732 = vpop.permute.xlu0 %4731
    %v4733 = vlaneseq
    %v4734 = vshrl.u32 %v4733, 7
    %v4735 = vsub.s32 2, %v4734
    %v4736 = vrot.slane %v4365, %v4735
    %4738 = vbcast.lane.b32.xlu0 %v4736, 256
    %v4739 = vpop.permute.xlu0 %4738
    %v4740 = vlaneseq
    %v4741 = vshrl.u32 %v4740, 7
    %v4742 = vsub.s32 3, %v4741
    %v4743 = vrot.slane %v4365, %v4742
    %4745 = vbcast.lane.b32.xlu0 %v4743, 256
    %v4746 = vpop.permute.xlu0 %4745
    %v4747 = vlaneseq
    %v4748 = vshrl.u32 %v4747, 7
    %v4749 = vsub.s32 4, %v4748
    %v4750 = vrot.slane %v4365, %v4749
    %4752 = vbcast.lane.b32.xlu0 %v4750, 256
    %v4753 = vpop.permute.xlu0 %4752
    %v4754 = vlaneseq
    %v4755 = vshrl.u32 %v4754, 7
    %v4756 = vsub.s32 5, %v4755
    %v4757 = vrot.slane %v4365, %v4756
    %4759 = vbcast.lane.b32.xlu0 %v4757, 256
    %v4760 = vpop.permute.xlu0 %4759
    %v4761 = vlaneseq
    %v4762 = vshrl.u32 %v4761, 7
    %v4763 = vsub.s32 6, %v4762
    %v4764 = vrot.slane %v4365, %v4763
    %4766 = vbcast.lane.b32.xlu0 %v4764, 256
    %v4767 = vpop.permute.xlu0 %4766
    %v4768 = vlaneseq
    %v4769 = vshrl.u32 %v4768, 7
    %v4770 = vsub.s32 7, %v4769
    %v4771 = vrot.slane %v4365, %v4770
    %4773 = vbcast.lane.b32.xlu0 %v4771, 256
    %v4774 = vpop.permute.xlu0 %4773
    %v4775 = vadd.f32 %v4725, %v50
    %v4776 = vadd.f32 %v4732, %v50
    %v4777 = vadd.f32 %v4739, %v50
    %v4778 = vadd.f32 %v4746, %v50
    %v4779 = vadd.f32 %v4753, %v50
    %v4780 = vadd.f32 %v4760, %v50
    %v4781 = vadd.f32 %v4767, %v50
    %v4782 = vadd.f32 %v4774, %v50
    %v4783 = vsel %vm2399, %v4775, -inf
    %v4784 = vrot.slane %v4783, 4
    %v4785 = vmax.f32 %v4783, %v4784
    %v4786 = vrot.slane %v4785, 2
    %v4787 = vmax.f32 %v4785, %v4786
    %v4788 = vrot.slane %v4787, 1
    %v4789 = vmax.f32 %v4787, %v4788
    %v4790 = vsel %vm2399, %v4776, -inf
    %v4791 = vrot.slane %v4790, 4
    %v4792 = vmax.f32 %v4790, %v4791
    %v4793 = vrot.slane %v4792, 2
    %v4794 = vmax.f32 %v4792, %v4793
    %v4795 = vrot.slane %v4794, 1
    %v4796 = vmax.f32 %v4794, %v4795
    %v4797 = vsel %vm2399, %v4777, -inf
    %v4798 = vrot.slane %v4797, 4
    %v4799 = vmax.f32 %v4797, %v4798
    %v4800 = vrot.slane %v4799, 2
    %v4801 = vmax.f32 %v4799, %v4800
    %v4802 = vrot.slane %v4801, 1
    %v4803 = vmax.f32 %v4801, %v4802
    %v4804 = vsel %vm2399, %v4778, -inf
    %v4805 = vrot.slane %v4804, 4
    %v4806 = vmax.f32 %v4804, %v4805
    %v4807 = vrot.slane %v4806, 2
    %v4808 = vmax.f32 %v4806, %v4807
    %v4809 = vrot.slane %v4808, 1
    %v4810 = vmax.f32 %v4808, %v4809
    %v4811 = vsel %vm2399, %v4779, -inf
    %v4812 = vrot.slane %v4811, 4
    %v4813 = vmax.f32 %v4811, %v4812
    %v4814 = vrot.slane %v4813, 2
    %v4815 = vmax.f32 %v4813, %v4814
    %v4816 = vrot.slane %v4815, 1
    %v4817 = vmax.f32 %v4815, %v4816
    %v4818 = vsel %vm2399, %v4780, -inf
    %v4819 = vrot.slane %v4818, 4
    %v4820 = vmax.f32 %v4818, %v4819
    %v4821 = vrot.slane %v4820, 2
    %v4822 = vmax.f32 %v4820, %v4821
    %v4823 = vrot.slane %v4822, 1
    %v4824 = vmax.f32 %v4822, %v4823
    %v4825 = vsel %vm2399, %v4781, -inf
    %v4826 = vrot.slane %v4825, 4
    %v4827 = vmax.f32 %v4825, %v4826
    %v4828 = vrot.slane %v4827, 2
    %v4829 = vmax.f32 %v4827, %v4828
    %v4830 = vrot.slane %v4829, 1
    %v4831 = vmax.f32 %v4829, %v4830
    %v4832 = vsel %vm2399, %v4782, -inf
    %v4833 = vrot.slane %v4832, 4
    %v4834 = vmax.f32 %v4832, %v4833
    %v4835 = vrot.slane %v4834, 2
    %v4836 = vmax.f32 %v4834, %v4835
    %v4837 = vrot.slane %v4836, 1
    %v4838 = vmax.f32 %v4836, %v4837
    %vm4839 = vcmp.ge.f32.partialorder %v4775, %v4789
    %vm4840 = vcmp.ge.f32.partialorder %v4776, %v4796
    %vm4841 = vcmp.ge.f32.partialorder %v4777, %v4803
    %vm4842 = vcmp.ge.f32.partialorder %v4778, %v4810
    %vm4843 = vcmp.ge.f32.partialorder %v4779, %v4817
    %vm4844 = vcmp.ge.f32.partialorder %v4780, %v4824
    %vm4845 = vcmp.ge.f32.partialorder %v4781, %v4831
    %vm4846 = vcmp.ge.f32.partialorder %v4782, %v4838
    %v4847 = vsel %vm4839, %v2579, 1073741824
    %v4848 = vsel %vm4840, %v2579, 1073741824
    %v4849 = vsel %vm4841, %v2579, 1073741824
    %v4850 = vsel %vm4842, %v2579, 1073741824
    %v4851 = vsel %vm4843, %v2579, 1073741824
    %v4852 = vsel %vm4844, %v2579, 1073741824
    %v4853 = vsel %vm4845, %v2579, 1073741824
    %v4854 = vsel %vm4846, %v2579, 1073741824
    %v4855 = vsel %vm2399, %v4847, 2147483647
    %v4856 = vrot.slane %v4855, 4
    %vm4857 = vcmp.lt.s32.totalorder %v4855, %v4856
    %v4858 = vsel %vm4857, %v4855, %v4856
    %v4859 = vrot.slane %v4858, 2
    %vm4860 = vcmp.lt.s32.totalorder %v4858, %v4859
    %v4861 = vsel %vm4860, %v4858, %v4859
    %v4862 = vrot.slane %v4861, 1
    %vm4863 = vcmp.lt.s32.totalorder %v4861, %v4862
    %v4864 = vsel %vm4863, %v4861, %v4862
    %v4865 = vsel %vm2399, %v4848, 2147483647
    %v4866 = vrot.slane %v4865, 4
    %vm4867 = vcmp.lt.s32.totalorder %v4865, %v4866
    %v4868 = vsel %vm4867, %v4865, %v4866
    %v4869 = vrot.slane %v4868, 2
    %vm4870 = vcmp.lt.s32.totalorder %v4868, %v4869
    %v4871 = vsel %vm4870, %v4868, %v4869
    %v4872 = vrot.slane %v4871, 1
    %vm4873 = vcmp.lt.s32.totalorder %v4871, %v4872
    %v4874 = vsel %vm4873, %v4871, %v4872
    %v4875 = vsel %vm2399, %v4849, 2147483647
    %v4876 = vrot.slane %v4875, 4
    %vm4877 = vcmp.lt.s32.totalorder %v4875, %v4876
    %v4878 = vsel %vm4877, %v4875, %v4876
    %v4879 = vrot.slane %v4878, 2
    %vm4880 = vcmp.lt.s32.totalorder %v4878, %v4879
    %v4881 = vsel %vm4880, %v4878, %v4879
    %v4882 = vrot.slane %v4881, 1
    %vm4883 = vcmp.lt.s32.totalorder %v4881, %v4882
    %v4884 = vsel %vm4883, %v4881, %v4882
    %v4885 = vsel %vm2399, %v4850, 2147483647
    %v4886 = vrot.slane %v4885, 4
    %vm4887 = vcmp.lt.s32.totalorder %v4885, %v4886
    %v4888 = vsel %vm4887, %v4885, %v4886
    %v4889 = vrot.slane %v4888, 2
    %vm4890 = vcmp.lt.s32.totalorder %v4888, %v4889
    %v4891 = vsel %vm4890, %v4888, %v4889
    %v4892 = vrot.slane %v4891, 1
    %vm4893 = vcmp.lt.s32.totalorder %v4891, %v4892
    %v4894 = vsel %vm4893, %v4891, %v4892
    %v4895 = vsel %vm2399, %v4851, 2147483647
    %v4896 = vrot.slane %v4895, 4
    %vm4897 = vcmp.lt.s32.totalorder %v4895, %v4896
    %v4898 = vsel %vm4897, %v4895, %v4896
    %v4899 = vrot.slane %v4898, 2
    %vm4900 = vcmp.lt.s32.totalorder %v4898, %v4899
    %v4901 = vsel %vm4900, %v4898, %v4899
    %v4902 = vrot.slane %v4901, 1
    %vm4903 = vcmp.lt.s32.totalorder %v4901, %v4902
    %v4904 = vsel %vm4903, %v4901, %v4902
    %v4905 = vsel %vm2399, %v4852, 2147483647
    %v4906 = vrot.slane %v4905, 4
    %vm4907 = vcmp.lt.s32.totalorder %v4905, %v4906
    %v4908 = vsel %vm4907, %v4905, %v4906
    %v4909 = vrot.slane %v4908, 2
    %vm4910 = vcmp.lt.s32.totalorder %v4908, %v4909
    %v4911 = vsel %vm4910, %v4908, %v4909
    %v4912 = vrot.slane %v4911, 1
    %vm4913 = vcmp.lt.s32.totalorder %v4911, %v4912
    %v4914 = vsel %vm4913, %v4911, %v4912
    %v4915 = vsel %vm2399, %v4853, 2147483647
    %v4916 = vrot.slane %v4915, 4
    %vm4917 = vcmp.lt.s32.totalorder %v4915, %v4916
    %v4918 = vsel %vm4917, %v4915, %v4916
    %v4919 = vrot.slane %v4918, 2
    %vm4920 = vcmp.lt.s32.totalorder %v4918, %v4919
    %v4921 = vsel %vm4920, %v4918, %v4919
    %v4922 = vrot.slane %v4921, 1
    %vm4923 = vcmp.lt.s32.totalorder %v4921, %v4922
    %v4924 = vsel %vm4923, %v4921, %v4922
    %v4925 = vsel %vm2399, %v4854, 2147483647
    %v4926 = vrot.slane %v4925, 4
    %vm4927 = vcmp.lt.s32.totalorder %v4925, %v4926
    %v4928 = vsel %vm4927, %v4925, %v4926
    %v4929 = vrot.slane %v4928, 2
    %vm4930 = vcmp.lt.s32.totalorder %v4928, %v4929
    %v4931 = vsel %vm4930, %v4928, %v4929
    %v4932 = vrot.slane %v4931, 1
    %vm4933 = vcmp.lt.s32.totalorder %v4931, %v4932
    %v4934 = vsel %vm4933, %v4931, %v4932
    %v4935 = vrot.slane %v1925, 1
    %v4936 = vrot.slane %v1925, 2
    %v4937 = vrot.slane %v1925, 3
    %v4938 = vrot.slane %v1925, 4
    %v4939 = vrot.slane %v1925, 5
    %v4940 = vrot.slane %v1925, 6
    %v4941 = vrot.slane %v1925, 7
    %v4950 = vadd.f32 %v4789, %v1925
    %v4951 = vadd.f32 %v4796, %v4935
    %v4952 = vadd.f32 %v4803, %v4936
    %v4953 = vadd.f32 %v4810, %v4937
    %v4954 = vadd.f32 %v4817, %v4938
    %v4955 = vadd.f32 %v4824, %v4939
    %v4956 = vadd.f32 %v4831, %v4940
    %v4957 = vadd.f32 %v4838, %v4941
    %v4966 = vrot.slane %v4951, 7
    %v4967 = vsel %vm2919, %v4966, %v4950
    %v4968 = vrot.slane %v4952, 6
    %v4969 = vsel %vm2921, %v4968, %v4967
    %v4970 = vrot.slane %v4953, 5
    %v4971 = vsel %vm2923, %v4970, %v4969
    %v4972 = vrot.slane %v4954, 4
    %v4973 = vsel %vm2925, %v4972, %v4971
    %v4974 = vrot.slane %v4955, 3
    %v4975 = vsel %vm2927, %v4974, %v4973
    %v4976 = vrot.slane %v4956, 2
    %v4977 = vsel %vm2929, %v4976, %v4975
    %v4978 = vrot.slane %v4957, 1
    %v4979 = vsel %vm2931, %v4978, %v4977
    %v4981 = vsel %vm4701, %v4979, %v4365
    %v4982 = vsel %vm2919, %v4874, %v4864
    %v4983 = vsel %vm2921, %v4884, %v4982
    %v4984 = vsel %vm2923, %v4894, %v4983
    %v4985 = vsel %vm2925, %v4904, %v4984
    %v4986 = vsel %vm2927, %v4914, %v4985
    %v4987 = vsel %vm2929, %v4924, %v4986
    %v4988 = vsel %vm2931, %v4934, %v4987
    %v4989 = vsel %vm4701, %v4988, %v2581
    %vm4990 = vcmp.gt.f32.partialorder %v66, 0.5
    %v4991 = vlaneseq
    %v4992 = vshrl.u32 %v4991, 7
    %v4993 = vsub.s32 0, %v4992
    %v4994 = vrot.slane %v4718, %v4993
    %4996 = vbcast.lane.b32.xlu0 %v4994, 256
    %v4997 = vpop.permute.xlu0 %4996
    %v4998 = vlaneseq
    %v4999 = vshrl.u32 %v4998, 7
    %v5000 = vsub.s32 1, %v4999
    %v5001 = vrot.slane %v4718, %v5000
    %5003 = vbcast.lane.b32.xlu0 %v5001, 256
    %v5004 = vpop.permute.xlu0 %5003
    %v5005 = vlaneseq
    %v5006 = vshrl.u32 %v5005, 7
    %v5007 = vsub.s32 2, %v5006
    %v5008 = vrot.slane %v4718, %v5007
    %5010 = vbcast.lane.b32.xlu0 %v5008, 256
    %v5011 = vpop.permute.xlu0 %5010
    %v5012 = vlaneseq
    %v5013 = vshrl.u32 %v5012, 7
    %v5014 = vsub.s32 3, %v5013
    %v5015 = vrot.slane %v4718, %v5014
    %5017 = vbcast.lane.b32.xlu0 %v5015, 256
    %v5018 = vpop.permute.xlu0 %5017
    %v5019 = vlaneseq
    %v5020 = vshrl.u32 %v5019, 7
    %v5021 = vsub.s32 4, %v5020
    %v5022 = vrot.slane %v4718, %v5021
    %5024 = vbcast.lane.b32.xlu0 %v5022, 256
    %v5025 = vpop.permute.xlu0 %5024
    %v5026 = vlaneseq
    %v5027 = vshrl.u32 %v5026, 7
    %v5028 = vsub.s32 5, %v5027
    %v5029 = vrot.slane %v4718, %v5028
    %5031 = vbcast.lane.b32.xlu0 %v5029, 256
    %v5032 = vpop.permute.xlu0 %5031
    %v5033 = vlaneseq
    %v5034 = vshrl.u32 %v5033, 7
    %v5035 = vsub.s32 6, %v5034
    %v5036 = vrot.slane %v4718, %v5035
    %5038 = vbcast.lane.b32.xlu0 %v5036, 256
    %v5039 = vpop.permute.xlu0 %5038
    %v5040 = vlaneseq
    %v5041 = vshrl.u32 %v5040, 7
    %v5042 = vsub.s32 7, %v5041
    %v5043 = vrot.slane %v4718, %v5042
    %5045 = vbcast.lane.b32.xlu0 %v5043, 256
    %v5046 = vpop.permute.xlu0 %5045
    %v5047 = vadd.f32 %v4997, %v50
    %v5048 = vadd.f32 %v5004, %v50
    %v5049 = vadd.f32 %v5011, %v50
    %v5050 = vadd.f32 %v5018, %v50
    %v5051 = vadd.f32 %v5025, %v50
    %v5052 = vadd.f32 %v5032, %v50
    %v5053 = vadd.f32 %v5039, %v50
    %v5054 = vadd.f32 %v5046, %v50
    %v5056 = vcombine.high %v2072, %v2072
    %v5058 = vunpack.c.l.s4 1966171168
    %v5059 = vunpack.c.0.s8 %v5058
    %v5060 = vlaneseq
    %v5061 = vshrl.u32 %v5060, 7
    %v5062 = vsub.s32 %v5059, %v5061
    %v5063 = vrot.slane %v2072, %v5062
    %v5065 = vunpack.c.l.s4 1966171168
    %v5066 = vunpack.c.0.s8 %v5065
    %v5067 = vlaneseq
    %v5068 = vshrl.u32 %v5067, 7
    %v5069 = vsub.s32 %v5066, %v5068
    %v5070 = vrot.slane %v5056, %v5069
    %v5071 = vcombine.high %v5063, %v5063
    %v5072 = vcombine.high %v5070, %v5070
    %v5074 = vunpack.c.l.s4 1966171168
    %v5075 = vunpack.c.0.s8 %v5074
    %v5076 = vlaneseq
    %v5077 = vshrl.u32 %v5076, 7
    %v5078 = vsub.s32 %v5075, %v5077
    %v5079 = vrot.slane %v5063, %v5078
    %v5081 = vunpack.c.l.s4 1966171168
    %v5082 = vunpack.c.0.s8 %v5081
    %v5083 = vlaneseq
    %v5084 = vshrl.u32 %v5083, 7
    %v5085 = vsub.s32 %v5082, %v5084
    %v5086 = vrot.slane %v5070, %v5085
    %v5088 = vunpack.c.l.s4 1966171168
    %v5089 = vunpack.c.0.s8 %v5088
    %v5090 = vlaneseq
    %v5091 = vshrl.u32 %v5090, 7
    %v5092 = vsub.s32 %v5089, %v5091
    %v5093 = vrot.slane %v5071, %v5092
    %v5095 = vunpack.c.l.s4 1966171168
    %v5096 = vunpack.c.0.s8 %v5095
    %v5097 = vlaneseq
    %v5098 = vshrl.u32 %v5097, 7
    %v5099 = vsub.s32 %v5096, %v5098
    %v5100 = vrot.slane %v5072, %v5099
    %v5101 = vcombine.high %v5079, %v5079
    %v5102 = vcombine.high %v5086, %v5086
    %v5103 = vcombine.high %v5093, %v5093
    %v5104 = vcombine.high %v5100, %v5100
    %v5105 = vlaneseq
    %v5106 = vshrl.u32 %v5105, 7
    %v5107 = vsub.s32 0, %v5106
    %v5108 = vrot.slane %v5079, %v5107
    %v5109 = vlaneseq
    %v5110 = vshrl.u32 %v5109, 7
    %v5111 = vsub.s32 0, %v5110
    %v5112 = vrot.slane %v5093, %v5111
    %v5113 = vlaneseq
    %v5114 = vshrl.u32 %v5113, 7
    %v5115 = vsub.s32 0, %v5114
    %v5116 = vrot.slane %v5101, %v5115
    %v5117 = vlaneseq
    %v5118 = vshrl.u32 %v5117, 7
    %v5119 = vsub.s32 0, %v5118
    %v5120 = vrot.slane %v5103, %v5119
    %v5121 = vlaneseq
    %v5122 = vshrl.u32 %v5121, 7
    %v5123 = vsub.s32 0, %v5122
    %v5124 = vrot.slane %v5086, %v5123
    %v5125 = vlaneseq
    %v5126 = vshrl.u32 %v5125, 7
    %v5127 = vsub.s32 0, %v5126
    %v5128 = vrot.slane %v5100, %v5127
    %v5129 = vlaneseq
    %v5130 = vshrl.u32 %v5129, 7
    %v5131 = vsub.s32 0, %v5130
    %v5132 = vrot.slane %v5102, %v5131
    %v5133 = vlaneseq
    %v5134 = vshrl.u32 %v5133, 7
    %v5135 = vsub.s32 0, %v5134
    %v5136 = vrot.slane %v5104, %v5135
    %v5145 = vadd.f32 %v5047, %v5108
    %v5146 = vadd.f32 %v5048, %v5112
    %v5147 = vadd.f32 %v5049, %v5116
    %v5148 = vadd.f32 %v5050, %v5120
    %v5149 = vadd.f32 %v5051, %v5124
    %v5150 = vadd.f32 %v5052, %v5128
    %v5151 = vadd.f32 %v5053, %v5132
    %v5152 = vadd.f32 %v5054, %v5136
    %v5153 = vsel %vm2399, %v5145, -inf
    %v5154 = vrot.slane %v5153, 4
    %v5155 = vmax.f32 %v5153, %v5154
    %v5156 = vrot.slane %v5155, 2
    %v5157 = vmax.f32 %v5155, %v5156
    %v5158 = vrot.slane %v5157, 1
    %v5159 = vmax.f32 %v5157, %v5158
    %v5160 = vsel %vm2399, %v5146, -inf
    %v5161 = vrot.slane %v5160, 4
    %v5162 = vmax.f32 %v5160, %v5161
    %v5163 = vrot.slane %v5162, 2
    %v5164 = vmax.f32 %v5162, %v5163
    %v5165 = vrot.slane %v5164, 1
    %v5166 = vmax.f32 %v5164, %v5165
    %v5167 = vsel %vm2399, %v5147, -inf
    %v5168 = vrot.slane %v5167, 4
    %v5169 = vmax.f32 %v5167, %v5168
    %v5170 = vrot.slane %v5169, 2
    %v5171 = vmax.f32 %v5169, %v5170
    %v5172 = vrot.slane %v5171, 1
    %v5173 = vmax.f32 %v5171, %v5172
    %v5174 = vsel %vm2399, %v5148, -inf
    %v5175 = vrot.slane %v5174, 4
    %v5176 = vmax.f32 %v5174, %v5175
    %v5177 = vrot.slane %v5176, 2
    %v5178 = vmax.f32 %v5176, %v5177
    %v5179 = vrot.slane %v5178, 1
    %v5180 = vmax.f32 %v5178, %v5179
    %v5181 = vsel %vm2399, %v5149, -inf
    %v5182 = vrot.slane %v5181, 4
    %v5183 = vmax.f32 %v5181, %v5182
    %v5184 = vrot.slane %v5183, 2
    %v5185 = vmax.f32 %v5183, %v5184
    %v5186 = vrot.slane %v5185, 1
    %v5187 = vmax.f32 %v5185, %v5186
    %v5188 = vsel %vm2399, %v5150, -inf
    %v5189 = vrot.slane %v5188, 4
    %v5190 = vmax.f32 %v5188, %v5189
    %v5191 = vrot.slane %v5190, 2
    %v5192 = vmax.f32 %v5190, %v5191
    %v5193 = vrot.slane %v5192, 1
    %v5194 = vmax.f32 %v5192, %v5193
    %v5195 = vsel %vm2399, %v5151, -inf
    %v5196 = vrot.slane %v5195, 4
    %v5197 = vmax.f32 %v5195, %v5196
    %v5198 = vrot.slane %v5197, 2
    %v5199 = vmax.f32 %v5197, %v5198
    %v5200 = vrot.slane %v5199, 1
    %v5201 = vmax.f32 %v5199, %v5200
    %v5202 = vsel %vm2399, %v5152, -inf
    %v5203 = vrot.slane %v5202, 4
    %v5204 = vmax.f32 %v5202, %v5203
    %v5205 = vrot.slane %v5204, 2
    %v5206 = vmax.f32 %v5204, %v5205
    %v5207 = vrot.slane %v5206, 1
    %v5208 = vmax.f32 %v5206, %v5207
    %v5209 = vsub.f32 %v5145, %v5159
    %v5210 = vsub.f32 %v5146, %v5166
    %v5211 = vsub.f32 %v5147, %v5173
    %v5212 = vsub.f32 %v5148, %v5180
    %v5213 = vsub.f32 %v5149, %v5187
    %v5214 = vsub.f32 %v5150, %v5194
    %v5215 = vsub.f32 %v5151, %v5201
    %v5216 = vsub.f32 %v5152, %v5208
    %v5217 = vmul.f32 %v5209, 1.442695
    %v5218 = vpow.pop %v5217
    %v5219 = vmul.f32 %v5210, 1.442695
    %v5220 = vpow.pop %v5219
    %v5221 = vmul.f32 %v5211, 1.442695
    %v5222 = vpow.pop %v5221
    %v5223 = vmul.f32 %v5212, 1.442695
    %v5224 = vpow.pop %v5223
    %v5225 = vmul.f32 %v5213, 1.442695
    %v5226 = vpow.pop %v5225
    %v5227 = vmul.f32 %v5214, 1.442695
    %v5228 = vpow.pop %v5227
    %v5229 = vmul.f32 %v5215, 1.442695
    %v5230 = vpow.pop %v5229
    %v5231 = vmul.f32 %v5216, 1.442695
    %v5232 = vpow.pop %v5231
    %v5233 = vsel %vm2399, %v5218, 0.0
    %v5234 = vrot.slane %v5233, 4
    %v5235 = vadd.f32 %v5233, %v5234
    %v5236 = vrot.slane %v5235, 2
    %v5237 = vadd.f32 %v5235, %v5236
    %v5238 = vrot.slane %v5237, 1
    %v5239 = vadd.f32 %v5237, %v5238
    %v5240 = vsel %vm2399, %v5220, 0.0
    %v5241 = vrot.slane %v5240, 4
    %v5242 = vadd.f32 %v5240, %v5241
    %v5243 = vrot.slane %v5242, 2
    %v5244 = vadd.f32 %v5242, %v5243
    %v5245 = vrot.slane %v5244, 1
    %v5246 = vadd.f32 %v5244, %v5245
    %v5247 = vsel %vm2399, %v5222, 0.0
    %v5248 = vrot.slane %v5247, 4
    %v5249 = vadd.f32 %v5247, %v5248
    %v5250 = vrot.slane %v5249, 2
    %v5251 = vadd.f32 %v5249, %v5250
    %v5252 = vrot.slane %v5251, 1
    %v5253 = vadd.f32 %v5251, %v5252
    %v5254 = vsel %vm2399, %v5224, 0.0
    %v5255 = vrot.slane %v5254, 4
    %v5256 = vadd.f32 %v5254, %v5255
    %v5257 = vrot.slane %v5256, 2
    %v5258 = vadd.f32 %v5256, %v5257
    %v5259 = vrot.slane %v5258, 1
    %v5260 = vadd.f32 %v5258, %v5259
    %v5261 = vsel %vm2399, %v5226, 0.0
    %v5262 = vrot.slane %v5261, 4
    %v5263 = vadd.f32 %v5261, %v5262
    %v5264 = vrot.slane %v5263, 2
    %v5265 = vadd.f32 %v5263, %v5264
    %v5266 = vrot.slane %v5265, 1
    %v5267 = vadd.f32 %v5265, %v5266
    %v5268 = vsel %vm2399, %v5228, 0.0
    %v5269 = vrot.slane %v5268, 4
    %v5270 = vadd.f32 %v5268, %v5269
    %v5271 = vrot.slane %v5270, 2
    %v5272 = vadd.f32 %v5270, %v5271
    %v5273 = vrot.slane %v5272, 1
    %v5274 = vadd.f32 %v5272, %v5273
    %v5275 = vsel %vm2399, %v5230, 0.0
    %v5276 = vrot.slane %v5275, 4
    %v5277 = vadd.f32 %v5275, %v5276
    %v5278 = vrot.slane %v5277, 2
    %v5279 = vadd.f32 %v5277, %v5278
    %v5280 = vrot.slane %v5279, 1
    %v5281 = vadd.f32 %v5279, %v5280
    %v5282 = vsel %vm2399, %v5232, 0.0
    %v5283 = vrot.slane %v5282, 4
    %v5284 = vadd.f32 %v5282, %v5283
    %v5285 = vrot.slane %v5284, 2
    %v5286 = vadd.f32 %v5284, %v5285
    %v5287 = vrot.slane %v5286, 1
    %v5288 = vadd.f32 %v5286, %v5287
    %v5289 = vlog2.pop %v5239
    %v5290 = vmul.f32 %v5289, 0.6931472
    %v5291 = vlog2.pop %v5246
    %v5292 = vmul.f32 %v5291, 0.6931472
    %v5293 = vlog2.pop %v5253
    %v5294 = vmul.f32 %v5293, 0.6931472
    %v5295 = vlog2.pop %v5260
    %v5296 = vmul.f32 %v5295, 0.6931472
    %v5297 = vlog2.pop %v5267
    %v5298 = vmul.f32 %v5297, 0.6931472
    %v5299 = vlog2.pop %v5274
    %v5300 = vmul.f32 %v5299, 0.6931472
    %v5301 = vlog2.pop %v5281
    %v5302 = vmul.f32 %v5301, 0.6931472
    %v5303 = vlog2.pop %v5288
    %v5304 = vmul.f32 %v5303, 0.6931472
    %v5305 = vadd.f32 %v5159, %v5290
    %v5306 = vadd.f32 %v5166, %v5292
    %v5307 = vadd.f32 %v5173, %v5294
    %v5308 = vadd.f32 %v5180, %v5296
    %v5309 = vadd.f32 %v5187, %v5298
    %v5310 = vadd.f32 %v5194, %v5300
    %v5311 = vadd.f32 %v5201, %v5302
    %v5312 = vadd.f32 %v5208, %v5304
    %v5313 = vsel %vm4990, 1, 0
    %5314 = vset.pattern.permute.xlu0 0
    %5315 = vperm.xlu0 %5314, %v5313
    %v5316 = vpop.permute.xlu0 %5315
    %vm5317 = vcmp.eq.s32.totalorder %v5316, 1
    %v5326 = vsel %vm2919, %v5306, %v5305
    %v5327 = vsel %vm2921, %v5307, %v5326
    %v5328 = vsel %vm2923, %v5308, %v5327
    %v5329 = vsel %vm2925, %v5309, %v5328
    %v5330 = vsel %vm2927, %v5310, %v5329
    %v5331 = vsel %vm2929, %v5311, %v5330
    %v5332 = vsel %vm2931, %v5312, %v5331
    %v5334 = vsel %vm5317, %v5332, %v4718
    %v5335 = vlaneseq
    %v5336 = vshrl.u32 %v5335, 7
    %v5337 = vsub.s32 0, %v5336
    %v5338 = vrot.slane %v4981, %v5337
    %5340 = vbcast.lane.b32.xlu0 %v5338, 256
    %v5341 = vpop.permute.xlu0 %5340
    %v5342 = vlaneseq
    %v5343 = vshrl.u32 %v5342, 7
    %v5344 = vsub.s32 1, %v5343
    %v5345 = vrot.slane %v4981, %v5344
    %5347 = vbcast.lane.b32.xlu0 %v5345, 256
    %v5348 = vpop.permute.xlu0 %5347
    %v5349 = vlaneseq
    %v5350 = vshrl.u32 %v5349, 7
    %v5351 = vsub.s32 2, %v5350
    %v5352 = vrot.slane %v4981, %v5351
    %5354 = vbcast.lane.b32.xlu0 %v5352, 256
    %v5355 = vpop.permute.xlu0 %5354
    %v5356 = vlaneseq
    %v5357 = vshrl.u32 %v5356, 7
    %v5358 = vsub.s32 3, %v5357
    %v5359 = vrot.slane %v4981, %v5358
    %5361 = vbcast.lane.b32.xlu0 %v5359, 256
    %v5362 = vpop.permute.xlu0 %5361
    %v5363 = vlaneseq
    %v5364 = vshrl.u32 %v5363, 7
    %v5365 = vsub.s32 4, %v5364
    %v5366 = vrot.slane %v4981, %v5365
    %5368 = vbcast.lane.b32.xlu0 %v5366, 256
    %v5369 = vpop.permute.xlu0 %5368
    %v5370 = vlaneseq
    %v5371 = vshrl.u32 %v5370, 7
    %v5372 = vsub.s32 5, %v5371
    %v5373 = vrot.slane %v4981, %v5372
    %5375 = vbcast.lane.b32.xlu0 %v5373, 256
    %v5376 = vpop.permute.xlu0 %5375
    %v5377 = vlaneseq
    %v5378 = vshrl.u32 %v5377, 7
    %v5379 = vsub.s32 6, %v5378
    %v5380 = vrot.slane %v4981, %v5379
    %5382 = vbcast.lane.b32.xlu0 %v5380, 256
    %v5383 = vpop.permute.xlu0 %5382
    %v5384 = vlaneseq
    %v5385 = vshrl.u32 %v5384, 7
    %v5386 = vsub.s32 7, %v5385
    %v5387 = vrot.slane %v4981, %v5386
    %5389 = vbcast.lane.b32.xlu0 %v5387, 256
    %v5390 = vpop.permute.xlu0 %5389
    %v5391 = vadd.f32 %v5341, %v50
    %v5392 = vadd.f32 %v5348, %v50
    %v5393 = vadd.f32 %v5355, %v50
    %v5394 = vadd.f32 %v5362, %v50
    %v5395 = vadd.f32 %v5369, %v50
    %v5396 = vadd.f32 %v5376, %v50
    %v5397 = vadd.f32 %v5383, %v50
    %v5398 = vadd.f32 %v5390, %v50
    %v5399 = vsel %vm2399, %v5391, -inf
    %v5400 = vrot.slane %v5399, 4
    %v5401 = vmax.f32 %v5399, %v5400
    %v5402 = vrot.slane %v5401, 2
    %v5403 = vmax.f32 %v5401, %v5402
    %v5404 = vrot.slane %v5403, 1
    %v5405 = vmax.f32 %v5403, %v5404
    %v5406 = vsel %vm2399, %v5392, -inf
    %v5407 = vrot.slane %v5406, 4
    %v5408 = vmax.f32 %v5406, %v5407
    %v5409 = vrot.slane %v5408, 2
    %v5410 = vmax.f32 %v5408, %v5409
    %v5411 = vrot.slane %v5410, 1
    %v5412 = vmax.f32 %v5410, %v5411
    %v5413 = vsel %vm2399, %v5393, -inf
    %v5414 = vrot.slane %v5413, 4
    %v5415 = vmax.f32 %v5413, %v5414
    %v5416 = vrot.slane %v5415, 2
    %v5417 = vmax.f32 %v5415, %v5416
    %v5418 = vrot.slane %v5417, 1
    %v5419 = vmax.f32 %v5417, %v5418
    %v5420 = vsel %vm2399, %v5394, -inf
    %v5421 = vrot.slane %v5420, 4
    %v5422 = vmax.f32 %v5420, %v5421
    %v5423 = vrot.slane %v5422, 2
    %v5424 = vmax.f32 %v5422, %v5423
    %v5425 = vrot.slane %v5424, 1
    %v5426 = vmax.f32 %v5424, %v5425
    %v5427 = vsel %vm2399, %v5395, -inf
    %v5428 = vrot.slane %v5427, 4
    %v5429 = vmax.f32 %v5427, %v5428
    %v5430 = vrot.slane %v5429, 2
    %v5431 = vmax.f32 %v5429, %v5430
    %v5432 = vrot.slane %v5431, 1
    %v5433 = vmax.f32 %v5431, %v5432
    %v5434 = vsel %vm2399, %v5396, -inf
    %v5435 = vrot.slane %v5434, 4
    %v5436 = vmax.f32 %v5434, %v5435
    %v5437 = vrot.slane %v5436, 2
    %v5438 = vmax.f32 %v5436, %v5437
    %v5439 = vrot.slane %v5438, 1
    %v5440 = vmax.f32 %v5438, %v5439
    %v5441 = vsel %vm2399, %v5397, -inf
    %v5442 = vrot.slane %v5441, 4
    %v5443 = vmax.f32 %v5441, %v5442
    %v5444 = vrot.slane %v5443, 2
    %v5445 = vmax.f32 %v5443, %v5444
    %v5446 = vrot.slane %v5445, 1
    %v5447 = vmax.f32 %v5445, %v5446
    %v5448 = vsel %vm2399, %v5398, -inf
    %v5449 = vrot.slane %v5448, 4
    %v5450 = vmax.f32 %v5448, %v5449
    %v5451 = vrot.slane %v5450, 2
    %v5452 = vmax.f32 %v5450, %v5451
    %v5453 = vrot.slane %v5452, 1
    %v5454 = vmax.f32 %v5452, %v5453
    %vm5455 = vcmp.ge.f32.partialorder %v5391, %v5405
    %vm5456 = vcmp.ge.f32.partialorder %v5392, %v5412
    %vm5457 = vcmp.ge.f32.partialorder %v5393, %v5419
    %vm5458 = vcmp.ge.f32.partialorder %v5394, %v5426
    %vm5459 = vcmp.ge.f32.partialorder %v5395, %v5433
    %vm5460 = vcmp.ge.f32.partialorder %v5396, %v5440
    %vm5461 = vcmp.ge.f32.partialorder %v5397, %v5447
    %vm5462 = vcmp.ge.f32.partialorder %v5398, %v5454
    %v5463 = vsel %vm5455, %v2579, 1073741824
    %v5464 = vsel %vm5456, %v2579, 1073741824
    %v5465 = vsel %vm5457, %v2579, 1073741824
    %v5466 = vsel %vm5458, %v2579, 1073741824
    %v5467 = vsel %vm5459, %v2579, 1073741824
    %v5468 = vsel %vm5460, %v2579, 1073741824
    %v5469 = vsel %vm5461, %v2579, 1073741824
    %v5470 = vsel %vm5462, %v2579, 1073741824
    %v5471 = vsel %vm2399, %v5463, 2147483647
    %v5472 = vrot.slane %v5471, 4
    %vm5473 = vcmp.lt.s32.totalorder %v5471, %v5472
    %v5474 = vsel %vm5473, %v5471, %v5472
    %v5475 = vrot.slane %v5474, 2
    %vm5476 = vcmp.lt.s32.totalorder %v5474, %v5475
    %v5477 = vsel %vm5476, %v5474, %v5475
    %v5478 = vrot.slane %v5477, 1
    %vm5479 = vcmp.lt.s32.totalorder %v5477, %v5478
    %v5480 = vsel %vm5479, %v5477, %v5478
    %v5481 = vsel %vm2399, %v5464, 2147483647
    %v5482 = vrot.slane %v5481, 4
    %vm5483 = vcmp.lt.s32.totalorder %v5481, %v5482
    %v5484 = vsel %vm5483, %v5481, %v5482
    %v5485 = vrot.slane %v5484, 2
    %vm5486 = vcmp.lt.s32.totalorder %v5484, %v5485
    %v5487 = vsel %vm5486, %v5484, %v5485
    %v5488 = vrot.slane %v5487, 1
    %vm5489 = vcmp.lt.s32.totalorder %v5487, %v5488
    %v5490 = vsel %vm5489, %v5487, %v5488
    %v5491 = vsel %vm2399, %v5465, 2147483647
    %v5492 = vrot.slane %v5491, 4
    %vm5493 = vcmp.lt.s32.totalorder %v5491, %v5492
    %v5494 = vsel %vm5493, %v5491, %v5492
    %v5495 = vrot.slane %v5494, 2
    %vm5496 = vcmp.lt.s32.totalorder %v5494, %v5495
    %v5497 = vsel %vm5496, %v5494, %v5495
    %v5498 = vrot.slane %v5497, 1
    %vm5499 = vcmp.lt.s32.totalorder %v5497, %v5498
    %v5500 = vsel %vm5499, %v5497, %v5498
    %v5501 = vsel %vm2399, %v5466, 2147483647
    %v5502 = vrot.slane %v5501, 4
    %vm5503 = vcmp.lt.s32.totalorder %v5501, %v5502
    %v5504 = vsel %vm5503, %v5501, %v5502
    %v5505 = vrot.slane %v5504, 2
    %vm5506 = vcmp.lt.s32.totalorder %v5504, %v5505
    %v5507 = vsel %vm5506, %v5504, %v5505
    %v5508 = vrot.slane %v5507, 1
    %vm5509 = vcmp.lt.s32.totalorder %v5507, %v5508
    %v5510 = vsel %vm5509, %v5507, %v5508
    %v5511 = vsel %vm2399, %v5467, 2147483647
    %v5512 = vrot.slane %v5511, 4
    %vm5513 = vcmp.lt.s32.totalorder %v5511, %v5512
    %v5514 = vsel %vm5513, %v5511, %v5512
    %v5515 = vrot.slane %v5514, 2
    %vm5516 = vcmp.lt.s32.totalorder %v5514, %v5515
    %v5517 = vsel %vm5516, %v5514, %v5515
    %v5518 = vrot.slane %v5517, 1
    %vm5519 = vcmp.lt.s32.totalorder %v5517, %v5518
    %v5520 = vsel %vm5519, %v5517, %v5518
    %v5521 = vsel %vm2399, %v5468, 2147483647
    %v5522 = vrot.slane %v5521, 4
    %vm5523 = vcmp.lt.s32.totalorder %v5521, %v5522
    %v5524 = vsel %vm5523, %v5521, %v5522
    %v5525 = vrot.slane %v5524, 2
    %vm5526 = vcmp.lt.s32.totalorder %v5524, %v5525
    %v5527 = vsel %vm5526, %v5524, %v5525
    %v5528 = vrot.slane %v5527, 1
    %vm5529 = vcmp.lt.s32.totalorder %v5527, %v5528
    %v5530 = vsel %vm5529, %v5527, %v5528
    %v5531 = vsel %vm2399, %v5469, 2147483647
    %v5532 = vrot.slane %v5531, 4
    %vm5533 = vcmp.lt.s32.totalorder %v5531, %v5532
    %v5534 = vsel %vm5533, %v5531, %v5532
    %v5535 = vrot.slane %v5534, 2
    %vm5536 = vcmp.lt.s32.totalorder %v5534, %v5535
    %v5537 = vsel %vm5536, %v5534, %v5535
    %v5538 = vrot.slane %v5537, 1
    %vm5539 = vcmp.lt.s32.totalorder %v5537, %v5538
    %v5540 = vsel %vm5539, %v5537, %v5538
    %v5541 = vsel %vm2399, %v5470, 2147483647
    %v5542 = vrot.slane %v5541, 4
    %vm5543 = vcmp.lt.s32.totalorder %v5541, %v5542
    %v5544 = vsel %vm5543, %v5541, %v5542
    %v5545 = vrot.slane %v5544, 2
    %vm5546 = vcmp.lt.s32.totalorder %v5544, %v5545
    %v5547 = vsel %vm5546, %v5544, %v5545
    %v5548 = vrot.slane %v5547, 1
    %vm5549 = vcmp.lt.s32.totalorder %v5547, %v5548
    %v5550 = vsel %vm5549, %v5547, %v5548
    %v5551 = vrot.slane %v2072, 1
    %v5552 = vrot.slane %v2072, 2
    %v5553 = vrot.slane %v2072, 3
    %v5554 = vrot.slane %v2072, 4
    %v5555 = vrot.slane %v2072, 5
    %v5556 = vrot.slane %v2072, 6
    %v5557 = vrot.slane %v2072, 7
    %v5566 = vadd.f32 %v5405, %v2072
    %v5567 = vadd.f32 %v5412, %v5551
    %v5568 = vadd.f32 %v5419, %v5552
    %v5569 = vadd.f32 %v5426, %v5553
    %v5570 = vadd.f32 %v5433, %v5554
    %v5571 = vadd.f32 %v5440, %v5555
    %v5572 = vadd.f32 %v5447, %v5556
    %v5573 = vadd.f32 %v5454, %v5557
    %v5582 = vrot.slane %v5567, 7
    %v5583 = vsel %vm2919, %v5582, %v5566
    %v5584 = vrot.slane %v5568, 6
    %v5585 = vsel %vm2921, %v5584, %v5583
    %v5586 = vrot.slane %v5569, 5
    %v5587 = vsel %vm2923, %v5586, %v5585
    %v5588 = vrot.slane %v5570, 4
    %v5589 = vsel %vm2925, %v5588, %v5587
    %v5590 = vrot.slane %v5571, 3
    %v5591 = vsel %vm2927, %v5590, %v5589
    %v5592 = vrot.slane %v5572, 2
    %v5593 = vsel %vm2929, %v5592, %v5591
    %v5594 = vrot.slane %v5573, 1
    %v5595 = vsel %vm2931, %v5594, %v5593
    %v5597 = vsel %vm5317, %v5595, %v4981
    %v5598 = vsel %vm2919, %v5490, %v5480
    %v5599 = vsel %vm2921, %v5500, %v5598
    %v5600 = vsel %vm2923, %v5510, %v5599
    %v5601 = vsel %vm2925, %v5520, %v5600
    %v5602 = vsel %vm2927, %v5530, %v5601
    %v5603 = vsel %vm2929, %v5540, %v5602
    %v5604 = vsel %vm2931, %v5550, %v5603
    %v5605 = vsel %vm5317, %v5604, %v2581
    %vm5606 = vcmp.gt.f32.partialorder %v67, 0.5
    %v5607 = vlaneseq
    %v5608 = vshrl.u32 %v5607, 7
    %v5609 = vsub.s32 0, %v5608
    %v5610 = vrot.slane %v5334, %v5609
    %5612 = vbcast.lane.b32.xlu0 %v5610, 256
    %v5613 = vpop.permute.xlu0 %5612
    %v5614 = vlaneseq
    %v5615 = vshrl.u32 %v5614, 7
    %v5616 = vsub.s32 1, %v5615
    %v5617 = vrot.slane %v5334, %v5616
    %5619 = vbcast.lane.b32.xlu0 %v5617, 256
    %v5620 = vpop.permute.xlu0 %5619
    %v5621 = vlaneseq
    %v5622 = vshrl.u32 %v5621, 7
    %v5623 = vsub.s32 2, %v5622
    %v5624 = vrot.slane %v5334, %v5623
    %5626 = vbcast.lane.b32.xlu0 %v5624, 256
    %v5627 = vpop.permute.xlu0 %5626
    %v5628 = vlaneseq
    %v5629 = vshrl.u32 %v5628, 7
    %v5630 = vsub.s32 3, %v5629
    %v5631 = vrot.slane %v5334, %v5630
    %5633 = vbcast.lane.b32.xlu0 %v5631, 256
    %v5634 = vpop.permute.xlu0 %5633
    %v5635 = vlaneseq
    %v5636 = vshrl.u32 %v5635, 7
    %v5637 = vsub.s32 4, %v5636
    %v5638 = vrot.slane %v5334, %v5637
    %5640 = vbcast.lane.b32.xlu0 %v5638, 256
    %v5641 = vpop.permute.xlu0 %5640
    %v5642 = vlaneseq
    %v5643 = vshrl.u32 %v5642, 7
    %v5644 = vsub.s32 5, %v5643
    %v5645 = vrot.slane %v5334, %v5644
    %5647 = vbcast.lane.b32.xlu0 %v5645, 256
    %v5648 = vpop.permute.xlu0 %5647
    %v5649 = vlaneseq
    %v5650 = vshrl.u32 %v5649, 7
    %v5651 = vsub.s32 6, %v5650
    %v5652 = vrot.slane %v5334, %v5651
    %5654 = vbcast.lane.b32.xlu0 %v5652, 256
    %v5655 = vpop.permute.xlu0 %5654
    %v5656 = vlaneseq
    %v5657 = vshrl.u32 %v5656, 7
    %v5658 = vsub.s32 7, %v5657
    %v5659 = vrot.slane %v5334, %v5658
    %5661 = vbcast.lane.b32.xlu0 %v5659, 256
    %v5662 = vpop.permute.xlu0 %5661
    %v5663 = vadd.f32 %v5613, %v50
    %v5664 = vadd.f32 %v5620, %v50
    %v5665 = vadd.f32 %v5627, %v50
    %v5666 = vadd.f32 %v5634, %v50
    %v5667 = vadd.f32 %v5641, %v50
    %v5668 = vadd.f32 %v5648, %v50
    %v5669 = vadd.f32 %v5655, %v50
    %v5670 = vadd.f32 %v5662, %v50
    %v5672 = vcombine.high %v2219, %v2219
    %v5674 = vunpack.c.l.s4 1966171168
    %v5675 = vunpack.c.0.s8 %v5674
    %v5676 = vlaneseq
    %v5677 = vshrl.u32 %v5676, 7
    %v5678 = vsub.s32 %v5675, %v5677
    %v5679 = vrot.slane %v2219, %v5678
    %v5681 = vunpack.c.l.s4 1966171168
    %v5682 = vunpack.c.0.s8 %v5681
    %v5683 = vlaneseq
    %v5684 = vshrl.u32 %v5683, 7
    %v5685 = vsub.s32 %v5682, %v5684
    %v5686 = vrot.slane %v5672, %v5685
    %v5687 = vcombine.high %v5679, %v5679
    %v5688 = vcombine.high %v5686, %v5686
    %v5690 = vunpack.c.l.s4 1966171168
    %v5691 = vunpack.c.0.s8 %v5690
    %v5692 = vlaneseq
    %v5693 = vshrl.u32 %v5692, 7
    %v5694 = vsub.s32 %v5691, %v5693
    %v5695 = vrot.slane %v5679, %v5694
    %v5697 = vunpack.c.l.s4 1966171168
    %v5698 = vunpack.c.0.s8 %v5697
    %v5699 = vlaneseq
    %v5700 = vshrl.u32 %v5699, 7
    %v5701 = vsub.s32 %v5698, %v5700
    %v5702 = vrot.slane %v5686, %v5701
    %v5704 = vunpack.c.l.s4 1966171168
    %v5705 = vunpack.c.0.s8 %v5704
    %v5706 = vlaneseq
    %v5707 = vshrl.u32 %v5706, 7
    %v5708 = vsub.s32 %v5705, %v5707
    %v5709 = vrot.slane %v5687, %v5708
    %v5711 = vunpack.c.l.s4 1966171168
    %v5712 = vunpack.c.0.s8 %v5711
    %v5713 = vlaneseq
    %v5714 = vshrl.u32 %v5713, 7
    %v5715 = vsub.s32 %v5712, %v5714
    %v5716 = vrot.slane %v5688, %v5715
    %v5717 = vcombine.high %v5695, %v5695
    %v5718 = vcombine.high %v5702, %v5702
    %v5719 = vcombine.high %v5709, %v5709
    %v5720 = vcombine.high %v5716, %v5716
    %v5721 = vlaneseq
    %v5722 = vshrl.u32 %v5721, 7
    %v5723 = vsub.s32 0, %v5722
    %v5724 = vrot.slane %v5695, %v5723
    %v5725 = vlaneseq
    %v5726 = vshrl.u32 %v5725, 7
    %v5727 = vsub.s32 0, %v5726
    %v5728 = vrot.slane %v5709, %v5727
    %v5729 = vlaneseq
    %v5730 = vshrl.u32 %v5729, 7
    %v5731 = vsub.s32 0, %v5730
    %v5732 = vrot.slane %v5717, %v5731
    %v5733 = vlaneseq
    %v5734 = vshrl.u32 %v5733, 7
    %v5735 = vsub.s32 0, %v5734
    %v5736 = vrot.slane %v5719, %v5735
    %v5737 = vlaneseq
    %v5738 = vshrl.u32 %v5737, 7
    %v5739 = vsub.s32 0, %v5738
    %v5740 = vrot.slane %v5702, %v5739
    %v5741 = vlaneseq
    %v5742 = vshrl.u32 %v5741, 7
    %v5743 = vsub.s32 0, %v5742
    %v5744 = vrot.slane %v5716, %v5743
    %v5745 = vlaneseq
    %v5746 = vshrl.u32 %v5745, 7
    %v5747 = vsub.s32 0, %v5746
    %v5748 = vrot.slane %v5718, %v5747
    %v5749 = vlaneseq
    %v5750 = vshrl.u32 %v5749, 7
    %v5751 = vsub.s32 0, %v5750
    %v5752 = vrot.slane %v5720, %v5751
    %v5761 = vadd.f32 %v5663, %v5724
    %v5762 = vadd.f32 %v5664, %v5728
    %v5763 = vadd.f32 %v5665, %v5732
    %v5764 = vadd.f32 %v5666, %v5736
    %v5765 = vadd.f32 %v5667, %v5740
    %v5766 = vadd.f32 %v5668, %v5744
    %v5767 = vadd.f32 %v5669, %v5748
    %v5768 = vadd.f32 %v5670, %v5752
    %v5769 = vsel %vm2399, %v5761, -inf
    %v5770 = vrot.slane %v5769, 4
    %v5771 = vmax.f32 %v5769, %v5770
    %v5772 = vrot.slane %v5771, 2
    %v5773 = vmax.f32 %v5771, %v5772
    %v5774 = vrot.slane %v5773, 1
    %v5775 = vmax.f32 %v5773, %v5774
    %v5776 = vsel %vm2399, %v5762, -inf
    %v5777 = vrot.slane %v5776, 4
    %v5778 = vmax.f32 %v5776, %v5777
    %v5779 = vrot.slane %v5778, 2
    %v5780 = vmax.f32 %v5778, %v5779
    %v5781 = vrot.slane %v5780, 1
    %v5782 = vmax.f32 %v5780, %v5781
    %v5783 = vsel %vm2399, %v5763, -inf
    %v5784 = vrot.slane %v5783, 4
    %v5785 = vmax.f32 %v5783, %v5784
    %v5786 = vrot.slane %v5785, 2
    %v5787 = vmax.f32 %v5785, %v5786
    %v5788 = vrot.slane %v5787, 1
    %v5789 = vmax.f32 %v5787, %v5788
    %v5790 = vsel %vm2399, %v5764, -inf
    %v5791 = vrot.slane %v5790, 4
    %v5792 = vmax.f32 %v5790, %v5791
    %v5793 = vrot.slane %v5792, 2
    %v5794 = vmax.f32 %v5792, %v5793
    %v5795 = vrot.slane %v5794, 1
    %v5796 = vmax.f32 %v5794, %v5795
    %v5797 = vsel %vm2399, %v5765, -inf
    %v5798 = vrot.slane %v5797, 4
    %v5799 = vmax.f32 %v5797, %v5798
    %v5800 = vrot.slane %v5799, 2
    %v5801 = vmax.f32 %v5799, %v5800
    %v5802 = vrot.slane %v5801, 1
    %v5803 = vmax.f32 %v5801, %v5802
    %v5804 = vsel %vm2399, %v5766, -inf
    %v5805 = vrot.slane %v5804, 4
    %v5806 = vmax.f32 %v5804, %v5805
    %v5807 = vrot.slane %v5806, 2
    %v5808 = vmax.f32 %v5806, %v5807
    %v5809 = vrot.slane %v5808, 1
    %v5810 = vmax.f32 %v5808, %v5809
    %v5811 = vsel %vm2399, %v5767, -inf
    %v5812 = vrot.slane %v5811, 4
    %v5813 = vmax.f32 %v5811, %v5812
    %v5814 = vrot.slane %v5813, 2
    %v5815 = vmax.f32 %v5813, %v5814
    %v5816 = vrot.slane %v5815, 1
    %v5817 = vmax.f32 %v5815, %v5816
    %v5818 = vsel %vm2399, %v5768, -inf
    %v5819 = vrot.slane %v5818, 4
    %v5820 = vmax.f32 %v5818, %v5819
    %v5821 = vrot.slane %v5820, 2
    %v5822 = vmax.f32 %v5820, %v5821
    %v5823 = vrot.slane %v5822, 1
    %v5824 = vmax.f32 %v5822, %v5823
    %v5825 = vsub.f32 %v5761, %v5775
    %v5826 = vsub.f32 %v5762, %v5782
    %v5827 = vsub.f32 %v5763, %v5789
    %v5828 = vsub.f32 %v5764, %v5796
    %v5829 = vsub.f32 %v5765, %v5803
    %v5830 = vsub.f32 %v5766, %v5810
    %v5831 = vsub.f32 %v5767, %v5817
    %v5832 = vsub.f32 %v5768, %v5824
    %v5833 = vmul.f32 %v5825, 1.442695
    %v5834 = vpow.pop %v5833
    %v5835 = vmul.f32 %v5826, 1.442695
    %v5836 = vpow.pop %v5835
    %v5837 = vmul.f32 %v5827, 1.442695
    %v5838 = vpow.pop %v5837
    %v5839 = vmul.f32 %v5828, 1.442695
    %v5840 = vpow.pop %v5839
    %v5841 = vmul.f32 %v5829, 1.442695
    %v5842 = vpow.pop %v5841
    %v5843 = vmul.f32 %v5830, 1.442695
    %v5844 = vpow.pop %v5843
    %v5845 = vmul.f32 %v5831, 1.442695
    %v5846 = vpow.pop %v5845
    %v5847 = vmul.f32 %v5832, 1.442695
    %v5848 = vpow.pop %v5847
    %v5849 = vsel %vm2399, %v5834, 0.0
    %v5850 = vrot.slane %v5849, 4
    %v5851 = vadd.f32 %v5849, %v5850
    %v5852 = vrot.slane %v5851, 2
    %v5853 = vadd.f32 %v5851, %v5852
    %v5854 = vrot.slane %v5853, 1
    %v5855 = vadd.f32 %v5853, %v5854
    %v5856 = vsel %vm2399, %v5836, 0.0
    %v5857 = vrot.slane %v5856, 4
    %v5858 = vadd.f32 %v5856, %v5857
    %v5859 = vrot.slane %v5858, 2
    %v5860 = vadd.f32 %v5858, %v5859
    %v5861 = vrot.slane %v5860, 1
    %v5862 = vadd.f32 %v5860, %v5861
    %v5863 = vsel %vm2399, %v5838, 0.0
    %v5864 = vrot.slane %v5863, 4
    %v5865 = vadd.f32 %v5863, %v5864
    %v5866 = vrot.slane %v5865, 2
    %v5867 = vadd.f32 %v5865, %v5866
    %v5868 = vrot.slane %v5867, 1
    %v5869 = vadd.f32 %v5867, %v5868
    %v5870 = vsel %vm2399, %v5840, 0.0
    %v5871 = vrot.slane %v5870, 4
    %v5872 = vadd.f32 %v5870, %v5871
    %v5873 = vrot.slane %v5872, 2
    %v5874 = vadd.f32 %v5872, %v5873
    %v5875 = vrot.slane %v5874, 1
    %v5876 = vadd.f32 %v5874, %v5875
    %v5877 = vsel %vm2399, %v5842, 0.0
    %v5878 = vrot.slane %v5877, 4
    %v5879 = vadd.f32 %v5877, %v5878
    %v5880 = vrot.slane %v5879, 2
    %v5881 = vadd.f32 %v5879, %v5880
    %v5882 = vrot.slane %v5881, 1
    %v5883 = vadd.f32 %v5881, %v5882
    %v5884 = vsel %vm2399, %v5844, 0.0
    %v5885 = vrot.slane %v5884, 4
    %v5886 = vadd.f32 %v5884, %v5885
    %v5887 = vrot.slane %v5886, 2
    %v5888 = vadd.f32 %v5886, %v5887
    %v5889 = vrot.slane %v5888, 1
    %v5890 = vadd.f32 %v5888, %v5889
    %v5891 = vsel %vm2399, %v5846, 0.0
    %v5892 = vrot.slane %v5891, 4
    %v5893 = vadd.f32 %v5891, %v5892
    %v5894 = vrot.slane %v5893, 2
    %v5895 = vadd.f32 %v5893, %v5894
    %v5896 = vrot.slane %v5895, 1
    %v5897 = vadd.f32 %v5895, %v5896
    %v5898 = vsel %vm2399, %v5848, 0.0
    %v5899 = vrot.slane %v5898, 4
    %v5900 = vadd.f32 %v5898, %v5899
    %v5901 = vrot.slane %v5900, 2
    %v5902 = vadd.f32 %v5900, %v5901
    %v5903 = vrot.slane %v5902, 1
    %v5904 = vadd.f32 %v5902, %v5903
    %v5905 = vlog2.pop %v5855
    %v5906 = vmul.f32 %v5905, 0.6931472
    %v5907 = vlog2.pop %v5862
    %v5908 = vmul.f32 %v5907, 0.6931472
    %v5909 = vlog2.pop %v5869
    %v5910 = vmul.f32 %v5909, 0.6931472
    %v5911 = vlog2.pop %v5876
    %v5912 = vmul.f32 %v5911, 0.6931472
    %v5913 = vlog2.pop %v5883
    %v5914 = vmul.f32 %v5913, 0.6931472
    %v5915 = vlog2.pop %v5890
    %v5916 = vmul.f32 %v5915, 0.6931472
    %v5917 = vlog2.pop %v5897
    %v5918 = vmul.f32 %v5917, 0.6931472
    %v5919 = vlog2.pop %v5904
    %v5920 = vmul.f32 %v5919, 0.6931472
    %v5921 = vadd.f32 %v5775, %v5906
    %v5922 = vadd.f32 %v5782, %v5908
    %v5923 = vadd.f32 %v5789, %v5910
    %v5924 = vadd.f32 %v5796, %v5912
    %v5925 = vadd.f32 %v5803, %v5914
    %v5926 = vadd.f32 %v5810, %v5916
    %v5927 = vadd.f32 %v5817, %v5918
    %v5928 = vadd.f32 %v5824, %v5920
    %v5929 = vsel %vm5606, 1, 0
    %5930 = vset.pattern.permute.xlu0 0
    %5931 = vperm.xlu0 %5930, %v5929
    %v5932 = vpop.permute.xlu0 %5931
    %vm5933 = vcmp.eq.s32.totalorder %v5932, 1
    %v5942 = vsel %vm2919, %v5922, %v5921
    %v5943 = vsel %vm2921, %v5923, %v5942
    %v5944 = vsel %vm2923, %v5924, %v5943
    %v5945 = vsel %vm2925, %v5925, %v5944
    %v5946 = vsel %vm2927, %v5926, %v5945
    %v5947 = vsel %vm2929, %v5927, %v5946
    %v5948 = vsel %vm2931, %v5928, %v5947
    %v5950 = vsel %vm5933, %v5948, %v5334
    %v5951 = vlaneseq
    %v5952 = vshrl.u32 %v5951, 7
    %v5953 = vsub.s32 0, %v5952
    %v5954 = vrot.slane %v5597, %v5953
    %5956 = vbcast.lane.b32.xlu0 %v5954, 256
    %v5957 = vpop.permute.xlu0 %5956
    %v5958 = vlaneseq
    %v5959 = vshrl.u32 %v5958, 7
    %v5960 = vsub.s32 1, %v5959
    %v5961 = vrot.slane %v5597, %v5960
    %5963 = vbcast.lane.b32.xlu0 %v5961, 256
    %v5964 = vpop.permute.xlu0 %5963
    %v5965 = vlaneseq
    %v5966 = vshrl.u32 %v5965, 7
    %v5967 = vsub.s32 2, %v5966
    %v5968 = vrot.slane %v5597, %v5967
    %5970 = vbcast.lane.b32.xlu0 %v5968, 256
    %v5971 = vpop.permute.xlu0 %5970
    %v5972 = vlaneseq
    %v5973 = vshrl.u32 %v5972, 7
    %v5974 = vsub.s32 3, %v5973
    %v5975 = vrot.slane %v5597, %v5974
    %5977 = vbcast.lane.b32.xlu0 %v5975, 256
    %v5978 = vpop.permute.xlu0 %5977
    %v5979 = vlaneseq
    %v5980 = vshrl.u32 %v5979, 7
    %v5981 = vsub.s32 4, %v5980
    %v5982 = vrot.slane %v5597, %v5981
    %5984 = vbcast.lane.b32.xlu0 %v5982, 256
    %v5985 = vpop.permute.xlu0 %5984
    %v5986 = vlaneseq
    %v5987 = vshrl.u32 %v5986, 7
    %v5988 = vsub.s32 5, %v5987
    %v5989 = vrot.slane %v5597, %v5988
    %5991 = vbcast.lane.b32.xlu0 %v5989, 256
    %v5992 = vpop.permute.xlu0 %5991
    %v5993 = vlaneseq
    %v5994 = vshrl.u32 %v5993, 7
    %v5995 = vsub.s32 6, %v5994
    %v5996 = vrot.slane %v5597, %v5995
    %5998 = vbcast.lane.b32.xlu0 %v5996, 256
    %v5999 = vpop.permute.xlu0 %5998
    %v6000 = vlaneseq
    %v6001 = vshrl.u32 %v6000, 7
    %v6002 = vsub.s32 7, %v6001
    %v6003 = vrot.slane %v5597, %v6002
    %6005 = vbcast.lane.b32.xlu0 %v6003, 256
    %v6006 = vpop.permute.xlu0 %6005
    %v6007 = vadd.f32 %v5957, %v50
    %v6008 = vadd.f32 %v5964, %v50
    %v6009 = vadd.f32 %v5971, %v50
    %v6010 = vadd.f32 %v5978, %v50
    %v6011 = vadd.f32 %v5985, %v50
    %v6012 = vadd.f32 %v5992, %v50
    %v6013 = vadd.f32 %v5999, %v50
    %v6014 = vadd.f32 %v6006, %v50
    %v6015 = vsel %vm2399, %v6007, -inf
    %v6016 = vrot.slane %v6015, 4
    %v6017 = vmax.f32 %v6015, %v6016
    %v6018 = vrot.slane %v6017, 2
    %v6019 = vmax.f32 %v6017, %v6018
    %v6020 = vrot.slane %v6019, 1
    %v6021 = vmax.f32 %v6019, %v6020
    %v6022 = vsel %vm2399, %v6008, -inf
    %v6023 = vrot.slane %v6022, 4
    %v6024 = vmax.f32 %v6022, %v6023
    %v6025 = vrot.slane %v6024, 2
    %v6026 = vmax.f32 %v6024, %v6025
    %v6027 = vrot.slane %v6026, 1
    %v6028 = vmax.f32 %v6026, %v6027
    %v6029 = vsel %vm2399, %v6009, -inf
    %v6030 = vrot.slane %v6029, 4
    %v6031 = vmax.f32 %v6029, %v6030
    %v6032 = vrot.slane %v6031, 2
    %v6033 = vmax.f32 %v6031, %v6032
    %v6034 = vrot.slane %v6033, 1
    %v6035 = vmax.f32 %v6033, %v6034
    %v6036 = vsel %vm2399, %v6010, -inf
    %v6037 = vrot.slane %v6036, 4
    %v6038 = vmax.f32 %v6036, %v6037
    %v6039 = vrot.slane %v6038, 2
    %v6040 = vmax.f32 %v6038, %v6039
    %v6041 = vrot.slane %v6040, 1
    %v6042 = vmax.f32 %v6040, %v6041
    %v6043 = vsel %vm2399, %v6011, -inf
    %v6044 = vrot.slane %v6043, 4
    %v6045 = vmax.f32 %v6043, %v6044
    %v6046 = vrot.slane %v6045, 2
    %v6047 = vmax.f32 %v6045, %v6046
    %v6048 = vrot.slane %v6047, 1
    %v6049 = vmax.f32 %v6047, %v6048
    %v6050 = vsel %vm2399, %v6012, -inf
    %v6051 = vrot.slane %v6050, 4
    %v6052 = vmax.f32 %v6050, %v6051
    %v6053 = vrot.slane %v6052, 2
    %v6054 = vmax.f32 %v6052, %v6053
    %v6055 = vrot.slane %v6054, 1
    %v6056 = vmax.f32 %v6054, %v6055
    %v6057 = vsel %vm2399, %v6013, -inf
    %v6058 = vrot.slane %v6057, 4
    %v6059 = vmax.f32 %v6057, %v6058
    %v6060 = vrot.slane %v6059, 2
    %v6061 = vmax.f32 %v6059, %v6060
    %v6062 = vrot.slane %v6061, 1
    %v6063 = vmax.f32 %v6061, %v6062
    %v6064 = vsel %vm2399, %v6014, -inf
    %v6065 = vrot.slane %v6064, 4
    %v6066 = vmax.f32 %v6064, %v6065
    %v6067 = vrot.slane %v6066, 2
    %v6068 = vmax.f32 %v6066, %v6067
    %v6069 = vrot.slane %v6068, 1
    %v6070 = vmax.f32 %v6068, %v6069
    %vm6071 = vcmp.ge.f32.partialorder %v6007, %v6021
    %vm6072 = vcmp.ge.f32.partialorder %v6008, %v6028
    %vm6073 = vcmp.ge.f32.partialorder %v6009, %v6035
    %vm6074 = vcmp.ge.f32.partialorder %v6010, %v6042
    %vm6075 = vcmp.ge.f32.partialorder %v6011, %v6049
    %vm6076 = vcmp.ge.f32.partialorder %v6012, %v6056
    %vm6077 = vcmp.ge.f32.partialorder %v6013, %v6063
    %vm6078 = vcmp.ge.f32.partialorder %v6014, %v6070
    %v6079 = vsel %vm6071, %v2579, 1073741824
    %v6080 = vsel %vm6072, %v2579, 1073741824
    %v6081 = vsel %vm6073, %v2579, 1073741824
    %v6082 = vsel %vm6074, %v2579, 1073741824
    %v6083 = vsel %vm6075, %v2579, 1073741824
    %v6084 = vsel %vm6076, %v2579, 1073741824
    %v6085 = vsel %vm6077, %v2579, 1073741824
    %v6086 = vsel %vm6078, %v2579, 1073741824
    %v6087 = vsel %vm2399, %v6079, 2147483647
    %v6088 = vrot.slane %v6087, 4
    %vm6089 = vcmp.lt.s32.totalorder %v6087, %v6088
    %v6090 = vsel %vm6089, %v6087, %v6088
    %v6091 = vrot.slane %v6090, 2
    %vm6092 = vcmp.lt.s32.totalorder %v6090, %v6091
    %v6093 = vsel %vm6092, %v6090, %v6091
    %v6094 = vrot.slane %v6093, 1
    %vm6095 = vcmp.lt.s32.totalorder %v6093, %v6094
    %v6096 = vsel %vm6095, %v6093, %v6094
    %v6097 = vsel %vm2399, %v6080, 2147483647
    %v6098 = vrot.slane %v6097, 4
    %vm6099 = vcmp.lt.s32.totalorder %v6097, %v6098
    %v6100 = vsel %vm6099, %v6097, %v6098
    %v6101 = vrot.slane %v6100, 2
    %vm6102 = vcmp.lt.s32.totalorder %v6100, %v6101
    %v6103 = vsel %vm6102, %v6100, %v6101
    %v6104 = vrot.slane %v6103, 1
    %vm6105 = vcmp.lt.s32.totalorder %v6103, %v6104
    %v6106 = vsel %vm6105, %v6103, %v6104
    %v6107 = vsel %vm2399, %v6081, 2147483647
    %v6108 = vrot.slane %v6107, 4
    %vm6109 = vcmp.lt.s32.totalorder %v6107, %v6108
    %v6110 = vsel %vm6109, %v6107, %v6108
    %v6111 = vrot.slane %v6110, 2
    %vm6112 = vcmp.lt.s32.totalorder %v6110, %v6111
    %v6113 = vsel %vm6112, %v6110, %v6111
    %v6114 = vrot.slane %v6113, 1
    %vm6115 = vcmp.lt.s32.totalorder %v6113, %v6114
    %v6116 = vsel %vm6115, %v6113, %v6114
    %v6117 = vsel %vm2399, %v6082, 2147483647
    %v6118 = vrot.slane %v6117, 4
    %vm6119 = vcmp.lt.s32.totalorder %v6117, %v6118
    %v6120 = vsel %vm6119, %v6117, %v6118
    %v6121 = vrot.slane %v6120, 2
    %vm6122 = vcmp.lt.s32.totalorder %v6120, %v6121
    %v6123 = vsel %vm6122, %v6120, %v6121
    %v6124 = vrot.slane %v6123, 1
    %vm6125 = vcmp.lt.s32.totalorder %v6123, %v6124
    %v6126 = vsel %vm6125, %v6123, %v6124
    %v6127 = vsel %vm2399, %v6083, 2147483647
    %v6128 = vrot.slane %v6127, 4
    %vm6129 = vcmp.lt.s32.totalorder %v6127, %v6128
    %v6130 = vsel %vm6129, %v6127, %v6128
    %v6131 = vrot.slane %v6130, 2
    %vm6132 = vcmp.lt.s32.totalorder %v6130, %v6131
    %v6133 = vsel %vm6132, %v6130, %v6131
    %v6134 = vrot.slane %v6133, 1
    %vm6135 = vcmp.lt.s32.totalorder %v6133, %v6134
    %v6136 = vsel %vm6135, %v6133, %v6134
    %v6137 = vsel %vm2399, %v6084, 2147483647
    %v6138 = vrot.slane %v6137, 4
    %vm6139 = vcmp.lt.s32.totalorder %v6137, %v6138
    %v6140 = vsel %vm6139, %v6137, %v6138
    %v6141 = vrot.slane %v6140, 2
    %vm6142 = vcmp.lt.s32.totalorder %v6140, %v6141
    %v6143 = vsel %vm6142, %v6140, %v6141
    %v6144 = vrot.slane %v6143, 1
    %vm6145 = vcmp.lt.s32.totalorder %v6143, %v6144
    %v6146 = vsel %vm6145, %v6143, %v6144
    %v6147 = vsel %vm2399, %v6085, 2147483647
    %v6148 = vrot.slane %v6147, 4
    %vm6149 = vcmp.lt.s32.totalorder %v6147, %v6148
    %v6150 = vsel %vm6149, %v6147, %v6148
    %v6151 = vrot.slane %v6150, 2
    %vm6152 = vcmp.lt.s32.totalorder %v6150, %v6151
    %v6153 = vsel %vm6152, %v6150, %v6151
    %v6154 = vrot.slane %v6153, 1
    %vm6155 = vcmp.lt.s32.totalorder %v6153, %v6154
    %v6156 = vsel %vm6155, %v6153, %v6154
    %v6157 = vsel %vm2399, %v6086, 2147483647
    %v6158 = vrot.slane %v6157, 4
    %vm6159 = vcmp.lt.s32.totalorder %v6157, %v6158
    %v6160 = vsel %vm6159, %v6157, %v6158
    %v6161 = vrot.slane %v6160, 2
    %vm6162 = vcmp.lt.s32.totalorder %v6160, %v6161
    %v6163 = vsel %vm6162, %v6160, %v6161
    %v6164 = vrot.slane %v6163, 1
    %vm6165 = vcmp.lt.s32.totalorder %v6163, %v6164
    %v6166 = vsel %vm6165, %v6163, %v6164
    %v6167 = vrot.slane %v2219, 1
    %v6168 = vrot.slane %v2219, 2
    %v6169 = vrot.slane %v2219, 3
    %v6170 = vrot.slane %v2219, 4
    %v6171 = vrot.slane %v2219, 5
    %v6172 = vrot.slane %v2219, 6
    %v6173 = vrot.slane %v2219, 7
    %v6182 = vadd.f32 %v6021, %v2219
    %v6183 = vadd.f32 %v6028, %v6167
    %v6184 = vadd.f32 %v6035, %v6168
    %v6185 = vadd.f32 %v6042, %v6169
    %v6186 = vadd.f32 %v6049, %v6170
    %v6187 = vadd.f32 %v6056, %v6171
    %v6188 = vadd.f32 %v6063, %v6172
    %v6189 = vadd.f32 %v6070, %v6173
    %v6198 = vrot.slane %v6183, 7
    %v6199 = vsel %vm2919, %v6198, %v6182
    %v6200 = vrot.slane %v6184, 6
    %v6201 = vsel %vm2921, %v6200, %v6199
    %v6202 = vrot.slane %v6185, 5
    %v6203 = vsel %vm2923, %v6202, %v6201
    %v6204 = vrot.slane %v6186, 4
    %v6205 = vsel %vm2925, %v6204, %v6203
    %v6206 = vrot.slane %v6187, 3
    %v6207 = vsel %vm2927, %v6206, %v6205
    %v6208 = vrot.slane %v6188, 2
    %v6209 = vsel %vm2929, %v6208, %v6207
    %v6210 = vrot.slane %v6189, 1
    %v6211 = vsel %vm2931, %v6210, %v6209
    %v6213 = vsel %vm5933, %v6211, %v5597
    %v6214 = vsel %vm2919, %v6106, %v6096
    %v6215 = vsel %vm2921, %v6116, %v6214
    %v6216 = vsel %vm2923, %v6126, %v6215
    %v6217 = vsel %vm2925, %v6136, %v6216
    %v6218 = vsel %vm2927, %v6146, %v6217
    %v6219 = vsel %vm2929, %v6156, %v6218
    %v6220 = vsel %vm2931, %v6166, %v6219
    %v6221 = vsel %vm5933, %v6220, %v2581
    %vm6222 = vcmp.gt.f32.partialorder %v68, 0.5
    %v6223 = vlaneseq
    %v6224 = vshrl.u32 %v6223, 7
    %v6225 = vsub.s32 0, %v6224
    %v6226 = vrot.slane %v5950, %v6225
    %6228 = vbcast.lane.b32.xlu0 %v6226, 256
    %v6229 = vpop.permute.xlu0 %6228
    %v6230 = vlaneseq
    %v6231 = vshrl.u32 %v6230, 7
    %v6232 = vsub.s32 1, %v6231
    %v6233 = vrot.slane %v5950, %v6232
    %6235 = vbcast.lane.b32.xlu0 %v6233, 256
    %v6236 = vpop.permute.xlu0 %6235
    %v6237 = vlaneseq
    %v6238 = vshrl.u32 %v6237, 7
    %v6239 = vsub.s32 2, %v6238
    %v6240 = vrot.slane %v5950, %v6239
    %6242 = vbcast.lane.b32.xlu0 %v6240, 256
    %v6243 = vpop.permute.xlu0 %6242
    %v6244 = vlaneseq
    %v6245 = vshrl.u32 %v6244, 7
    %v6246 = vsub.s32 3, %v6245
    %v6247 = vrot.slane %v5950, %v6246
    %6249 = vbcast.lane.b32.xlu0 %v6247, 256
    %v6250 = vpop.permute.xlu0 %6249
    %v6251 = vlaneseq
    %v6252 = vshrl.u32 %v6251, 7
    %v6253 = vsub.s32 4, %v6252
    %v6254 = vrot.slane %v5950, %v6253
    %6256 = vbcast.lane.b32.xlu0 %v6254, 256
    %v6257 = vpop.permute.xlu0 %6256
    %v6258 = vlaneseq
    %v6259 = vshrl.u32 %v6258, 7
    %v6260 = vsub.s32 5, %v6259
    %v6261 = vrot.slane %v5950, %v6260
    %6263 = vbcast.lane.b32.xlu0 %v6261, 256
    %v6264 = vpop.permute.xlu0 %6263
    %v6265 = vlaneseq
    %v6266 = vshrl.u32 %v6265, 7
    %v6267 = vsub.s32 6, %v6266
    %v6268 = vrot.slane %v5950, %v6267
    %6270 = vbcast.lane.b32.xlu0 %v6268, 256
    %v6271 = vpop.permute.xlu0 %6270
    %v6272 = vlaneseq
    %v6273 = vshrl.u32 %v6272, 7
    %v6274 = vsub.s32 7, %v6273
    %v6275 = vrot.slane %v5950, %v6274
    %6277 = vbcast.lane.b32.xlu0 %v6275, 256
    %v6278 = vpop.permute.xlu0 %6277
    %v6279 = vadd.f32 %v6229, %v50
    %v6280 = vadd.f32 %v6236, %v50
    %v6281 = vadd.f32 %v6243, %v50
    %v6282 = vadd.f32 %v6250, %v50
    %v6283 = vadd.f32 %v6257, %v50
    %v6284 = vadd.f32 %v6264, %v50
    %v6285 = vadd.f32 %v6271, %v50
    %v6286 = vadd.f32 %v6278, %v50
    %v6288 = vcombine.high %v2366, %v2366
    %v6290 = vunpack.c.l.s4 1966171168
    %v6291 = vunpack.c.0.s8 %v6290
    %v6292 = vlaneseq
    %v6293 = vshrl.u32 %v6292, 7
    %v6294 = vsub.s32 %v6291, %v6293
    %v6295 = vrot.slane %v2366, %v6294
    %v6297 = vunpack.c.l.s4 1966171168
    %v6298 = vunpack.c.0.s8 %v6297
    %v6299 = vlaneseq
    %v6300 = vshrl.u32 %v6299, 7
    %v6301 = vsub.s32 %v6298, %v6300
    %v6302 = vrot.slane %v6288, %v6301
    %v6303 = vcombine.high %v6295, %v6295
    %v6304 = vcombine.high %v6302, %v6302
    %v6306 = vunpack.c.l.s4 1966171168
    %v6307 = vunpack.c.0.s8 %v6306
    %v6308 = vlaneseq
    %v6309 = vshrl.u32 %v6308, 7
    %v6310 = vsub.s32 %v6307, %v6309
    %v6311 = vrot.slane %v6295, %v6310
    %v6313 = vunpack.c.l.s4 1966171168
    %v6314 = vunpack.c.0.s8 %v6313
    %v6315 = vlaneseq
    %v6316 = vshrl.u32 %v6315, 7
    %v6317 = vsub.s32 %v6314, %v6316
    %v6318 = vrot.slane %v6302, %v6317
    %v6320 = vunpack.c.l.s4 1966171168
    %v6321 = vunpack.c.0.s8 %v6320
    %v6322 = vlaneseq
    %v6323 = vshrl.u32 %v6322, 7
    %v6324 = vsub.s32 %v6321, %v6323
    %v6325 = vrot.slane %v6303, %v6324
    %v6327 = vunpack.c.l.s4 1966171168
    %v6328 = vunpack.c.0.s8 %v6327
    %v6329 = vlaneseq
    %v6330 = vshrl.u32 %v6329, 7
    %v6331 = vsub.s32 %v6328, %v6330
    %v6332 = vrot.slane %v6304, %v6331
    %v6333 = vcombine.high %v6311, %v6311
    %v6334 = vcombine.high %v6318, %v6318
    %v6335 = vcombine.high %v6325, %v6325
    %v6336 = vcombine.high %v6332, %v6332
    %v6337 = vlaneseq
    %v6338 = vshrl.u32 %v6337, 7
    %v6339 = vsub.s32 0, %v6338
    %v6340 = vrot.slane %v6311, %v6339
    %v6341 = vlaneseq
    %v6342 = vshrl.u32 %v6341, 7
    %v6343 = vsub.s32 0, %v6342
    %v6344 = vrot.slane %v6325, %v6343
    %v6345 = vlaneseq
    %v6346 = vshrl.u32 %v6345, 7
    %v6347 = vsub.s32 0, %v6346
    %v6348 = vrot.slane %v6333, %v6347
    %v6349 = vlaneseq
    %v6350 = vshrl.u32 %v6349, 7
    %v6351 = vsub.s32 0, %v6350
    %v6352 = vrot.slane %v6335, %v6351
    %v6353 = vlaneseq
    %v6354 = vshrl.u32 %v6353, 7
    %v6355 = vsub.s32 0, %v6354
    %v6356 = vrot.slane %v6318, %v6355
    %v6357 = vlaneseq
    %v6358 = vshrl.u32 %v6357, 7
    %v6359 = vsub.s32 0, %v6358
    %v6360 = vrot.slane %v6332, %v6359
    %v6361 = vlaneseq
    %v6362 = vshrl.u32 %v6361, 7
    %v6363 = vsub.s32 0, %v6362
    %v6364 = vrot.slane %v6334, %v6363
    %v6365 = vlaneseq
    %v6366 = vshrl.u32 %v6365, 7
    %v6367 = vsub.s32 0, %v6366
    %v6368 = vrot.slane %v6336, %v6367
    %v6377 = vadd.f32 %v6279, %v6340
    %v6378 = vadd.f32 %v6280, %v6344
    %v6379 = vadd.f32 %v6281, %v6348
    %v6380 = vadd.f32 %v6282, %v6352
    %v6381 = vadd.f32 %v6283, %v6356
    %v6382 = vadd.f32 %v6284, %v6360
    %v6383 = vadd.f32 %v6285, %v6364
    %v6384 = vadd.f32 %v6286, %v6368
    %v6385 = vsel %vm2399, %v6377, -inf
    %v6386 = vrot.slane %v6385, 4
    %v6387 = vmax.f32 %v6385, %v6386
    %v6388 = vrot.slane %v6387, 2
    %v6389 = vmax.f32 %v6387, %v6388
    %v6390 = vrot.slane %v6389, 1
    %v6391 = vmax.f32 %v6389, %v6390
    %v6392 = vsel %vm2399, %v6378, -inf
    %v6393 = vrot.slane %v6392, 4
    %v6394 = vmax.f32 %v6392, %v6393
    %v6395 = vrot.slane %v6394, 2
    %v6396 = vmax.f32 %v6394, %v6395
    %v6397 = vrot.slane %v6396, 1
    %v6398 = vmax.f32 %v6396, %v6397
    %v6399 = vsel %vm2399, %v6379, -inf
    %v6400 = vrot.slane %v6399, 4
    %v6401 = vmax.f32 %v6399, %v6400
    %v6402 = vrot.slane %v6401, 2
    %v6403 = vmax.f32 %v6401, %v6402
    %v6404 = vrot.slane %v6403, 1
    %v6405 = vmax.f32 %v6403, %v6404
    %v6406 = vsel %vm2399, %v6380, -inf
    %v6407 = vrot.slane %v6406, 4
    %v6408 = vmax.f32 %v6406, %v6407
    %v6409 = vrot.slane %v6408, 2
    %v6410 = vmax.f32 %v6408, %v6409
    %v6411 = vrot.slane %v6410, 1
    %v6412 = vmax.f32 %v6410, %v6411
    %v6413 = vsel %vm2399, %v6381, -inf
    %v6414 = vrot.slane %v6413, 4
    %v6415 = vmax.f32 %v6413, %v6414
    %v6416 = vrot.slane %v6415, 2
    %v6417 = vmax.f32 %v6415, %v6416
    %v6418 = vrot.slane %v6417, 1
    %v6419 = vmax.f32 %v6417, %v6418
    %v6420 = vsel %vm2399, %v6382, -inf
    %v6421 = vrot.slane %v6420, 4
    %v6422 = vmax.f32 %v6420, %v6421
    %v6423 = vrot.slane %v6422, 2
    %v6424 = vmax.f32 %v6422, %v6423
    %v6425 = vrot.slane %v6424, 1
    %v6426 = vmax.f32 %v6424, %v6425
    %v6427 = vsel %vm2399, %v6383, -inf
    %v6428 = vrot.slane %v6427, 4
    %v6429 = vmax.f32 %v6427, %v6428
    %v6430 = vrot.slane %v6429, 2
    %v6431 = vmax.f32 %v6429, %v6430
    %v6432 = vrot.slane %v6431, 1
    %v6433 = vmax.f32 %v6431, %v6432
    %v6434 = vsel %vm2399, %v6384, -inf
    %v6435 = vrot.slane %v6434, 4
    %v6436 = vmax.f32 %v6434, %v6435
    %v6437 = vrot.slane %v6436, 2
    %v6438 = vmax.f32 %v6436, %v6437
    %v6439 = vrot.slane %v6438, 1
    %v6440 = vmax.f32 %v6438, %v6439
    %v6441 = vsub.f32 %v6377, %v6391
    %v6442 = vsub.f32 %v6378, %v6398
    %v6443 = vsub.f32 %v6379, %v6405
    %v6444 = vsub.f32 %v6380, %v6412
    %v6445 = vsub.f32 %v6381, %v6419
    %v6446 = vsub.f32 %v6382, %v6426
    %v6447 = vsub.f32 %v6383, %v6433
    %v6448 = vsub.f32 %v6384, %v6440
    %v6449 = vmul.f32 %v6441, 1.442695
    %v6450 = vpow.pop %v6449
    %v6451 = vmul.f32 %v6442, 1.442695
    %v6452 = vpow.pop %v6451
    %v6453 = vmul.f32 %v6443, 1.442695
    %v6454 = vpow.pop %v6453
    %v6455 = vmul.f32 %v6444, 1.442695
    %v6456 = vpow.pop %v6455
    %v6457 = vmul.f32 %v6445, 1.442695
    %v6458 = vpow.pop %v6457
    %v6459 = vmul.f32 %v6446, 1.442695
    %v6460 = vpow.pop %v6459
    %v6461 = vmul.f32 %v6447, 1.442695
    %v6462 = vpow.pop %v6461
    %v6463 = vmul.f32 %v6448, 1.442695
    %v6464 = vpow.pop %v6463
    %v6465 = vsel %vm2399, %v6450, 0.0
    %v6466 = vrot.slane %v6465, 4
    %v6467 = vadd.f32 %v6465, %v6466
    %v6468 = vrot.slane %v6467, 2
    %v6469 = vadd.f32 %v6467, %v6468
    %v6470 = vrot.slane %v6469, 1
    %v6471 = vadd.f32 %v6469, %v6470
    %v6472 = vsel %vm2399, %v6452, 0.0
    %v6473 = vrot.slane %v6472, 4
    %v6474 = vadd.f32 %v6472, %v6473
    %v6475 = vrot.slane %v6474, 2
    %v6476 = vadd.f32 %v6474, %v6475
    %v6477 = vrot.slane %v6476, 1
    %v6478 = vadd.f32 %v6476, %v6477
    %v6479 = vsel %vm2399, %v6454, 0.0
    %v6480 = vrot.slane %v6479, 4
    %v6481 = vadd.f32 %v6479, %v6480
    %v6482 = vrot.slane %v6481, 2
    %v6483 = vadd.f32 %v6481, %v6482
    %v6484 = vrot.slane %v6483, 1
    %v6485 = vadd.f32 %v6483, %v6484
    %v6486 = vsel %vm2399, %v6456, 0.0
    %v6487 = vrot.slane %v6486, 4
    %v6488 = vadd.f32 %v6486, %v6487
    %v6489 = vrot.slane %v6488, 2
    %v6490 = vadd.f32 %v6488, %v6489
    %v6491 = vrot.slane %v6490, 1
    %v6492 = vadd.f32 %v6490, %v6491
    %v6493 = vsel %vm2399, %v6458, 0.0
    %v6494 = vrot.slane %v6493, 4
    %v6495 = vadd.f32 %v6493, %v6494
    %v6496 = vrot.slane %v6495, 2
    %v6497 = vadd.f32 %v6495, %v6496
    %v6498 = vrot.slane %v6497, 1
    %v6499 = vadd.f32 %v6497, %v6498
    %v6500 = vsel %vm2399, %v6460, 0.0
    %v6501 = vrot.slane %v6500, 4
    %v6502 = vadd.f32 %v6500, %v6501
    %v6503 = vrot.slane %v6502, 2
    %v6504 = vadd.f32 %v6502, %v6503
    %v6505 = vrot.slane %v6504, 1
    %v6506 = vadd.f32 %v6504, %v6505
    %v6507 = vsel %vm2399, %v6462, 0.0
    %v6508 = vrot.slane %v6507, 4
    %v6509 = vadd.f32 %v6507, %v6508
    %v6510 = vrot.slane %v6509, 2
    %v6511 = vadd.f32 %v6509, %v6510
    %v6512 = vrot.slane %v6511, 1
    %v6513 = vadd.f32 %v6511, %v6512
    %v6514 = vsel %vm2399, %v6464, 0.0
    %v6515 = vrot.slane %v6514, 4
    %v6516 = vadd.f32 %v6514, %v6515
    %v6517 = vrot.slane %v6516, 2
    %v6518 = vadd.f32 %v6516, %v6517
    %v6519 = vrot.slane %v6518, 1
    %v6520 = vadd.f32 %v6518, %v6519
    %v6521 = vlog2.pop %v6471
    %v6522 = vmul.f32 %v6521, 0.6931472
    %v6523 = vlog2.pop %v6478
    %v6524 = vmul.f32 %v6523, 0.6931472
    %v6525 = vlog2.pop %v6485
    %v6526 = vmul.f32 %v6525, 0.6931472
    %v6527 = vlog2.pop %v6492
    %v6528 = vmul.f32 %v6527, 0.6931472
    %v6529 = vlog2.pop %v6499
    %v6530 = vmul.f32 %v6529, 0.6931472
    %v6531 = vlog2.pop %v6506
    %v6532 = vmul.f32 %v6531, 0.6931472
    %v6533 = vlog2.pop %v6513
    %v6534 = vmul.f32 %v6533, 0.6931472
    %v6535 = vlog2.pop %v6520
    %v6536 = vmul.f32 %v6535, 0.6931472
    %v6537 = vadd.f32 %v6391, %v6522
    %v6538 = vadd.f32 %v6398, %v6524
    %v6539 = vadd.f32 %v6405, %v6526
    %v6540 = vadd.f32 %v6412, %v6528
    %v6541 = vadd.f32 %v6419, %v6530
    %v6542 = vadd.f32 %v6426, %v6532
    %v6543 = vadd.f32 %v6433, %v6534
    %v6544 = vadd.f32 %v6440, %v6536
    %v6545 = vsel %vm6222, 1, 0
    %6546 = vset.pattern.permute.xlu0 0
    %6547 = vperm.xlu0 %6546, %v6545
    %v6548 = vpop.permute.xlu0 %6547
    %vm6549 = vcmp.eq.s32.totalorder %v6548, 1
    %v6558 = vsel %vm2919, %v6538, %v6537
    %v6559 = vsel %vm2921, %v6539, %v6558
    %v6560 = vsel %vm2923, %v6540, %v6559
    %v6561 = vsel %vm2925, %v6541, %v6560
    %v6562 = vsel %vm2927, %v6542, %v6561
    %v6563 = vsel %vm2929, %v6543, %v6562
    %v6564 = vsel %vm2931, %v6544, %v6563
    %v6566 = vsel %vm6549, %v6564, %v5950
    %v6567 = vlaneseq
    %v6568 = vshrl.u32 %v6567, 7
    %v6569 = vsub.s32 0, %v6568
    %v6570 = vrot.slane %v6213, %v6569
    %6572 = vbcast.lane.b32.xlu0 %v6570, 256
    %v6573 = vpop.permute.xlu0 %6572
    %v6574 = vlaneseq
    %v6575 = vshrl.u32 %v6574, 7
    %v6576 = vsub.s32 1, %v6575
    %v6577 = vrot.slane %v6213, %v6576
    %6579 = vbcast.lane.b32.xlu0 %v6577, 256
    %v6580 = vpop.permute.xlu0 %6579
    %v6581 = vlaneseq
    %v6582 = vshrl.u32 %v6581, 7
    %v6583 = vsub.s32 2, %v6582
    %v6584 = vrot.slane %v6213, %v6583
    %6586 = vbcast.lane.b32.xlu0 %v6584, 256
    %v6587 = vpop.permute.xlu0 %6586
    %v6588 = vlaneseq
    %v6589 = vshrl.u32 %v6588, 7
    %v6590 = vsub.s32 3, %v6589
    %v6591 = vrot.slane %v6213, %v6590
    %6593 = vbcast.lane.b32.xlu0 %v6591, 256
    %v6594 = vpop.permute.xlu0 %6593
    %v6595 = vlaneseq
    %v6596 = vshrl.u32 %v6595, 7
    %v6597 = vsub.s32 4, %v6596
    %v6598 = vrot.slane %v6213, %v6597
    %6600 = vbcast.lane.b32.xlu0 %v6598, 256
    %v6601 = vpop.permute.xlu0 %6600
    %v6602 = vlaneseq
    %v6603 = vshrl.u32 %v6602, 7
    %v6604 = vsub.s32 5, %v6603
    %v6605 = vrot.slane %v6213, %v6604
    %6607 = vbcast.lane.b32.xlu0 %v6605, 256
    %v6608 = vpop.permute.xlu0 %6607
    %v6609 = vlaneseq
    %v6610 = vshrl.u32 %v6609, 7
    %v6611 = vsub.s32 6, %v6610
    %v6612 = vrot.slane %v6213, %v6611
    %6614 = vbcast.lane.b32.xlu0 %v6612, 256
    %v6615 = vpop.permute.xlu0 %6614
    %v6616 = vlaneseq
    %v6617 = vshrl.u32 %v6616, 7
    %v6618 = vsub.s32 7, %v6617
    %v6619 = vrot.slane %v6213, %v6618
    %6621 = vbcast.lane.b32.xlu0 %v6619, 256
    %v6622 = vpop.permute.xlu0 %6621
    %v6623 = vadd.f32 %v6573, %v50
    %v6624 = vadd.f32 %v6580, %v50
    %v6625 = vadd.f32 %v6587, %v50
    %v6626 = vadd.f32 %v6594, %v50
    %v6627 = vadd.f32 %v6601, %v50
    %v6628 = vadd.f32 %v6608, %v50
    %v6629 = vadd.f32 %v6615, %v50
    %v6630 = vadd.f32 %v6622, %v50
    %v6631 = vsel %vm2399, %v6623, -inf
    %v6632 = vrot.slane %v6631, 4
    %v6633 = vmax.f32 %v6631, %v6632
    %v6634 = vrot.slane %v6633, 2
    %v6635 = vmax.f32 %v6633, %v6634
    %v6636 = vrot.slane %v6635, 1
    %v6637 = vmax.f32 %v6635, %v6636
    %v6638 = vsel %vm2399, %v6624, -inf
    %v6639 = vrot.slane %v6638, 4
    %v6640 = vmax.f32 %v6638, %v6639
    %v6641 = vrot.slane %v6640, 2
    %v6642 = vmax.f32 %v6640, %v6641
    %v6643 = vrot.slane %v6642, 1
    %v6644 = vmax.f32 %v6642, %v6643
    %v6645 = vsel %vm2399, %v6625, -inf
    %v6646 = vrot.slane %v6645, 4
    %v6647 = vmax.f32 %v6645, %v6646
    %v6648 = vrot.slane %v6647, 2
    %v6649 = vmax.f32 %v6647, %v6648
    %v6650 = vrot.slane %v6649, 1
    %v6651 = vmax.f32 %v6649, %v6650
    %v6652 = vsel %vm2399, %v6626, -inf
    %v6653 = vrot.slane %v6652, 4
    %v6654 = vmax.f32 %v6652, %v6653
    %v6655 = vrot.slane %v6654, 2
    %v6656 = vmax.f32 %v6654, %v6655
    %v6657 = vrot.slane %v6656, 1
    %v6658 = vmax.f32 %v6656, %v6657
    %v6659 = vsel %vm2399, %v6627, -inf
    %v6660 = vrot.slane %v6659, 4
    %v6661 = vmax.f32 %v6659, %v6660
    %v6662 = vrot.slane %v6661, 2
    %v6663 = vmax.f32 %v6661, %v6662
    %v6664 = vrot.slane %v6663, 1
    %v6665 = vmax.f32 %v6663, %v6664
    %v6666 = vsel %vm2399, %v6628, -inf
    %v6667 = vrot.slane %v6666, 4
    %v6668 = vmax.f32 %v6666, %v6667
    %v6669 = vrot.slane %v6668, 2
    %v6670 = vmax.f32 %v6668, %v6669
    %v6671 = vrot.slane %v6670, 1
    %v6672 = vmax.f32 %v6670, %v6671
    %v6673 = vsel %vm2399, %v6629, -inf
    %v6674 = vrot.slane %v6673, 4
    %v6675 = vmax.f32 %v6673, %v6674
    %v6676 = vrot.slane %v6675, 2
    %v6677 = vmax.f32 %v6675, %v6676
    %v6678 = vrot.slane %v6677, 1
    %v6679 = vmax.f32 %v6677, %v6678
    %v6680 = vsel %vm2399, %v6630, -inf
    %v6681 = vrot.slane %v6680, 4
    %v6682 = vmax.f32 %v6680, %v6681
    %v6683 = vrot.slane %v6682, 2
    %v6684 = vmax.f32 %v6682, %v6683
    %v6685 = vrot.slane %v6684, 1
    %v6686 = vmax.f32 %v6684, %v6685
    %vm6687 = vcmp.ge.f32.partialorder %v6623, %v6637
    %vm6688 = vcmp.ge.f32.partialorder %v6624, %v6644
    %vm6689 = vcmp.ge.f32.partialorder %v6625, %v6651
    %vm6690 = vcmp.ge.f32.partialorder %v6626, %v6658
    %vm6691 = vcmp.ge.f32.partialorder %v6627, %v6665
    %vm6692 = vcmp.ge.f32.partialorder %v6628, %v6672
    %vm6693 = vcmp.ge.f32.partialorder %v6629, %v6679
    %vm6694 = vcmp.ge.f32.partialorder %v6630, %v6686
    %v6695 = vsel %vm6687, %v2579, 1073741824
    %v6696 = vsel %vm6688, %v2579, 1073741824
    %v6697 = vsel %vm6689, %v2579, 1073741824
    %v6698 = vsel %vm6690, %v2579, 1073741824
    %v6699 = vsel %vm6691, %v2579, 1073741824
    %v6700 = vsel %vm6692, %v2579, 1073741824
    %v6701 = vsel %vm6693, %v2579, 1073741824
    %v6702 = vsel %vm6694, %v2579, 1073741824
    %v6703 = vsel %vm2399, %v6695, 2147483647
    %v6704 = vrot.slane %v6703, 4
    %vm6705 = vcmp.lt.s32.totalorder %v6703, %v6704
    %v6706 = vsel %vm6705, %v6703, %v6704
    %v6707 = vrot.slane %v6706, 2
    %vm6708 = vcmp.lt.s32.totalorder %v6706, %v6707
    %v6709 = vsel %vm6708, %v6706, %v6707
    %v6710 = vrot.slane %v6709, 1
    %vm6711 = vcmp.lt.s32.totalorder %v6709, %v6710
    %v6712 = vsel %vm6711, %v6709, %v6710
    %v6713 = vsel %vm2399, %v6696, 2147483647
    %v6714 = vrot.slane %v6713, 4
    %vm6715 = vcmp.lt.s32.totalorder %v6713, %v6714
    %v6716 = vsel %vm6715, %v6713, %v6714
    %v6717 = vrot.slane %v6716, 2
    %vm6718 = vcmp.lt.s32.totalorder %v6716, %v6717
    %v6719 = vsel %vm6718, %v6716, %v6717
    %v6720 = vrot.slane %v6719, 1
    %vm6721 = vcmp.lt.s32.totalorder %v6719, %v6720
    %v6722 = vsel %vm6721, %v6719, %v6720
    %v6723 = vsel %vm2399, %v6697, 2147483647
    %v6724 = vrot.slane %v6723, 4
    %vm6725 = vcmp.lt.s32.totalorder %v6723, %v6724
    %v6726 = vsel %vm6725, %v6723, %v6724
    %v6727 = vrot.slane %v6726, 2
    %vm6728 = vcmp.lt.s32.totalorder %v6726, %v6727
    %v6729 = vsel %vm6728, %v6726, %v6727
    %v6730 = vrot.slane %v6729, 1
    %vm6731 = vcmp.lt.s32.totalorder %v6729, %v6730
    %v6732 = vsel %vm6731, %v6729, %v6730
    %v6733 = vsel %vm2399, %v6698, 2147483647
    %v6734 = vrot.slane %v6733, 4
    %vm6735 = vcmp.lt.s32.totalorder %v6733, %v6734
    %v6736 = vsel %vm6735, %v6733, %v6734
    %v6737 = vrot.slane %v6736, 2
    %vm6738 = vcmp.lt.s32.totalorder %v6736, %v6737
    %v6739 = vsel %vm6738, %v6736, %v6737
    %v6740 = vrot.slane %v6739, 1
    %vm6741 = vcmp.lt.s32.totalorder %v6739, %v6740
    %v6742 = vsel %vm6741, %v6739, %v6740
    %v6743 = vsel %vm2399, %v6699, 2147483647
    %v6744 = vrot.slane %v6743, 4
    %vm6745 = vcmp.lt.s32.totalorder %v6743, %v6744
    %v6746 = vsel %vm6745, %v6743, %v6744
    %v6747 = vrot.slane %v6746, 2
    %vm6748 = vcmp.lt.s32.totalorder %v6746, %v6747
    %v6749 = vsel %vm6748, %v6746, %v6747
    %v6750 = vrot.slane %v6749, 1
    %vm6751 = vcmp.lt.s32.totalorder %v6749, %v6750
    %v6752 = vsel %vm6751, %v6749, %v6750
    %v6753 = vsel %vm2399, %v6700, 2147483647
    %v6754 = vrot.slane %v6753, 4
    %vm6755 = vcmp.lt.s32.totalorder %v6753, %v6754
    %v6756 = vsel %vm6755, %v6753, %v6754
    %v6757 = vrot.slane %v6756, 2
    %vm6758 = vcmp.lt.s32.totalorder %v6756, %v6757
    %v6759 = vsel %vm6758, %v6756, %v6757
    %v6760 = vrot.slane %v6759, 1
    %vm6761 = vcmp.lt.s32.totalorder %v6759, %v6760
    %v6762 = vsel %vm6761, %v6759, %v6760
    %v6763 = vsel %vm2399, %v6701, 2147483647
    %v6764 = vrot.slane %v6763, 4
    %vm6765 = vcmp.lt.s32.totalorder %v6763, %v6764
    %v6766 = vsel %vm6765, %v6763, %v6764
    %v6767 = vrot.slane %v6766, 2
    %vm6768 = vcmp.lt.s32.totalorder %v6766, %v6767
    %v6769 = vsel %vm6768, %v6766, %v6767
    %v6770 = vrot.slane %v6769, 1
    %vm6771 = vcmp.lt.s32.totalorder %v6769, %v6770
    %v6772 = vsel %vm6771, %v6769, %v6770
    %v6773 = vsel %vm2399, %v6702, 2147483647
    %v6774 = vrot.slane %v6773, 4
    %vm6775 = vcmp.lt.s32.totalorder %v6773, %v6774
    %v6776 = vsel %vm6775, %v6773, %v6774
    %v6777 = vrot.slane %v6776, 2
    %vm6778 = vcmp.lt.s32.totalorder %v6776, %v6777
    %v6779 = vsel %vm6778, %v6776, %v6777
    %v6780 = vrot.slane %v6779, 1
    %vm6781 = vcmp.lt.s32.totalorder %v6779, %v6780
    %v6782 = vsel %vm6781, %v6779, %v6780
    %v6783 = vrot.slane %v2366, 1
    %v6784 = vrot.slane %v2366, 2
    %v6785 = vrot.slane %v2366, 3
    %v6786 = vrot.slane %v2366, 4
    %v6787 = vrot.slane %v2366, 5
    %v6788 = vrot.slane %v2366, 6
    %v6789 = vrot.slane %v2366, 7
    %v6798 = vadd.f32 %v6637, %v2366
    %v6799 = vadd.f32 %v6644, %v6783
    %v6800 = vadd.f32 %v6651, %v6784
    %v6801 = vadd.f32 %v6658, %v6785
    %v6802 = vadd.f32 %v6665, %v6786
    %v6803 = vadd.f32 %v6672, %v6787
    %v6804 = vadd.f32 %v6679, %v6788
    %v6805 = vadd.f32 %v6686, %v6789
    %v6814 = vrot.slane %v6799, 7
    %v6815 = vsel %vm2919, %v6814, %v6798
    %v6816 = vrot.slane %v6800, 6
    %v6817 = vsel %vm2921, %v6816, %v6815
    %v6818 = vrot.slane %v6801, 5
    %v6819 = vsel %vm2923, %v6818, %v6817
    %v6820 = vrot.slane %v6802, 4
    %v6821 = vsel %vm2925, %v6820, %v6819
    %v6822 = vrot.slane %v6803, 3
    %v6823 = vsel %vm2927, %v6822, %v6821
    %v6824 = vrot.slane %v6804, 2
    %v6825 = vsel %vm2929, %v6824, %v6823
    %v6826 = vrot.slane %v6805, 1
    %v6827 = vsel %vm2931, %v6826, %v6825
    %v6829 = vsel %vm6549, %v6827, %v6213
    %v6830 = vsel %vm2919, %v6722, %v6712
    %v6831 = vsel %vm2921, %v6732, %v6830
    %v6832 = vsel %vm2923, %v6742, %v6831
    %v6833 = vsel %vm2925, %v6752, %v6832
    %v6834 = vsel %vm2927, %v6762, %v6833
    %v6835 = vsel %vm2929, %v6772, %v6834
    %v6836 = vsel %vm2931, %v6782, %v6835
    %v6837 = vsel %vm6549, %v6836, %v2581
    %v6838 = vadd.f32 %v6566, %v2379
    %v6839 = vsel %vm2399, %v6838, -inf
    %6840 = vmax.xlane.f32.xlu0 %v6839
    %v6841 = vpop.xlane.xlu0 %6840
    %v6842 = vsub.f32 %v6838, %v6841
    %v6843 = vmul.f32 %v6842, 1.442695
    %v6844 = vpow.pop %v6843
    %v6845 = vsel %vm2399, %v6844, 0.0
    %6846 = vadd.xlane.f32.xlu0 %v6845
    %v6847 = vpop.xlane.xlu0 %6846
    %v6848 = vlog2.pop %v6847
    %v6849 = vmul.f32 %v6848, 0.6931472
    %v6850 = vadd.f32 %v6841, %v6849
    %v6851 = vmul.f32 %v6850, %v61
    %vm6852 = vcmask 7168
    %v6853 = vsel %vm6852, %v6851, 0.0
    %v6854 = vrot.slane %v6853, 4
    %v6855 = vadd.f32 %v6853, %v6854
    %v6856 = vrot.slane %v6855, 2
    %v6857 = vadd.f32 %v6855, %v6856
    %v6858 = vrot.slane %v6857, 1
    %v6859 = vadd.f32 %v6857, %v6858
    %v6860 = vsub.f32 %v2577, %v6859
    %v6861 = vsub.f32 0.0, %v6860
    %v6862 = vmul.f32 %v6861, 0.5
    %vm6863 = vcmask 0
    %6864 = vst.msk [vmem:[#allocation2] sm:$0x1] %vm6863, %v6862
    %v6865 = vadd.f32 %v6829, %v2379
    %v6866 = vsel %vm2399, %v6865, -inf
    %6867 = vmax.xlane.f32.xlu0 %v6866
    %v6868 = vpop.xlane.xlu0 %6867
    %vm6869 = vcmp.ge.f32.partialorder %v6865, %v6868
    %v6870 = vsel %vm6869, %v2581, 1073741824
    %v6871 = vsel %vm2399, %v6870, 2147483647
    %v6872 = vand.u32 %v6871, 65535
    %v6873 = vshra.s32 %v6871, 16
    %v6874 = vcvt.s32.f32 %v6872
    %v6875 = vcvt.s32.f32 %v6873
    %6876 = vmin.xlane.f32.xlu0 %v6875
    %v6877 = vpop.xlane.xlu0 %6876
    %vm6878 = vcmp.eq.f32.partialorder %v6875, %v6877
    %v6879 = vsel %vm6878, %v6874, inf
    %6880 = vmin.xlane.f32.xlu0 %v6879
    %v6881 = vpop.xlane.xlu0 %6880
    %v6882 = vcvt.f32.s32 %v6881
    %v6883 = vcvt.f32.s32 %v6877
    %v6884 = vshll.u32 %v6883, 16
    %v6885 = vadd.s32 %v6884, %v6882
    %vm6886 = vcmp.eq.s32.totalorder %v2581, 7
    %v6887 = vsel %vm6886, %v6885, 0
    %vm6888 = vcmp.eq.s32.totalorder %v2581, %v6885
    %v6889 = vsel %vm6888, %v6837, 0
    %v6890 = vsel %vm2399, %v6889, 0
    %v6891 = vand.u32 %v6890, 65535
    %v6892 = vshrl.u32 %v6890, 16
    %v6893 = vcvt.s32.f32 %v6891
    %v6894 = vcvt.s32.f32 %v6892
    %6895 = vadd.xlane.f32.xlu0 %v6893
    %v6896 = vpop.xlane.xlu0 %6895
    %6897 = vadd.xlane.f32.xlu0 %v6894
    %v6898 = vpop.xlane.xlu0 %6897
    %v6899 = vcvt.f32.s32 %v6896
    %v6900 = vcvt.f32.s32 %v6898
    %v6901 = vshll.u32 %v6900, 16
    %v6902 = vadd.s32 %v6901, %v6899
    %vm6903 = vcmp.eq.s32.totalorder %v2581, 6
    %v6904 = vsel %vm6903, %v6902, %v6887
    %vm6905 = vcmp.eq.s32.totalorder %v2581, %v6902
    %v6906 = vsel %vm6905, %v6221, 0
    %v6907 = vsel %vm2399, %v6906, 0
    %v6908 = vand.u32 %v6907, 65535
    %v6909 = vshrl.u32 %v6907, 16
    %v6910 = vcvt.s32.f32 %v6908
    %v6911 = vcvt.s32.f32 %v6909
    %6912 = vadd.xlane.f32.xlu0 %v6910
    %v6913 = vpop.xlane.xlu0 %6912
    %6914 = vadd.xlane.f32.xlu0 %v6911
    %v6915 = vpop.xlane.xlu0 %6914
    %v6916 = vcvt.f32.s32 %v6913
    %v6917 = vcvt.f32.s32 %v6915
    %v6918 = vshll.u32 %v6917, 16
    %v6919 = vadd.s32 %v6918, %v6916
    %vm6920 = vcmp.eq.s32.totalorder %v2581, 5
    %v6921 = vsel %vm6920, %v6919, %v6904
    %vm6922 = vcmp.eq.s32.totalorder %v2581, %v6919
    %v6923 = vsel %vm6922, %v5605, 0
    %v6924 = vsel %vm2399, %v6923, 0
    %v6925 = vand.u32 %v6924, 65535
    %v6926 = vshrl.u32 %v6924, 16
    %v6927 = vcvt.s32.f32 %v6925
    %v6928 = vcvt.s32.f32 %v6926
    %6929 = vadd.xlane.f32.xlu0 %v6927
    %v6930 = vpop.xlane.xlu0 %6929
    %6931 = vadd.xlane.f32.xlu0 %v6928
    %v6932 = vpop.xlane.xlu0 %6931
    %v6933 = vcvt.f32.s32 %v6930
    %v6934 = vcvt.f32.s32 %v6932
    %v6935 = vshll.u32 %v6934, 16
    %v6936 = vadd.s32 %v6935, %v6933
    %vm6937 = vcmp.eq.s32.totalorder %v2581, 4
    %v6938 = vsel %vm6937, %v6936, %v6921
    %vm6939 = vcmp.eq.s32.totalorder %v2581, %v6936
    %v6940 = vsel %vm6939, %v4989, 0
    %v6941 = vsel %vm2399, %v6940, 0
    %v6942 = vand.u32 %v6941, 65535
    %v6943 = vshrl.u32 %v6941, 16
    %v6944 = vcvt.s32.f32 %v6942
    %v6945 = vcvt.s32.f32 %v6943
    %6946 = vadd.xlane.f32.xlu0 %v6944
    %v6947 = vpop.xlane.xlu0 %6946
    %6948 = vadd.xlane.f32.xlu0 %v6945
    %v6949 = vpop.xlane.xlu0 %6948
    %v6950 = vcvt.f32.s32 %v6947
    %v6951 = vcvt.f32.s32 %v6949
    %v6952 = vshll.u32 %v6951, 16
    %v6953 = vadd.s32 %v6952, %v6950
    %vm6954 = vcmp.eq.s32.totalorder %v2581, 3
    %v6955 = vsel %vm6954, %v6953, %v6938
    %vm6956 = vcmp.eq.s32.totalorder %v2581, %v6953
    %v6957 = vsel %vm6956, %v4373, 0
    %v6958 = vsel %vm2399, %v6957, 0
    %v6959 = vand.u32 %v6958, 65535
    %v6960 = vshrl.u32 %v6958, 16
    %v6961 = vcvt.s32.f32 %v6959
    %v6962 = vcvt.s32.f32 %v6960
    %6963 = vadd.xlane.f32.xlu0 %v6961
    %v6964 = vpop.xlane.xlu0 %6963
    %6965 = vadd.xlane.f32.xlu0 %v6962
    %v6966 = vpop.xlane.xlu0 %6965
    %v6967 = vcvt.f32.s32 %v6964
    %v6968 = vcvt.f32.s32 %v6966
    %v6969 = vshll.u32 %v6968, 16
    %v6970 = vadd.s32 %v6969, %v6967
    %vm6971 = vcmp.eq.s32.totalorder %v2581, 2
    %v6972 = vsel %vm6971, %v6970, %v6955
    %vm6973 = vcmp.eq.s32.totalorder %v2581, %v6970
    %v6974 = vsel %vm6973, %v3757, 0
    %v6975 = vsel %vm2399, %v6974, 0
    %v6976 = vand.u32 %v6975, 65535
    %v6977 = vshrl.u32 %v6975, 16
    %v6978 = vcvt.s32.f32 %v6976
    %v6979 = vcvt.s32.f32 %v6977
    %6980 = vadd.xlane.f32.xlu0 %v6978
    %v6981 = vpop.xlane.xlu0 %6980
    %6982 = vadd.xlane.f32.xlu0 %v6979
    %v6983 = vpop.xlane.xlu0 %6982
    %v6984 = vcvt.f32.s32 %v6981
    %v6985 = vcvt.f32.s32 %v6983
    %v6986 = vshll.u32 %v6985, 16
    %v6987 = vadd.s32 %v6986, %v6984
    %vm6988 = vcmp.eq.s32.totalorder %v2581, 1
    %v6989 = vsel %vm6988, %v6987, %v6972
    %vm6990 = vcmp.eq.s32.totalorder %v2581, %v6987
    %v6991 = vsel %vm6990, %v3141, 0
    %v6992 = vsel %vm2399, %v6991, 0
    %v6993 = vand.u32 %v6992, 65535
    %v6994 = vshrl.u32 %v6992, 16
    %v6995 = vcvt.s32.f32 %v6993
    %v6996 = vcvt.s32.f32 %v6994
    %6997 = vadd.xlane.f32.xlu0 %v6995
    %v6998 = vpop.xlane.xlu0 %6997
    %6999 = vadd.xlane.f32.xlu0 %v6996
    %v7000 = vpop.xlane.xlu0 %6999
    %v7001 = vcvt.f32.s32 %v6998
    %v7002 = vcvt.f32.s32 %v7000
    %v7003 = vshll.u32 %v7002, 16
    %v7004 = vadd.s32 %v7003, %v7001
    %vm7005 = vcmp.eq.s32.totalorder %v2581, 0
    %v7006 = vsel %vm7005, %v7004, %v6989
    %7007 = vst [vmem:[%s15] sm:$0xff] %v7006
    // Predicated region
    $region58: #{_forward_device.1} parent=1 // pred_check
      _
    $region59: #{_forward_device.1} parent=1 // pred_check_branch
      %7009 = sbr.rel (0) target = $region61
    $region60: #{_forward_device.1} parent=1 // pred_region
      %s7011 = ssub.s32 16, 16
      %7012 = vsyncadd [#allocation3], %s7011
      %s7014 = sshll.u32 [#allocation2], 4
      %s7015 = int_to_ptr.vmem [resolvable:$true] %s7014
      %7017 = dma.vmem_to_hbm [thread:$0]  %s7015, 16, %s14, [#allocation3]
    $region61: #{_forward_device.1} parent=1 // pred_fallthru
      _
    // Predicated region
    $region62: #{_forward_device.1} parent=1 // pred_check
      _
    $region63: #{_forward_device.1} parent=1 // pred_check_branch
      %7019 = sbr.rel (0) target = $region65
    $region64: #{_forward_device.1} parent=1 // pred_region
      _
    $region65: #{_forward_device.1} parent=1 // pred_fallthru
      _
    // Predicated region
    $region66: #{_forward_device.1} parent=1 // pred_check
      _
    $region67: #{_forward_device.1} parent=1 // pred_check_branch
      %7021 = sbr.rel (0) target = $region69
    $region68: #{_forward_device.1} parent=1 // pred_region
      %7022 = dma.done [#allocation3], 16
    $region69: #{_forward_device.1} parent=1 // pred_fallthru
      _
    // Predicated region
    $region70: #{_forward_device.1} parent=1 // pred_check
      _
    $region71: #{_forward_device.1} parent=1 // pred_check_branch
      %7024 = sbr.rel (0) target = $region73
    $region72: #{_forward_device.1} parent=1 // pred_region
      _
    $region73: #{_forward_device.1} parent=1 // pred_fallthru
      _
    %7025 = vsyncpa [#allocation3], 1

</llo_original>
